<compile_context>
chip_gen: v7x
topology: tpu7x:2x2x1
jax: 0.10.0
libtpu: 0.0.40
codegen_flags: <defaults>
</compile_context>

<pallas_src>
import functools

import jax
import jax.numpy as jnp
from jax import lax
from jax.experimental import pallas as pl
from jax.experimental.pallas import tpu as pltpu

EPS = 1e-5
LANE = 128


def _round_up(v, m):
    return (v + m - 1) // m * m


def _pick_strip_height(H, W):
    """Smallest divisor-of-H multiple of 8 with TH*W >= 256 (fills the MXU M
    dim on v6e/v7x); falls back to the largest such divisor, then to H."""
    divs = [th for th in range(8, H + 1, 8) if H % th == 0]
    if not divs:
        # TODO(synk): pad H to a multiple of 8 instead of degenerating to a
        # single full-image strip for odd image heights.
        return H
    for th in divs:
        if th * W >= 256:
            return th
    return divs[-1]


def _vmem_limit_bytes():
    """Generation-aware VMEM budget: leave headroom on 64 MiB (v7x-class)
    parts, be generous on 128 MiB (v5e/v6e) parts."""
    cap = 128 * 1024 * 1024
    try:
        cap = int(pltpu.get_tpu_info().vmem_capacity_bytes)
    except Exception:
        pass
    return 40 * 1024 * 1024 if cap <= 64 * 1024 * 1024 else 64 * 1024 * 1024


# ----------------------------------------------------------------------------
# Fused kernel: [optional BN+ReLU on the input read] -> 3x3 SAME conv ->
#               per-batch per-channel sum / sum-of-squares accumulation.
#
# Grid = (N, H // TH).  The input BlockSpec delivers the full (H, W, CIN)
# bf16 image of the current batch element (same block across the strip axis,
# DMA'd once per batch element); the kernel slices a TH-row strip plus a
# 1-row halo and masks the halo at the image border, reproducing zero
# `padding=1` without a padded HBM copy.
# ----------------------------------------------------------------------------
def _conv3x3_fused_kernel(scale_ref, shift_ref, x_ref, w_ref,
                          h_ref, sum_ref, ssq_ref,
                          *, H, W, TH, CIN, COUT, bn_relu_input):
    t = pl.program_id(1)
    num_t = pl.num_programs(1)

    # Per-batch (1,1,COUT) stat accumulators stay resident across the row
    # strips of this batch element: init on the first strip.
    @pl.when(t == 0)
    def _init():
        sum_ref[...] = jnp.zeros_like(sum_ref)
        ssq_ref[...] = jnp.zeros_like(ssq_ref)

    r0 = pl.multiple_of(t * TH, TH)            # first output row of the strip

    # Strip rows + 1-row halo above/below (clamped reads, masked below).
    center = x_ref[0, pl.ds(r0, TH), :, :]                        # (TH, W, CIN)
    top = x_ref[0, pl.ds(jnp.maximum(r0 - 1, 0), 1), :, :]        # (1,  W, CIN)
    bot = x_ref[0, pl.ds(jnp.minimum(r0 + TH, H - 1), 1), :, :]   # (1,  W, CIN)

    if bn_relu_input:
        # Previous BatchNorm (per-channel scale/shift) + ReLU folded into the
        # read of this conv's input.  Math explicitly in f32 (v5e has no
        # native bf16 VPU path; matches the module's f32 BN semantics).
        scale = scale_ref[...].reshape(1, 1, CIN)
        shift = shift_ref[...].reshape(1, 1, CIN)
        center = jnp.maximum(center.astype(jnp.float32) * scale + shift, 0.0)
        top = jnp.maximum(top.astype(jnp.float32) * scale + shift, 0.0)
        bot = jnp.maximum(bot.astype(jnp.float32) * scale + shift, 0.0)

    # Zero the halo rows where they fall outside the image.  This happens
    # AFTER the BN/ReLU fold so the zero padding matches PyTorch (padding is
    # applied to the post-activation tensor).
    top = top * (t > 0).astype(top.dtype)
    bot = bot * (t < num_t - 1).astype(bot.dtype)

    xs = jnp.concatenate([top.astype(jnp.bfloat16),
                          center.astype(jnp.bfloat16),
                          bot.astype(jnp.bfloat16)], axis=0)      # (TH+2, W, CIN)
    rows = (TH + 2) * W
    xf = xs.reshape(rows, CIN)                 # row-major over (row, col)

    # kx = 0 / 2 taps: shift by one flattened position and zero the border
    # column (row-boundary bleed lands only in the masked border columns).
    # TODO(synk): on v6e/v7x these two shifted copies can move to the XLU
    # slot via pltpu.roll(xf, shift, axis=0); kept as slice+concat here.
    zrow = jnp.zeros((1, CIN), jnp.bfloat16)
    col = lax.broadcasted_iota(jnp.int32, (rows, 1), 0) % W
    left = jnp.concatenate([zrow, xf[:rows - 1]], axis=0)
    left = jnp.where(col != 0, left, jnp.zeros_like(left))
    right = jnp.concatenate([xf[1:], zrow], axis=0)
    right = jnp.where(col != W - 1, right, jnp.zeros_like(right))

    # One lane-dense (rows, 3*CIN) operand; 3 accumulated MXU dots over ky
    # with K = 3*CIN (replaces the old (TH*W, 9*CIN) patches buffer).
    xcat = jnp.concatenate([left, xf, right], axis=-1)

    acc = jnp.zeros((TH * W, COUT), jnp.float32)
    for ky in range(3):
        acc += jnp.dot(xcat[ky * W:ky * W + TH * W, :], w_ref[ky],
                       preferred_element_type=jnp.float32)

    # bf16 storage of the pre-BN conv output (the dominant HBM bytes); BN
    # statistics accumulate from the f32 accumulator.
    h_ref[...] = acc.reshape(1, TH, W, COUT).astype(h_ref.dtype)
    # TODO(synk): for very large N*H*W switch the single-pass E[x^2]-E[x]^2
    # variance to a Welford / two-pass mean-centered formulation.
    sum_ref[...] += jnp.sum(acc, axis=0, keepdims=True).reshape(1, 1, COUT)
    ssq_ref[...] += jnp.sum(acc * acc, axis=0, keepdims=True).reshape(1, 1, COUT)


def _conv3x3_bn_stats(x, w3, scale, shift, *, bn_relu_input):
    """x: (N, H, W, CIN) bf16;  w3: (3, 3*CIN, COUT) bf16.

    Returns (h, sum, sumsq): bf16 pre-BN conv output and per-batch f32
    per-channel statistics of shape (N, 1, COUT)."""
    N, H, W, CIN = x.shape
    _, K3, COUT = w3.shape
    assert K3 == 3 * CIN
    TH = _pick_strip_height(H, W)
    T = H // TH

    kernel = functools.partial(
        _conv3x3_fused_kernel, H=H, W=W, TH=TH, CIN=CIN, COUT=COUT,
        bn_relu_input=bn_relu_input)

    return pl.pallas_call(
        kernel,
        out_shape=(jax.ShapeDtypeStruct((N, H, W, COUT), jnp.bfloat16),
                   jax.ShapeDtypeStruct((N, 1, COUT), jnp.float32),
                   jax.ShapeDtypeStruct((N, 1, COUT), jnp.float32)),
        grid=(N, T),
        in_specs=[
            pl.BlockSpec((1, CIN), lambda n, t: (0, 0)),          # BN scale
            pl.BlockSpec((1, CIN), lambda n, t: (0, 0)),          # BN shift
            # Full image of the current batch element is resident (DMA'd once
            # per n); the kernel slices out the strip + halo.
            # TODO(synk): for very large H*W*C on v7x switch to haloed
            # (1, TH+2, W, CIN) strip blocks so only the strip is resident
            # and the t axis pipelines.
            pl.BlockSpec((1, H, W, CIN), lambda n, t: (n, 0, 0, 0)),
            # TODO(synk): pipeline_mode=pl.Buffered(1) on this constant-index
            # weight block would halve its VMEM cost on v7x.
            pl.BlockSpec((3, 3 * CIN, COUT), lambda n, t: (0, 0, 0)),
        ],
        out_specs=(
            pl.BlockSpec((1, TH, W, COUT), lambda n, t: (n, t, 0, 0)),
            pl.BlockSpec((1, 1, COUT), lambda n, t: (n, 0, 0)),   # per-n sum
            pl.BlockSpec((1, 1, COUT), lambda n, t: (n, 0, 0)),   # per-n sumsq
        ),
        compiler_params=pltpu.CompilerParams(
            # Batch axis shards across TensorCores (v7x megacore); the strip
            # axis carries the resident per-batch stat accumulators.
            dimension_semantics=("parallel", "arbitrary"),
            vmem_limit_bytes=_vmem_limit_bytes()),
    )(scale, shift, x, w3)


def _bn_scale_shift(s, q, count, gamma, beta):
    """Training-mode BN folded into per-channel scale/shift (f32)."""
    mean = s / count
    var = jnp.maximum(q / count - mean * mean, 0.0)   # biased batch variance
    inv = lax.rsqrt(var + EPS)
    scale = gamma * inv
    shift = beta - mean * scale
    return scale, shift


# ----------------------------------------------------------------------------
# DoubleConv forward (NCHW in / NCHW out, like the PyTorch module).
# ----------------------------------------------------------------------------
def double_conv(x_nchw, params):
    w1, g1, b1, w2, g2, b2 = params
    N, Cin, H, W = x_nchw.shape
    Cout = w1.shape[-1]
    CPI = _round_up(Cin, LANE)
    CPO = _round_up(Cout, LANE)
    count = float(N * H * W)

    # Boundary layout conversion: NCHW -> NHWC, lane-pad channels to 128,
    # bf16 for the MXU/DMA.  XLA fuses transpose+pad+cast into one pass.
    # TODO(synk): when chaining DoubleConv blocks keep this padded-NHWC bf16
    # layout across blocks and only convert at model boundaries.
    x = jnp.transpose(x_nchw.astype(jnp.float32), (0, 2, 3, 1))
    x = jnp.pad(x, ((0, 0), (0, 0), (0, 0), (0, CPI - Cin))).astype(jnp.bfloat16)

    # Weights: pad channels, keep ky as the leading dim and fold the kx taps
    # into the K dim -> (3, 3*CIN, COUT) bf16 per conv.
    w1p = jnp.pad(w1.astype(jnp.float32),
                  ((0, 0), (0, 0), (0, CPI - Cin), (0, CPO - Cout)))
    w1p = w1p.reshape(3, 3 * CPI, CPO).astype(jnp.bfloat16)
    w2p = jnp.pad(w2.astype(jnp.float32),
                  ((0, 0), (0, 0), (0, CPO - Cout), (0, CPO - Cout)))
    w2p = w2p.reshape(3, 3 * CPO, CPO).astype(jnp.bfloat16)

    g1p = jnp.pad(g1.astype(jnp.float32), (0, CPO - Cout)).reshape(1, CPO)
    b1p = jnp.pad(b1.astype(jnp.float32), (0, CPO - Cout)).reshape(1, CPO)
    g2p = jnp.pad(g2.astype(jnp.float32), (0, CPO - Cout)).reshape(1, CPO)
    b2p = jnp.pad(b2.astype(jnp.float32), (0, CPO - Cout)).reshape(1, CPO)

    dummy = jnp.zeros((1, CPI), jnp.float32)

    # K1: conv1 + per-batch BN1 statistics (one fused pallas_call).
    h1, s1, q1 = _conv3x3_bn_stats(x, w1p, dummy, dummy, bn_relu_input=False)
    scale1, shift1 = _bn_scale_shift(s1.sum(axis=0), q1.sum(axis=0),
                                     count, g1p, b1p)

    # K2: BN1-apply + ReLU folded into conv2's input read; conv2 + BN2 stats.
    h2, s2, q2 = _conv3x3_bn_stats(h1, w2p, scale1, shift1, bn_relu_input=True)
    scale2, shift2 = _bn_scale_shift(s2.sum(axis=0), q2.sum(axis=0),
                                     count, g2p, b2p)

    # Epilogue: BN2-apply + ReLU + channel-unpad + NHWC->NCHW transpose, all
    # fused by XLA into a single HBM pass over h2.
    y = jnp.maximum(
        h2.astype(jnp.float32) * scale2.reshape(1, 1, 1, CPO)
        + shift2.reshape(1, 1, 1, CPO), 0.0)
    return jnp.transpose(y[..., :Cout], (0, 3, 1, 2))     # back to NCHW


# ----------------------------------------------------------------------------
# Pure-JAX reference with matching precision (bf16 conv operands, f32
# accumulation / BN math, bf16 storage of the pre-BN conv outputs).
# ----------------------------------------------------------------------------
def double_conv_ref(x_nchw, params):
    w1, g1, b1, w2, g2, b2 = params
    x = jnp.transpose(x_nchw.astype(jnp.float32), (0, 2, 3, 1))

    def block(h, w, g, b):
        c = lax.conv_general_dilated(
            h.astype(jnp.bfloat16), w.astype(jnp.bfloat16),
            window_strides=(1, 1), padding="SAME",
            dimension_numbers=("NHWC", "HWIO", "NHWC"),
            preferred_element_type=jnp.float32)
        mean = jnp.mean(c, axis=(0, 1, 2), keepdims=True)
        var = jnp.mean((c - mean) ** 2, axis=(0, 1, 2), keepdims=True)
        scale = g * lax.rsqrt(var + EPS)
        shift = b - mean * scale
        # Mirror the kernel's bf16 storage of the pre-BN conv output.
        c = c.astype(jnp.bfloat16).astype(jnp.float32)
        return jnp.maximum(c * scale + shift, 0.0)

    h = block(x, w1, g1, b1)
    h = block(h, w2, g2, b2)
    return jnp.transpose(h, (0, 3, 1, 2))


if __name__ == "__main__":
    N, Cin, Cout, H, W = 2, 4, 8, 16, 16

    key = jax.random.PRNGKey(0)
    kx, kw1, kw2, kg1, kb1, kg2, kb2 = jax.random.split(key, 7)

    x = jax.random.normal(kx, (N, Cin, H, W), dtype=jnp.float32)
    w1 = jax.random.normal(kw1, (3, 3, Cin, Cout), jnp.float32) * (
        2.0 / (9 * Cin)) ** 0.5
    w2 = jax.random.normal(kw2, (3, 3, Cout, Cout), jnp.float32) * (
        2.0 / (9 * Cout)) ** 0.5
    g1 = 1.0 + 0.1 * jax.random.normal(kg1, (Cout,), jnp.float32)
    b1 = 0.1 * jax.random.normal(kb1, (Cout,), jnp.float32)
    g2 = 1.0 + 0.1 * jax.random.normal(kg2, (Cout,), jnp.float32)
    b2 = 0.1 * jax.random.normal(kb2, (Cout,), jnp.float32)
    params = (w1, g1, b1, w2, g2, b2)

    out = jax.block_until_ready(jax.jit(double_conv)(x, params))
    ref = jax.block_until_ready(jax.jit(double_conv_ref)(x, params))

    assert out.shape == (N, Cout, H, W), out.shape
    err = float(jnp.max(jnp.abs(out - ref)))
    assert err < 1e-2, f"max abs err {err}"
    print("KERNEL_OK")
</pallas_src>

<mosaic_0001>
module attributes {stable_mosaic.version = 11 : i64} {
  func.func @_conv3x3_fused_kernel(%arg0: i32, %arg1: i32, %arg2: memref<1x128xf32, #tpu.memory_space<vmem>>, %arg3: memref<1x128xf32, #tpu.memory_space<vmem>>, %arg4: memref<1x16x16x128xbf16, #tpu.memory_space<vmem>>, %arg5: memref<3x384x128xbf16, #tpu.memory_space<vmem>>, %arg6: memref<1x16x16x128xbf16, #tpu.memory_space<vmem>>, %arg7: memref<1x1x128xf32, #tpu.memory_space<vmem>>, %arg8: memref<1x1x128xf32, #tpu.memory_space<vmem>>) attributes {dimension_semantics = [#tpu.dimension_semantics<parallel>, #tpu.dimension_semantics<arbitrary>], iteration_bounds = array<i64: 2, 1>, scalar_prefetch = 0 : i64, scratch_operands = 0 : i64, tpu.core_type = #tpu.core_type<tc>, window_params = [{pipeline_mode = #tpu.pipeline_mode<synchronous>, transform_indices = @transform_0, window_bounds = array<i64: 1, 128>}, {pipeline_mode = #tpu.pipeline_mode<synchronous>, transform_indices = @transform_1, window_bounds = array<i64: 1, 128>}, {transform_indices = @transform_2, window_bounds = array<i64: 1, 16, 16, 128>}, {pipeline_mode = #tpu.pipeline_mode<synchronous>, transform_indices = @transform_3, window_bounds = array<i64: 3, 384, 128>}, {transform_indices = @transform_4, window_bounds = array<i64: 1, 16, 16, 128>}, {transform_indices = @transform_5, window_bounds = array<i64: 1, 1, 128>}, {transform_indices = @transform_6, window_bounds = array<i64: 1, 1, 128>}]} {
    %c0_i32 = arith.constant 0 : i32
    %0 = arith.cmpi eq, %arg1, %c0_i32 : i32
    %1 = arith.extui %0 : i1 to i32
    %c0_i32_0 = arith.constant 0 : i32
    %2 = arith.cmpi ne, %1, %c0_i32_0 : i32
    scf.if %2 {
      %cst_52 = arith.constant 0.000000e+00 : f32
      %99 = vector.broadcast %cst_52 : f32 to vector<1x1x128xf32>
      %c0_53 = arith.constant 0 : index
      %c0_54 = arith.constant 0 : index
      %c0_55 = arith.constant 0 : index
      %100 = vector.load %arg7[%c0_53, %c0_54, %c0_55] : memref<1x1x128xf32, #tpu.memory_space<vmem>>, vector<1x1x128xf32>
      tpu.vector_store %arg7[%c0_53, %c0_54, %c0_55], %99 {strides = array<i32>} : memref<1x1x128xf32, #tpu.memory_space<vmem>>, vector<1x1x128xf32>,
      %cst_56 = arith.constant 0.000000e+00 : f32
      %101 = vector.broadcast %cst_56 : f32 to vector<1x1x128xf32>
      %c0_57 = arith.constant 0 : index
      %c0_58 = arith.constant 0 : index
      %c0_59 = arith.constant 0 : index
      %102 = vector.load %arg8[%c0_57, %c0_58, %c0_59] : memref<1x1x128xf32, #tpu.memory_space<vmem>>, vector<1x1x128xf32>
      tpu.vector_store %arg8[%c0_57, %c0_58, %c0_59], %101 {strides = array<i32>} : memref<1x1x128xf32, #tpu.memory_space<vmem>>, vector<1x1x128xf32>,
    } else {
    }
    %c16_i32 = arith.constant 16 : i32
    %3 = arith.muli %arg1, %c16_i32 : i32
    %4 = tpu.assume_multiple %3, 16 : i32
    %c0 = arith.constant 0 : index
    %5 = arith.index_cast %4 : i32 to index
    %c0_1 = arith.constant 0 : index
    %c0_2 = arith.constant 0 : index
    %6 = vector.load %arg4[%c0, %5, %c0_1, %c0_2] : memref<1x16x16x128xbf16, #tpu.memory_space<vmem>>, vector<1x16x16x128xbf16>
    %7 = vector.shape_cast %6 : vector<1x16x16x128xbf16> to vector<16x16x128xbf16>
    %c1_i32 = arith.constant 1 : i32
    %8 = arith.subi %4, %c1_i32 : i32
    %c0_i32_3 = arith.constant 0 : i32
    %9 = arith.maxsi %8, %c0_i32_3 : i32
    %c0_4 = arith.constant 0 : index
    %10 = arith.index_cast %9 : i32 to index
    %c0_5 = arith.constant 0 : index
    %c0_6 = arith.constant 0 : index
    %11 = vector.load %arg4[%c0_4, %10, %c0_5, %c0_6] : memref<1x16x16x128xbf16, #tpu.memory_space<vmem>>, vector<1x1x16x128xbf16>
    %12 = vector.shape_cast %11 : vector<1x1x16x128xbf16> to vector<1x16x128xbf16>
    %c16_i32_7 = arith.constant 16 : i32
    %13 = arith.addi %4, %c16_i32_7 : i32
    %c15_i32 = arith.constant 15 : i32
    %14 = arith.minsi %13, %c15_i32 : i32
    %c0_8 = arith.constant 0 : index
    %15 = arith.index_cast %14 : i32 to index
    %c0_9 = arith.constant 0 : index
    %c0_10 = arith.constant 0 : index
    %16 = vector.load %arg4[%c0_8, %15, %c0_9, %c0_10] : memref<1x16x16x128xbf16, #tpu.memory_space<vmem>>, vector<1x1x16x128xbf16>
    %17 = vector.shape_cast %16 : vector<1x1x16x128xbf16> to vector<1x16x128xbf16>
    %c0_i32_11 = arith.constant 0 : i32
    %18 = arith.cmpi sgt, %arg1, %c0_i32_11 : i32
    %19 = arith.extui %18 : i1 to i32
    %20 = arith.sitofp %19 : i32 to f32
    %21 = arith.truncf %20 : f32 to bf16
    %22 = vector.broadcast %21 : bf16 to vector<1x16x128xbf16>
    %23 = arith.mulf %12, %22 : vector<1x16x128xbf16>
    %c0_i32_12 = arith.constant 0 : i32
    %24 = arith.cmpi slt, %arg1, %c0_i32_12 : i32
    %25 = arith.extui %24 : i1 to i32
    %26 = arith.sitofp %25 : i32 to f32
    %27 = arith.truncf %26 : f32 to bf16
    %28 = vector.broadcast %27 : bf16 to vector<1x16x128xbf16>
    %29 = arith.mulf %17, %28 : vector<1x16x128xbf16>
    %30 = tpu.concatenate %23, %7, %29 in 0 : vector<1x16x128xbf16>, vector<16x16x128xbf16>, vector<1x16x128xbf16> -> vector<18x16x128xbf16>
    %31 = vector.shape_cast %30 : vector<18x16x128xbf16> to vector<288x128xbf16>
    %cst = arith.constant 0.000000e+00 : bf16
    %32 = vector.broadcast %cst : bf16 to vector<1x128xbf16>
    %33 = tpu.iota {dimensions = array<i32: 0>} : vector<288x1xi32>
    %c16_i32_13 = arith.constant 16 : i32
    %c0_i32_14 = arith.constant 0 : i32
    %34 = arith.cmpi eq, %c16_i32_13, %c0_i32_14 : i32
    %c1_i32_15 = arith.constant 1 : i32
    %35 = arith.select %34, %c1_i32_15, %c16_i32_13 : i32
    %36 = vector.broadcast %35 : i32 to vector<288x1xi32>
    %37 = arith.remsi %33, %36 : vector<288x1xi32>
    %c0_i32_16 = arith.constant 0 : i32
    %38 = vector.broadcast %c0_i32_16 : i32 to vector<288x1xi32>
    %39 = arith.cmpi ne, %37, %38 : vector<288x1xi32>
    %c0_i32_17 = arith.constant 0 : i32
    %40 = vector.broadcast %c0_i32_17 : i32 to vector<288x1xi32>
    %41 = arith.cmpi slt, %37, %40 : vector<288x1xi32>
    %c0_i32_18 = arith.constant 0 : i32
    %42 = arith.cmpi slt, %35, %c0_i32_18 : i32
    %43 = vector.broadcast %42 : i1 to vector<288x1xi1>
    %44 = vector.broadcast %43 : vector<288x1xi1> to vector<288x1xi1>
    %45 = arith.xori %41, %44 : vector<288x1xi1>
    %46 = arith.andi %45, %39 : vector<288x1xi1>
    %47 = vector.broadcast %35 : i32 to vector<288x1xi32>
    %48 = arith.addi %37, %47 : vector<288x1xi32>
    %49 = arith.select %46, %48, %37 : vector<288x1xi1>, vector<288x1xi32>
    %50 = vector.extract_strided_slice %31 {offsets = [0, 0], sizes = [287, 128], strides = [1, 1]} : vector<288x128xbf16> to vector<287x128xbf16>
    %51 = tpu.concatenate %32, %50 in 0 : vector<1x128xbf16>, vector<287x128xbf16> -> vector<288x128xbf16>
    %c0_i32_19 = arith.constant 0 : i32
    %52 = vector.broadcast %c0_i32_19 : i32 to vector<288x1xi32>
    %53 = arith.cmpi ne, %49, %52 : vector<288x1xi32>
    %cst_20 = arith.constant 0.000000e+00 : bf16
    %54 = vector.broadcast %cst_20 : bf16 to vector<288x128xbf16>
    %55 = vector.shape_cast %53 : vector<288x1xi1> to vector<288x1xi1>
    %56 = vector.broadcast %55 : vector<288x1xi1> to vector<288x128xi1>
    %57 = arith.select %56, %51, %54 : vector<288x128xi1>, vector<288x128xbf16>
    %58 = vector.extract_strided_slice %31 {offsets = [1, 0], sizes = [287, 128], strides = [1, 1]} : vector<288x128xbf16> to vector<287x128xbf16>
    %59 = tpu.concatenate %58, %32 in 0 : vector<287x128xbf16>, vector<1x128xbf16> -> vector<288x128xbf16>
    %c15_i32_21 = arith.constant 15 : i32
    %60 = vector.broadcast %c15_i32_21 : i32 to vector<288x1xi32>
    %61 = arith.cmpi ne, %49, %60 : vector<288x1xi32>
    %cst_22 = arith.constant 0.000000e+00 : bf16
    %62 = vector.broadcast %cst_22 : bf16 to vector<288x128xbf16>
    %63 = vector.shape_cast %61 : vector<288x1xi1> to vector<288x1xi1>
    %64 = vector.broadcast %63 : vector<288x1xi1> to vector<288x128xi1>
    %65 = arith.select %64, %59, %62 : vector<288x128xi1>, vector<288x128xbf16>
    %66 = tpu.concatenate %57, %31, %65 in 1 : vector<288x128xbf16>, vector<288x128xbf16>, vector<288x128xbf16> -> vector<288x384xbf16>
    %cst_23 = arith.constant 0.000000e+00 : f32
    %67 = vector.broadcast %cst_23 : f32 to vector<256x128xf32>
    %68 = vector.extract_strided_slice %66 {offsets = [0, 0], sizes = [256, 384], strides = [1, 1]} : vector<288x384xbf16> to vector<256x384xbf16>
    %c0_24 = arith.constant 0 : index
    %c0_25 = arith.constant 0 : index
    %c0_26 = arith.constant 0 : index
    %69 = vector.load %arg5[%c0_24, %c0_25, %c0_26] : memref<3x384x128xbf16, #tpu.memory_space<vmem>>, vector<1x384x128xbf16>
    %70 = vector.shape_cast %69 : vector<1x384x128xbf16> to vector<384x128xbf16>
    %cst_27 = arith.constant dense<0.000000e+00> : vector<256x128xf32>
    %71 = tpu.matmul %68, %70, %cst_27 {dimension_numbers = #tpu.dot_dimension_numbers<[1], [0], [0], [1], [0, 0, 1, 1], [], []>} : vector<256x384xbf16>, vector<384x128xbf16>, vector<256x128xf32> -> vector<256x128xf32>
    %72 = arith.addf %67, %71 : vector<256x128xf32>
    %73 = vector.extract_strided_slice %66 {offsets = [16, 0], sizes = [256, 384], strides = [1, 1]} : vector<288x384xbf16> to vector<256x384xbf16>
    %c1 = arith.constant 1 : index
    %c0_28 = arith.constant 0 : index
    %c0_29 = arith.constant 0 : index
    %74 = vector.load %arg5[%c1, %c0_28, %c0_29] : memref<3x384x128xbf16, #tpu.memory_space<vmem>>, vector<1x384x128xbf16>
    %75 = vector.shape_cast %74 : vector<1x384x128xbf16> to vector<384x128xbf16>
    %cst_30 = arith.constant dense<0.000000e+00> : vector<256x128xf32>
    %76 = tpu.matmul %73, %75, %cst_30 {dimension_numbers = #tpu.dot_dimension_numbers<[1], [0], [0], [1], [0, 0, 1, 1], [], []>} : vector<256x384xbf16>, vector<384x128xbf16>, vector<256x128xf32> -> vector<256x128xf32>
    %77 = arith.addf %72, %76 : vector<256x128xf32>
    %78 = vector.extract_strided_slice %66 {offsets = [32, 0], sizes = [256, 384], strides = [1, 1]} : vector<288x384xbf16> to vector<256x384xbf16>
    %c2 = arith.constant 2 : index
    %c0_31 = arith.constant 0 : index
    %c0_32 = arith.constant 0 : index
    %79 = vector.load %arg5[%c2, %c0_31, %c0_32] : memref<3x384x128xbf16, #tpu.memory_space<vmem>>, vector<1x384x128xbf16>
    %80 = vector.shape_cast %79 : vector<1x384x128xbf16> to vector<384x128xbf16>
    %cst_33 = arith.constant dense<0.000000e+00> : vector<256x128xf32>
    %81 = tpu.matmul %78, %80, %cst_33 {dimension_numbers = #tpu.dot_dimension_numbers<[1], [0], [0], [1], [0, 0, 1, 1], [], []>} : vector<256x384xbf16>, vector<384x128xbf16>, vector<256x128xf32> -> vector<256x128xf32>
    %82 = arith.addf %77, %81 : vector<256x128xf32>
    %83 = vector.shape_cast %82 : vector<256x128xf32> to vector<1x16x16x128xf32>
    %84 = arith.truncf %83 : vector<1x16x16x128xf32> to vector<1x16x16x128xbf16>
    %c0_34 = arith.constant 0 : index
    %c0_35 = arith.constant 0 : index
    %c0_36 = arith.constant 0 : index
    %c0_37 = arith.constant 0 : index
    %85 = vector.load %arg6[%c0_34, %c0_35, %c0_36, %c0_37] : memref<1x16x16x128xbf16, #tpu.memory_space<vmem>>, vector<1x16x16x128xbf16>
    tpu.vector_store %arg6[%c0_34, %c0_35, %c0_36, %c0_37], %84 {strides = array<i32>} : memref<1x16x16x128xbf16, #tpu.memory_space<vmem>>, vector<1x16x16x128xbf16>,
    %c0_38 = arith.constant 0 : index
    %c0_39 = arith.constant 0 : index
    %c0_40 = arith.constant 0 : index
    %86 = vector.load %arg7[%c0_38, %c0_39, %c0_40] : memref<1x1x128xf32, #tpu.memory_space<vmem>>, vector<1x1x128xf32>
    %cst_41 = arith.constant dense<0.000000e+00> : vector<128xf32>
    %87 = vector.multi_reduction <add>, %82, %cst_41 [0] : vector<256x128xf32> to vector<128xf32>
    %88 = vector.shape_cast %87 : vector<128xf32> to vector<1x128xf32>
    %89 = vector.shape_cast %88 : vector<1x128xf32> to vector<1x1x128xf32>
    %90 = arith.addf %86, %89 : vector<1x1x128xf32>
    %c0_42 = arith.constant 0 : index
    %c0_43 = arith.constant 0 : index
    %c0_44 = arith.constant 0 : index
    %91 = vector.load %arg7[%c0_42, %c0_43, %c0_44] : memref<1x1x128xf32, #tpu.memory_space<vmem>>, vector<1x1x128xf32>
    tpu.vector_store %arg7[%c0_42, %c0_43, %c0_44], %90 {strides = array<i32>} : memref<1x1x128xf32, #tpu.memory_space<vmem>>, vector<1x1x128xf32>,
    %c0_45 = arith.constant 0 : index
    %c0_46 = arith.constant 0 : index
    %c0_47 = arith.constant 0 : index
    %92 = vector.load %arg8[%c0_45, %c0_46, %c0_47] : memref<1x1x128xf32, #tpu.memory_space<vmem>>, vector<1x1x128xf32>
    %93 = arith.mulf %82, %82 : vector<256x128xf32>
    %cst_48 = arith.constant dense<0.000000e+00> : vector<128xf32>
    %94 = vector.multi_reduction <add>, %93, %cst_48 [0] : vector<256x128xf32> to vector<128xf32>
    %95 = vector.shape_cast %94 : vector<128xf32> to vector<1x128xf32>
    %96 = vector.shape_cast %95 : vector<1x128xf32> to vector<1x1x128xf32>
    %97 = arith.addf %92, %96 : vector<1x1x128xf32>
    %c0_49 = arith.constant 0 : index
    %c0_50 = arith.constant 0 : index
    %c0_51 = arith.constant 0 : index
    %98 = vector.load %arg8[%c0_49, %c0_50, %c0_51] : memref<1x1x128xf32, #tpu.memory_space<vmem>>, vector<1x1x128xf32>
    tpu.vector_store %arg8[%c0_49, %c0_50, %c0_51], %97 {strides = array<i32>} : memref<1x1x128xf32, #tpu.memory_space<vmem>>, vector<1x1x128xf32>,
    return
  }
  func.func @transform_0(%arg0: i32, %arg1: i32) -> (i32, i32) {
    %c0_i32 = arith.constant 0 : i32
    %c0_i32_0 = arith.constant 0 : i32
    %c0_i32_1 = arith.constant 0 : i32
    return %c0_i32, %c0_i32_0 : i32, i32
  }
  func.func @transform_1(%arg0: i32, %arg1: i32) -> (i32, i32) {
    %c0_i32 = arith.constant 0 : i32
    %c0_i32_0 = arith.constant 0 : i32
    %c0_i32_1 = arith.constant 0 : i32
    return %c0_i32, %c0_i32_0 : i32, i32
  }
  func.func @transform_2(%arg0: i32, %arg1: i32) -> (i32, i32, i32, i32) {
    %c0_i32 = arith.constant 0 : i32
    %c0_i32_0 = arith.constant 0 : i32
    %c0_i32_1 = arith.constant 0 : i32
    %c0_i32_2 = arith.constant 0 : i32
    return %arg0, %c0_i32, %c0_i32_0, %c0_i32_1 : i32, i32, i32, i32
  }
  func.func @transform_3(%arg0: i32, %arg1: i32) -> (i32, i32, i32) {
    %c0_i32 = arith.constant 0 : i32
    %c0_i32_0 = arith.constant 0 : i32
    %c0_i32_1 = arith.constant 0 : i32
    %c0_i32_2 = arith.constant 0 : i32
    return %c0_i32, %c0_i32_0, %c0_i32_1 : i32, i32, i32
  }
  func.func @transform_4(%arg0: i32, %arg1: i32) -> (i32, i32, i32, i32) {
    %c0_i32 = arith.constant 0 : i32
    %c0_i32_0 = arith.constant 0 : i32
    %c0_i32_1 = arith.constant 0 : i32
    return %arg0, %arg1, %c0_i32, %c0_i32_0 : i32, i32, i32, i32
  }
  func.func @transform_5(%arg0: i32, %arg1: i32) -> (i32, i32, i32) {
    %c0_i32 = arith.constant 0 : i32
    %c0_i32_0 = arith.constant 0 : i32
    %c0_i32_1 = arith.constant 0 : i32
    return %arg0, %c0_i32, %c0_i32_0 : i32, i32, i32
  }
  func.func @transform_6(%arg0: i32, %arg1: i32) -> (i32, i32, i32) {
    %c0_i32 = arith.constant 0 : i32
    %c0_i32_0 = arith.constant 0 : i32
    %c0_i32_1 = arith.constant 0 : i32
    return %arg0, %c0_i32, %c0_i32_0 : i32, i32, i32
  }
}

module attributes {stable_mosaic.version = 11 : i64} {
  func.func @_conv3x3_fused_kernel(%arg0: i32, %arg1: i32, %arg2: memref<1x128xf32, #tpu.memory_space<vmem>>, %arg3: memref<1x128xf32, #tpu.memory_space<vmem>>, %arg4: memref<1x16x16x128xbf16, #tpu.memory_space<vmem>>, %arg5: memref<3x384x128xbf16, #tpu.memory_space<vmem>>, %arg6: memref<1x16x16x128xbf16, #tpu.memory_space<vmem>>, %arg7: memref<1x1x128xf32, #tpu.memory_space<vmem>>, %arg8: memref<1x1x128xf32, #tpu.memory_space<vmem>>) attributes {dimension_semantics = [#tpu.dimension_semantics<parallel>, #tpu.dimension_semantics<arbitrary>], iteration_bounds = array<i64: 2, 1>, scalar_prefetch = 0 : i64, scratch_operands = 0 : i64, tpu.core_type = #tpu.core_type<tc>, window_params = [{pipeline_mode = #tpu.pipeline_mode<synchronous>, transform_indices = @transform_0, window_bounds = array<i64: 1, 128>}, {pipeline_mode = #tpu.pipeline_mode<synchronous>, transform_indices = @transform_1, window_bounds = array<i64: 1, 128>}, {transform_indices = @transform_2, window_bounds = array<i64: 1, 16, 16, 128>}, {pipeline_mode = #tpu.pipeline_mode<synchronous>, transform_indices = @transform_3, window_bounds = array<i64: 3, 384, 128>}, {transform_indices = @transform_4, window_bounds = array<i64: 1, 16, 16, 128>}, {transform_indices = @transform_5, window_bounds = array<i64: 1, 1, 128>}, {transform_indices = @transform_6, window_bounds = array<i64: 1, 1, 128>}]} {
    %c0_i32 = arith.constant 0 : i32
    %0 = arith.cmpi eq, %arg1, %c0_i32 : i32
    %1 = arith.extui %0 : i1 to i32
    %c0_i32_0 = arith.constant 0 : i32
    %2 = arith.cmpi ne, %1, %c0_i32_0 : i32
    scf.if %2 {
      %cst_59 = arith.constant 0.000000e+00 : f32
      %125 = vector.broadcast %cst_59 : f32 to vector<1x1x128xf32>
      %c0_60 = arith.constant 0 : index
      %c0_61 = arith.constant 0 : index
      %c0_62 = arith.constant 0 : index
      %126 = vector.load %arg7[%c0_60, %c0_61, %c0_62] : memref<1x1x128xf32, #tpu.memory_space<vmem>>, vector<1x1x128xf32>
      tpu.vector_store %arg7[%c0_60, %c0_61, %c0_62], %125 {strides = array<i32>} : memref<1x1x128xf32, #tpu.memory_space<vmem>>, vector<1x1x128xf32>,
      %cst_63 = arith.constant 0.000000e+00 : f32
      %127 = vector.broadcast %cst_63 : f32 to vector<1x1x128xf32>
      %c0_64 = arith.constant 0 : index
      %c0_65 = arith.constant 0 : index
      %c0_66 = arith.constant 0 : index
      %128 = vector.load %arg8[%c0_64, %c0_65, %c0_66] : memref<1x1x128xf32, #tpu.memory_space<vmem>>, vector<1x1x128xf32>
      tpu.vector_store %arg8[%c0_64, %c0_65, %c0_66], %127 {strides = array<i32>} : memref<1x1x128xf32, #tpu.memory_space<vmem>>, vector<1x1x128xf32>,
    } else {
    }
    %c16_i32 = arith.constant 16 : i32
    %3 = arith.muli %arg1, %c16_i32 : i32
    %4 = tpu.assume_multiple %3, 16 : i32
    %c0 = arith.constant 0 : index
    %5 = arith.index_cast %4 : i32 to index
    %c0_1 = arith.constant 0 : index
    %c0_2 = arith.constant 0 : index
    %6 = vector.load %arg4[%c0, %5, %c0_1, %c0_2] : memref<1x16x16x128xbf16, #tpu.memory_space<vmem>>, vector<1x16x16x128xbf16>
    %7 = vector.shape_cast %6 : vector<1x16x16x128xbf16> to vector<16x16x128xbf16>
    %c1_i32 = arith.constant 1 : i32
    %8 = arith.subi %4, %c1_i32 : i32
    %c0_i32_3 = arith.constant 0 : i32
    %9 = arith.maxsi %8, %c0_i32_3 : i32
    %c0_4 = arith.constant 0 : index
    %10 = arith.index_cast %9 : i32 to index
    %c0_5 = arith.constant 0 : index
    %c0_6 = arith.constant 0 : index
    %11 = vector.load %arg4[%c0_4, %10, %c0_5, %c0_6] : memref<1x16x16x128xbf16, #tpu.memory_space<vmem>>, vector<1x1x16x128xbf16>
    %12 = vector.shape_cast %11 : vector<1x1x16x128xbf16> to vector<1x16x128xbf16>
    %c16_i32_7 = arith.constant 16 : i32
    %13 = arith.addi %4, %c16_i32_7 : i32
    %c15_i32 = arith.constant 15 : i32
    %14 = arith.minsi %13, %c15_i32 : i32
    %c0_8 = arith.constant 0 : index
    %15 = arith.index_cast %14 : i32 to index
    %c0_9 = arith.constant 0 : index
    %c0_10 = arith.constant 0 : index
    %16 = vector.load %arg4[%c0_8, %15, %c0_9, %c0_10] : memref<1x16x16x128xbf16, #tpu.memory_space<vmem>>, vector<1x1x16x128xbf16>
    %17 = vector.shape_cast %16 : vector<1x1x16x128xbf16> to vector<1x16x128xbf16>
    %c0_11 = arith.constant 0 : index
    %c0_12 = arith.constant 0 : index
    %18 = vector.load %arg2[%c0_11, %c0_12] : memref<1x128xf32, #tpu.memory_space<vmem>>, vector<1x128xf32>
    %19 = vector.shape_cast %18 : vector<1x128xf32> to vector<1x1x128xf32>
    %c0_13 = arith.constant 0 : index
    %c0_14 = arith.constant 0 : index
    %20 = vector.load %arg3[%c0_13, %c0_14] : memref<1x128xf32, #tpu.memory_space<vmem>>, vector<1x128xf32>
    %21 = vector.shape_cast %20 : vector<1x128xf32> to vector<1x1x128xf32>
    %22 = arith.extf %7 : vector<16x16x128xbf16> to vector<16x16x128xf32>
    %23 = vector.broadcast %19 : vector<1x1x128xf32> to vector<16x16x128xf32>
    %24 = arith.mulf %22, %23 : vector<16x16x128xf32>
    %25 = vector.broadcast %21 : vector<1x1x128xf32> to vector<16x16x128xf32>
    %26 = arith.addf %24, %25 : vector<16x16x128xf32>
    %cst = arith.constant 0.000000e+00 : f32
    %27 = vector.broadcast %cst : f32 to vector<16x16x128xf32>
    %28 = arith.maximumf %26, %27 : vector<16x16x128xf32>
    %29 = arith.extf %12 : vector<1x16x128xbf16> to vector<1x16x128xf32>
    %30 = vector.broadcast %19 : vector<1x1x128xf32> to vector<1x16x128xf32>
    %31 = arith.mulf %29, %30 : vector<1x16x128xf32>
    %32 = vector.broadcast %21 : vector<1x1x128xf32> to vector<1x16x128xf32>
    %33 = arith.addf %31, %32 : vector<1x16x128xf32>
    %cst_15 = arith.constant 0.000000e+00 : f32
    %34 = vector.broadcast %cst_15 : f32 to vector<1x16x128xf32>
    %35 = arith.maximumf %33, %34 : vector<1x16x128xf32>
    %36 = arith.extf %17 : vector<1x16x128xbf16> to vector<1x16x128xf32>
    %37 = vector.broadcast %19 : vector<1x1x128xf32> to vector<1x16x128xf32>
    %38 = arith.mulf %36, %37 : vector<1x16x128xf32>
    %39 = vector.broadcast %21 : vector<1x1x128xf32> to vector<1x16x128xf32>
    %40 = arith.addf %38, %39 : vector<1x16x128xf32>
    %cst_16 = arith.constant 0.000000e+00 : f32
    %41 = vector.broadcast %cst_16 : f32 to vector<1x16x128xf32>
    %42 = arith.maximumf %40, %41 : vector<1x16x128xf32>
    %c0_i32_17 = arith.constant 0 : i32
    %43 = arith.cmpi sgt, %arg1, %c0_i32_17 : i32
    %44 = arith.extui %43 : i1 to i32
    %45 = arith.sitofp %44 : i32 to f32
    %46 = vector.broadcast %45 : f32 to vector<1x16x128xf32>
    %47 = arith.mulf %35, %46 : vector<1x16x128xf32>
    %c0_i32_18 = arith.constant 0 : i32
    %48 = arith.cmpi slt, %arg1, %c0_i32_18 : i32
    %49 = arith.extui %48 : i1 to i32
    %50 = arith.sitofp %49 : i32 to f32
    %51 = vector.broadcast %50 : f32 to vector<1x16x128xf32>
    %52 = arith.mulf %42, %51 : vector<1x16x128xf32>
    %53 = arith.truncf %47 : vector<1x16x128xf32> to vector<1x16x128xbf16>
    %54 = arith.truncf %28 : vector<16x16x128xf32> to vector<16x16x128xbf16>
    %55 = arith.truncf %52 : vector<1x16x128xf32> to vector<1x16x128xbf16>
    %56 = tpu.concatenate %53, %54, %55 in 0 : vector<1x16x128xbf16>, vector<16x16x128xbf16>, vector<1x16x128xbf16> -> vector<18x16x128xbf16>
    %57 = vector.shape_cast %56 : vector<18x16x128xbf16> to vector<288x128xbf16>
    %cst_19 = arith.constant 0.000000e+00 : bf16
    %58 = vector.broadcast %cst_19 : bf16 to vector<1x128xbf16>
    %59 = tpu.iota {dimensions = array<i32: 0>} : vector<288x1xi32>
    %c16_i32_20 = arith.constant 16 : i32
    %c0_i32_21 = arith.constant 0 : i32
    %60 = arith.cmpi eq, %c16_i32_20, %c0_i32_21 : i32
    %c1_i32_22 = arith.constant 1 : i32
    %61 = arith.select %60, %c1_i32_22, %c16_i32_20 : i32
    %62 = vector.broadcast %61 : i32 to vector<288x1xi32>
    %63 = arith.remsi %59, %62 : vector<288x1xi32>
    %c0_i32_23 = arith.constant 0 : i32
    %64 = vector.broadcast %c0_i32_23 : i32 to vector<288x1xi32>
    %65 = arith.cmpi ne, %63, %64 : vector<288x1xi32>
    %c0_i32_24 = arith.constant 0 : i32
    %66 = vector.broadcast %c0_i32_24 : i32 to vector<288x1xi32>
    %67 = arith.cmpi slt, %63, %66 : vector<288x1xi32>
    %c0_i32_25 = arith.constant 0 : i32
    %68 = arith.cmpi slt, %61, %c0_i32_25 : i32
    %69 = vector.broadcast %68 : i1 to vector<288x1xi1>
    %70 = vector.broadcast %69 : vector<288x1xi1> to vector<288x1xi1>
    %71 = arith.xori %67, %70 : vector<288x1xi1>
    %72 = arith.andi %71, %65 : vector<288x1xi1>
    %73 = vector.broadcast %61 : i32 to vector<288x1xi32>
    %74 = arith.addi %63, %73 : vector<288x1xi32>
    %75 = arith.select %72, %74, %63 : vector<288x1xi1>, vector<288x1xi32>
    %76 = vector.extract_strided_slice %57 {offsets = [0, 0], sizes = [287, 128], strides = [1, 1]} : vector<288x128xbf16> to vector<287x128xbf16>
    %77 = tpu.concatenate %58, %76 in 0 : vector<1x128xbf16>, vector<287x128xbf16> -> vector<288x128xbf16>
    %c0_i32_26 = arith.constant 0 : i32
    %78 = vector.broadcast %c0_i32_26 : i32 to vector<288x1xi32>
    %79 = arith.cmpi ne, %75, %78 : vector<288x1xi32>
    %cst_27 = arith.constant 0.000000e+00 : bf16
    %80 = vector.broadcast %cst_27 : bf16 to vector<288x128xbf16>
    %81 = vector.shape_cast %79 : vector<288x1xi1> to vector<288x1xi1>
    %82 = vector.broadcast %81 : vector<288x1xi1> to vector<288x128xi1>
    %83 = arith.select %82, %77, %80 : vector<288x128xi1>, vector<288x128xbf16>
    %84 = vector.extract_strided_slice %57 {offsets = [1, 0], sizes = [287, 128], strides = [1, 1]} : vector<288x128xbf16> to vector<287x128xbf16>
    %85 = tpu.concatenate %84, %58 in 0 : vector<287x128xbf16>, vector<1x128xbf16> -> vector<288x128xbf16>
    %c15_i32_28 = arith.constant 15 : i32
    %86 = vector.broadcast %c15_i32_28 : i32 to vector<288x1xi32>
    %87 = arith.cmpi ne, %75, %86 : vector<288x1xi32>
    %cst_29 = arith.constant 0.000000e+00 : bf16
    %88 = vector.broadcast %cst_29 : bf16 to vector<288x128xbf16>
    %89 = vector.shape_cast %87 : vector<288x1xi1> to vector<288x1xi1>
    %90 = vector.broadcast %89 : vector<288x1xi1> to vector<288x128xi1>
    %91 = arith.select %90, %85, %88 : vector<288x128xi1>, vector<288x128xbf16>
    %92 = tpu.concatenate %83, %57, %91 in 1 : vector<288x128xbf16>, vector<288x128xbf16>, vector<288x128xbf16> -> vector<288x384xbf16>
    %cst_30 = arith.constant 0.000000e+00 : f32
    %93 = vector.broadcast %cst_30 : f32 to vector<256x128xf32>
    %94 = vector.extract_strided_slice %92 {offsets = [0, 0], sizes = [256, 384], strides = [1, 1]} : vector<288x384xbf16> to vector<256x384xbf16>
    %c0_31 = arith.constant 0 : index
    %c0_32 = arith.constant 0 : index
    %c0_33 = arith.constant 0 : index
    %95 = vector.load %arg5[%c0_31, %c0_32, %c0_33] : memref<3x384x128xbf16, #tpu.memory_space<vmem>>, vector<1x384x128xbf16>
    %96 = vector.shape_cast %95 : vector<1x384x128xbf16> to vector<384x128xbf16>
    %cst_34 = arith.constant dense<0.000000e+00> : vector<256x128xf32>
    %97 = tpu.matmul %94, %96, %cst_34 {dimension_numbers = #tpu.dot_dimension_numbers<[1], [0], [0], [1], [0, 0, 1, 1], [], []>} : vector<256x384xbf16>, vector<384x128xbf16>, vector<256x128xf32> -> vector<256x128xf32>
    %98 = arith.addf %93, %97 : vector<256x128xf32>
    %99 = vector.extract_strided_slice %92 {offsets = [16, 0], sizes = [256, 384], strides = [1, 1]} : vector<288x384xbf16> to vector<256x384xbf16>
    %c1 = arith.constant 1 : index
    %c0_35 = arith.constant 0 : index
    %c0_36 = arith.constant 0 : index
    %100 = vector.load %arg5[%c1, %c0_35, %c0_36] : memref<3x384x128xbf16, #tpu.memory_space<vmem>>, vector<1x384x128xbf16>
    %101 = vector.shape_cast %100 : vector<1x384x128xbf16> to vector<384x128xbf16>
    %cst_37 = arith.constant dense<0.000000e+00> : vector<256x128xf32>
    %102 = tpu.matmul %99, %101, %cst_37 {dimension_numbers = #tpu.dot_dimension_numbers<[1], [0], [0], [1], [0, 0, 1, 1], [], []>} : vector<256x384xbf16>, vector<384x128xbf16>, vector<256x128xf32> -> vector<256x128xf32>
    %103 = arith.addf %98, %102 : vector<256x128xf32>
    %104 = vector.extract_strided_slice %92 {offsets = [32, 0], sizes = [256, 384], strides = [1, 1]} : vector<288x384xbf16> to vector<256x384xbf16>
    %c2 = arith.constant 2 : index
    %c0_38 = arith.constant 0 : index
    %c0_39 = arith.constant 0 : index
    %105 = vector.load %arg5[%c2, %c0_38, %c0_39] : memref<3x384x128xbf16, #tpu.memory_space<vmem>>, vector<1x384x128xbf16>
    %106 = vector.shape_cast %105 : vector<1x384x128xbf16> to vector<384x128xbf16>
    %cst_40 = arith.constant dense<0.000000e+00> : vector<256x128xf32>
    %107 = tpu.matmul %104, %106, %cst_40 {dimension_numbers = #tpu.dot_dimension_numbers<[1], [0], [0], [1], [0, 0, 1, 1], [], []>} : vector<256x384xbf16>, vector<384x128xbf16>, vector<256x128xf32> -> vector<256x128xf32>
    %108 = arith.addf %103, %107 : vector<256x128xf32>
    %109 = vector.shape_cast %108 : vector<256x128xf32> to vector<1x16x16x128xf32>
    %110 = arith.truncf %109 : vector<1x16x16x128xf32> to vector<1x16x16x128xbf16>
    %c0_41 = arith.constant 0 : index
    %c0_42 = arith.constant 0 : index
    %c0_43 = arith.constant 0 : index
    %c0_44 = arith.constant 0 : index
    %111 = vector.load %arg6[%c0_41, %c0_42, %c0_43, %c0_44] : memref<1x16x16x128xbf16, #tpu.memory_space<vmem>>, vector<1x16x16x128xbf16>
    tpu.vector_store %arg6[%c0_41, %c0_42, %c0_43, %c0_44], %110 {strides = array<i32>} : memref<1x16x16x128xbf16, #tpu.memory_space<vmem>>, vector<1x16x16x128xbf16>,
    %c0_45 = arith.constant 0 : index
    %c0_46 = arith.constant 0 : index
    %c0_47 = arith.constant 0 : index
    %112 = vector.load %arg7[%c0_45, %c0_46, %c0_47] : memref<1x1x128xf32, #tpu.memory_space<vmem>>, vector<1x1x128xf32>
    %cst_48 = arith.constant dense<0.000000e+00> : vector<128xf32>
    %113 = vector.multi_reduction <add>, %108, %cst_48 [0] : vector<256x128xf32> to vector<128xf32>
    %114 = vector.shape_cast %113 : vector<128xf32> to vector<1x128xf32>
    %115 = vector.shape_cast %114 : vector<1x128xf32> to vector<1x1x128xf32>
    %116 = arith.addf %112, %115 : vector<1x1x128xf32>
    %c0_49 = arith.constant 0 : index
    %c0_50 = arith.constant 0 : index
    %c0_51 = arith.constant 0 : index
    %117 = vector.load %arg7[%c0_49, %c0_50, %c0_51] : memref<1x1x128xf32, #tpu.memory_space<vmem>>, vector<1x1x128xf32>
    tpu.vector_store %arg7[%c0_49, %c0_50, %c0_51], %116 {strides = array<i32>} : memref<1x1x128xf32, #tpu.memory_space<vmem>>, vector<1x1x128xf32>,
    %c0_52 = arith.constant 0 : index
    %c0_53 = arith.constant 0 : index
    %c0_54 = arith.constant 0 : index
    %118 = vector.load %arg8[%c0_52, %c0_53, %c0_54] : memref<1x1x128xf32, #tpu.memory_space<vmem>>, vector<1x1x128xf32>
    %119 = arith.mulf %108, %108 : vector<256x128xf32>
    %cst_55 = arith.constant dense<0.000000e+00> : vector<128xf32>
    %120 = vector.multi_reduction <add>, %119, %cst_55 [0] : vector<256x128xf32> to vector<128xf32>
    %121 = vector.shape_cast %120 : vector<128xf32> to vector<1x128xf32>
    %122 = vector.shape_cast %121 : vector<1x128xf32> to vector<1x1x128xf32>
    %123 = arith.addf %118, %122 : vector<1x1x128xf32>
    %c0_56 = arith.constant 0 : index
    %c0_57 = arith.constant 0 : index
    %c0_58 = arith.constant 0 : index
    %124 = vector.load %arg8[%c0_56, %c0_57, %c0_58] : memref<1x1x128xf32, #tpu.memory_space<vmem>>, vector<1x1x128xf32>
    tpu.vector_store %arg8[%c0_56, %c0_57, %c0_58], %123 {strides = array<i32>} : memref<1x1x128xf32, #tpu.memory_space<vmem>>, vector<1x1x128xf32>,
    return
  }
  func.func @transform_0(%arg0: i32, %arg1: i32) -> (i32, i32) {
    %c0_i32 = arith.constant 0 : i32
    %c0_i32_0 = arith.constant 0 : i32
    %c0_i32_1 = arith.constant 0 : i32
    return %c0_i32, %c0_i32_0 : i32, i32
  }
  func.func @transform_1(%arg0: i32, %arg1: i32) -> (i32, i32) {
    %c0_i32 = arith.constant 0 : i32
    %c0_i32_0 = arith.constant 0 : i32
    %c0_i32_1 = arith.constant 0 : i32
    return %c0_i32, %c0_i32_0 : i32, i32
  }
  func.func @transform_2(%arg0: i32, %arg1: i32) -> (i32, i32, i32, i32) {
    %c0_i32 = arith.constant 0 : i32
    %c0_i32_0 = arith.constant 0 : i32
    %c0_i32_1 = arith.constant 0 : i32
    %c0_i32_2 = arith.constant 0 : i32
    return %arg0, %c0_i32, %c0_i32_0, %c0_i32_1 : i32, i32, i32, i32
  }
  func.func @transform_3(%arg0: i32, %arg1: i32) -> (i32, i32, i32) {
    %c0_i32 = arith.constant 0 : i32
    %c0_i32_0 = arith.constant 0 : i32
    %c0_i32_1 = arith.constant 0 : i32
    %c0_i32_2 = arith.constant 0 : i32
    return %c0_i32, %c0_i32_0, %c0_i32_1 : i32, i32, i32
  }
  func.func @transform_4(%arg0: i32, %arg1: i32) -> (i32, i32, i32, i32) {
    %c0_i32 = arith.constant 0 : i32
    %c0_i32_0 = arith.constant 0 : i32
    %c0_i32_1 = arith.constant 0 : i32
    return %arg0, %arg1, %c0_i32, %c0_i32_0 : i32, i32, i32, i32
  }
  func.func @transform_5(%arg0: i32, %arg1: i32) -> (i32, i32, i32) {
    %c0_i32 = arith.constant 0 : i32
    %c0_i32_0 = arith.constant 0 : i32
    %c0_i32_1 = arith.constant 0 : i32
    return %arg0, %c0_i32, %c0_i32_0 : i32, i32, i32
  }
  func.func @transform_6(%arg0: i32, %arg1: i32) -> (i32, i32, i32) {
    %c0_i32 = arith.constant 0 : i32
    %c0_i32_0 = arith.constant 0 : i32
    %c0_i32_1 = arith.constant 0 : i32
    return %arg0, %c0_i32, %c0_i32_0 : i32, i32, i32
  }
}

</mosaic_0001>

<llo_original>
// kernel: double_conv.2
$region0: #{double_conv.2}
  #allocation0 [shape = 'u32[]', space=smem, size = 0x4, offset = 0x4, fixed_abs, tag = 'smem constant byte address 0x4 - core index']
  #allocation1 [shape = 'u32[144,128]{1,0:T(1,128)}', space=vmem, size = 0x12000, scoped, tag = 'internal scratch']
  %s0 = inlined_call_operand.hbm [shape: f32[1,128], index: 0, kind: input, shape index: {}, may-alias: {0,1}]
  %s1 = inlined_call_operand.hbm [shape: f32[1,128], index: 1, kind: input, shape index: {}, may-alias: {0,1}]
  %s2 = inlined_call_operand.hbm [shape: bf16[2,16,16,128], index: 2, kind: input, shape index: {}]
  %s3 = inlined_call_operand.hbm [shape: bf16[3,384,128], index: 3, kind: input, shape index: {}]
  %s4 = inlined_call_operand.hbm [shape: bf16[2,16,16,128], index: 4, kind: output, shape index: {0}]
  %s5 = inlined_call_operand.hbm [shape: f32[2,1,128], index: 5, kind: output, shape index: {1}]
  %s6 = inlined_call_operand.hbm [shape: f32[2,1,128], index: 6, kind: output, shape index: {2}]
  %7 = xla_tuple %s4, %s5, %s6
  %s8 = sld [smem:[#allocation0]]
  $region85: #{double_conv.2} parent=0
    _
  %s10 = ssub.s32 1, %s8
  %s11 = scalar_select 0, %s10, %s8
  $region1: #{double_conv.2} parent=0
    #allocation2 [shape = 'u8[512]{0}', space=vmem, size = 0x400, scoped, tag = 'input window, operand 0, single buffered']
    #allocation3 [shape = 's32[2]{0}', space=sflag, size = 0x8, scoped, tag = 'scoped memory for double_conv.2']
    #allocation4 [shape = 's32[2]{0}', space=sflag, size = 0x8, scoped, tag = 'scoped memory for double_conv.2']
    #allocation5 [shape = 'u8[512]{0}', space=vmem, size = 0x400, scoped, tag = 'input window, operand 1, single buffered']
    #allocation6 [shape = 's32[1]{0}', space=sflag, size = 0x4, scoped, tag = 'scoped memory for double_conv.2']
    #allocation7 [shape = 'u8[131072]{0}', space=vmem, size = 0x20000, scoped, tag = 'input window, operand 2']
    #allocation8 [shape = 'u8[294912]{0}', space=vmem, size = 0x48000, scoped, tag = 'input window, operand 3, single buffered']
    #allocation9 [shape = 'u8[131072]{0}', space=vmem, size = 0x20000, scoped, tag = 'output window, operand 0']
    #allocation10 [shape = 'u8[1024]{0}', space=vmem, size = 0x400, scoped, tag = 'output window, operand 1']
    #allocation11 [shape = 's32[2]{0}', space=sflag, size = 0x8, scoped, tag = 'scoped memory for double_conv.2']
    #allocation12 [shape = 'u8[1024]{0}', space=vmem, size = 0x400, scoped, tag = 'output window, operand 2']
    %12 = vsyncpa [#allocation3], 0
    %13 = vsyncpa [#allocation6], 0
    %14 = vsyncpa [#allocation4], 0
    %s15 = scalar_lea.sflag [#allocation4], 1
    %16 = vsyncpa %s15, 0
    %17 = vsyncpa [#allocation11], 0
    %s18 = scalar_lea.sflag [#allocation11], 1
    %19 = vsyncpa %s18, 0
    loop: start=0, step=1, limit=4
    $region2: #{double_conv.2} parent=1 // loop_pre_header
      _
    $region3: #{double_conv.2} parent=1 // loop_header
      %s21 = sphi 0, %s25
      %p22 = scmp.ge.s32.totalorder %s21, 4
      %s28 = sphi 0, %s40
      %s29 = sphi 0, %s36
      %s30 = sphi 0, %s28
      %s31 = sphi 0, %s29
      %s32 = sphi 0, %s30
      %s33 = sphi 0, %s31
      %s41 = sphi 0, %s41
      %s43 = sphi 0, %s41
      %s44 = sphi 0, %s43
      %s58 = sphi 0, %s44
      %s62 = sphi 0, %s62
      %s64 = sphi 0, %s62
      %s65 = sphi 0, %s64
      %s79 = sphi 0, %s65
      %s85 = sphi 0, %s87
      %s88 = sphi 0, %s85
      %s89 = sphi 0, %s88
      %s105 = sphi 0, %s89
      %s109 = sphi 0, %s109
      %s111 = sphi 0, %s109
      %s112 = sphi 0, %s111
      %s126 = sphi 0, %s112
      %s134 = sphi 0, %s136
      %s137 = sphi 0, %s134
      %s138 = sphi 0, %s137
      %s154 = sphi 0, %s138
      %s160 = sphi 0, %s162
      %s163 = sphi 0, %s160
      %s164 = sphi 0, %s163
      %s180 = sphi 0, %s164
      %s186 = sphi 0, %s188
      %s189 = sphi 0, %s186
      %s190 = sphi 0, %s189
      %s206 = sphi 0, %s190
    $region4: #{double_conv.2} parent=1 // loop_header_branch
      %24 = sbr.rel (%p22) target = $region8
    $region5: #{double_conv.2} parent=1 // loop_body
      %s26 = ssub.s32 %s21, 1
      %s27 = ssub.s32 %s21, 2
      %s34 = sadd.s32 1, %s29
      %p35 = scmp.ge.s32.totalorder %s34, 1
      %s36 = scalar_select %p35, 0, %s34
      %s37 = sadd.s32 1, %s28
      %s38 = scalar_select %p35, %s37, %s28
      %p39 = scmp.ge.s32.totalorder %s38, 2
      %s40 = scalar_select %p39, 0, %s38
      %s42 = sadd.s32 %s41, 1
      %p45 = scmp.eq.s32.totalorder %s21, 1
      %p46 = scmp.ne.s32.totalorder %s41, %s43
      %p47 = scmp.eq.s32.totalorder %s21, 0
      %p48 = por %p46, %p47
      %p49 = scmp.ne.s32.totalorder %s41, %s43
      %p50 = scmp.eq.s32.totalorder %s26, 1
      %p51 = por %p49, %p50
      %p52 = scmp.ne.s32.totalorder %s43, %s44
      %p53 = scmp.eq.s32.totalorder %s26, 0
      %p54 = por %p52, %p53
      %p55 = scmp.ne.s32.totalorder %s43, %s44
      %p56 = scmp.eq.s32.totalorder %s27, 1
      %p57 = por %p55, %p56
      %p59 = scmp.ne.s32.totalorder %s44, %s58
      %p60 = scmp.eq.s32.totalorder %s27, 0
      %p61 = por %p59, %p60
      %s63 = sadd.s32 %s62, 1
      %p66 = scmp.eq.s32.totalorder %s21, 1
      %p67 = scmp.ne.s32.totalorder %s62, %s64
      %p68 = scmp.eq.s32.totalorder %s21, 0
      %p69 = por %p67, %p68
      %p70 = scmp.ne.s32.totalorder %s62, %s64
      %p71 = scmp.eq.s32.totalorder %s26, 1
      %p72 = por %p70, %p71
      %p73 = scmp.ne.s32.totalorder %s64, %s65
      %p74 = scmp.eq.s32.totalorder %s26, 0
      %p75 = por %p73, %p74
      %p76 = scmp.ne.s32.totalorder %s64, %s65
      %p77 = scmp.eq.s32.totalorder %s27, 1
      %p78 = por %p76, %p77
      %p80 = scmp.ne.s32.totalorder %s65, %s79
      %p81 = scmp.eq.s32.totalorder %s27, 0
      %p82 = por %p80, %p81
      %s83 = ssub.s32 %s28, %s40
      %p84 = scmp.eq.s32.totalorder %s83, 0
      %s86 = sadd.s32 %s85, 1
      %s87 = scalar_select %p84, %s85, %s86
      %p90 = pneg %p84
      %p91 = scmp.eq.s32.totalorder %s21, 1
      %p92 = por %p90, %p91
      %p93 = scmp.ne.s32.totalorder %s85, %s88
      %p94 = scmp.eq.s32.totalorder %s21, 0
      %p95 = por %p93, %p94
      %p96 = scmp.ne.s32.totalorder %s85, %s88
      %p97 = scmp.eq.s32.totalorder %s26, 1
      %p98 = por %p96, %p97
      %p99 = scmp.ne.s32.totalorder %s88, %s89
      %p100 = scmp.eq.s32.totalorder %s26, 0
      %p101 = por %p99, %p100
      %p102 = scmp.ne.s32.totalorder %s88, %s89
      %p103 = scmp.eq.s32.totalorder %s27, 1
      %p104 = por %p102, %p103
      %p106 = scmp.ne.s32.totalorder %s89, %s105
      %p107 = scmp.eq.s32.totalorder %s27, 0
      %p108 = por %p106, %p107
      %s110 = sadd.s32 %s109, 1
      %p113 = scmp.eq.s32.totalorder %s21, 1
      %p114 = scmp.ne.s32.totalorder %s109, %s111
      %p115 = scmp.eq.s32.totalorder %s21, 0
      %p116 = por %p114, %p115
      %p117 = scmp.ne.s32.totalorder %s109, %s111
      %p118 = scmp.eq.s32.totalorder %s26, 1
      %p119 = por %p117, %p118
      %p120 = scmp.ne.s32.totalorder %s111, %s112
      %p121 = scmp.eq.s32.totalorder %s26, 0
      %p122 = por %p120, %p121
      %p123 = scmp.ne.s32.totalorder %s111, %s112
      %p124 = scmp.eq.s32.totalorder %s27, 1
      %p125 = por %p123, %p124
      %p127 = scmp.ne.s32.totalorder %s112, %s126
      %p128 = scmp.eq.s32.totalorder %s27, 0
      %p129 = por %p127, %p128
      %s130 = ssub.s32 %s28, %s40
      %s131 = ssub.s32 %s29, %s36
      %s132 = sor.u32 %s130, %s131
      %p133 = scmp.eq.s32.totalorder %s132, 0
      %s135 = sadd.s32 %s134, 1
      %s136 = scalar_select %p133, %s134, %s135
      %p139 = pneg %p133
      %p140 = scmp.eq.s32.totalorder %s21, 1
      %p141 = por %p139, %p140
      %p142 = scmp.ne.s32.totalorder %s134, %s137
      %p143 = scmp.eq.s32.totalorder %s21, 0
      %p144 = por %p142, %p143
      %p145 = scmp.ne.s32.totalorder %s134, %s137
      %p146 = scmp.eq.s32.totalorder %s26, 1
      %p147 = por %p145, %p146
      %p148 = scmp.ne.s32.totalorder %s137, %s138
      %p149 = scmp.eq.s32.totalorder %s26, 0
      %p150 = por %p148, %p149
      %p151 = scmp.ne.s32.totalorder %s137, %s138
      %p152 = scmp.eq.s32.totalorder %s27, 1
      %p153 = por %p151, %p152
      %p155 = scmp.ne.s32.totalorder %s138, %s154
      %p156 = scmp.eq.s32.totalorder %s27, 0
      %p157 = por %p155, %p156
      %s158 = ssub.s32 %s28, %s40
      %p159 = scmp.eq.s32.totalorder %s158, 0
      %s161 = sadd.s32 %s160, 1
      %s162 = scalar_select %p159, %s160, %s161
      %p165 = pneg %p159
      %p166 = scmp.eq.s32.totalorder %s21, 1
      %p167 = por %p165, %p166
      %p168 = scmp.ne.s32.totalorder %s160, %s163
      %p169 = scmp.eq.s32.totalorder %s21, 0
      %p170 = por %p168, %p169
      %p171 = scmp.ne.s32.totalorder %s160, %s163
      %p172 = scmp.eq.s32.totalorder %s26, 1
      %p173 = por %p171, %p172
      %p174 = scmp.ne.s32.totalorder %s163, %s164
      %p175 = scmp.eq.s32.totalorder %s26, 0
      %p176 = por %p174, %p175
      %p177 = scmp.ne.s32.totalorder %s163, %s164
      %p178 = scmp.eq.s32.totalorder %s27, 1
      %p179 = por %p177, %p178
      %p181 = scmp.ne.s32.totalorder %s164, %s180
      %p182 = scmp.eq.s32.totalorder %s27, 0
      %p183 = por %p181, %p182
      %s184 = ssub.s32 %s28, %s40
      %p185 = scmp.eq.s32.totalorder %s184, 0
      %s187 = sadd.s32 %s186, 1
      %s188 = scalar_select %p185, %s186, %s187
      %p191 = pneg %p185
      %p192 = scmp.eq.s32.totalorder %s21, 1
      %p193 = por %p191, %p192
      %p194 = scmp.ne.s32.totalorder %s186, %s189
      %p195 = scmp.eq.s32.totalorder %s21, 0
      %p196 = por %p194, %p195
      %p197 = scmp.ne.s32.totalorder %s186, %s189
      %p198 = scmp.eq.s32.totalorder %s26, 1
      %p199 = por %p197, %p198
      %p200 = scmp.ne.s32.totalorder %s189, %s190
      %p201 = scmp.eq.s32.totalorder %s26, 0
      %p202 = por %p200, %p201
      %p203 = scmp.ne.s32.totalorder %s189, %s190
      %p204 = scmp.eq.s32.totalorder %s27, 1
      %p205 = por %p203, %p204
      %p207 = scmp.ne.s32.totalorder %s190, %s206
      %p208 = scmp.eq.s32.totalorder %s27, 0
      %p209 = por %p207, %p208
      %p210 = scmp.le.s32.totalorder 1, %s21
      %p211 = scmp.lt.s32.totalorder %s21, 3
      %p212 = pnand %p210, %p211
      %p213 = pneg %p212
      // Predicated region
      $region9: #{double_conv.2} parent=5 // pred_check
        _
      $region10: #{double_conv.2} parent=5 // pred_check_branch
        %215 = sbr.rel (%p212) target = $region12
      $region11: #{double_conv.2} parent=5 // pred_region
        %s216 = ssub.s32 %s21, 1
        // Predicated region
        $region13: #{double_conv.2} parent=11 // pred_check
          %p217 = pneg %p54
        $region14: #{double_conv.2} parent=11 // pred_check_branch
          %219 = sbr.rel (%p217) target = $region16
        $region15: #{double_conv.2} parent=11 // pred_region
          %s221 = ssub.s32 16, 16
          %222 = vsyncadd [#allocation3], %s221
          %s224 = sshll.u32 [#allocation2], 4
          %s225 = int_to_ptr.vmem [resolvable:$true] %s224
          %227 = dma.hbm_to_vmem [thread:$0]  %s0, 16, %s225, [#allocation3]
        $region16: #{double_conv.2} parent=11 // pred_fallthru
          _
        // Predicated region
        $region17: #{double_conv.2} parent=11 // pred_check
          %p228 = pneg %p75
        $region18: #{double_conv.2} parent=11 // pred_check_branch
          %230 = sbr.rel (%p228) target = $region20
        $region19: #{double_conv.2} parent=11 // pred_region
          %s232 = ssub.s32 16, 16
          %233 = vsyncadd [#allocation6], %s232
          %s235 = sshll.u32 [#allocation5], 4
          %s236 = int_to_ptr.vmem [resolvable:$true] %s235
          %238 = dma.hbm_to_vmem [thread:$0]  %s1, 16, %s236, [#allocation6]
        $region20: #{double_conv.2} parent=11 // pred_fallthru
          _
        // Predicated region
        $region21: #{double_conv.2} parent=11 // pred_check
          %p239 = pneg %p122
        $region22: #{double_conv.2} parent=11 // pred_check_branch
          %241 = sbr.rel (%p239) target = $region24
        $region23: #{double_conv.2} parent=11 // pred_region
          %s243 = ssub.s32 9216, 9216
          %244 = vsyncadd [#allocation6], %s243
          %s245 = sshll.u32 [#allocation8], 4
          %s246 = int_to_ptr.vmem [resolvable:$true] %s245
          %251 = dma.hbm_to_vmem [thread:$0]  %s3, 9216, %s246, [#allocation6], 64, 64, 4
        $region24: #{double_conv.2} parent=11 // pred_fallthru
          _
      $region12: #{double_conv.2} parent=5 // pred_fallthru
        _
      %p252 = scmp.lt.s32.totalorder %s21, 2
      // Predicated region
      $region25: #{double_conv.2} parent=5 // pred_check
        %p253 = pneg %p252
      $region26: #{double_conv.2} parent=5 // pred_check_branch
        %255 = sbr.rel (%p253) target = $region28
      $region27: #{double_conv.2} parent=5 // pred_region
        // Predicated region
        $region29: #{double_conv.2} parent=27 // pred_check
          %p256 = pneg %p95
        $region30: #{double_conv.2} parent=27 // pred_check_branch
          %258 = sbr.rel (%p256) target = $region32
        $region31: #{double_conv.2} parent=27 // pred_region
          %s259 = sand.u32 %s21, 1
          %s260 = scalar_lea.sflag [#allocation3], %s259
          %s261 = sand.u32 %s85, 1
          %s262 = smul.addr %s261, 128
          %s263 = scalar_lea.vmem [#allocation7], %s262
          %s265 = ssub.s32 2048, 2048
          %266 = vsyncadd %s260, %s265
          %s267 = smul.addr %s28, 32
          %s268 = smul.addr %s267, 64
          %s269 = scalar_lea.hbm %s2, %s268
          %s270 = sshll.u32 %s263, 4
          %s271 = int_to_ptr.vmem [resolvable:$true] %s270
          %276 = dma.hbm_to_vmem [thread:$0]  %s269, 2048, %s271, %s260, 64, 64, 4
        $region32: #{double_conv.2} parent=27 // pred_fallthru
          _
      $region28: #{double_conv.2} parent=5 // pred_fallthru
        _
      %p277 = scmp.le.s32.totalorder 1, %s21
      %p278 = scmp.lt.s32.totalorder %s21, 3
      %p279 = pnand %p277, %p278
      %p280 = pneg %p279
      // Predicated region
      $region33: #{double_conv.2} parent=5 // pred_check
        _
      $region34: #{double_conv.2} parent=5 // pred_check_branch
        %282 = sbr.rel (%p279) target = $region36
      $region35: #{double_conv.2} parent=5 // pred_region
        %s283 = ssub.s32 %s21, 1
        // Predicated region
        $region37: #{double_conv.2} parent=35 // pred_check
          %p284 = pneg %p54
        $region38: #{double_conv.2} parent=35 // pred_check_branch
          %286 = sbr.rel (%p284) target = $region40
        $region39: #{double_conv.2} parent=35 // pred_region
          %287 = dma.done [#allocation3], 16
        $region40: #{double_conv.2} parent=35 // pred_fallthru
          _
        // Predicated region
        $region41: #{double_conv.2} parent=35 // pred_check
          %p288 = pneg %p75
        $region42: #{double_conv.2} parent=35 // pred_check_branch
          %290 = sbr.rel (%p288) target = $region44
        $region43: #{double_conv.2} parent=35 // pred_region
          %291 = dma.done [#allocation6], 16
        $region44: #{double_conv.2} parent=35 // pred_fallthru
          _
        %s292 = sand.u32 %s26, 1
        %s293 = scalar_lea.sflag [#allocation3], %s292
        %s294 = sand.u32 %s88, 1
        %s295 = smul.addr %s294, 128
        %s296 = scalar_lea.vmem [#allocation7], %s295
        // Predicated region
        $region45: #{double_conv.2} parent=35 // pred_check
          %p297 = pneg %p101
        $region46: #{double_conv.2} parent=35 // pred_check_branch
          %299 = sbr.rel (%p297) target = $region48
        $region47: #{double_conv.2} parent=35 // pred_region
          %300 = dma.done %s293, 2048
        $region48: #{double_conv.2} parent=35 // pred_fallthru
          _
        // Predicated region
        $region49: #{double_conv.2} parent=35 // pred_check
          %p301 = pneg %p122
        $region50: #{double_conv.2} parent=35 // pred_check_branch
          %303 = sbr.rel (%p301) target = $region52
        $region51: #{double_conv.2} parent=35 // pred_region
          %304 = dma.done [#allocation6], 9216
        $region52: #{double_conv.2} parent=35 // pred_fallthru
          _
        %p305 = pneg %p54
        %p306 = pneg %p51
        %p307 = pneg %p75
        %p308 = pneg %p72
        %s309 = sand.u32 %s26, 1
        %s310 = scalar_lea.sflag [#allocation3], %s309
        %s311 = sand.u32 %s88, 1
        %s312 = smul.addr %s311, 128
        %s313 = scalar_lea.vmem [#allocation7], %s312
        %p314 = pneg %p101
        %p315 = pneg %p98
        %p316 = pneg %p122
        %p317 = pneg %p119
        %p318 = pneg %p150
        %p319 = pneg %p147
        %s320 = sand.u32 %s137, 1
        %s321 = scalar_lea.sflag [#allocation4], %s320
        %s322 = sand.u32 %s137, 1
        %s323 = smul.addr %s322, 128
        %s324 = scalar_lea.vmem [#allocation9], %s323
        %p325 = pneg %p176
        %p326 = pneg %p173
        %s327 = sand.u32 %s26, 1
        %s328 = scalar_lea.sflag [#allocation11], %s327
        %s329 = sand.u32 %s163, 1
        %s330 = scalar_lea.vmem [#allocation10], %s329
        %p331 = pneg %p202
        %p332 = pneg %p199
        %s333 = sand.u32 %s26, 1
        %s334 = scalar_lea.sflag [#allocation11], %s333
        %s335 = sand.u32 %s189, 1
        %s336 = scalar_lea.vmem [#allocation12], %s335
        %s337 = smul.u32 16, %s31
        %p341 = scmp.eq.s32.totalorder %s31, 0
        // Predicated region
        $region53: #{double_conv.2} parent=35 // pred_check
          %p342 = pneg %p341
        $region54: #{double_conv.2} parent=35 // pred_check_branch
          %344 = sbr.rel (%p342) target = $region56
        $region55: #{double_conv.2} parent=35 // pred_region
          %345 = vst [vmem:[%s330] sm:$0x1] 0.0
          %346 = vst [vmem:[%s336] sm:$0x1] 0.0
        $region56: #{double_conv.2} parent=35 // pred_fallthru
          _
        %s347 = smul.u32 %s31, 16
        %s348 = smul.u32 %s347, 2
        %s349 = smul.addr %s348, 4
        %s350 = scalar_lea.vmem %s296, %s349 [#allocation7]
        %v351 = vld [vmem:[%s350] sm:$0xf]
        %v352 = vld [vmem:[%s350 + $0x4] sm:$0xf]
        %v353 = vld [vmem:[%s350 + $0x8] sm:$0xf]
        %v354 = vld [vmem:[%s350 + $0xc] sm:$0xf]
        %v355 = vld [vmem:[%s350 + $0x10] sm:$0xf]
        %v356 = vld [vmem:[%s350 + $0x14] sm:$0xf]
        %v357 = vld [vmem:[%s350 + $0x18] sm:$0xf]
        %v358 = vld [vmem:[%s350 + $0x1c] sm:$0xf]
        %v359 = vld [vmem:[%s350 + $0x20] sm:$0xf]
        %v360 = vld [vmem:[%s350 + $0x24] sm:$0xf]
        %v361 = vld [vmem:[%s350 + $0x28] sm:$0xf]
        %v362 = vld [vmem:[%s350 + $0x2c] sm:$0xf]
        %v363 = vld [vmem:[%s350 + $0x30] sm:$0xf]
        %v364 = vld [vmem:[%s350 + $0x34] sm:$0xf]
        %v365 = vld [vmem:[%s350 + $0x38] sm:$0xf]
        %v366 = vld [vmem:[%s350 + $0x3c] sm:$0xf]
        %v367 = vld [vmem:[%s350 + $0x40] sm:$0xf]
        %v368 = vld [vmem:[%s350 + $0x44] sm:$0xf]
        %v369 = vld [vmem:[%s350 + $0x48] sm:$0xf]
        %v370 = vld [vmem:[%s350 + $0x4c] sm:$0xf]
        %v371 = vld [vmem:[%s350 + $0x50] sm:$0xf]
        %v372 = vld [vmem:[%s350 + $0x54] sm:$0xf]
        %v373 = vld [vmem:[%s350 + $0x58] sm:$0xf]
        %v374 = vld [vmem:[%s350 + $0x5c] sm:$0xf]
        %v375 = vld [vmem:[%s350 + $0x60] sm:$0xf]
        %v376 = vld [vmem:[%s350 + $0x64] sm:$0xf]
        %v377 = vld [vmem:[%s350 + $0x68] sm:$0xf]
        %v378 = vld [vmem:[%s350 + $0x6c] sm:$0xf]
        %v379 = vld [vmem:[%s350 + $0x70] sm:$0xf]
        %v380 = vld [vmem:[%s350 + $0x74] sm:$0xf]
        %v381 = vld [vmem:[%s350 + $0x78] sm:$0xf]
        %v382 = vld [vmem:[%s350 + $0x7c] sm:$0xf]
        %s383 = ssub.s32 %s347, 1
        %p384 = scmp.gt.s32.totalorder %s383, 0
        %s385 = scalar_select %p384, %s383, 0
        %s386 = smul.u32 %s385, 2
        %s387 = smul.addr %s386, 4
        %s388 = scalar_lea.vmem %s296, %s387 [#allocation7]
        %v389 = vld [vmem:[%s388] sm:$0xf]
        %v390 = vld [vmem:[%s388 + $0x4] sm:$0xf]
        %s391 = sadd.s32 %s347, 16
        %p392 = scmp.lt.s32.totalorder %s391, 15
        %s393 = scalar_select %p392, %s391, 15
        %s394 = smul.u32 %s393, 2
        %s395 = smul.addr %s394, 4
        %s396 = scalar_lea.vmem %s296, %s395 [#allocation7]
        %v397 = vld [vmem:[%s396] sm:$0xf]
        %v398 = vld [vmem:[%s396 + $0x4] sm:$0xf]
        %p399 = scmp.gt.s32.totalorder %s31, 0
        %s400 = scalar_select %p399, 1, 0
        %s401 = scvt.s32.f32 %s400
        %p403 = scmp.ne.f32.partialorder %s401, %s401
        %s404 = sshrl.u32 %s401, 16
        %s405 = sand.u32 %s404, 1
        %s406 = sadd.s32 32767, %s405
        %s407 = sadd.s32 %s401, %s406
        %s408 = sand.u32 %s407, 4294901760
        %s409 = scalar_select %p403, 2143289344, %s408
        %s411 = sshrl.u32 %s409, 16
        %s412 = sshll.u32 %s411, 16
        %s413 = sor.u32 %s411, %s412
        %v414 = vstv %s413
        %v416 = vmul.bf16 %v389, %v414
        %v417 = vmul.bf16 %v390, %v414
        %p418 = scmp.lt.s32.totalorder %s31, 0
        %s419 = scalar_select %p418, 1, 0
        %s420 = scvt.s32.f32 %s419
        %p422 = scmp.ne.f32.partialorder %s420, %s420
        %s423 = sshrl.u32 %s420, 16
        %s424 = sand.u32 %s423, 1
        %s425 = sadd.s32 32767, %s424
        %s426 = sadd.s32 %s420, %s425
        %s427 = sand.u32 %s426, 4294901760
        %s428 = scalar_select %p422, 2143289344, %s427
        %s430 = sshrl.u32 %s428, 16
        %s431 = sshll.u32 %s430, 16
        %s432 = sor.u32 %s430, %s431
        %v433 = vstv %s432
        %v435 = vmul.bf16 %v397, %v433
        %v436 = vmul.bf16 %v398, %v433
        %v437 = vlaneseq
        %v438 = vshrl.u32 %v437, 7
        %v439 = vadd.s32 %v438, 8
        %v440 = vadd.s32 %v438, 16
        %v441 = vadd.s32 %v438, 24
        %v442 = vadd.s32 %v438, 32
        %v443 = vadd.s32 %v438, 40
        %v444 = vadd.s32 %v438, 48
        %v445 = vadd.s32 %v438, 56
        %v446 = vadd.s32 %v438, 64
        %v447 = vadd.s32 %v438, 72
        %v448 = vadd.s32 %v438, 80
        %v449 = vadd.s32 %v438, 88
        %v450 = vadd.s32 %v438, 96
        %v451 = vadd.s32 %v438, 104
        %v452 = vadd.s32 %v438, 112
        %v453 = vadd.s32 %v438, 120
        %v454 = vadd.s32 %v438, 128
        %v455 = vadd.s32 %v438, 136
        %v456 = vadd.s32 %v438, 144
        %v457 = vadd.s32 %v438, 152
        %v458 = vadd.s32 %v438, 160
        %v459 = vadd.s32 %v438, 168
        %v460 = vadd.s32 %v438, 176
        %v461 = vadd.s32 %v438, 184
        %v462 = vadd.s32 %v438, 192
        %v463 = vadd.s32 %v438, 200
        %v464 = vadd.s32 %v438, 208
        %v465 = vadd.s32 %v438, 216
        %v466 = vadd.s32 %v438, 224
        %v467 = vadd.s32 %v438, 232
        %v468 = vadd.s32 %v438, 240
        %v469 = vadd.s32 %v438, 248
        %v470 = vadd.s32 %v438, 256
        %v471 = vadd.s32 %v438, 264
        %v472 = vadd.s32 %v438, 272
        %v473 = vadd.s32 %v438, 280
        %vm474 = vcmp.lt.s32.totalorder %v438, 0
        %v475 = vsub.s32 0, %v438
        %v476 = vsel %vm474, %v475, %v438
        %v477 = vshrl.u32 %v476, 4
        %v478 = vand.u32 %v476, 15
        %v479 = vsub.s32 0, %v478
        %v480 = vsel %vm474, %v479, %v478
        %vm481 = vcmp.lt.s32.totalorder %v439, 0
        %v482 = vsub.s32 0, %v439
        %v483 = vsel %vm481, %v482, %v439
        %v484 = vshrl.u32 %v483, 4
        %v485 = vand.u32 %v483, 15
        %v486 = vsub.s32 0, %v485
        %v487 = vsel %vm481, %v486, %v485
        %vm488 = vcmp.lt.s32.totalorder %v440, 0
        %v489 = vsub.s32 0, %v440
        %v490 = vsel %vm488, %v489, %v440
        %v491 = vshrl.u32 %v490, 4
        %v492 = vand.u32 %v490, 15
        %v493 = vsub.s32 0, %v492
        %v494 = vsel %vm488, %v493, %v492
        %vm495 = vcmp.lt.s32.totalorder %v441, 0
        %v496 = vsub.s32 0, %v441
        %v497 = vsel %vm495, %v496, %v441
        %v498 = vshrl.u32 %v497, 4
        %v499 = vand.u32 %v497, 15
        %v500 = vsub.s32 0, %v499
        %v501 = vsel %vm495, %v500, %v499
        %vm502 = vcmp.lt.s32.totalorder %v442, 0
        %v503 = vsub.s32 0, %v442
        %v504 = vsel %vm502, %v503, %v442
        %v505 = vshrl.u32 %v504, 4
        %v506 = vand.u32 %v504, 15
        %v507 = vsub.s32 0, %v506
        %v508 = vsel %vm502, %v507, %v506
        %vm509 = vcmp.lt.s32.totalorder %v443, 0
        %v510 = vsub.s32 0, %v443
        %v511 = vsel %vm509, %v510, %v443
        %v512 = vshrl.u32 %v511, 4
        %v513 = vand.u32 %v511, 15
        %v514 = vsub.s32 0, %v513
        %v515 = vsel %vm509, %v514, %v513
        %vm516 = vcmp.lt.s32.totalorder %v444, 0
        %v517 = vsub.s32 0, %v444
        %v518 = vsel %vm516, %v517, %v444
        %v519 = vshrl.u32 %v518, 4
        %v520 = vand.u32 %v518, 15
        %v521 = vsub.s32 0, %v520
        %v522 = vsel %vm516, %v521, %v520
        %vm523 = vcmp.lt.s32.totalorder %v445, 0
        %v524 = vsub.s32 0, %v445
        %v525 = vsel %vm523, %v524, %v445
        %v526 = vshrl.u32 %v525, 4
        %v527 = vand.u32 %v525, 15
        %v528 = vsub.s32 0, %v527
        %v529 = vsel %vm523, %v528, %v527
        %vm530 = vcmp.lt.s32.totalorder %v446, 0
        %v531 = vsub.s32 0, %v446
        %v532 = vsel %vm530, %v531, %v446
        %v533 = vshrl.u32 %v532, 4
        %v534 = vand.u32 %v532, 15
        %v535 = vsub.s32 0, %v534
        %v536 = vsel %vm530, %v535, %v534
        %vm537 = vcmp.lt.s32.totalorder %v447, 0
        %v538 = vsub.s32 0, %v447
        %v539 = vsel %vm537, %v538, %v447
        %v540 = vshrl.u32 %v539, 4
        %v541 = vand.u32 %v539, 15
        %v542 = vsub.s32 0, %v541
        %v543 = vsel %vm537, %v542, %v541
        %vm544 = vcmp.lt.s32.totalorder %v448, 0
        %v545 = vsub.s32 0, %v448
        %v546 = vsel %vm544, %v545, %v448
        %v547 = vshrl.u32 %v546, 4
        %v548 = vand.u32 %v546, 15
        %v549 = vsub.s32 0, %v548
        %v550 = vsel %vm544, %v549, %v548
        %vm551 = vcmp.lt.s32.totalorder %v449, 0
        %v552 = vsub.s32 0, %v449
        %v553 = vsel %vm551, %v552, %v449
        %v554 = vshrl.u32 %v553, 4
        %v555 = vand.u32 %v553, 15
        %v556 = vsub.s32 0, %v555
        %v557 = vsel %vm551, %v556, %v555
        %vm558 = vcmp.lt.s32.totalorder %v450, 0
        %v559 = vsub.s32 0, %v450
        %v560 = vsel %vm558, %v559, %v450
        %v561 = vshrl.u32 %v560, 4
        %v562 = vand.u32 %v560, 15
        %v563 = vsub.s32 0, %v562
        %v564 = vsel %vm558, %v563, %v562
        %vm565 = vcmp.lt.s32.totalorder %v451, 0
        %v566 = vsub.s32 0, %v451
        %v567 = vsel %vm565, %v566, %v451
        %v568 = vshrl.u32 %v567, 4
        %v569 = vand.u32 %v567, 15
        %v570 = vsub.s32 0, %v569
        %v571 = vsel %vm565, %v570, %v569
        %vm572 = vcmp.lt.s32.totalorder %v452, 0
        %v573 = vsub.s32 0, %v452
        %v574 = vsel %vm572, %v573, %v452
        %v575 = vshrl.u32 %v574, 4
        %v576 = vand.u32 %v574, 15
        %v577 = vsub.s32 0, %v576
        %v578 = vsel %vm572, %v577, %v576
        %vm579 = vcmp.lt.s32.totalorder %v453, 0
        %v580 = vsub.s32 0, %v453
        %v581 = vsel %vm579, %v580, %v453
        %v582 = vshrl.u32 %v581, 4
        %v583 = vand.u32 %v581, 15
        %v584 = vsub.s32 0, %v583
        %v585 = vsel %vm579, %v584, %v583
        %vm586 = vcmp.lt.s32.totalorder %v454, 0
        %v587 = vsub.s32 0, %v454
        %v588 = vsel %vm586, %v587, %v454
        %v589 = vshrl.u32 %v588, 4
        %v590 = vand.u32 %v588, 15
        %v591 = vsub.s32 0, %v590
        %v592 = vsel %vm586, %v591, %v590
        %vm593 = vcmp.lt.s32.totalorder %v455, 0
        %v594 = vsub.s32 0, %v455
        %v595 = vsel %vm593, %v594, %v455
        %v596 = vshrl.u32 %v595, 4
        %v597 = vand.u32 %v595, 15
        %v598 = vsub.s32 0, %v597
        %v599 = vsel %vm593, %v598, %v597
        %vm600 = vcmp.lt.s32.totalorder %v456, 0
        %v601 = vsub.s32 0, %v456
        %v602 = vsel %vm600, %v601, %v456
        %v603 = vshrl.u32 %v602, 4
        %v604 = vand.u32 %v602, 15
        %v605 = vsub.s32 0, %v604
        %v606 = vsel %vm600, %v605, %v604
        %vm607 = vcmp.lt.s32.totalorder %v457, 0
        %v608 = vsub.s32 0, %v457
        %v609 = vsel %vm607, %v608, %v457
        %v610 = vshrl.u32 %v609, 4
        %v611 = vand.u32 %v609, 15
        %v612 = vsub.s32 0, %v611
        %v613 = vsel %vm607, %v612, %v611
        %vm614 = vcmp.lt.s32.totalorder %v458, 0
        %v615 = vsub.s32 0, %v458
        %v616 = vsel %vm614, %v615, %v458
        %v617 = vshrl.u32 %v616, 4
        %v618 = vand.u32 %v616, 15
        %v619 = vsub.s32 0, %v618
        %v620 = vsel %vm614, %v619, %v618
        %vm621 = vcmp.lt.s32.totalorder %v459, 0
        %v622 = vsub.s32 0, %v459
        %v623 = vsel %vm621, %v622, %v459
        %v624 = vshrl.u32 %v623, 4
        %v625 = vand.u32 %v623, 15
        %v626 = vsub.s32 0, %v625
        %v627 = vsel %vm621, %v626, %v625
        %vm628 = vcmp.lt.s32.totalorder %v460, 0
        %v629 = vsub.s32 0, %v460
        %v630 = vsel %vm628, %v629, %v460
        %v631 = vshrl.u32 %v630, 4
        %v632 = vand.u32 %v630, 15
        %v633 = vsub.s32 0, %v632
        %v634 = vsel %vm628, %v633, %v632
        %vm635 = vcmp.lt.s32.totalorder %v461, 0
        %v636 = vsub.s32 0, %v461
        %v637 = vsel %vm635, %v636, %v461
        %v638 = vshrl.u32 %v637, 4
        %v639 = vand.u32 %v637, 15
        %v640 = vsub.s32 0, %v639
        %v641 = vsel %vm635, %v640, %v639
        %vm642 = vcmp.lt.s32.totalorder %v462, 0
        %v643 = vsub.s32 0, %v462
        %v644 = vsel %vm642, %v643, %v462
        %v645 = vshrl.u32 %v644, 4
        %v646 = vand.u32 %v644, 15
        %v647 = vsub.s32 0, %v646
        %v648 = vsel %vm642, %v647, %v646
        %vm649 = vcmp.lt.s32.totalorder %v463, 0
        %v650 = vsub.s32 0, %v463
        %v651 = vsel %vm649, %v650, %v463
        %v652 = vshrl.u32 %v651, 4
        %v653 = vand.u32 %v651, 15
        %v654 = vsub.s32 0, %v653
        %v655 = vsel %vm649, %v654, %v653
        %vm656 = vcmp.lt.s32.totalorder %v464, 0
        %v657 = vsub.s32 0, %v464
        %v658 = vsel %vm656, %v657, %v464
        %v659 = vshrl.u32 %v658, 4
        %v660 = vand.u32 %v658, 15
        %v661 = vsub.s32 0, %v660
        %v662 = vsel %vm656, %v661, %v660
        %vm663 = vcmp.lt.s32.totalorder %v465, 0
        %v664 = vsub.s32 0, %v465
        %v665 = vsel %vm663, %v664, %v465
        %v666 = vshrl.u32 %v665, 4
        %v667 = vand.u32 %v665, 15
        %v668 = vsub.s32 0, %v667
        %v669 = vsel %vm663, %v668, %v667
        %vm670 = vcmp.lt.s32.totalorder %v466, 0
        %v671 = vsub.s32 0, %v466
        %v672 = vsel %vm670, %v671, %v466
        %v673 = vshrl.u32 %v672, 4
        %v674 = vand.u32 %v672, 15
        %v675 = vsub.s32 0, %v674
        %v676 = vsel %vm670, %v675, %v674
        %vm677 = vcmp.lt.s32.totalorder %v467, 0
        %v678 = vsub.s32 0, %v467
        %v679 = vsel %vm677, %v678, %v467
        %v680 = vshrl.u32 %v679, 4
        %v681 = vand.u32 %v679, 15
        %v682 = vsub.s32 0, %v681
        %v683 = vsel %vm677, %v682, %v681
        %vm684 = vcmp.lt.s32.totalorder %v468, 0
        %v685 = vsub.s32 0, %v468
        %v686 = vsel %vm684, %v685, %v468
        %v687 = vshrl.u32 %v686, 4
        %v688 = vand.u32 %v686, 15
        %v689 = vsub.s32 0, %v688
        %v690 = vsel %vm684, %v689, %v688
        %vm691 = vcmp.lt.s32.totalorder %v469, 0
        %v692 = vsub.s32 0, %v469
        %v693 = vsel %vm691, %v692, %v469
        %v694 = vshrl.u32 %v693, 4
        %v695 = vand.u32 %v693, 15
        %v696 = vsub.s32 0, %v695
        %v697 = vsel %vm691, %v696, %v695
        %vm698 = vcmp.lt.s32.totalorder %v470, 0
        %v699 = vsub.s32 0, %v470
        %v700 = vsel %vm698, %v699, %v470
        %v701 = vshrl.u32 %v700, 4
        %v702 = vand.u32 %v700, 15
        %v703 = vsub.s32 0, %v702
        %v704 = vsel %vm698, %v703, %v702
        %vm705 = vcmp.lt.s32.totalorder %v471, 0
        %v706 = vsub.s32 0, %v471
        %v707 = vsel %vm705, %v706, %v471
        %v708 = vshrl.u32 %v707, 4
        %v709 = vand.u32 %v707, 15
        %v710 = vsub.s32 0, %v709
        %v711 = vsel %vm705, %v710, %v709
        %vm712 = vcmp.lt.s32.totalorder %v472, 0
        %v713 = vsub.s32 0, %v472
        %v714 = vsel %vm712, %v713, %v472
        %v715 = vshrl.u32 %v714, 4
        %v716 = vand.u32 %v714, 15
        %v717 = vsub.s32 0, %v716
        %v718 = vsel %vm712, %v717, %v716
        %vm719 = vcmp.lt.s32.totalorder %v473, 0
        %v720 = vsub.s32 0, %v473
        %v721 = vsel %vm719, %v720, %v473
        %v722 = vshrl.u32 %v721, 4
        %v723 = vand.u32 %v721, 15
        %v724 = vsub.s32 0, %v723
        %v725 = vsel %vm719, %v724, %v723
        %vm726 = vcmp.ne.s32.totalorder %v480, 0
        %vm727 = vcmp.ne.s32.totalorder %v487, 0
        %vm728 = vcmp.ne.s32.totalorder %v494, 0
        %vm729 = vcmp.ne.s32.totalorder %v501, 0
        %vm730 = vcmp.ne.s32.totalorder %v508, 0
        %vm731 = vcmp.ne.s32.totalorder %v515, 0
        %vm732 = vcmp.ne.s32.totalorder %v522, 0
        %vm733 = vcmp.ne.s32.totalorder %v529, 0
        %vm734 = vcmp.ne.s32.totalorder %v536, 0
        %vm735 = vcmp.ne.s32.totalorder %v543, 0
        %vm736 = vcmp.ne.s32.totalorder %v550, 0
        %vm737 = vcmp.ne.s32.totalorder %v557, 0
        %vm738 = vcmp.ne.s32.totalorder %v564, 0
        %vm739 = vcmp.ne.s32.totalorder %v571, 0
        %vm740 = vcmp.ne.s32.totalorder %v578, 0
        %vm741 = vcmp.ne.s32.totalorder %v585, 0
        %vm742 = vcmp.ne.s32.totalorder %v592, 0
        %vm743 = vcmp.ne.s32.totalorder %v599, 0
        %vm744 = vcmp.ne.s32.totalorder %v606, 0
        %vm745 = vcmp.ne.s32.totalorder %v613, 0
        %vm746 = vcmp.ne.s32.totalorder %v620, 0
        %vm747 = vcmp.ne.s32.totalorder %v627, 0
        %vm748 = vcmp.ne.s32.totalorder %v634, 0
        %vm749 = vcmp.ne.s32.totalorder %v641, 0
        %vm750 = vcmp.ne.s32.totalorder %v648, 0
        %vm751 = vcmp.ne.s32.totalorder %v655, 0
        %vm752 = vcmp.ne.s32.totalorder %v662, 0
        %vm753 = vcmp.ne.s32.totalorder %v669, 0
        %vm754 = vcmp.ne.s32.totalorder %v676, 0
        %vm755 = vcmp.ne.s32.totalorder %v683, 0
        %vm756 = vcmp.ne.s32.totalorder %v690, 0
        %vm757 = vcmp.ne.s32.totalorder %v697, 0
        %vm758 = vcmp.ne.s32.totalorder %v704, 0
        %vm759 = vcmp.ne.s32.totalorder %v711, 0
        %vm760 = vcmp.ne.s32.totalorder %v718, 0
        %vm761 = vcmp.ne.s32.totalorder %v725, 0
        %vm762 = vcmp.lt.s32.totalorder %v480, 0
        %vm763 = vcmp.lt.s32.totalorder %v487, 0
        %vm764 = vcmp.lt.s32.totalorder %v494, 0
        %vm765 = vcmp.lt.s32.totalorder %v501, 0
        %vm766 = vcmp.lt.s32.totalorder %v508, 0
        %vm767 = vcmp.lt.s32.totalorder %v515, 0
        %vm768 = vcmp.lt.s32.totalorder %v522, 0
        %vm769 = vcmp.lt.s32.totalorder %v529, 0
        %vm770 = vcmp.lt.s32.totalorder %v536, 0
        %vm771 = vcmp.lt.s32.totalorder %v543, 0
        %vm772 = vcmp.lt.s32.totalorder %v550, 0
        %vm773 = vcmp.lt.s32.totalorder %v557, 0
        %vm774 = vcmp.lt.s32.totalorder %v564, 0
        %vm775 = vcmp.lt.s32.totalorder %v571, 0
        %vm776 = vcmp.lt.s32.totalorder %v578, 0
        %vm777 = vcmp.lt.s32.totalorder %v585, 0
        %vm778 = vcmp.lt.s32.totalorder %v592, 0
        %vm779 = vcmp.lt.s32.totalorder %v599, 0
        %vm780 = vcmp.lt.s32.totalorder %v606, 0
        %vm781 = vcmp.lt.s32.totalorder %v613, 0
        %vm782 = vcmp.lt.s32.totalorder %v620, 0
        %vm783 = vcmp.lt.s32.totalorder %v627, 0
        %vm784 = vcmp.lt.s32.totalorder %v634, 0
        %vm785 = vcmp.lt.s32.totalorder %v641, 0
        %vm786 = vcmp.lt.s32.totalorder %v648, 0
        %vm787 = vcmp.lt.s32.totalorder %v655, 0
        %vm788 = vcmp.lt.s32.totalorder %v662, 0
        %vm789 = vcmp.lt.s32.totalorder %v669, 0
        %vm790 = vcmp.lt.s32.totalorder %v676, 0
        %vm791 = vcmp.lt.s32.totalorder %v683, 0
        %vm792 = vcmp.lt.s32.totalorder %v690, 0
        %vm793 = vcmp.lt.s32.totalorder %v697, 0
        %vm794 = vcmp.lt.s32.totalorder %v704, 0
        %vm795 = vcmp.lt.s32.totalorder %v711, 0
        %vm796 = vcmp.lt.s32.totalorder %v718, 0
        %vm797 = vcmp.lt.s32.totalorder %v725, 0
        %vm798 = vmand %vm762, %vm726
        %vm799 = vmand %vm763, %vm727
        %vm800 = vmand %vm764, %vm728
        %vm801 = vmand %vm765, %vm729
        %vm802 = vmand %vm766, %vm730
        %vm803 = vmand %vm767, %vm731
        %vm804 = vmand %vm768, %vm732
        %vm805 = vmand %vm769, %vm733
        %vm806 = vmand %vm770, %vm734
        %vm807 = vmand %vm771, %vm735
        %vm808 = vmand %vm772, %vm736
        %vm809 = vmand %vm773, %vm737
        %vm810 = vmand %vm774, %vm738
        %vm811 = vmand %vm775, %vm739
        %vm812 = vmand %vm776, %vm740
        %vm813 = vmand %vm777, %vm741
        %vm814 = vmand %vm778, %vm742
        %vm815 = vmand %vm779, %vm743
        %vm816 = vmand %vm780, %vm744
        %vm817 = vmand %vm781, %vm745
        %vm818 = vmand %vm782, %vm746
        %vm819 = vmand %vm783, %vm747
        %vm820 = vmand %vm784, %vm748
        %vm821 = vmand %vm785, %vm749
        %vm822 = vmand %vm786, %vm750
        %vm823 = vmand %vm787, %vm751
        %vm824 = vmand %vm788, %vm752
        %vm825 = vmand %vm789, %vm753
        %vm826 = vmand %vm790, %vm754
        %vm827 = vmand %vm791, %vm755
        %vm828 = vmand %vm792, %vm756
        %vm829 = vmand %vm793, %vm757
        %vm830 = vmand %vm794, %vm758
        %vm831 = vmand %vm795, %vm759
        %vm832 = vmand %vm796, %vm760
        %vm833 = vmand %vm797, %vm761
        %v834 = vadd.s32 %v480, 16
        %v835 = vadd.s32 %v487, 16
        %v836 = vadd.s32 %v494, 16
        %v837 = vadd.s32 %v501, 16
        %v838 = vadd.s32 %v508, 16
        %v839 = vadd.s32 %v515, 16
        %v840 = vadd.s32 %v522, 16
        %v841 = vadd.s32 %v529, 16
        %v842 = vadd.s32 %v536, 16
        %v843 = vadd.s32 %v543, 16
        %v844 = vadd.s32 %v550, 16
        %v845 = vadd.s32 %v557, 16
        %v846 = vadd.s32 %v564, 16
        %v847 = vadd.s32 %v571, 16
        %v848 = vadd.s32 %v578, 16
        %v849 = vadd.s32 %v585, 16
        %v850 = vadd.s32 %v592, 16
        %v851 = vadd.s32 %v599, 16
        %v852 = vadd.s32 %v606, 16
        %v853 = vadd.s32 %v613, 16
        %v854 = vadd.s32 %v620, 16
        %v855 = vadd.s32 %v627, 16
        %v856 = vadd.s32 %v634, 16
        %v857 = vadd.s32 %v641, 16
        %v858 = vadd.s32 %v648, 16
        %v859 = vadd.s32 %v655, 16
        %v860 = vadd.s32 %v662, 16
        %v861 = vadd.s32 %v669, 16
        %v862 = vadd.s32 %v676, 16
        %v863 = vadd.s32 %v683, 16
        %v864 = vadd.s32 %v690, 16
        %v865 = vadd.s32 %v697, 16
        %v866 = vadd.s32 %v704, 16
        %v867 = vadd.s32 %v711, 16
        %v868 = vadd.s32 %v718, 16
        %v869 = vadd.s32 %v725, 16
        %v870 = vsel %vm798, %v834, %v480
        %v871 = vsel %vm799, %v835, %v487
        %v872 = vsel %vm800, %v836, %v494
        %v873 = vsel %vm801, %v837, %v501
        %v874 = vsel %vm802, %v838, %v508
        %v875 = vsel %vm803, %v839, %v515
        %v876 = vsel %vm804, %v840, %v522
        %v877 = vsel %vm805, %v841, %v529
        %v878 = vsel %vm806, %v842, %v536
        %v879 = vsel %vm807, %v843, %v543
        %v880 = vsel %vm808, %v844, %v550
        %v881 = vsel %vm809, %v845, %v557
        %v882 = vsel %vm810, %v846, %v564
        %v883 = vsel %vm811, %v847, %v571
        %v884 = vsel %vm812, %v848, %v578
        %v885 = vsel %vm813, %v849, %v585
        %v886 = vsel %vm814, %v850, %v592
        %v887 = vsel %vm815, %v851, %v599
        %v888 = vsel %vm816, %v852, %v606
        %v889 = vsel %vm817, %v853, %v613
        %v890 = vsel %vm818, %v854, %v620
        %v891 = vsel %vm819, %v855, %v627
        %v892 = vsel %vm820, %v856, %v634
        %v893 = vsel %vm821, %v857, %v641
        %v894 = vsel %vm822, %v858, %v648
        %v895 = vsel %vm823, %v859, %v655
        %v896 = vsel %vm824, %v860, %v662
        %v897 = vsel %vm825, %v861, %v669
        %v898 = vsel %vm826, %v862, %v676
        %v899 = vsel %vm827, %v863, %v683
        %v900 = vsel %vm828, %v864, %v690
        %v901 = vsel %vm829, %v865, %v697
        %v902 = vsel %vm830, %v866, %v704
        %v903 = vsel %vm831, %v867, %v711
        %v904 = vsel %vm832, %v868, %v718
        %v905 = vsel %vm833, %v869, %v725
        %v942 = vunpack.c.l.b16 %v416
        %v943 = vunpack.c.l.b16 %v417
        %v944 = vunpack.c.l.b16 %v351
        %v945 = vunpack.c.l.b16 %v352
        %v946 = vunpack.c.l.b16 %v353
        %v947 = vunpack.c.l.b16 %v354
        %v948 = vunpack.c.l.b16 %v355
        %v949 = vunpack.c.l.b16 %v356
        %v950 = vunpack.c.l.b16 %v357
        %v951 = vunpack.c.l.b16 %v358
        %v952 = vunpack.c.l.b16 %v359
        %v953 = vunpack.c.l.b16 %v360
        %v954 = vunpack.c.l.b16 %v361
        %v955 = vunpack.c.l.b16 %v362
        %v956 = vunpack.c.l.b16 %v363
        %v957 = vunpack.c.l.b16 %v364
        %v958 = vunpack.c.l.b16 %v365
        %v959 = vunpack.c.l.b16 %v366
        %v960 = vunpack.c.l.b16 %v367
        %v961 = vunpack.c.l.b16 %v368
        %v962 = vunpack.c.l.b16 %v369
        %v963 = vunpack.c.l.b16 %v370
        %v964 = vunpack.c.l.b16 %v371
        %v965 = vunpack.c.l.b16 %v372
        %v966 = vunpack.c.l.b16 %v373
        %v967 = vunpack.c.l.b16 %v374
        %v968 = vunpack.c.l.b16 %v375
        %v969 = vunpack.c.l.b16 %v376
        %v970 = vunpack.c.l.b16 %v377
        %v971 = vunpack.c.l.b16 %v378
        %v972 = vunpack.c.l.b16 %v379
        %v973 = vunpack.c.l.b16 %v380
        %v974 = vunpack.c.l.b16 %v381
        %v975 = vunpack.c.l.b16 %v382
        %v976 = vunpack.c.l.b16 %v435
        %v977 = vunpack.c.l.b16 %v436
        %v978 = vpack.c.b16 %v943, %v942
        %v979 = vpack.c.b16 %v945, %v944
        %v980 = vpack.c.b16 %v947, %v946
        %v981 = vpack.c.b16 %v949, %v948
        %v982 = vpack.c.b16 %v951, %v950
        %v983 = vpack.c.b16 %v953, %v952
        %v984 = vpack.c.b16 %v955, %v954
        %v985 = vpack.c.b16 %v957, %v956
        %v986 = vpack.c.b16 %v959, %v958
        %v987 = vpack.c.b16 %v961, %v960
        %v988 = vpack.c.b16 %v963, %v962
        %v989 = vpack.c.b16 %v965, %v964
        %v990 = vpack.c.b16 %v967, %v966
        %v991 = vpack.c.b16 %v969, %v968
        %v992 = vpack.c.b16 %v971, %v970
        %v993 = vpack.c.b16 %v973, %v972
        %v994 = vpack.c.b16 %v975, %v974
        %v995 = vpack.c.b16 %v977, %v976
        %vm996 = vsmask.f32 256
        %v998 = vshrl.u32 %v978, 16
        %v1000 = vrot.slane %v998, 7
        %v1001 = vshll.u32 %v978, 16
        %v1003 = vor.u32 %v1000, %v1001
        %v1005 = vshrl.u32 %v979, 16
        %v1007 = vrot.slane %v1005, 7
        %v1008 = vshll.u32 %v979, 16
        %v1010 = vor.u32 %v1007, %v1008
        %v1011 = vsel %vm996, %v1000, %v1010
        %v1013 = vshrl.u32 %v980, 16
        %v1015 = vrot.slane %v1013, 7
        %v1016 = vshll.u32 %v980, 16
        %v1018 = vor.u32 %v1015, %v1016
        %v1019 = vsel %vm996, %v1007, %v1018
        %v1021 = vshrl.u32 %v981, 16
        %v1023 = vrot.slane %v1021, 7
        %v1024 = vshll.u32 %v981, 16
        %v1026 = vor.u32 %v1023, %v1024
        %v1027 = vsel %vm996, %v1015, %v1026
        %v1029 = vshrl.u32 %v982, 16
        %v1031 = vrot.slane %v1029, 7
        %v1032 = vshll.u32 %v982, 16
        %v1034 = vor.u32 %v1031, %v1032
        %v1035 = vsel %vm996, %v1023, %v1034
        %v1037 = vshrl.u32 %v983, 16
        %v1039 = vrot.slane %v1037, 7
        %v1040 = vshll.u32 %v983, 16
        %v1042 = vor.u32 %v1039, %v1040
        %v1043 = vsel %vm996, %v1031, %v1042
        %v1045 = vshrl.u32 %v984, 16
        %v1047 = vrot.slane %v1045, 7
        %v1048 = vshll.u32 %v984, 16
        %v1050 = vor.u32 %v1047, %v1048
        %v1051 = vsel %vm996, %v1039, %v1050
        %v1053 = vshrl.u32 %v985, 16
        %v1055 = vrot.slane %v1053, 7
        %v1056 = vshll.u32 %v985, 16
        %v1058 = vor.u32 %v1055, %v1056
        %v1059 = vsel %vm996, %v1047, %v1058
        %v1061 = vshrl.u32 %v986, 16
        %v1063 = vrot.slane %v1061, 7
        %v1064 = vshll.u32 %v986, 16
        %v1066 = vor.u32 %v1063, %v1064
        %v1067 = vsel %vm996, %v1055, %v1066
        %v1069 = vshrl.u32 %v987, 16
        %v1071 = vrot.slane %v1069, 7
        %v1072 = vshll.u32 %v987, 16
        %v1074 = vor.u32 %v1071, %v1072
        %v1075 = vsel %vm996, %v1063, %v1074
        %v1077 = vshrl.u32 %v988, 16
        %v1079 = vrot.slane %v1077, 7
        %v1080 = vshll.u32 %v988, 16
        %v1082 = vor.u32 %v1079, %v1080
        %v1083 = vsel %vm996, %v1071, %v1082
        %v1085 = vshrl.u32 %v989, 16
        %v1087 = vrot.slane %v1085, 7
        %v1088 = vshll.u32 %v989, 16
        %v1090 = vor.u32 %v1087, %v1088
        %v1091 = vsel %vm996, %v1079, %v1090
        %v1093 = vshrl.u32 %v990, 16
        %v1095 = vrot.slane %v1093, 7
        %v1096 = vshll.u32 %v990, 16
        %v1098 = vor.u32 %v1095, %v1096
        %v1099 = vsel %vm996, %v1087, %v1098
        %v1101 = vshrl.u32 %v991, 16
        %v1103 = vrot.slane %v1101, 7
        %v1104 = vshll.u32 %v991, 16
        %v1106 = vor.u32 %v1103, %v1104
        %v1107 = vsel %vm996, %v1095, %v1106
        %v1109 = vshrl.u32 %v992, 16
        %v1111 = vrot.slane %v1109, 7
        %v1112 = vshll.u32 %v992, 16
        %v1114 = vor.u32 %v1111, %v1112
        %v1115 = vsel %vm996, %v1103, %v1114
        %v1117 = vshrl.u32 %v993, 16
        %v1119 = vrot.slane %v1117, 7
        %v1120 = vshll.u32 %v993, 16
        %v1122 = vor.u32 %v1119, %v1120
        %v1123 = vsel %vm996, %v1111, %v1122
        %v1125 = vshrl.u32 %v994, 16
        %v1127 = vrot.slane %v1125, 7
        %v1128 = vshll.u32 %v994, 16
        %v1130 = vor.u32 %v1127, %v1128
        %v1131 = vsel %vm996, %v1119, %v1130
        %v1133 = vshrl.u32 %v995, 16
        %v1135 = vrot.slane %v1133, 7
        %v1136 = vshll.u32 %v995, 16
        %v1138 = vor.u32 %v1135, %v1136
        %v1139 = vsel %vm996, %v1127, %v1138
        %vm1158 = vcmask 1040384
        %vm1159 = vmand %vm1158, %vm996
        %v1160 = vsel %vm1159, 0, %v1003
        %vm1161 = vcmp.ne.s32.totalorder %v870, 0
        %vm1162 = vcmp.ne.s32.totalorder %v871, 0
        %vm1163 = vcmp.ne.s32.totalorder %v872, 0
        %vm1164 = vcmp.ne.s32.totalorder %v873, 0
        %vm1165 = vcmp.ne.s32.totalorder %v874, 0
        %vm1166 = vcmp.ne.s32.totalorder %v875, 0
        %vm1167 = vcmp.ne.s32.totalorder %v876, 0
        %vm1168 = vcmp.ne.s32.totalorder %v877, 0
        %vm1169 = vcmp.ne.s32.totalorder %v878, 0
        %vm1170 = vcmp.ne.s32.totalorder %v879, 0
        %vm1171 = vcmp.ne.s32.totalorder %v880, 0
        %vm1172 = vcmp.ne.s32.totalorder %v881, 0
        %vm1173 = vcmp.ne.s32.totalorder %v882, 0
        %vm1174 = vcmp.ne.s32.totalorder %v883, 0
        %vm1175 = vcmp.ne.s32.totalorder %v884, 0
        %vm1176 = vcmp.ne.s32.totalorder %v885, 0
        %vm1177 = vcmp.ne.s32.totalorder %v886, 0
        %vm1178 = vcmp.ne.s32.totalorder %v887, 0
        %vm1179 = vcmp.ne.s32.totalorder %v888, 0
        %vm1180 = vcmp.ne.s32.totalorder %v889, 0
        %vm1181 = vcmp.ne.s32.totalorder %v890, 0
        %vm1182 = vcmp.ne.s32.totalorder %v891, 0
        %vm1183 = vcmp.ne.s32.totalorder %v892, 0
        %vm1184 = vcmp.ne.s32.totalorder %v893, 0
        %vm1185 = vcmp.ne.s32.totalorder %v894, 0
        %vm1186 = vcmp.ne.s32.totalorder %v895, 0
        %vm1187 = vcmp.ne.s32.totalorder %v896, 0
        %vm1188 = vcmp.ne.s32.totalorder %v897, 0
        %vm1189 = vcmp.ne.s32.totalorder %v898, 0
        %vm1190 = vcmp.ne.s32.totalorder %v899, 0
        %vm1191 = vcmp.ne.s32.totalorder %v900, 0
        %vm1192 = vcmp.ne.s32.totalorder %v901, 0
        %vm1193 = vcmp.ne.s32.totalorder %v902, 0
        %vm1194 = vcmp.ne.s32.totalorder %v903, 0
        %vm1195 = vcmp.ne.s32.totalorder %v904, 0
        %vm1196 = vcmp.ne.s32.totalorder %v905, 0
        %v1197 = vsel %vm1161, 1, 0
        %v1198 = vsel %vm1162, 1, 0
        %v1199 = vsel %vm1163, 1, 0
        %v1200 = vsel %vm1164, 1, 0
        %v1201 = vsel %vm1165, 1, 0
        %v1202 = vsel %vm1166, 1, 0
        %v1203 = vsel %vm1167, 1, 0
        %v1204 = vsel %vm1168, 1, 0
        %v1205 = vsel %vm1169, 1, 0
        %v1206 = vsel %vm1170, 1, 0
        %v1207 = vsel %vm1171, 1, 0
        %v1208 = vsel %vm1172, 1, 0
        %v1209 = vsel %vm1173, 1, 0
        %v1210 = vsel %vm1174, 1, 0
        %v1211 = vsel %vm1175, 1, 0
        %v1212 = vsel %vm1176, 1, 0
        %v1213 = vsel %vm1177, 1, 0
        %v1214 = vsel %vm1178, 1, 0
        %v1215 = vsel %vm1179, 1, 0
        %v1216 = vsel %vm1180, 1, 0
        %v1217 = vsel %vm1181, 1, 0
        %v1218 = vsel %vm1182, 1, 0
        %v1219 = vsel %vm1183, 1, 0
        %v1220 = vsel %vm1184, 1, 0
        %v1221 = vsel %vm1185, 1, 0
        %v1222 = vsel %vm1186, 1, 0
        %v1223 = vsel %vm1187, 1, 0
        %v1224 = vsel %vm1188, 1, 0
        %v1225 = vsel %vm1189, 1, 0
        %v1226 = vsel %vm1190, 1, 0
        %v1227 = vsel %vm1191, 1, 0
        %v1228 = vsel %vm1192, 1, 0
        %v1229 = vsel %vm1193, 1, 0
        %v1230 = vsel %vm1194, 1, 0
        %v1231 = vsel %vm1195, 1, 0
        %v1232 = vsel %vm1196, 1, 0
        %vm1233 = vcmp.eq.s32.totalorder %v1197, 1
        %vm1234 = vcmp.eq.s32.totalorder %v1198, 1
        %vm1235 = vcmp.eq.s32.totalorder %v1199, 1
        %vm1236 = vcmp.eq.s32.totalorder %v1200, 1
        %vm1237 = vcmp.eq.s32.totalorder %v1201, 1
        %vm1238 = vcmp.eq.s32.totalorder %v1202, 1
        %vm1239 = vcmp.eq.s32.totalorder %v1203, 1
        %vm1240 = vcmp.eq.s32.totalorder %v1204, 1
        %vm1241 = vcmp.eq.s32.totalorder %v1205, 1
        %vm1242 = vcmp.eq.s32.totalorder %v1206, 1
        %vm1243 = vcmp.eq.s32.totalorder %v1207, 1
        %vm1244 = vcmp.eq.s32.totalorder %v1208, 1
        %vm1245 = vcmp.eq.s32.totalorder %v1209, 1
        %vm1246 = vcmp.eq.s32.totalorder %v1210, 1
        %vm1247 = vcmp.eq.s32.totalorder %v1211, 1
        %vm1248 = vcmp.eq.s32.totalorder %v1212, 1
        %vm1249 = vcmp.eq.s32.totalorder %v1213, 1
        %vm1250 = vcmp.eq.s32.totalorder %v1214, 1
        %vm1251 = vcmp.eq.s32.totalorder %v1215, 1
        %vm1252 = vcmp.eq.s32.totalorder %v1216, 1
        %vm1253 = vcmp.eq.s32.totalorder %v1217, 1
        %vm1254 = vcmp.eq.s32.totalorder %v1218, 1
        %vm1255 = vcmp.eq.s32.totalorder %v1219, 1
        %vm1256 = vcmp.eq.s32.totalorder %v1220, 1
        %vm1257 = vcmp.eq.s32.totalorder %v1221, 1
        %vm1258 = vcmp.eq.s32.totalorder %v1222, 1
        %vm1259 = vcmp.eq.s32.totalorder %v1223, 1
        %vm1260 = vcmp.eq.s32.totalorder %v1224, 1
        %vm1261 = vcmp.eq.s32.totalorder %v1225, 1
        %vm1262 = vcmp.eq.s32.totalorder %v1226, 1
        %vm1263 = vcmp.eq.s32.totalorder %v1227, 1
        %vm1264 = vcmp.eq.s32.totalorder %v1228, 1
        %vm1265 = vcmp.eq.s32.totalorder %v1229, 1
        %vm1266 = vcmp.eq.s32.totalorder %v1230, 1
        %vm1267 = vcmp.eq.s32.totalorder %v1231, 1
        %vm1268 = vcmp.eq.s32.totalorder %v1232, 1
        %vm1269 = vmpackc.low %vm1233, %vm1233
        %vm1270 = vmpackc.low %vm1234, %vm1234
        %vm1271 = vmpackc.low %vm1235, %vm1235
        %vm1272 = vmpackc.low %vm1236, %vm1236
        %vm1273 = vmpackc.low %vm1237, %vm1237
        %vm1274 = vmpackc.low %vm1238, %vm1238
        %vm1275 = vmpackc.low %vm1239, %vm1239
        %vm1276 = vmpackc.low %vm1240, %vm1240
        %vm1277 = vmpackc.low %vm1241, %vm1241
        %vm1278 = vmpackc.low %vm1242, %vm1242
        %vm1279 = vmpackc.low %vm1243, %vm1243
        %vm1280 = vmpackc.low %vm1244, %vm1244
        %vm1281 = vmpackc.low %vm1245, %vm1245
        %vm1282 = vmpackc.low %vm1246, %vm1246
        %vm1283 = vmpackc.low %vm1247, %vm1247
        %vm1284 = vmpackc.low %vm1248, %vm1248
        %vm1285 = vmpackc.low %vm1249, %vm1249
        %vm1286 = vmpackc.low %vm1250, %vm1250
        %vm1287 = vmpackc.low %vm1251, %vm1251
        %vm1288 = vmpackc.low %vm1252, %vm1252
        %vm1289 = vmpackc.low %vm1253, %vm1253
        %vm1290 = vmpackc.low %vm1254, %vm1254
        %vm1291 = vmpackc.low %vm1255, %vm1255
        %vm1292 = vmpackc.low %vm1256, %vm1256
        %vm1293 = vmpackc.low %vm1257, %vm1257
        %vm1294 = vmpackc.low %vm1258, %vm1258
        %vm1295 = vmpackc.low %vm1259, %vm1259
        %vm1296 = vmpackc.low %vm1260, %vm1260
        %vm1297 = vmpackc.low %vm1261, %vm1261
        %vm1298 = vmpackc.low %vm1262, %vm1262
        %vm1299 = vmpackc.low %vm1263, %vm1263
        %vm1300 = vmpackc.low %vm1264, %vm1264
        %vm1301 = vmpackc.low %vm1265, %vm1265
        %vm1302 = vmpackc.low %vm1266, %vm1266
        %vm1303 = vmpackc.low %vm1267, %vm1267
        %vm1304 = vmpackc.low %vm1268, %vm1268
        %v1305 = vsel %vm1269, 65537, 0
        %v1306 = vsel %vm1270, 65537, 0
        %v1307 = vsel %vm1271, 65537, 0
        %v1308 = vsel %vm1272, 65537, 0
        %v1309 = vsel %vm1273, 65537, 0
        %v1310 = vsel %vm1274, 65537, 0
        %v1311 = vsel %vm1275, 65537, 0
        %v1312 = vsel %vm1276, 65537, 0
        %v1313 = vsel %vm1277, 65537, 0
        %v1314 = vsel %vm1278, 65537, 0
        %v1315 = vsel %vm1279, 65537, 0
        %v1316 = vsel %vm1280, 65537, 0
        %v1317 = vsel %vm1281, 65537, 0
        %v1318 = vsel %vm1282, 65537, 0
        %v1319 = vsel %vm1283, 65537, 0
        %v1320 = vsel %vm1284, 65537, 0
        %v1321 = vsel %vm1285, 65537, 0
        %v1322 = vsel %vm1286, 65537, 0
        %v1323 = vsel %vm1287, 65537, 0
        %v1324 = vsel %vm1288, 65537, 0
        %v1325 = vsel %vm1289, 65537, 0
        %v1326 = vsel %vm1290, 65537, 0
        %v1327 = vsel %vm1291, 65537, 0
        %v1328 = vsel %vm1292, 65537, 0
        %v1329 = vsel %vm1293, 65537, 0
        %v1330 = vsel %vm1294, 65537, 0
        %v1331 = vsel %vm1295, 65537, 0
        %v1332 = vsel %vm1296, 65537, 0
        %v1333 = vsel %vm1297, 65537, 0
        %v1334 = vsel %vm1298, 65537, 0
        %v1335 = vsel %vm1299, 65537, 0
        %v1336 = vsel %vm1300, 65537, 0
        %v1337 = vsel %vm1301, 65537, 0
        %v1338 = vsel %vm1302, 65537, 0
        %v1339 = vsel %vm1303, 65537, 0
        %v1340 = vsel %vm1304, 65537, 0
        %v1341 = vunpack.c.l.b16 %v1305
        %v1342 = vunpack.c.l.b16 %v1306
        %v1343 = vunpack.c.l.b16 %v1307
        %v1344 = vunpack.c.l.b16 %v1308
        %v1345 = vunpack.c.l.b16 %v1309
        %v1346 = vunpack.c.l.b16 %v1310
        %v1347 = vunpack.c.l.b16 %v1311
        %v1348 = vunpack.c.l.b16 %v1312
        %v1349 = vunpack.c.l.b16 %v1313
        %v1350 = vunpack.c.l.b16 %v1314
        %v1351 = vunpack.c.l.b16 %v1315
        %v1352 = vunpack.c.l.b16 %v1316
        %v1353 = vunpack.c.l.b16 %v1317
        %v1354 = vunpack.c.l.b16 %v1318
        %v1355 = vunpack.c.l.b16 %v1319
        %v1356 = vunpack.c.l.b16 %v1320
        %v1357 = vunpack.c.l.b16 %v1321
        %v1358 = vunpack.c.l.b16 %v1322
        %v1359 = vunpack.c.l.b16 %v1323
        %v1360 = vunpack.c.l.b16 %v1324
        %v1361 = vunpack.c.l.b16 %v1325
        %v1362 = vunpack.c.l.b16 %v1326
        %v1363 = vunpack.c.l.b16 %v1327
        %v1364 = vunpack.c.l.b16 %v1328
        %v1365 = vunpack.c.l.b16 %v1329
        %v1366 = vunpack.c.l.b16 %v1330
        %v1367 = vunpack.c.l.b16 %v1331
        %v1368 = vunpack.c.l.b16 %v1332
        %v1369 = vunpack.c.l.b16 %v1333
        %v1370 = vunpack.c.l.b16 %v1334
        %v1371 = vunpack.c.l.b16 %v1335
        %v1372 = vunpack.c.l.b16 %v1336
        %v1373 = vunpack.c.l.b16 %v1337
        %v1374 = vunpack.c.l.b16 %v1338
        %v1375 = vunpack.c.l.b16 %v1339
        %v1376 = vunpack.c.l.b16 %v1340
        %v1377 = vpack.c.b16 %v1342, %v1341
        %v1378 = vpack.c.b16 %v1344, %v1343
        %v1379 = vpack.c.b16 %v1346, %v1345
        %v1380 = vpack.c.b16 %v1348, %v1347
        %v1381 = vpack.c.b16 %v1350, %v1349
        %v1382 = vpack.c.b16 %v1352, %v1351
        %v1383 = vpack.c.b16 %v1354, %v1353
        %v1384 = vpack.c.b16 %v1356, %v1355
        %v1385 = vpack.c.b16 %v1358, %v1357
        %v1386 = vpack.c.b16 %v1360, %v1359
        %v1387 = vpack.c.b16 %v1362, %v1361
        %v1388 = vpack.c.b16 %v1364, %v1363
        %v1389 = vpack.c.b16 %v1366, %v1365
        %v1390 = vpack.c.b16 %v1368, %v1367
        %v1391 = vpack.c.b16 %v1370, %v1369
        %v1392 = vpack.c.b16 %v1372, %v1371
        %v1393 = vpack.c.b16 %v1374, %v1373
        %v1394 = vpack.c.b16 %v1376, %v1375
        %vm1395 = vcmp.ne.s16.totalorder %v1377, 0
        %vm1396 = vcmp.ne.s16.totalorder %v1378, 0
        %vm1397 = vcmp.ne.s16.totalorder %v1379, 0
        %vm1398 = vcmp.ne.s16.totalorder %v1380, 0
        %vm1399 = vcmp.ne.s16.totalorder %v1381, 0
        %vm1400 = vcmp.ne.s16.totalorder %v1382, 0
        %vm1401 = vcmp.ne.s16.totalorder %v1383, 0
        %vm1402 = vcmp.ne.s16.totalorder %v1384, 0
        %vm1403 = vcmp.ne.s16.totalorder %v1385, 0
        %vm1404 = vcmp.ne.s16.totalorder %v1386, 0
        %vm1405 = vcmp.ne.s16.totalorder %v1387, 0
        %vm1406 = vcmp.ne.s16.totalorder %v1388, 0
        %vm1407 = vcmp.ne.s16.totalorder %v1389, 0
        %vm1408 = vcmp.ne.s16.totalorder %v1390, 0
        %vm1409 = vcmp.ne.s16.totalorder %v1391, 0
        %vm1410 = vcmp.ne.s16.totalorder %v1392, 0
        %vm1411 = vcmp.ne.s16.totalorder %v1393, 0
        %vm1412 = vcmp.ne.s16.totalorder %v1394, 0
        %v1413 = vsel %vm1395, %v1160, 0
        %v1414 = vsel %vm1396, %v1011, 0
        %v1415 = vsel %vm1397, %v1019, 0
        %v1416 = vsel %vm1398, %v1027, 0
        %v1417 = vsel %vm1399, %v1035, 0
        %v1418 = vsel %vm1400, %v1043, 0
        %v1419 = vsel %vm1401, %v1051, 0
        %v1420 = vsel %vm1402, %v1059, 0
        %v1421 = vsel %vm1403, %v1067, 0
        %v1422 = vsel %vm1404, %v1075, 0
        %v1423 = vsel %vm1405, %v1083, 0
        %v1424 = vsel %vm1406, %v1091, 0
        %v1425 = vsel %vm1407, %v1099, 0
        %v1426 = vsel %vm1408, %v1107, 0
        %v1427 = vsel %vm1409, %v1115, 0
        %v1428 = vsel %vm1410, %v1123, 0
        %v1429 = vsel %vm1411, %v1131, 0
        %v1430 = vsel %vm1412, %v1139, 0
        %vm1431 = vsmask.f32 7424
        %v1432 = vrot.slane %v1001, 1
        %v1433 = vor.u32 %v998, %v1432
        %v1434 = vrot.slane %v1008, 1
        %v1435 = vsel %vm1431, %v1433, %v1434
        %v1436 = vor.u32 %v1005, %v1434
        %v1437 = vrot.slane %v1016, 1
        %v1438 = vsel %vm1431, %v1436, %v1437
        %v1439 = vor.u32 %v1013, %v1437
        %v1440 = vrot.slane %v1024, 1
        %v1441 = vsel %vm1431, %v1439, %v1440
        %v1442 = vor.u32 %v1021, %v1440
        %v1443 = vrot.slane %v1032, 1
        %v1444 = vsel %vm1431, %v1442, %v1443
        %v1445 = vor.u32 %v1029, %v1443
        %v1446 = vrot.slane %v1040, 1
        %v1447 = vsel %vm1431, %v1445, %v1446
        %v1448 = vor.u32 %v1037, %v1446
        %v1449 = vrot.slane %v1048, 1
        %v1450 = vsel %vm1431, %v1448, %v1449
        %v1451 = vor.u32 %v1045, %v1449
        %v1452 = vrot.slane %v1056, 1
        %v1453 = vsel %vm1431, %v1451, %v1452
        %v1454 = vor.u32 %v1053, %v1452
        %v1455 = vrot.slane %v1064, 1
        %v1456 = vsel %vm1431, %v1454, %v1455
        %v1457 = vor.u32 %v1061, %v1455
        %v1458 = vrot.slane %v1072, 1
        %v1459 = vsel %vm1431, %v1457, %v1458
        %v1460 = vor.u32 %v1069, %v1458
        %v1461 = vrot.slane %v1080, 1
        %v1462 = vsel %vm1431, %v1460, %v1461
        %v1463 = vor.u32 %v1077, %v1461
        %v1464 = vrot.slane %v1088, 1
        %v1465 = vsel %vm1431, %v1463, %v1464
        %v1466 = vor.u32 %v1085, %v1464
        %v1467 = vrot.slane %v1096, 1
        %v1468 = vsel %vm1431, %v1466, %v1467
        %v1469 = vor.u32 %v1093, %v1467
        %v1470 = vrot.slane %v1104, 1
        %v1471 = vsel %vm1431, %v1469, %v1470
        %v1472 = vor.u32 %v1101, %v1470
        %v1473 = vrot.slane %v1112, 1
        %v1474 = vsel %vm1431, %v1472, %v1473
        %v1475 = vor.u32 %v1109, %v1473
        %v1476 = vrot.slane %v1120, 1
        %v1477 = vsel %vm1431, %v1475, %v1476
        %v1478 = vor.u32 %v1117, %v1476
        %v1479 = vrot.slane %v1128, 1
        %v1480 = vsel %vm1431, %v1478, %v1479
        %v1481 = vor.u32 %v1125, %v1479
        %v1482 = vrot.slane %v1136, 1
        %v1483 = vsel %vm1431, %v1481, %v1482
        %v1484 = vor.u32 %v1133, %v1482
        %vm1503 = vcmask 1047552
        %vm1504 = vmand %vm1503, %vm1431
        %v1505 = vsel %vm1504, %v1484, 0
        %vm1506 = vcmp.ne.s32.totalorder %v870, 15
        %vm1507 = vcmp.ne.s32.totalorder %v871, 15
        %vm1508 = vcmp.ne.s32.totalorder %v872, 15
        %vm1509 = vcmp.ne.s32.totalorder %v873, 15
        %vm1510 = vcmp.ne.s32.totalorder %v874, 15
        %vm1511 = vcmp.ne.s32.totalorder %v875, 15
        %vm1512 = vcmp.ne.s32.totalorder %v876, 15
        %vm1513 = vcmp.ne.s32.totalorder %v877, 15
        %vm1514 = vcmp.ne.s32.totalorder %v878, 15
        %vm1515 = vcmp.ne.s32.totalorder %v879, 15
        %vm1516 = vcmp.ne.s32.totalorder %v880, 15
        %vm1517 = vcmp.ne.s32.totalorder %v881, 15
        %vm1518 = vcmp.ne.s32.totalorder %v882, 15
        %vm1519 = vcmp.ne.s32.totalorder %v883, 15
        %vm1520 = vcmp.ne.s32.totalorder %v884, 15
        %vm1521 = vcmp.ne.s32.totalorder %v885, 15
        %vm1522 = vcmp.ne.s32.totalorder %v886, 15
        %vm1523 = vcmp.ne.s32.totalorder %v887, 15
        %vm1524 = vcmp.ne.s32.totalorder %v888, 15
        %vm1525 = vcmp.ne.s32.totalorder %v889, 15
        %vm1526 = vcmp.ne.s32.totalorder %v890, 15
        %vm1527 = vcmp.ne.s32.totalorder %v891, 15
        %vm1528 = vcmp.ne.s32.totalorder %v892, 15
        %vm1529 = vcmp.ne.s32.totalorder %v893, 15
        %vm1530 = vcmp.ne.s32.totalorder %v894, 15
        %vm1531 = vcmp.ne.s32.totalorder %v895, 15
        %vm1532 = vcmp.ne.s32.totalorder %v896, 15
        %vm1533 = vcmp.ne.s32.totalorder %v897, 15
        %vm1534 = vcmp.ne.s32.totalorder %v898, 15
        %vm1535 = vcmp.ne.s32.totalorder %v899, 15
        %vm1536 = vcmp.ne.s32.totalorder %v900, 15
        %vm1537 = vcmp.ne.s32.totalorder %v901, 15
        %vm1538 = vcmp.ne.s32.totalorder %v902, 15
        %vm1539 = vcmp.ne.s32.totalorder %v903, 15
        %vm1540 = vcmp.ne.s32.totalorder %v904, 15
        %vm1541 = vcmp.ne.s32.totalorder %v905, 15
        %v1542 = vsel %vm1506, 1, 0
        %v1543 = vsel %vm1507, 1, 0
        %v1544 = vsel %vm1508, 1, 0
        %v1545 = vsel %vm1509, 1, 0
        %v1546 = vsel %vm1510, 1, 0
        %v1547 = vsel %vm1511, 1, 0
        %v1548 = vsel %vm1512, 1, 0
        %v1549 = vsel %vm1513, 1, 0
        %v1550 = vsel %vm1514, 1, 0
        %v1551 = vsel %vm1515, 1, 0
        %v1552 = vsel %vm1516, 1, 0
        %v1553 = vsel %vm1517, 1, 0
        %v1554 = vsel %vm1518, 1, 0
        %v1555 = vsel %vm1519, 1, 0
        %v1556 = vsel %vm1520, 1, 0
        %v1557 = vsel %vm1521, 1, 0
        %v1558 = vsel %vm1522, 1, 0
        %v1559 = vsel %vm1523, 1, 0
        %v1560 = vsel %vm1524, 1, 0
        %v1561 = vsel %vm1525, 1, 0
        %v1562 = vsel %vm1526, 1, 0
        %v1563 = vsel %vm1527, 1, 0
        %v1564 = vsel %vm1528, 1, 0
        %v1565 = vsel %vm1529, 1, 0
        %v1566 = vsel %vm1530, 1, 0
        %v1567 = vsel %vm1531, 1, 0
        %v1568 = vsel %vm1532, 1, 0
        %v1569 = vsel %vm1533, 1, 0
        %v1570 = vsel %vm1534, 1, 0
        %v1571 = vsel %vm1535, 1, 0
        %v1572 = vsel %vm1536, 1, 0
        %v1573 = vsel %vm1537, 1, 0
        %v1574 = vsel %vm1538, 1, 0
        %v1575 = vsel %vm1539, 1, 0
        %v1576 = vsel %vm1540, 1, 0
        %v1577 = vsel %vm1541, 1, 0
        %vm1578 = vcmp.eq.s32.totalorder %v1542, 1
        %vm1579 = vcmp.eq.s32.totalorder %v1543, 1
        %vm1580 = vcmp.eq.s32.totalorder %v1544, 1
        %vm1581 = vcmp.eq.s32.totalorder %v1545, 1
        %vm1582 = vcmp.eq.s32.totalorder %v1546, 1
        %vm1583 = vcmp.eq.s32.totalorder %v1547, 1
        %vm1584 = vcmp.eq.s32.totalorder %v1548, 1
        %vm1585 = vcmp.eq.s32.totalorder %v1549, 1
        %vm1586 = vcmp.eq.s32.totalorder %v1550, 1
        %vm1587 = vcmp.eq.s32.totalorder %v1551, 1
        %vm1588 = vcmp.eq.s32.totalorder %v1552, 1
        %vm1589 = vcmp.eq.s32.totalorder %v1553, 1
        %vm1590 = vcmp.eq.s32.totalorder %v1554, 1
        %vm1591 = vcmp.eq.s32.totalorder %v1555, 1
        %vm1592 = vcmp.eq.s32.totalorder %v1556, 1
        %vm1593 = vcmp.eq.s32.totalorder %v1557, 1
        %vm1594 = vcmp.eq.s32.totalorder %v1558, 1
        %vm1595 = vcmp.eq.s32.totalorder %v1559, 1
        %vm1596 = vcmp.eq.s32.totalorder %v1560, 1
        %vm1597 = vcmp.eq.s32.totalorder %v1561, 1
        %vm1598 = vcmp.eq.s32.totalorder %v1562, 1
        %vm1599 = vcmp.eq.s32.totalorder %v1563, 1
        %vm1600 = vcmp.eq.s32.totalorder %v1564, 1
        %vm1601 = vcmp.eq.s32.totalorder %v1565, 1
        %vm1602 = vcmp.eq.s32.totalorder %v1566, 1
        %vm1603 = vcmp.eq.s32.totalorder %v1567, 1
        %vm1604 = vcmp.eq.s32.totalorder %v1568, 1
        %vm1605 = vcmp.eq.s32.totalorder %v1569, 1
        %vm1606 = vcmp.eq.s32.totalorder %v1570, 1
        %vm1607 = vcmp.eq.s32.totalorder %v1571, 1
        %vm1608 = vcmp.eq.s32.totalorder %v1572, 1
        %vm1609 = vcmp.eq.s32.totalorder %v1573, 1
        %vm1610 = vcmp.eq.s32.totalorder %v1574, 1
        %vm1611 = vcmp.eq.s32.totalorder %v1575, 1
        %vm1612 = vcmp.eq.s32.totalorder %v1576, 1
        %vm1613 = vcmp.eq.s32.totalorder %v1577, 1
        %vm1614 = vmpackc.low %vm1578, %vm1578
        %vm1615 = vmpackc.low %vm1579, %vm1579
        %vm1616 = vmpackc.low %vm1580, %vm1580
        %vm1617 = vmpackc.low %vm1581, %vm1581
        %vm1618 = vmpackc.low %vm1582, %vm1582
        %vm1619 = vmpackc.low %vm1583, %vm1583
        %vm1620 = vmpackc.low %vm1584, %vm1584
        %vm1621 = vmpackc.low %vm1585, %vm1585
        %vm1622 = vmpackc.low %vm1586, %vm1586
        %vm1623 = vmpackc.low %vm1587, %vm1587
        %vm1624 = vmpackc.low %vm1588, %vm1588
        %vm1625 = vmpackc.low %vm1589, %vm1589
        %vm1626 = vmpackc.low %vm1590, %vm1590
        %vm1627 = vmpackc.low %vm1591, %vm1591
        %vm1628 = vmpackc.low %vm1592, %vm1592
        %vm1629 = vmpackc.low %vm1593, %vm1593
        %vm1630 = vmpackc.low %vm1594, %vm1594
        %vm1631 = vmpackc.low %vm1595, %vm1595
        %vm1632 = vmpackc.low %vm1596, %vm1596
        %vm1633 = vmpackc.low %vm1597, %vm1597
        %vm1634 = vmpackc.low %vm1598, %vm1598
        %vm1635 = vmpackc.low %vm1599, %vm1599
        %vm1636 = vmpackc.low %vm1600, %vm1600
        %vm1637 = vmpackc.low %vm1601, %vm1601
        %vm1638 = vmpackc.low %vm1602, %vm1602
        %vm1639 = vmpackc.low %vm1603, %vm1603
        %vm1640 = vmpackc.low %vm1604, %vm1604
        %vm1641 = vmpackc.low %vm1605, %vm1605
        %vm1642 = vmpackc.low %vm1606, %vm1606
        %vm1643 = vmpackc.low %vm1607, %vm1607
        %vm1644 = vmpackc.low %vm1608, %vm1608
        %vm1645 = vmpackc.low %vm1609, %vm1609
        %vm1646 = vmpackc.low %vm1610, %vm1610
        %vm1647 = vmpackc.low %vm1611, %vm1611
        %vm1648 = vmpackc.low %vm1612, %vm1612
        %vm1649 = vmpackc.low %vm1613, %vm1613
        %v1650 = vsel %vm1614, 65537, 0
        %v1651 = vsel %vm1615, 65537, 0
        %v1652 = vsel %vm1616, 65537, 0
        %v1653 = vsel %vm1617, 65537, 0
        %v1654 = vsel %vm1618, 65537, 0
        %v1655 = vsel %vm1619, 65537, 0
        %v1656 = vsel %vm1620, 65537, 0
        %v1657 = vsel %vm1621, 65537, 0
        %v1658 = vsel %vm1622, 65537, 0
        %v1659 = vsel %vm1623, 65537, 0
        %v1660 = vsel %vm1624, 65537, 0
        %v1661 = vsel %vm1625, 65537, 0
        %v1662 = vsel %vm1626, 65537, 0
        %v1663 = vsel %vm1627, 65537, 0
        %v1664 = vsel %vm1628, 65537, 0
        %v1665 = vsel %vm1629, 65537, 0
        %v1666 = vsel %vm1630, 65537, 0
        %v1667 = vsel %vm1631, 65537, 0
        %v1668 = vsel %vm1632, 65537, 0
        %v1669 = vsel %vm1633, 65537, 0
        %v1670 = vsel %vm1634, 65537, 0
        %v1671 = vsel %vm1635, 65537, 0
        %v1672 = vsel %vm1636, 65537, 0
        %v1673 = vsel %vm1637, 65537, 0
        %v1674 = vsel %vm1638, 65537, 0
        %v1675 = vsel %vm1639, 65537, 0
        %v1676 = vsel %vm1640, 65537, 0
        %v1677 = vsel %vm1641, 65537, 0
        %v1678 = vsel %vm1642, 65537, 0
        %v1679 = vsel %vm1643, 65537, 0
        %v1680 = vsel %vm1644, 65537, 0
        %v1681 = vsel %vm1645, 65537, 0
        %v1682 = vsel %vm1646, 65537, 0
        %v1683 = vsel %vm1647, 65537, 0
        %v1684 = vsel %vm1648, 65537, 0
        %v1685 = vsel %vm1649, 65537, 0
        %v1686 = vunpack.c.l.b16 %v1650
        %v1687 = vunpack.c.l.b16 %v1651
        %v1688 = vunpack.c.l.b16 %v1652
        %v1689 = vunpack.c.l.b16 %v1653
        %v1690 = vunpack.c.l.b16 %v1654
        %v1691 = vunpack.c.l.b16 %v1655
        %v1692 = vunpack.c.l.b16 %v1656
        %v1693 = vunpack.c.l.b16 %v1657
        %v1694 = vunpack.c.l.b16 %v1658
        %v1695 = vunpack.c.l.b16 %v1659
        %v1696 = vunpack.c.l.b16 %v1660
        %v1697 = vunpack.c.l.b16 %v1661
        %v1698 = vunpack.c.l.b16 %v1662
        %v1699 = vunpack.c.l.b16 %v1663
        %v1700 = vunpack.c.l.b16 %v1664
        %v1701 = vunpack.c.l.b16 %v1665
        %v1702 = vunpack.c.l.b16 %v1666
        %v1703 = vunpack.c.l.b16 %v1667
        %v1704 = vunpack.c.l.b16 %v1668
        %v1705 = vunpack.c.l.b16 %v1669
        %v1706 = vunpack.c.l.b16 %v1670
        %v1707 = vunpack.c.l.b16 %v1671
        %v1708 = vunpack.c.l.b16 %v1672
        %v1709 = vunpack.c.l.b16 %v1673
        %v1710 = vunpack.c.l.b16 %v1674
        %v1711 = vunpack.c.l.b16 %v1675
        %v1712 = vunpack.c.l.b16 %v1676
        %v1713 = vunpack.c.l.b16 %v1677
        %v1714 = vunpack.c.l.b16 %v1678
        %v1715 = vunpack.c.l.b16 %v1679
        %v1716 = vunpack.c.l.b16 %v1680
        %v1717 = vunpack.c.l.b16 %v1681
        %v1718 = vunpack.c.l.b16 %v1682
        %v1719 = vunpack.c.l.b16 %v1683
        %v1720 = vunpack.c.l.b16 %v1684
        %v1721 = vunpack.c.l.b16 %v1685
        %v1722 = vpack.c.b16 %v1687, %v1686
        %v1723 = vpack.c.b16 %v1689, %v1688
        %v1724 = vpack.c.b16 %v1691, %v1690
        %v1725 = vpack.c.b16 %v1693, %v1692
        %v1726 = vpack.c.b16 %v1695, %v1694
        %v1727 = vpack.c.b16 %v1697, %v1696
        %v1728 = vpack.c.b16 %v1699, %v1698
        %v1729 = vpack.c.b16 %v1701, %v1700
        %v1730 = vpack.c.b16 %v1703, %v1702
        %v1731 = vpack.c.b16 %v1705, %v1704
        %v1732 = vpack.c.b16 %v1707, %v1706
        %v1733 = vpack.c.b16 %v1709, %v1708
        %v1734 = vpack.c.b16 %v1711, %v1710
        %v1735 = vpack.c.b16 %v1713, %v1712
        %v1736 = vpack.c.b16 %v1715, %v1714
        %v1737 = vpack.c.b16 %v1717, %v1716
        %v1738 = vpack.c.b16 %v1719, %v1718
        %v1739 = vpack.c.b16 %v1721, %v1720
        %vm1740 = vcmp.ne.s16.totalorder %v1722, 0
        %vm1741 = vcmp.ne.s16.totalorder %v1723, 0
        %vm1742 = vcmp.ne.s16.totalorder %v1724, 0
        %vm1743 = vcmp.ne.s16.totalorder %v1725, 0
        %vm1744 = vcmp.ne.s16.totalorder %v1726, 0
        %vm1745 = vcmp.ne.s16.totalorder %v1727, 0
        %vm1746 = vcmp.ne.s16.totalorder %v1728, 0
        %vm1747 = vcmp.ne.s16.totalorder %v1729, 0
        %vm1748 = vcmp.ne.s16.totalorder %v1730, 0
        %vm1749 = vcmp.ne.s16.totalorder %v1731, 0
        %vm1750 = vcmp.ne.s16.totalorder %v1732, 0
        %vm1751 = vcmp.ne.s16.totalorder %v1733, 0
        %vm1752 = vcmp.ne.s16.totalorder %v1734, 0
        %vm1753 = vcmp.ne.s16.totalorder %v1735, 0
        %vm1754 = vcmp.ne.s16.totalorder %v1736, 0
        %vm1755 = vcmp.ne.s16.totalorder %v1737, 0
        %vm1756 = vcmp.ne.s16.totalorder %v1738, 0
        %vm1757 = vcmp.ne.s16.totalorder %v1739, 0
        %v1758 = vsel %vm1740, %v1435, 0
        %v1759 = vsel %vm1741, %v1438, 0
        %v1760 = vsel %vm1742, %v1441, 0
        %v1761 = vsel %vm1743, %v1444, 0
        %v1762 = vsel %vm1744, %v1447, 0
        %v1763 = vsel %vm1745, %v1450, 0
        %v1764 = vsel %vm1746, %v1453, 0
        %v1765 = vsel %vm1747, %v1456, 0
        %v1766 = vsel %vm1748, %v1459, 0
        %v1767 = vsel %vm1749, %v1462, 0
        %v1768 = vsel %vm1750, %v1465, 0
        %v1769 = vsel %vm1751, %v1468, 0
        %v1770 = vsel %vm1752, %v1471, 0
        %v1771 = vsel %vm1753, %v1474, 0
        %v1772 = vsel %vm1754, %v1477, 0
        %v1773 = vsel %vm1755, %v1480, 0
        %v1774 = vsel %vm1756, %v1483, 0
        %v1775 = vsel %vm1757, %v1505, 0
        %v1794 = vld [vmem:[#allocation8] sm:$0xf]
        %v1795 = vld [vmem:[#allocation8 + $0x4] sm:$0xf]
        %v1796 = vld [vmem:[#allocation8 + $0x8] sm:$0xf]
        %v1797 = vld [vmem:[#allocation8 + $0xc] sm:$0xf]
        %v1798 = vld [vmem:[#allocation8 + $0x10] sm:$0xf]
        %v1799 = vld [vmem:[#allocation8 + $0x14] sm:$0xf]
        %v1800 = vld [vmem:[#allocation8 + $0x18] sm:$0xf]
        %v1801 = vld [vmem:[#allocation8 + $0x1c] sm:$0xf]
        %v1802 = vld [vmem:[#allocation8 + $0x20] sm:$0xf]
        %v1803 = vld [vmem:[#allocation8 + $0x24] sm:$0xf]
        %v1804 = vld [vmem:[#allocation8 + $0x28] sm:$0xf]
        %v1805 = vld [vmem:[#allocation8 + $0x2c] sm:$0xf]
        %v1806 = vld [vmem:[#allocation8 + $0x30] sm:$0xf]
        %v1807 = vld [vmem:[#allocation8 + $0x34] sm:$0xf]
        %v1808 = vld [vmem:[#allocation8 + $0x38] sm:$0xf]
        %v1809 = vld [vmem:[#allocation8 + $0x3c] sm:$0xf]
        %v1810 = vld [vmem:[#allocation8 + $0x40] sm:$0xf]
        %v1811 = vld [vmem:[#allocation8 + $0x44] sm:$0xf]
        %v1812 = vld [vmem:[#allocation8 + $0x48] sm:$0xf]
        %v1813 = vld [vmem:[#allocation8 + $0x4c] sm:$0xf]
        %v1814 = vld [vmem:[#allocation8 + $0x50] sm:$0xf]
        %v1815 = vld [vmem:[#allocation8 + $0x54] sm:$0xf]
        %v1816 = vld [vmem:[#allocation8 + $0x58] sm:$0xf]
        %v1817 = vld [vmem:[#allocation8 + $0x5c] sm:$0xf]
        %v1818 = vld [vmem:[#allocation8 + $0x60] sm:$0xf]
        %v1819 = vld [vmem:[#allocation8 + $0x64] sm:$0xf]
        %v1820 = vld [vmem:[#allocation8 + $0x68] sm:$0xf]
        %v1821 = vld [vmem:[#allocation8 + $0x6c] sm:$0xf]
        %v1822 = vld [vmem:[#allocation8 + $0x70] sm:$0xf]
        %v1823 = vld [vmem:[#allocation8 + $0x74] sm:$0xf]
        %v1824 = vld [vmem:[#allocation8 + $0x78] sm:$0xf]
        %v1825 = vld [vmem:[#allocation8 + $0x7c] sm:$0xf]
        %v1826 = vld [vmem:[#allocation8 + $0x80] sm:$0xf]
        %v1827 = vld [vmem:[#allocation8 + $0x84] sm:$0xf]
        %v1828 = vld [vmem:[#allocation8 + $0x88] sm:$0xf]
        %v1829 = vld [vmem:[#allocation8 + $0x8c] sm:$0xf]
        %v1830 = vld [vmem:[#allocation8 + $0x90] sm:$0xf]
        %v1831 = vld [vmem:[#allocation8 + $0x94] sm:$0xf]
        %v1832 = vld [vmem:[#allocation8 + $0x98] sm:$0xf]
        %v1833 = vld [vmem:[#allocation8 + $0x9c] sm:$0xf]
        %v1834 = vld [vmem:[#allocation8 + $0xa0] sm:$0xf]
        %v1835 = vld [vmem:[#allocation8 + $0xa4] sm:$0xf]
        %v1836 = vld [vmem:[#allocation8 + $0xa8] sm:$0xf]
        %v1837 = vld [vmem:[#allocation8 + $0xac] sm:$0xf]
        %v1838 = vld [vmem:[#allocation8 + $0xb0] sm:$0xf]
        %v1839 = vld [vmem:[#allocation8 + $0xb4] sm:$0xf]
        %v1840 = vld [vmem:[#allocation8 + $0xb8] sm:$0xf]
        %v1841 = vld [vmem:[#allocation8 + $0xbc] sm:$0xf]
        %s1842 = scalar_lea.vmem [#allocation8], 192
        %v1843 = vld [vmem:[%s1842] sm:$0xf]
        %v1844 = vld [vmem:[%s1842 + $0x4] sm:$0xf]
        %v1845 = vld [vmem:[%s1842 + $0x8] sm:$0xf]
        %v1846 = vld [vmem:[%s1842 + $0xc] sm:$0xf]
        %v1847 = vld [vmem:[%s1842 + $0x10] sm:$0xf]
        %v1848 = vld [vmem:[%s1842 + $0x14] sm:$0xf]
        %v1849 = vld [vmem:[%s1842 + $0x18] sm:$0xf]
        %v1850 = vld [vmem:[%s1842 + $0x1c] sm:$0xf]
        %v1851 = vld [vmem:[%s1842 + $0x20] sm:$0xf]
        %v1852 = vld [vmem:[%s1842 + $0x24] sm:$0xf]
        %v1853 = vld [vmem:[%s1842 + $0x28] sm:$0xf]
        %v1854 = vld [vmem:[%s1842 + $0x2c] sm:$0xf]
        %v1855 = vld [vmem:[%s1842 + $0x30] sm:$0xf]
        %v1856 = vld [vmem:[%s1842 + $0x34] sm:$0xf]
        %v1857 = vld [vmem:[%s1842 + $0x38] sm:$0xf]
        %v1858 = vld [vmem:[%s1842 + $0x3c] sm:$0xf]
        %v1859 = vld [vmem:[%s1842 + $0x40] sm:$0xf]
        %v1860 = vld [vmem:[%s1842 + $0x44] sm:$0xf]
        %v1861 = vld [vmem:[%s1842 + $0x48] sm:$0xf]
        %v1862 = vld [vmem:[%s1842 + $0x4c] sm:$0xf]
        %v1863 = vld [vmem:[%s1842 + $0x50] sm:$0xf]
        %v1864 = vld [vmem:[%s1842 + $0x54] sm:$0xf]
        %v1865 = vld [vmem:[%s1842 + $0x58] sm:$0xf]
        %v1866 = vld [vmem:[%s1842 + $0x5c] sm:$0xf]
        %v1867 = vld [vmem:[%s1842 + $0x60] sm:$0xf]
        %v1868 = vld [vmem:[%s1842 + $0x64] sm:$0xf]
        %v1869 = vld [vmem:[%s1842 + $0x68] sm:$0xf]
        %v1870 = vld [vmem:[%s1842 + $0x6c] sm:$0xf]
        %v1871 = vld [vmem:[%s1842 + $0x70] sm:$0xf]
        %v1872 = vld [vmem:[%s1842 + $0x74] sm:$0xf]
        %v1873 = vld [vmem:[%s1842 + $0x78] sm:$0xf]
        %v1874 = vld [vmem:[%s1842 + $0x7c] sm:$0xf]
        %v1875 = vld [vmem:[%s1842 + $0x80] sm:$0xf]
        %v1876 = vld [vmem:[%s1842 + $0x84] sm:$0xf]
        %v1877 = vld [vmem:[%s1842 + $0x88] sm:$0xf]
        %v1878 = vld [vmem:[%s1842 + $0x8c] sm:$0xf]
        %v1879 = vld [vmem:[%s1842 + $0x90] sm:$0xf]
        %v1880 = vld [vmem:[%s1842 + $0x94] sm:$0xf]
        %v1881 = vld [vmem:[%s1842 + $0x98] sm:$0xf]
        %v1882 = vld [vmem:[%s1842 + $0x9c] sm:$0xf]
        %v1883 = vld [vmem:[%s1842 + $0xa0] sm:$0xf]
        %v1884 = vld [vmem:[%s1842 + $0xa4] sm:$0xf]
        %v1885 = vld [vmem:[%s1842 + $0xa8] sm:$0xf]
        %v1886 = vld [vmem:[%s1842 + $0xac] sm:$0xf]
        %v1887 = vld [vmem:[%s1842 + $0xb0] sm:$0xf]
        %v1888 = vld [vmem:[%s1842 + $0xb4] sm:$0xf]
        %v1889 = vld [vmem:[%s1842 + $0xb8] sm:$0xf]
        %v1890 = vld [vmem:[%s1842 + $0xbc] sm:$0xf]
        %v1939 = vunpack.c.l.b16 %v1843
        %v1940 = vunpack.c.l.b16 %v1844
        %v1941 = vunpack.c.l.b16 %v1845
        %v1942 = vunpack.c.l.b16 %v1846
        %v1943 = vunpack.c.l.b16 %v1847
        %v1944 = vunpack.c.l.b16 %v1848
        %v1945 = vunpack.c.l.b16 %v1849
        %v1946 = vunpack.c.l.b16 %v1850
        %v1947 = vunpack.c.l.b16 %v1851
        %v1948 = vunpack.c.l.b16 %v1852
        %v1949 = vunpack.c.l.b16 %v1853
        %v1950 = vunpack.c.l.b16 %v1854
        %v1951 = vunpack.c.l.b16 %v1855
        %v1952 = vunpack.c.l.b16 %v1856
        %v1953 = vunpack.c.l.b16 %v1857
        %v1954 = vunpack.c.l.b16 %v1858
        %v1955 = vunpack.c.l.b16 %v1859
        %v1956 = vunpack.c.l.b16 %v1860
        %v1957 = vunpack.c.l.b16 %v1861
        %v1958 = vunpack.c.l.b16 %v1862
        %v1959 = vunpack.c.l.b16 %v1863
        %v1960 = vunpack.c.l.b16 %v1864
        %v1961 = vunpack.c.l.b16 %v1865
        %v1962 = vunpack.c.l.b16 %v1866
        %v1963 = vunpack.c.l.b16 %v1867
        %v1964 = vunpack.c.l.b16 %v1868
        %v1965 = vunpack.c.l.b16 %v1869
        %v1966 = vunpack.c.l.b16 %v1870
        %v1967 = vunpack.c.l.b16 %v1871
        %v1968 = vunpack.c.l.b16 %v1872
        %v1969 = vunpack.c.l.b16 %v1873
        %v1970 = vunpack.c.l.b16 %v1874
        %v1971 = vunpack.c.l.b16 %v1875
        %v1972 = vunpack.c.l.b16 %v1876
        %v1973 = vunpack.c.l.b16 %v1877
        %v1974 = vunpack.c.l.b16 %v1878
        %v1975 = vunpack.c.l.b16 %v1879
        %v1976 = vunpack.c.l.b16 %v1880
        %v1977 = vunpack.c.l.b16 %v1881
        %v1978 = vunpack.c.l.b16 %v1882
        %v1979 = vunpack.c.l.b16 %v1883
        %v1980 = vunpack.c.l.b16 %v1884
        %v1981 = vunpack.c.l.b16 %v1885
        %v1982 = vunpack.c.l.b16 %v1886
        %v1983 = vunpack.c.l.b16 %v1887
        %v1984 = vunpack.c.l.b16 %v1888
        %v1985 = vunpack.c.l.b16 %v1889
        %v1986 = vunpack.c.l.b16 %v1890
        %v1987 = vpack.c.b16 %v1940, %v1939
        %v1988 = vpack.c.b16 %v1942, %v1941
        %v1989 = vpack.c.b16 %v1944, %v1943
        %v1990 = vpack.c.b16 %v1946, %v1945
        %v1991 = vpack.c.b16 %v1948, %v1947
        %v1992 = vpack.c.b16 %v1950, %v1949
        %v1993 = vpack.c.b16 %v1952, %v1951
        %v1994 = vpack.c.b16 %v1954, %v1953
        %v1995 = vpack.c.b16 %v1956, %v1955
        %v1996 = vpack.c.b16 %v1958, %v1957
        %v1997 = vpack.c.b16 %v1960, %v1959
        %v1998 = vpack.c.b16 %v1962, %v1961
        %v1999 = vpack.c.b16 %v1964, %v1963
        %v2000 = vpack.c.b16 %v1966, %v1965
        %v2001 = vpack.c.b16 %v1968, %v1967
        %v2002 = vpack.c.b16 %v1970, %v1969
        %v2003 = vpack.c.b16 %v1972, %v1971
        %v2004 = vpack.c.b16 %v1974, %v1973
        %v2005 = vpack.c.b16 %v1976, %v1975
        %v2006 = vpack.c.b16 %v1978, %v1977
        %v2007 = vpack.c.b16 %v1980, %v1979
        %v2008 = vpack.c.b16 %v1982, %v1981
        %v2009 = vpack.c.b16 %v1984, %v1983
        %v2010 = vpack.c.b16 %v1986, %v1985
        %2035 = vmatprep.subr.bf16.mxu0 0
        %2036 = vmatpush1.bf16.msra.mxu0 %v1987
        %2037 = vmatprep.subr.bf16.mxu0 0
        %2038 = vmatpush1.bf16.msra.mxu0 %v1988
        %2039 = vmatprep.subr.bf16.mxu0 0
        %2040 = vmatpush1.bf16.msra.mxu0 %v1989
        %2041 = vmatprep.subr.bf16.mxu0 0
        %2042 = vmatpush1.bf16.msra.mxu0 %v1990
        %2043 = vmatprep.subr.bf16.mxu0 0
        %2044 = vmatpush1.bf16.msra.mxu0 %v1991
        %2045 = vmatprep.subr.bf16.mxu0 0
        %2046 = vmatpush1.bf16.msra.mxu0 %v1992
        %2047 = vmatprep.subr.bf16.mxu0 0
        %2048 = vmatpush1.bf16.msra.mxu0 %v1993
        %2049 = vmatprep.subr.bf16.mxu0 0
        %2050 = vmatpush1.bf16.msra.mxu0 %v1994
        %2051 = vmatprep.subr.bf16.mxu0 0
        %2052 = vmatpush1.bf16.msra.mxu0 %v1995
        %2053 = vmatprep.subr.bf16.mxu0 0
        %2054 = vmatpush1.bf16.msra.mxu0 %v1996
        %2055 = vmatprep.subr.bf16.mxu0 0
        %2056 = vmatpush1.bf16.msra.mxu0 %v1997
        %2057 = vmatprep.subr.bf16.mxu0 0
        %2058 = vmatpush1.bf16.msra.mxu0 %v1998
        %2059 = vmatprep.subr.bf16.mxu0 0
        %2060 = vmatpush1.bf16.msra.mxu0 %v1999
        %2061 = vmatprep.subr.bf16.mxu0 0
        %2062 = vmatpush1.bf16.msra.mxu0 %v2000
        %2063 = vmatprep.subr.bf16.mxu0 0
        %2064 = vmatpush1.bf16.msra.mxu0 %v2001
        %2065 = vmatprep.subr.bf16.mxu0 0
        %2066 = vmatpush1.bf16.msra.mxu0 %v2002
        %2067 = vmatprep.mubr.bf16.mxu0 %v979
        %2068 = vmatmul.mubr.bf16.gmra.mrb[0].mxu0 %v1414
        %v2069 = vpop.f32.mrb[0].mxu0
        %v2070 = vadd.f32 0.0, %v2069
        %v2071 = vpop.f32.mrb[0].mxu0
        %v2072 = vpop.f32.mrb[0].mxu0
        %v2073 = vadd.f32 0.0, %v2072
        %v2074 = vpop.f32.mrb[0].mxu0
        %2075 = vmatprep.mubr.bf16.mxu0 %v980
        %2076 = vmatmul.mubr.bf16.gmra.mrb[0].mxu0 %v1415
        %v2077 = vpop.f32.mrb[0].mxu0
        %v2078 = vadd.f32 0.0, %v2077
        %v2079 = vpop.f32.mrb[0].mxu0
        %v2080 = vpop.f32.mrb[0].mxu0
        %v2081 = vadd.f32 0.0, %v2080
        %v2082 = vpop.f32.mrb[0].mxu0
        %2083 = vmatprep.mubr.bf16.mxu0 %v981
        %2084 = vmatmul.mubr.bf16.gmra.mrb[0].mxu0 %v1416
        %v2085 = vpop.f32.mrb[0].mxu0
        %v2086 = vadd.f32 0.0, %v2085
        %v2087 = vpop.f32.mrb[0].mxu0
        %v2088 = vpop.f32.mrb[0].mxu0
        %v2089 = vadd.f32 0.0, %v2088
        %v2090 = vpop.f32.mrb[0].mxu0
        %2091 = vmatprep.mubr.bf16.mxu0 %v982
        %2092 = vmatmul.mubr.bf16.gmra.mrb[0].mxu0 %v1417
        %v2093 = vpop.f32.mrb[0].mxu0
        %v2094 = vadd.f32 0.0, %v2093
        %v2095 = vpop.f32.mrb[0].mxu0
        %v2096 = vpop.f32.mrb[0].mxu0
        %v2097 = vadd.f32 0.0, %v2096
        %v2098 = vpop.f32.mrb[0].mxu0
        %2099 = vmatprep.mubr.bf16.mxu0 %v983
        %2100 = vmatmul.mubr.bf16.gmra.mrb[0].mxu0 %v1418
        %v2101 = vpop.f32.mrb[0].mxu0
        %v2102 = vadd.f32 0.0, %v2101
        %v2103 = vpop.f32.mrb[0].mxu0
        %v2104 = vpop.f32.mrb[0].mxu0
        %v2105 = vadd.f32 0.0, %v2104
        %v2106 = vpop.f32.mrb[0].mxu0
        %2107 = vmatprep.mubr.bf16.mxu0 %v984
        %2108 = vmatmul.mubr.bf16.gmra.mrb[0].mxu0 %v1419
        %v2109 = vpop.f32.mrb[0].mxu0
        %v2110 = vadd.f32 0.0, %v2109
        %v2111 = vpop.f32.mrb[0].mxu0
        %v2112 = vpop.f32.mrb[0].mxu0
        %v2113 = vadd.f32 0.0, %v2112
        %v2114 = vpop.f32.mrb[0].mxu0
        %2115 = vmatprep.mubr.bf16.mxu0 %v985
        %2116 = vmatmul.mubr.bf16.gmra.mrb[0].mxu0 %v1420
        %v2117 = vpop.f32.mrb[0].mxu0
        %v2118 = vadd.f32 0.0, %v2117
        %v2119 = vpop.f32.mrb[0].mxu0
        %v2120 = vpop.f32.mrb[0].mxu0
        %v2121 = vadd.f32 0.0, %v2120
        %v2122 = vpop.f32.mrb[0].mxu0
        %2123 = vmatprep.mubr.bf16.mxu0 %v986
        %2124 = vmatmul.mubr.bf16.gmra.mrb[0].mxu0 %v1421
        %v2125 = vpop.f32.mrb[0].mxu0
        %v2126 = vadd.f32 0.0, %v2125
        %v2127 = vpop.f32.mrb[0].mxu0
        %v2128 = vpop.f32.mrb[0].mxu0
        %v2129 = vadd.f32 0.0, %v2128
        %v2130 = vpop.f32.mrb[0].mxu0
        %2131 = vmatprep.mubr.bf16.mxu0 %v987
        %2132 = vmatmul.mubr.bf16.gmra.mrb[0].mxu0 %v1422
        %v2133 = vpop.f32.mrb[0].mxu0
        %v2134 = vadd.f32 0.0, %v2133
        %v2135 = vpop.f32.mrb[0].mxu0
        %v2136 = vpop.f32.mrb[0].mxu0
        %v2137 = vadd.f32 0.0, %v2136
        %v2138 = vpop.f32.mrb[0].mxu0
        %2139 = vmatprep.mubr.bf16.mxu0 %v988
        %2140 = vmatmul.mubr.bf16.gmra.mrb[0].mxu0 %v1423
        %v2141 = vpop.f32.mrb[0].mxu0
        %v2142 = vadd.f32 0.0, %v2141
        %v2143 = vpop.f32.mrb[0].mxu0
        %v2144 = vpop.f32.mrb[0].mxu0
        %v2145 = vadd.f32 0.0, %v2144
        %v2146 = vpop.f32.mrb[0].mxu0
        %2147 = vmatprep.mubr.bf16.mxu0 %v989
        %2148 = vmatmul.mubr.bf16.gmra.mrb[0].mxu0 %v1424
        %v2149 = vpop.f32.mrb[0].mxu0
        %v2150 = vadd.f32 0.0, %v2149
        %v2151 = vpop.f32.mrb[0].mxu0
        %v2152 = vpop.f32.mrb[0].mxu0
        %v2153 = vadd.f32 0.0, %v2152
        %v2154 = vpop.f32.mrb[0].mxu0
        %2155 = vmatprep.mubr.bf16.mxu0 %v990
        %2156 = vmatmul.mubr.bf16.gmra.mrb[0].mxu0 %v1425
        %v2157 = vpop.f32.mrb[0].mxu0
        %v2158 = vadd.f32 0.0, %v2157
        %v2159 = vpop.f32.mrb[0].mxu0
        %v2160 = vpop.f32.mrb[0].mxu0
        %v2161 = vadd.f32 0.0, %v2160
        %v2162 = vpop.f32.mrb[0].mxu0
        %2163 = vmatprep.mubr.bf16.mxu0 %v991
        %2164 = vmatmul.mubr.bf16.gmra.mrb[0].mxu0 %v1426
        %v2165 = vpop.f32.mrb[0].mxu0
        %v2166 = vadd.f32 0.0, %v2165
        %v2167 = vpop.f32.mrb[0].mxu0
        %v2168 = vpop.f32.mrb[0].mxu0
        %v2169 = vadd.f32 0.0, %v2168
        %v2170 = vpop.f32.mrb[0].mxu0
        %2171 = vmatprep.mubr.bf16.mxu0 %v992
        %2172 = vmatmul.mubr.bf16.gmra.mrb[0].mxu0 %v1427
        %v2173 = vpop.f32.mrb[0].mxu0
        %v2174 = vadd.f32 0.0, %v2173
        %v2175 = vpop.f32.mrb[0].mxu0
        %v2176 = vpop.f32.mrb[0].mxu0
        %v2177 = vadd.f32 0.0, %v2176
        %v2178 = vpop.f32.mrb[0].mxu0
        %2179 = vmatprep.mubr.bf16.mxu0 %v993
        %2180 = vmatmul.mubr.bf16.gmra.mrb[0].mxu0 %v1428
        %v2181 = vpop.f32.mrb[0].mxu0
        %v2182 = vadd.f32 0.0, %v2181
        %v2183 = vpop.f32.mrb[0].mxu0
        %v2184 = vpop.f32.mrb[0].mxu0
        %v2185 = vadd.f32 0.0, %v2184
        %v2186 = vpop.f32.mrb[0].mxu0
        %2187 = vmatprep.mubr.bf16.mxu0 %v994
        %2188 = vmatmul.mubr.bf16.gmra.mrb[0].mxu0 %v1429
        %v2189 = vpop.f32.mrb[0].mxu0
        %v2190 = vadd.f32 0.0, %v2189
        %v2191 = vpop.f32.mrb[0].mxu0
        %v2192 = vpop.f32.mrb[0].mxu0
        %v2193 = vadd.f32 0.0, %v2192
        %v2194 = vpop.f32.mrb[0].mxu0
        %2195 = vdwg.mxu0
        %2196 = vmatprep.subr.bf16.mxu0 0
        %2197 = vmatpush1.bf16.msra.mxu0 %v2003
        %2198 = vmatprep.subr.bf16.mxu0 0
        %2199 = vmatpush1.bf16.msra.mxu0 %v2004
        %2200 = vmatprep.subr.bf16.mxu0 0
        %2201 = vmatpush1.bf16.msra.mxu0 %v2005
        %2202 = vmatprep.subr.bf16.mxu0 0
        %2203 = vmatpush1.bf16.msra.mxu0 %v2006
        %2204 = vmatprep.subr.bf16.mxu0 0
        %2205 = vmatpush1.bf16.msra.mxu0 %v2007
        %2206 = vmatprep.subr.bf16.mxu0 0
        %2207 = vmatpush1.bf16.msra.mxu0 %v2008
        %2208 = vmatprep.subr.bf16.mxu0 0
        %2209 = vmatpush1.bf16.msra.mxu0 %v2009
        %2210 = vmatprep.subr.bf16.mxu0 0
        %2211 = vmatpush1.bf16.msra.mxu0 %v2010
        %2212 = vmatprep.subr.bf16.mxu0 0
        %2213 = vmatpush1.bf16.msra.mxu0 0
        %2214 = vmatprep.subr.bf16.mxu0 0
        %2215 = vmatpush1.bf16.msra.mxu0 0
        %2216 = vmatprep.subr.bf16.mxu0 0
        %2217 = vmatpush1.bf16.msra.mxu0 0
        %2218 = vmatprep.subr.bf16.mxu0 0
        %2219 = vmatpush1.bf16.msra.mxu0 0
        %2220 = vmatprep.subr.bf16.mxu0 0
        %2221 = vmatpush1.bf16.msra.mxu0 0
        %2222 = vmatprep.subr.bf16.mxu0 0
        %2223 = vmatpush1.bf16.msra.mxu0 0
        %2224 = vmatprep.subr.bf16.mxu0 0
        %2225 = vmatpush1.bf16.msra.mxu0 0
        %2226 = vmatprep.subr.bf16.mxu0 0
        %2227 = vmatpush1.bf16.msra.mxu0 0
        %2228 = vmatprep.mubr.bf16.mxu0 0
        %2229 = vmatmul.mubr.bf16.gmra.mrb[0].mxu0 %v1759
        %v2230 = vpop.f32.mrb[0].mxu0
        %v2231 = vadd.f32 %v2070, %v2230
        %v2232 = vpop.f32.mrb[0].mxu0
        %v2233 = vpop.f32.mrb[0].mxu0
        %v2234 = vadd.f32 %v2073, %v2233
        %v2235 = vpop.f32.mrb[0].mxu0
        %2236 = vmatprep.mubr.bf16.mxu0 0
        %2237 = vmatmul.mubr.bf16.gmra.mrb[0].mxu0 %v1760
        %v2238 = vpop.f32.mrb[0].mxu0
        %v2239 = vadd.f32 %v2078, %v2238
        %v2240 = vpop.f32.mrb[0].mxu0
        %v2241 = vpop.f32.mrb[0].mxu0
        %v2242 = vadd.f32 %v2081, %v2241
        %v2243 = vpop.f32.mrb[0].mxu0
        %2244 = vmatprep.mubr.bf16.mxu0 0
        %2245 = vmatmul.mubr.bf16.gmra.mrb[0].mxu0 %v1761
        %v2246 = vpop.f32.mrb[0].mxu0
        %v2247 = vadd.f32 %v2086, %v2246
        %v2248 = vpop.f32.mrb[0].mxu0
        %v2249 = vpop.f32.mrb[0].mxu0
        %v2250 = vadd.f32 %v2089, %v2249
        %v2251 = vpop.f32.mrb[0].mxu0
        %2252 = vmatprep.mubr.bf16.mxu0 0
        %2253 = vmatmul.mubr.bf16.gmra.mrb[0].mxu0 %v1762
        %v2254 = vpop.f32.mrb[0].mxu0
        %v2255 = vadd.f32 %v2094, %v2254
        %v2256 = vpop.f32.mrb[0].mxu0
        %v2257 = vpop.f32.mrb[0].mxu0
        %v2258 = vadd.f32 %v2097, %v2257
        %v2259 = vpop.f32.mrb[0].mxu0
        %2260 = vmatprep.mubr.bf16.mxu0 0
        %2261 = vmatmul.mubr.bf16.gmra.mrb[0].mxu0 %v1763
        %v2262 = vpop.f32.mrb[0].mxu0
        %v2263 = vadd.f32 %v2102, %v2262
        %v2264 = vpop.f32.mrb[0].mxu0
        %v2265 = vpop.f32.mrb[0].mxu0
        %v2266 = vadd.f32 %v2105, %v2265
        %v2267 = vpop.f32.mrb[0].mxu0
        %2268 = vmatprep.mubr.bf16.mxu0 0
        %2269 = vmatmul.mubr.bf16.gmra.mrb[0].mxu0 %v1764
        %v2270 = vpop.f32.mrb[0].mxu0
        %v2271 = vadd.f32 %v2110, %v2270
        %v2272 = vpop.f32.mrb[0].mxu0
        %v2273 = vpop.f32.mrb[0].mxu0
        %v2274 = vadd.f32 %v2113, %v2273
        %v2275 = vpop.f32.mrb[0].mxu0
        %2276 = vmatprep.mubr.bf16.mxu0 0
        %2277 = vmatmul.mubr.bf16.gmra.mrb[0].mxu0 %v1765
        %v2278 = vpop.f32.mrb[0].mxu0
        %v2279 = vadd.f32 %v2118, %v2278
        %v2280 = vpop.f32.mrb[0].mxu0
        %v2281 = vpop.f32.mrb[0].mxu0
        %v2282 = vadd.f32 %v2121, %v2281
        %v2283 = vpop.f32.mrb[0].mxu0
        %2284 = vmatprep.mubr.bf16.mxu0 0
        %2285 = vmatmul.mubr.bf16.gmra.mrb[0].mxu0 %v1766
        %v2286 = vpop.f32.mrb[0].mxu0
        %v2287 = vadd.f32 %v2126, %v2286
        %v2288 = vpop.f32.mrb[0].mxu0
        %v2289 = vpop.f32.mrb[0].mxu0
        %v2290 = vadd.f32 %v2129, %v2289
        %v2291 = vpop.f32.mrb[0].mxu0
        %2292 = vmatprep.mubr.bf16.mxu0 0
        %2293 = vmatmul.mubr.bf16.gmra.mrb[0].mxu0 %v1767
        %v2294 = vpop.f32.mrb[0].mxu0
        %v2295 = vadd.f32 %v2134, %v2294
        %v2296 = vpop.f32.mrb[0].mxu0
        %v2297 = vpop.f32.mrb[0].mxu0
        %v2298 = vadd.f32 %v2137, %v2297
        %v2299 = vpop.f32.mrb[0].mxu0
        %2300 = vmatprep.mubr.bf16.mxu0 0
        %2301 = vmatmul.mubr.bf16.gmra.mrb[0].mxu0 %v1768
        %v2302 = vpop.f32.mrb[0].mxu0
        %v2303 = vadd.f32 %v2142, %v2302
        %v2304 = vpop.f32.mrb[0].mxu0
        %v2305 = vpop.f32.mrb[0].mxu0
        %v2306 = vadd.f32 %v2145, %v2305
        %v2307 = vpop.f32.mrb[0].mxu0
        %2308 = vmatprep.mubr.bf16.mxu0 0
        %2309 = vmatmul.mubr.bf16.gmra.mrb[0].mxu0 %v1769
        %v2310 = vpop.f32.mrb[0].mxu0
        %v2311 = vadd.f32 %v2150, %v2310
        %v2312 = vpop.f32.mrb[0].mxu0
        %v2313 = vpop.f32.mrb[0].mxu0
        %v2314 = vadd.f32 %v2153, %v2313
        %v2315 = vpop.f32.mrb[0].mxu0
        %2316 = vmatprep.mubr.bf16.mxu0 0
        %2317 = vmatmul.mubr.bf16.gmra.mrb[0].mxu0 %v1770
        %v2318 = vpop.f32.mrb[0].mxu0
        %v2319 = vadd.f32 %v2158, %v2318
        %v2320 = vpop.f32.mrb[0].mxu0
        %v2321 = vpop.f32.mrb[0].mxu0
        %v2322 = vadd.f32 %v2161, %v2321
        %v2323 = vpop.f32.mrb[0].mxu0
        %2324 = vmatprep.mubr.bf16.mxu0 0
        %2325 = vmatmul.mubr.bf16.gmra.mrb[0].mxu0 %v1771
        %v2326 = vpop.f32.mrb[0].mxu0
        %v2327 = vadd.f32 %v2166, %v2326
        %v2328 = vpop.f32.mrb[0].mxu0
        %v2329 = vpop.f32.mrb[0].mxu0
        %v2330 = vadd.f32 %v2169, %v2329
        %v2331 = vpop.f32.mrb[0].mxu0
        %2332 = vmatprep.mubr.bf16.mxu0 0
        %2333 = vmatmul.mubr.bf16.gmra.mrb[0].mxu0 %v1772
        %v2334 = vpop.f32.mrb[0].mxu0
        %v2335 = vadd.f32 %v2174, %v2334
        %v2336 = vpop.f32.mrb[0].mxu0
        %v2337 = vpop.f32.mrb[0].mxu0
        %v2338 = vadd.f32 %v2177, %v2337
        %v2339 = vpop.f32.mrb[0].mxu0
        %2340 = vmatprep.mubr.bf16.mxu0 0
        %2341 = vmatmul.mubr.bf16.gmra.mrb[0].mxu0 %v1773
        %v2342 = vpop.f32.mrb[0].mxu0
        %v2343 = vadd.f32 %v2182, %v2342
        %v2344 = vpop.f32.mrb[0].mxu0
        %v2345 = vpop.f32.mrb[0].mxu0
        %v2346 = vadd.f32 %v2185, %v2345
        %v2347 = vpop.f32.mrb[0].mxu0
        %2348 = vmatprep.mubr.bf16.mxu0 0
        %2349 = vmatmul.mubr.bf16.gmra.mrb[0].mxu0 %v1774
        %v2350 = vpop.f32.mrb[0].mxu0
        %v2351 = vadd.f32 %v2190, %v2350
        %v2352 = vpop.f32.mrb[0].mxu0
        %v2353 = vpop.f32.mrb[0].mxu0
        %v2354 = vadd.f32 %v2193, %v2353
        %v2355 = vpop.f32.mrb[0].mxu0
        %2356 = vdwg.mxu0
        %v2405 = vunpack.c.l.b16 %v1794
        %v2406 = vunpack.c.l.b16 %v1795
        %v2407 = vunpack.c.l.b16 %v1796
        %v2408 = vunpack.c.l.b16 %v1797
        %v2409 = vunpack.c.l.b16 %v1798
        %v2410 = vunpack.c.l.b16 %v1799
        %v2411 = vunpack.c.l.b16 %v1800
        %v2412 = vunpack.c.l.b16 %v1801
        %v2413 = vunpack.c.l.b16 %v1802
        %v2414 = vunpack.c.l.b16 %v1803
        %v2415 = vunpack.c.l.b16 %v1804
        %v2416 = vunpack.c.l.b16 %v1805
        %v2417 = vunpack.c.l.b16 %v1806
        %v2418 = vunpack.c.l.b16 %v1807
        %v2419 = vunpack.c.l.b16 %v1808
        %v2420 = vunpack.c.l.b16 %v1809
        %v2421 = vunpack.c.l.b16 %v1810
        %v2422 = vunpack.c.l.b16 %v1811
        %v2423 = vunpack.c.l.b16 %v1812
        %v2424 = vunpack.c.l.b16 %v1813
        %v2425 = vunpack.c.l.b16 %v1814
        %v2426 = vunpack.c.l.b16 %v1815
        %v2427 = vunpack.c.l.b16 %v1816
        %v2428 = vunpack.c.l.b16 %v1817
        %v2429 = vunpack.c.l.b16 %v1818
        %v2430 = vunpack.c.l.b16 %v1819
        %v2431 = vunpack.c.l.b16 %v1820
        %v2432 = vunpack.c.l.b16 %v1821
        %v2433 = vunpack.c.l.b16 %v1822
        %v2434 = vunpack.c.l.b16 %v1823
        %v2435 = vunpack.c.l.b16 %v1824
        %v2436 = vunpack.c.l.b16 %v1825
        %v2437 = vunpack.c.l.b16 %v1826
        %v2438 = vunpack.c.l.b16 %v1827
        %v2439 = vunpack.c.l.b16 %v1828
        %v2440 = vunpack.c.l.b16 %v1829
        %v2441 = vunpack.c.l.b16 %v1830
        %v2442 = vunpack.c.l.b16 %v1831
        %v2443 = vunpack.c.l.b16 %v1832
        %v2444 = vunpack.c.l.b16 %v1833
        %v2445 = vunpack.c.l.b16 %v1834
        %v2446 = vunpack.c.l.b16 %v1835
        %v2447 = vunpack.c.l.b16 %v1836
        %v2448 = vunpack.c.l.b16 %v1837
        %v2449 = vunpack.c.l.b16 %v1838
        %v2450 = vunpack.c.l.b16 %v1839
        %v2451 = vunpack.c.l.b16 %v1840
        %v2452 = vunpack.c.l.b16 %v1841
        %v2453 = vpack.c.b16 %v2406, %v2405
        %v2454 = vpack.c.b16 %v2408, %v2407
        %v2455 = vpack.c.b16 %v2410, %v2409
        %v2456 = vpack.c.b16 %v2412, %v2411
        %v2457 = vpack.c.b16 %v2414, %v2413
        %v2458 = vpack.c.b16 %v2416, %v2415
        %v2459 = vpack.c.b16 %v2418, %v2417
        %v2460 = vpack.c.b16 %v2420, %v2419
        %v2461 = vpack.c.b16 %v2422, %v2421
        %v2462 = vpack.c.b16 %v2424, %v2423
        %v2463 = vpack.c.b16 %v2426, %v2425
        %v2464 = vpack.c.b16 %v2428, %v2427
        %v2465 = vpack.c.b16 %v2430, %v2429
        %v2466 = vpack.c.b16 %v2432, %v2431
        %v2467 = vpack.c.b16 %v2434, %v2433
        %v2468 = vpack.c.b16 %v2436, %v2435
        %v2469 = vpack.c.b16 %v2438, %v2437
        %v2470 = vpack.c.b16 %v2440, %v2439
        %v2471 = vpack.c.b16 %v2442, %v2441
        %v2472 = vpack.c.b16 %v2444, %v2443
        %v2473 = vpack.c.b16 %v2446, %v2445
        %v2474 = vpack.c.b16 %v2448, %v2447
        %v2475 = vpack.c.b16 %v2450, %v2449
        %v2476 = vpack.c.b16 %v2452, %v2451
        %2501 = vmatprep.subr.bf16.mxu0 0
        %2502 = vmatpush1.bf16.msra.mxu0 %v2453
        %2503 = vmatprep.subr.bf16.mxu0 0
        %2504 = vmatpush1.bf16.msra.mxu0 %v2454
        %2505 = vmatprep.subr.bf16.mxu0 0
        %2506 = vmatpush1.bf16.msra.mxu0 %v2455
        %2507 = vmatprep.subr.bf16.mxu0 0
        %2508 = vmatpush1.bf16.msra.mxu0 %v2456
        %2509 = vmatprep.subr.bf16.mxu0 0
        %2510 = vmatpush1.bf16.msra.mxu0 %v2457
        %2511 = vmatprep.subr.bf16.mxu0 0
        %2512 = vmatpush1.bf16.msra.mxu0 %v2458
        %2513 = vmatprep.subr.bf16.mxu0 0
        %2514 = vmatpush1.bf16.msra.mxu0 %v2459
        %2515 = vmatprep.subr.bf16.mxu0 0
        %2516 = vmatpush1.bf16.msra.mxu0 %v2460
        %2517 = vmatprep.subr.bf16.mxu0 0
        %2518 = vmatpush1.bf16.msra.mxu0 %v2461
        %2519 = vmatprep.subr.bf16.mxu0 0
        %2520 = vmatpush1.bf16.msra.mxu0 %v2462
        %2521 = vmatprep.subr.bf16.mxu0 0
        %2522 = vmatpush1.bf16.msra.mxu0 %v2463
        %2523 = vmatprep.subr.bf16.mxu0 0
        %2524 = vmatpush1.bf16.msra.mxu0 %v2464
        %2525 = vmatprep.subr.bf16.mxu0 0
        %2526 = vmatpush1.bf16.msra.mxu0 %v2465
        %2527 = vmatprep.subr.bf16.mxu0 0
        %2528 = vmatpush1.bf16.msra.mxu0 %v2466
        %2529 = vmatprep.subr.bf16.mxu0 0
        %2530 = vmatpush1.bf16.msra.mxu0 %v2467
        %2531 = vmatprep.subr.bf16.mxu0 0
        %2532 = vmatpush1.bf16.msra.mxu0 %v2468
        %2533 = vmatprep.mubr.bf16.mxu0 %v978
        %2534 = vmatmul.mubr.bf16.gmra.mrb[0].mxu0 %v1413
        %v2535 = vpop.f32.mrb[0].mxu0
        %v2536 = vadd.f32 %v2231, %v2535
        %v2537 = vpop.f32.mrb[0].mxu0
        %v2538 = vpop.f32.mrb[0].mxu0
        %v2539 = vadd.f32 %v2234, %v2538
        %v2540 = vpop.f32.mrb[0].mxu0
        %2541 = vmatprep.mubr.bf16.mxu0 %v979
        %2542 = vmatmul.mubr.bf16.gmra.mrb[0].mxu0 %v1414
        %v2543 = vpop.f32.mrb[0].mxu0
        %v2544 = vadd.f32 %v2239, %v2543
        %v2545 = vpop.f32.mrb[0].mxu0
        %v2546 = vpop.f32.mrb[0].mxu0
        %v2547 = vadd.f32 %v2242, %v2546
        %v2548 = vpop.f32.mrb[0].mxu0
        %2549 = vmatprep.mubr.bf16.mxu0 %v980
        %2550 = vmatmul.mubr.bf16.gmra.mrb[0].mxu0 %v1415
        %v2551 = vpop.f32.mrb[0].mxu0
        %v2552 = vadd.f32 %v2247, %v2551
        %v2553 = vpop.f32.mrb[0].mxu0
        %v2554 = vpop.f32.mrb[0].mxu0
        %v2555 = vadd.f32 %v2250, %v2554
        %v2556 = vpop.f32.mrb[0].mxu0
        %2557 = vmatprep.mubr.bf16.mxu0 %v981
        %2558 = vmatmul.mubr.bf16.gmra.mrb[0].mxu0 %v1416
        %v2559 = vpop.f32.mrb[0].mxu0
        %v2560 = vadd.f32 %v2255, %v2559
        %v2561 = vpop.f32.mrb[0].mxu0
        %v2562 = vpop.f32.mrb[0].mxu0
        %v2563 = vadd.f32 %v2258, %v2562
        %v2564 = vpop.f32.mrb[0].mxu0
        %2565 = vmatprep.mubr.bf16.mxu0 %v982
        %2566 = vmatmul.mubr.bf16.gmra.mrb[0].mxu0 %v1417
        %v2567 = vpop.f32.mrb[0].mxu0
        %v2568 = vadd.f32 %v2263, %v2567
        %v2569 = vpop.f32.mrb[0].mxu0
        %v2570 = vpop.f32.mrb[0].mxu0
        %v2571 = vadd.f32 %v2266, %v2570
        %v2572 = vpop.f32.mrb[0].mxu0
        %2573 = vmatprep.mubr.bf16.mxu0 %v983
        %2574 = vmatmul.mubr.bf16.gmra.mrb[0].mxu0 %v1418
        %v2575 = vpop.f32.mrb[0].mxu0
        %v2576 = vadd.f32 %v2271, %v2575
        %v2577 = vpop.f32.mrb[0].mxu0
        %v2578 = vpop.f32.mrb[0].mxu0
        %v2579 = vadd.f32 %v2274, %v2578
        %v2580 = vpop.f32.mrb[0].mxu0
        %2581 = vmatprep.mubr.bf16.mxu0 %v984
        %2582 = vmatmul.mubr.bf16.gmra.mrb[0].mxu0 %v1419
        %v2583 = vpop.f32.mrb[0].mxu0
        %v2584 = vadd.f32 %v2279, %v2583
        %v2585 = vpop.f32.mrb[0].mxu0
        %v2586 = vpop.f32.mrb[0].mxu0
        %v2587 = vadd.f32 %v2282, %v2586
        %v2588 = vpop.f32.mrb[0].mxu0
        %2589 = vmatprep.mubr.bf16.mxu0 %v985
        %2590 = vmatmul.mubr.bf16.gmra.mrb[0].mxu0 %v1420
        %v2591 = vpop.f32.mrb[0].mxu0
        %v2592 = vadd.f32 %v2287, %v2591
        %v2593 = vpop.f32.mrb[0].mxu0
        %v2594 = vpop.f32.mrb[0].mxu0
        %v2595 = vadd.f32 %v2290, %v2594
        %v2596 = vpop.f32.mrb[0].mxu0
        %2597 = vmatprep.mubr.bf16.mxu0 %v986
        %2598 = vmatmul.mubr.bf16.gmra.mrb[0].mxu0 %v1421
        %v2599 = vpop.f32.mrb[0].mxu0
        %v2600 = vadd.f32 %v2295, %v2599
        %v2601 = vpop.f32.mrb[0].mxu0
        %v2602 = vpop.f32.mrb[0].mxu0
        %v2603 = vadd.f32 %v2298, %v2602
        %v2604 = vpop.f32.mrb[0].mxu0
        %2605 = vmatprep.mubr.bf16.mxu0 %v987
        %2606 = vmatmul.mubr.bf16.gmra.mrb[0].mxu0 %v1422
        %v2607 = vpop.f32.mrb[0].mxu0
        %v2608 = vadd.f32 %v2303, %v2607
        %v2609 = vpop.f32.mrb[0].mxu0
        %v2610 = vpop.f32.mrb[0].mxu0
        %v2611 = vadd.f32 %v2306, %v2610
        %v2612 = vpop.f32.mrb[0].mxu0
        %2613 = vmatprep.mubr.bf16.mxu0 %v988
        %2614 = vmatmul.mubr.bf16.gmra.mrb[0].mxu0 %v1423
        %v2615 = vpop.f32.mrb[0].mxu0
        %v2616 = vadd.f32 %v2311, %v2615
        %v2617 = vpop.f32.mrb[0].mxu0
        %v2618 = vpop.f32.mrb[0].mxu0
        %v2619 = vadd.f32 %v2314, %v2618
        %v2620 = vpop.f32.mrb[0].mxu0
        %2621 = vmatprep.mubr.bf16.mxu0 %v989
        %2622 = vmatmul.mubr.bf16.gmra.mrb[0].mxu0 %v1424
        %v2623 = vpop.f32.mrb[0].mxu0
        %v2624 = vadd.f32 %v2319, %v2623
        %v2625 = vpop.f32.mrb[0].mxu0
        %v2626 = vpop.f32.mrb[0].mxu0
        %v2627 = vadd.f32 %v2322, %v2626
        %v2628 = vpop.f32.mrb[0].mxu0
        %2629 = vmatprep.mubr.bf16.mxu0 %v990
        %2630 = vmatmul.mubr.bf16.gmra.mrb[0].mxu0 %v1425
        %v2631 = vpop.f32.mrb[0].mxu0
        %v2632 = vadd.f32 %v2327, %v2631
        %v2633 = vpop.f32.mrb[0].mxu0
        %v2634 = vpop.f32.mrb[0].mxu0
        %v2635 = vadd.f32 %v2330, %v2634
        %v2636 = vpop.f32.mrb[0].mxu0
        %2637 = vmatprep.mubr.bf16.mxu0 %v991
        %2638 = vmatmul.mubr.bf16.gmra.mrb[0].mxu0 %v1426
        %v2639 = vpop.f32.mrb[0].mxu0
        %v2640 = vadd.f32 %v2335, %v2639
        %v2641 = vpop.f32.mrb[0].mxu0
        %v2642 = vpop.f32.mrb[0].mxu0
        %v2643 = vadd.f32 %v2338, %v2642
        %v2644 = vpop.f32.mrb[0].mxu0
        %2645 = vmatprep.mubr.bf16.mxu0 %v992
        %2646 = vmatmul.mubr.bf16.gmra.mrb[0].mxu0 %v1427
        %v2647 = vpop.f32.mrb[0].mxu0
        %v2648 = vadd.f32 %v2343, %v2647
        %v2649 = vpop.f32.mrb[0].mxu0
        %v2650 = vpop.f32.mrb[0].mxu0
        %v2651 = vadd.f32 %v2346, %v2650
        %v2652 = vpop.f32.mrb[0].mxu0
        %2653 = vmatprep.mubr.bf16.mxu0 %v993
        %2654 = vmatmul.mubr.bf16.gmra.mrb[0].mxu0 %v1428
        %v2655 = vpop.f32.mrb[0].mxu0
        %v2656 = vadd.f32 %v2351, %v2655
        %v2657 = vpop.f32.mrb[0].mxu0
        %v2658 = vpop.f32.mrb[0].mxu0
        %v2659 = vadd.f32 %v2354, %v2658
        %v2660 = vpop.f32.mrb[0].mxu0
        %2661 = vdwg.mxu0
        %2662 = vmatprep.subr.bf16.mxu0 0
        %2663 = vmatpush1.bf16.msra.mxu0 %v2469
        %2664 = vmatprep.subr.bf16.mxu0 0
        %2665 = vmatpush1.bf16.msra.mxu0 %v2470
        %2666 = vmatprep.subr.bf16.mxu0 0
        %2667 = vmatpush1.bf16.msra.mxu0 %v2471
        %2668 = vmatprep.subr.bf16.mxu0 0
        %2669 = vmatpush1.bf16.msra.mxu0 %v2472
        %2670 = vmatprep.subr.bf16.mxu0 0
        %2671 = vmatpush1.bf16.msra.mxu0 %v2473
        %2672 = vmatprep.subr.bf16.mxu0 0
        %2673 = vmatpush1.bf16.msra.mxu0 %v2474
        %2674 = vmatprep.subr.bf16.mxu0 0
        %2675 = vmatpush1.bf16.msra.mxu0 %v2475
        %2676 = vmatprep.subr.bf16.mxu0 0
        %2677 = vmatpush1.bf16.msra.mxu0 %v2476
        %2678 = vmatprep.subr.bf16.mxu0 0
        %2679 = vmatpush1.bf16.msra.mxu0 0
        %2680 = vmatprep.subr.bf16.mxu0 0
        %2681 = vmatpush1.bf16.msra.mxu0 0
        %2682 = vmatprep.subr.bf16.mxu0 0
        %2683 = vmatpush1.bf16.msra.mxu0 0
        %2684 = vmatprep.subr.bf16.mxu0 0
        %2685 = vmatpush1.bf16.msra.mxu0 0
        %2686 = vmatprep.subr.bf16.mxu0 0
        %2687 = vmatpush1.bf16.msra.mxu0 0
        %2688 = vmatprep.subr.bf16.mxu0 0
        %2689 = vmatpush1.bf16.msra.mxu0 0
        %2690 = vmatprep.subr.bf16.mxu0 0
        %2691 = vmatpush1.bf16.msra.mxu0 0
        %2692 = vmatprep.subr.bf16.mxu0 0
        %2693 = vmatpush1.bf16.msra.mxu0 0
        %2694 = vmatprep.mubr.bf16.mxu0 0
        %2695 = vmatmul.mubr.bf16.gmra.mrb[0].mxu0 %v1758
        %v2696 = vpop.f32.mrb[0].mxu0
        %v2697 = vadd.f32 %v2536, %v2696
        %v2698 = vpop.f32.mrb[0].mxu0
        %v2699 = vpop.f32.mrb[0].mxu0
        %v2700 = vadd.f32 %v2539, %v2699
        %v2701 = vpop.f32.mrb[0].mxu0
        %2702 = vmatprep.mubr.bf16.mxu0 0
        %2703 = vmatmul.mubr.bf16.gmra.mrb[0].mxu0 %v1759
        %v2704 = vpop.f32.mrb[0].mxu0
        %v2705 = vadd.f32 %v2544, %v2704
        %v2706 = vpop.f32.mrb[0].mxu0
        %v2707 = vpop.f32.mrb[0].mxu0
        %v2708 = vadd.f32 %v2547, %v2707
        %v2709 = vpop.f32.mrb[0].mxu0
        %2710 = vmatprep.mubr.bf16.mxu0 0
        %2711 = vmatmul.mubr.bf16.gmra.mrb[0].mxu0 %v1760
        %v2712 = vpop.f32.mrb[0].mxu0
        %v2713 = vadd.f32 %v2552, %v2712
        %v2714 = vpop.f32.mrb[0].mxu0
        %v2715 = vpop.f32.mrb[0].mxu0
        %v2716 = vadd.f32 %v2555, %v2715
        %v2717 = vpop.f32.mrb[0].mxu0
        %2718 = vmatprep.mubr.bf16.mxu0 0
        %2719 = vmatmul.mubr.bf16.gmra.mrb[0].mxu0 %v1761
        %v2720 = vpop.f32.mrb[0].mxu0
        %v2721 = vadd.f32 %v2560, %v2720
        %v2722 = vpop.f32.mrb[0].mxu0
        %v2723 = vpop.f32.mrb[0].mxu0
        %v2724 = vadd.f32 %v2563, %v2723
        %v2725 = vpop.f32.mrb[0].mxu0
        %2726 = vmatprep.mubr.bf16.mxu0 0
        %2727 = vmatmul.mubr.bf16.gmra.mrb[0].mxu0 %v1762
        %v2728 = vpop.f32.mrb[0].mxu0
        %v2729 = vadd.f32 %v2568, %v2728
        %v2730 = vpop.f32.mrb[0].mxu0
        %v2731 = vpop.f32.mrb[0].mxu0
        %v2732 = vadd.f32 %v2571, %v2731
        %v2733 = vpop.f32.mrb[0].mxu0
        %2734 = vmatprep.mubr.bf16.mxu0 0
        %2735 = vmatmul.mubr.bf16.gmra.mrb[0].mxu0 %v1763
        %v2736 = vpop.f32.mrb[0].mxu0
        %v2737 = vadd.f32 %v2576, %v2736
        %v2738 = vpop.f32.mrb[0].mxu0
        %v2739 = vpop.f32.mrb[0].mxu0
        %v2740 = vadd.f32 %v2579, %v2739
        %v2741 = vpop.f32.mrb[0].mxu0
        %2742 = vmatprep.mubr.bf16.mxu0 0
        %2743 = vmatmul.mubr.bf16.gmra.mrb[0].mxu0 %v1764
        %v2744 = vpop.f32.mrb[0].mxu0
        %v2745 = vadd.f32 %v2584, %v2744
        %v2746 = vpop.f32.mrb[0].mxu0
        %v2747 = vpop.f32.mrb[0].mxu0
        %v2748 = vadd.f32 %v2587, %v2747
        %v2749 = vpop.f32.mrb[0].mxu0
        %2750 = vmatprep.mubr.bf16.mxu0 0
        %2751 = vmatmul.mubr.bf16.gmra.mrb[0].mxu0 %v1765
        %v2752 = vpop.f32.mrb[0].mxu0
        %v2753 = vadd.f32 %v2592, %v2752
        %v2754 = vpop.f32.mrb[0].mxu0
        %v2755 = vpop.f32.mrb[0].mxu0
        %v2756 = vadd.f32 %v2595, %v2755
        %v2757 = vpop.f32.mrb[0].mxu0
        %2758 = vmatprep.mubr.bf16.mxu0 0
        %2759 = vmatmul.mubr.bf16.gmra.mrb[0].mxu0 %v1766
        %v2760 = vpop.f32.mrb[0].mxu0
        %v2761 = vadd.f32 %v2600, %v2760
        %v2762 = vpop.f32.mrb[0].mxu0
        %v2763 = vpop.f32.mrb[0].mxu0
        %v2764 = vadd.f32 %v2603, %v2763
        %v2765 = vpop.f32.mrb[0].mxu0
        %2766 = vmatprep.mubr.bf16.mxu0 0
        %2767 = vmatmul.mubr.bf16.gmra.mrb[0].mxu0 %v1767
        %v2768 = vpop.f32.mrb[0].mxu0
        %v2769 = vadd.f32 %v2608, %v2768
        %v2770 = vpop.f32.mrb[0].mxu0
        %v2771 = vpop.f32.mrb[0].mxu0
        %v2772 = vadd.f32 %v2611, %v2771
        %v2773 = vpop.f32.mrb[0].mxu0
        %2774 = vmatprep.mubr.bf16.mxu0 0
        %2775 = vmatmul.mubr.bf16.gmra.mrb[0].mxu0 %v1768
        %v2776 = vpop.f32.mrb[0].mxu0
        %v2777 = vadd.f32 %v2616, %v2776
        %v2778 = vpop.f32.mrb[0].mxu0
        %v2779 = vpop.f32.mrb[0].mxu0
        %v2780 = vadd.f32 %v2619, %v2779
        %v2781 = vpop.f32.mrb[0].mxu0
        %2782 = vmatprep.mubr.bf16.mxu0 0
        %2783 = vmatmul.mubr.bf16.gmra.mrb[0].mxu0 %v1769
        %v2784 = vpop.f32.mrb[0].mxu0
        %v2785 = vadd.f32 %v2624, %v2784
        %v2786 = vpop.f32.mrb[0].mxu0
        %v2787 = vpop.f32.mrb[0].mxu0
        %v2788 = vadd.f32 %v2627, %v2787
        %v2789 = vpop.f32.mrb[0].mxu0
        %2790 = vmatprep.mubr.bf16.mxu0 0
        %2791 = vmatmul.mubr.bf16.gmra.mrb[0].mxu0 %v1770
        %v2792 = vpop.f32.mrb[0].mxu0
        %v2793 = vadd.f32 %v2632, %v2792
        %v2794 = vpop.f32.mrb[0].mxu0
        %v2795 = vpop.f32.mrb[0].mxu0
        %v2796 = vadd.f32 %v2635, %v2795
        %v2797 = vpop.f32.mrb[0].mxu0
        %2798 = vmatprep.mubr.bf16.mxu0 0
        %2799 = vmatmul.mubr.bf16.gmra.mrb[0].mxu0 %v1771
        %v2800 = vpop.f32.mrb[0].mxu0
        %v2801 = vadd.f32 %v2640, %v2800
        %v2802 = vpop.f32.mrb[0].mxu0
        %v2803 = vpop.f32.mrb[0].mxu0
        %v2804 = vadd.f32 %v2643, %v2803
        %v2805 = vpop.f32.mrb[0].mxu0
        %2806 = vmatprep.mubr.bf16.mxu0 0
        %2807 = vmatmul.mubr.bf16.gmra.mrb[0].mxu0 %v1772
        %v2808 = vpop.f32.mrb[0].mxu0
        %v2809 = vadd.f32 %v2648, %v2808
        %v2810 = vpop.f32.mrb[0].mxu0
        %v2811 = vpop.f32.mrb[0].mxu0
        %v2812 = vadd.f32 %v2651, %v2811
        %v2813 = vpop.f32.mrb[0].mxu0
        %2814 = vmatprep.mubr.bf16.mxu0 0
        %2815 = vmatmul.mubr.bf16.gmra.mrb[0].mxu0 %v1773
        %v2816 = vpop.f32.mrb[0].mxu0
        %v2817 = vadd.f32 %v2656, %v2816
        %v2818 = vpop.f32.mrb[0].mxu0
        %v2819 = vpop.f32.mrb[0].mxu0
        %v2820 = vadd.f32 %v2659, %v2819
        %v2821 = vpop.f32.mrb[0].mxu0
        %2822 = vdwg.mxu0
        %s2823 = scalar_lea.vmem [#allocation8], 384
        %v2824 = vld [vmem:[%s2823] sm:$0xf]
        %v2825 = vld [vmem:[%s2823 + $0x4] sm:$0xf]
        %v2826 = vld [vmem:[%s2823 + $0x8] sm:$0xf]
        %v2827 = vld [vmem:[%s2823 + $0xc] sm:$0xf]
        %v2828 = vld [vmem:[%s2823 + $0x10] sm:$0xf]
        %v2829 = vld [vmem:[%s2823 + $0x14] sm:$0xf]
        %v2830 = vld [vmem:[%s2823 + $0x18] sm:$0xf]
        %v2831 = vld [vmem:[%s2823 + $0x1c] sm:$0xf]
        %v2832 = vld [vmem:[%s2823 + $0x20] sm:$0xf]
        %v2833 = vld [vmem:[%s2823 + $0x24] sm:$0xf]
        %v2834 = vld [vmem:[%s2823 + $0x28] sm:$0xf]
        %v2835 = vld [vmem:[%s2823 + $0x2c] sm:$0xf]
        %v2836 = vld [vmem:[%s2823 + $0x30] sm:$0xf]
        %v2837 = vld [vmem:[%s2823 + $0x34] sm:$0xf]
        %v2838 = vld [vmem:[%s2823 + $0x38] sm:$0xf]
        %v2839 = vld [vmem:[%s2823 + $0x3c] sm:$0xf]
        %v2840 = vld [vmem:[%s2823 + $0x40] sm:$0xf]
        %v2841 = vld [vmem:[%s2823 + $0x44] sm:$0xf]
        %v2842 = vld [vmem:[%s2823 + $0x48] sm:$0xf]
        %v2843 = vld [vmem:[%s2823 + $0x4c] sm:$0xf]
        %v2844 = vld [vmem:[%s2823 + $0x50] sm:$0xf]
        %v2845 = vld [vmem:[%s2823 + $0x54] sm:$0xf]
        %v2846 = vld [vmem:[%s2823 + $0x58] sm:$0xf]
        %v2847 = vld [vmem:[%s2823 + $0x5c] sm:$0xf]
        %v2848 = vld [vmem:[%s2823 + $0x60] sm:$0xf]
        %v2849 = vld [vmem:[%s2823 + $0x64] sm:$0xf]
        %v2850 = vld [vmem:[%s2823 + $0x68] sm:$0xf]
        %v2851 = vld [vmem:[%s2823 + $0x6c] sm:$0xf]
        %v2852 = vld [vmem:[%s2823 + $0x70] sm:$0xf]
        %v2853 = vld [vmem:[%s2823 + $0x74] sm:$0xf]
        %v2854 = vld [vmem:[%s2823 + $0x78] sm:$0xf]
        %v2855 = vld [vmem:[%s2823 + $0x7c] sm:$0xf]
        %v2856 = vld [vmem:[%s2823 + $0x80] sm:$0xf]
        %v2857 = vld [vmem:[%s2823 + $0x84] sm:$0xf]
        %v2858 = vld [vmem:[%s2823 + $0x88] sm:$0xf]
        %v2859 = vld [vmem:[%s2823 + $0x8c] sm:$0xf]
        %v2860 = vld [vmem:[%s2823 + $0x90] sm:$0xf]
        %v2861 = vld [vmem:[%s2823 + $0x94] sm:$0xf]
        %v2862 = vld [vmem:[%s2823 + $0x98] sm:$0xf]
        %v2863 = vld [vmem:[%s2823 + $0x9c] sm:$0xf]
        %v2864 = vld [vmem:[%s2823 + $0xa0] sm:$0xf]
        %v2865 = vld [vmem:[%s2823 + $0xa4] sm:$0xf]
        %v2866 = vld [vmem:[%s2823 + $0xa8] sm:$0xf]
        %v2867 = vld [vmem:[%s2823 + $0xac] sm:$0xf]
        %v2868 = vld [vmem:[%s2823 + $0xb0] sm:$0xf]
        %v2869 = vld [vmem:[%s2823 + $0xb4] sm:$0xf]
        %v2870 = vld [vmem:[%s2823 + $0xb8] sm:$0xf]
        %v2871 = vld [vmem:[%s2823 + $0xbc] sm:$0xf]
        %v2920 = vunpack.c.l.b16 %v2824
        %v2921 = vunpack.c.l.b16 %v2825
        %v2922 = vunpack.c.l.b16 %v2826
        %v2923 = vunpack.c.l.b16 %v2827
        %v2924 = vunpack.c.l.b16 %v2828
        %v2925 = vunpack.c.l.b16 %v2829
        %v2926 = vunpack.c.l.b16 %v2830
        %v2927 = vunpack.c.l.b16 %v2831
        %v2928 = vunpack.c.l.b16 %v2832
        %v2929 = vunpack.c.l.b16 %v2833
        %v2930 = vunpack.c.l.b16 %v2834
        %v2931 = vunpack.c.l.b16 %v2835
        %v2932 = vunpack.c.l.b16 %v2836
        %v2933 = vunpack.c.l.b16 %v2837
        %v2934 = vunpack.c.l.b16 %v2838
        %v2935 = vunpack.c.l.b16 %v2839
        %v2936 = vunpack.c.l.b16 %v2840
        %v2937 = vunpack.c.l.b16 %v2841
        %v2938 = vunpack.c.l.b16 %v2842
        %v2939 = vunpack.c.l.b16 %v2843
        %v2940 = vunpack.c.l.b16 %v2844
        %v2941 = vunpack.c.l.b16 %v2845
        %v2942 = vunpack.c.l.b16 %v2846
        %v2943 = vunpack.c.l.b16 %v2847
        %v2944 = vunpack.c.l.b16 %v2848
        %v2945 = vunpack.c.l.b16 %v2849
        %v2946 = vunpack.c.l.b16 %v2850
        %v2947 = vunpack.c.l.b16 %v2851
        %v2948 = vunpack.c.l.b16 %v2852
        %v2949 = vunpack.c.l.b16 %v2853
        %v2950 = vunpack.c.l.b16 %v2854
        %v2951 = vunpack.c.l.b16 %v2855
        %v2952 = vunpack.c.l.b16 %v2856
        %v2953 = vunpack.c.l.b16 %v2857
        %v2954 = vunpack.c.l.b16 %v2858
        %v2955 = vunpack.c.l.b16 %v2859
        %v2956 = vunpack.c.l.b16 %v2860
        %v2957 = vunpack.c.l.b16 %v2861
        %v2958 = vunpack.c.l.b16 %v2862
        %v2959 = vunpack.c.l.b16 %v2863
        %v2960 = vunpack.c.l.b16 %v2864
        %v2961 = vunpack.c.l.b16 %v2865
        %v2962 = vunpack.c.l.b16 %v2866
        %v2963 = vunpack.c.l.b16 %v2867
        %v2964 = vunpack.c.l.b16 %v2868
        %v2965 = vunpack.c.l.b16 %v2869
        %v2966 = vunpack.c.l.b16 %v2870
        %v2967 = vunpack.c.l.b16 %v2871
        %v2968 = vpack.c.b16 %v2921, %v2920
        %v2969 = vpack.c.b16 %v2923, %v2922
        %v2970 = vpack.c.b16 %v2925, %v2924
        %v2971 = vpack.c.b16 %v2927, %v2926
        %v2972 = vpack.c.b16 %v2929, %v2928
        %v2973 = vpack.c.b16 %v2931, %v2930
        %v2974 = vpack.c.b16 %v2933, %v2932
        %v2975 = vpack.c.b16 %v2935, %v2934
        %v2976 = vpack.c.b16 %v2937, %v2936
        %v2977 = vpack.c.b16 %v2939, %v2938
        %v2978 = vpack.c.b16 %v2941, %v2940
        %v2979 = vpack.c.b16 %v2943, %v2942
        %v2980 = vpack.c.b16 %v2945, %v2944
        %v2981 = vpack.c.b16 %v2947, %v2946
        %v2982 = vpack.c.b16 %v2949, %v2948
        %v2983 = vpack.c.b16 %v2951, %v2950
        %v2984 = vpack.c.b16 %v2953, %v2952
        %v2985 = vpack.c.b16 %v2955, %v2954
        %v2986 = vpack.c.b16 %v2957, %v2956
        %v2987 = vpack.c.b16 %v2959, %v2958
        %v2988 = vpack.c.b16 %v2961, %v2960
        %v2989 = vpack.c.b16 %v2963, %v2962
        %v2990 = vpack.c.b16 %v2965, %v2964
        %v2991 = vpack.c.b16 %v2967, %v2966
        %3016 = vmatprep.subr.bf16.mxu0 0
        %3017 = vmatpush1.bf16.msra.mxu0 %v2968
        %3018 = vmatprep.subr.bf16.mxu0 0
        %3019 = vmatpush1.bf16.msra.mxu0 %v2969
        %3020 = vmatprep.subr.bf16.mxu0 0
        %3021 = vmatpush1.bf16.msra.mxu0 %v2970
        %3022 = vmatprep.subr.bf16.mxu0 0
        %3023 = vmatpush1.bf16.msra.mxu0 %v2971
        %3024 = vmatprep.subr.bf16.mxu0 0
        %3025 = vmatpush1.bf16.msra.mxu0 %v2972
        %3026 = vmatprep.subr.bf16.mxu0 0
        %3027 = vmatpush1.bf16.msra.mxu0 %v2973
        %3028 = vmatprep.subr.bf16.mxu0 0
        %3029 = vmatpush1.bf16.msra.mxu0 %v2974
        %3030 = vmatprep.subr.bf16.mxu0 0
        %3031 = vmatpush1.bf16.msra.mxu0 %v2975
        %3032 = vmatprep.subr.bf16.mxu0 0
        %3033 = vmatpush1.bf16.msra.mxu0 %v2976
        %3034 = vmatprep.subr.bf16.mxu0 0
        %3035 = vmatpush1.bf16.msra.mxu0 %v2977
        %3036 = vmatprep.subr.bf16.mxu0 0
        %3037 = vmatpush1.bf16.msra.mxu0 %v2978
        %3038 = vmatprep.subr.bf16.mxu0 0
        %3039 = vmatpush1.bf16.msra.mxu0 %v2979
        %3040 = vmatprep.subr.bf16.mxu0 0
        %3041 = vmatpush1.bf16.msra.mxu0 %v2980
        %3042 = vmatprep.subr.bf16.mxu0 0
        %3043 = vmatpush1.bf16.msra.mxu0 %v2981
        %3044 = vmatprep.subr.bf16.mxu0 0
        %3045 = vmatpush1.bf16.msra.mxu0 %v2982
        %3046 = vmatprep.subr.bf16.mxu0 0
        %3047 = vmatpush1.bf16.msra.mxu0 %v2983
        %3048 = vmatprep.mubr.bf16.mxu0 %v980
        %3049 = vmatmul.mubr.bf16.gmra.mrb[0].mxu0 %v1415
        %v3050 = vpop.f32.mrb[0].mxu0
        %v3051 = vadd.f32 0.0, %v3050
        %v3052 = vpop.f32.mrb[0].mxu0
        %v3053 = vpop.f32.mrb[0].mxu0
        %v3054 = vadd.f32 0.0, %v3053
        %v3055 = vpop.f32.mrb[0].mxu0
        %3056 = vmatprep.mubr.bf16.mxu0 %v981
        %3057 = vmatmul.mubr.bf16.gmra.mrb[0].mxu0 %v1416
        %v3058 = vpop.f32.mrb[0].mxu0
        %v3059 = vadd.f32 0.0, %v3058
        %v3060 = vpop.f32.mrb[0].mxu0
        %v3061 = vpop.f32.mrb[0].mxu0
        %v3062 = vadd.f32 0.0, %v3061
        %v3063 = vpop.f32.mrb[0].mxu0
        %3064 = vmatprep.mubr.bf16.mxu0 %v982
        %3065 = vmatmul.mubr.bf16.gmra.mrb[0].mxu0 %v1417
        %v3066 = vpop.f32.mrb[0].mxu0
        %v3067 = vadd.f32 0.0, %v3066
        %v3068 = vpop.f32.mrb[0].mxu0
        %v3069 = vpop.f32.mrb[0].mxu0
        %v3070 = vadd.f32 0.0, %v3069
        %v3071 = vpop.f32.mrb[0].mxu0
        %3072 = vmatprep.mubr.bf16.mxu0 %v983
        %3073 = vmatmul.mubr.bf16.gmra.mrb[0].mxu0 %v1418
        %v3074 = vpop.f32.mrb[0].mxu0
        %v3075 = vadd.f32 0.0, %v3074
        %v3076 = vpop.f32.mrb[0].mxu0
        %v3077 = vpop.f32.mrb[0].mxu0
        %v3078 = vadd.f32 0.0, %v3077
        %v3079 = vpop.f32.mrb[0].mxu0
        %3080 = vmatprep.mubr.bf16.mxu0 %v984
        %3081 = vmatmul.mubr.bf16.gmra.mrb[0].mxu0 %v1419
        %v3082 = vpop.f32.mrb[0].mxu0
        %v3083 = vadd.f32 0.0, %v3082
        %v3084 = vpop.f32.mrb[0].mxu0
        %v3085 = vpop.f32.mrb[0].mxu0
        %v3086 = vadd.f32 0.0, %v3085
        %v3087 = vpop.f32.mrb[0].mxu0
        %3088 = vmatprep.mubr.bf16.mxu0 %v985
        %3089 = vmatmul.mubr.bf16.gmra.mrb[0].mxu0 %v1420
        %v3090 = vpop.f32.mrb[0].mxu0
        %v3091 = vadd.f32 0.0, %v3090
        %v3092 = vpop.f32.mrb[0].mxu0
        %v3093 = vpop.f32.mrb[0].mxu0
        %v3094 = vadd.f32 0.0, %v3093
        %v3095 = vpop.f32.mrb[0].mxu0
        %3096 = vmatprep.mubr.bf16.mxu0 %v986
        %3097 = vmatmul.mubr.bf16.gmra.mrb[0].mxu0 %v1421
        %v3098 = vpop.f32.mrb[0].mxu0
        %v3099 = vadd.f32 0.0, %v3098
        %v3100 = vpop.f32.mrb[0].mxu0
        %v3101 = vpop.f32.mrb[0].mxu0
        %v3102 = vadd.f32 0.0, %v3101
        %v3103 = vpop.f32.mrb[0].mxu0
        %3104 = vmatprep.mubr.bf16.mxu0 %v987
        %3105 = vmatmul.mubr.bf16.gmra.mrb[0].mxu0 %v1422
        %v3106 = vpop.f32.mrb[0].mxu0
        %v3107 = vadd.f32 0.0, %v3106
        %v3108 = vpop.f32.mrb[0].mxu0
        %v3109 = vpop.f32.mrb[0].mxu0
        %v3110 = vadd.f32 0.0, %v3109
        %v3111 = vpop.f32.mrb[0].mxu0
        %3112 = vmatprep.mubr.bf16.mxu0 %v988
        %3113 = vmatmul.mubr.bf16.gmra.mrb[0].mxu0 %v1423
        %v3114 = vpop.f32.mrb[0].mxu0
        %v3115 = vadd.f32 0.0, %v3114
        %v3116 = vpop.f32.mrb[0].mxu0
        %v3117 = vpop.f32.mrb[0].mxu0
        %v3118 = vadd.f32 0.0, %v3117
        %v3119 = vpop.f32.mrb[0].mxu0
        %3120 = vmatprep.mubr.bf16.mxu0 %v989
        %3121 = vmatmul.mubr.bf16.gmra.mrb[0].mxu0 %v1424
        %v3122 = vpop.f32.mrb[0].mxu0
        %v3123 = vadd.f32 0.0, %v3122
        %v3124 = vpop.f32.mrb[0].mxu0
        %v3125 = vpop.f32.mrb[0].mxu0
        %v3126 = vadd.f32 0.0, %v3125
        %v3127 = vpop.f32.mrb[0].mxu0
        %3128 = vmatprep.mubr.bf16.mxu0 %v990
        %3129 = vmatmul.mubr.bf16.gmra.mrb[0].mxu0 %v1425
        %v3130 = vpop.f32.mrb[0].mxu0
        %v3131 = vadd.f32 0.0, %v3130
        %v3132 = vpop.f32.mrb[0].mxu0
        %v3133 = vpop.f32.mrb[0].mxu0
        %v3134 = vadd.f32 0.0, %v3133
        %v3135 = vpop.f32.mrb[0].mxu0
        %3136 = vmatprep.mubr.bf16.mxu0 %v991
        %3137 = vmatmul.mubr.bf16.gmra.mrb[0].mxu0 %v1426
        %v3138 = vpop.f32.mrb[0].mxu0
        %v3139 = vadd.f32 0.0, %v3138
        %v3140 = vpop.f32.mrb[0].mxu0
        %v3141 = vpop.f32.mrb[0].mxu0
        %v3142 = vadd.f32 0.0, %v3141
        %v3143 = vpop.f32.mrb[0].mxu0
        %3144 = vmatprep.mubr.bf16.mxu0 %v992
        %3145 = vmatmul.mubr.bf16.gmra.mrb[0].mxu0 %v1427
        %v3146 = vpop.f32.mrb[0].mxu0
        %v3147 = vadd.f32 0.0, %v3146
        %v3148 = vpop.f32.mrb[0].mxu0
        %v3149 = vpop.f32.mrb[0].mxu0
        %v3150 = vadd.f32 0.0, %v3149
        %v3151 = vpop.f32.mrb[0].mxu0
        %3152 = vmatprep.mubr.bf16.mxu0 %v993
        %3153 = vmatmul.mubr.bf16.gmra.mrb[0].mxu0 %v1428
        %v3154 = vpop.f32.mrb[0].mxu0
        %v3155 = vadd.f32 0.0, %v3154
        %v3156 = vpop.f32.mrb[0].mxu0
        %v3157 = vpop.f32.mrb[0].mxu0
        %v3158 = vadd.f32 0.0, %v3157
        %v3159 = vpop.f32.mrb[0].mxu0
        %3160 = vmatprep.mubr.bf16.mxu0 %v994
        %3161 = vmatmul.mubr.bf16.gmra.mrb[0].mxu0 %v1429
        %v3162 = vpop.f32.mrb[0].mxu0
        %v3163 = vadd.f32 0.0, %v3162
        %v3164 = vpop.f32.mrb[0].mxu0
        %v3165 = vpop.f32.mrb[0].mxu0
        %v3166 = vadd.f32 0.0, %v3165
        %v3167 = vpop.f32.mrb[0].mxu0
        %3168 = vmatprep.mubr.bf16.mxu0 %v995
        %3169 = vmatmul.mubr.bf16.gmra.mrb[0].mxu0 %v1430
        %v3170 = vpop.f32.mrb[0].mxu0
        %v3171 = vadd.f32 0.0, %v3170
        %v3172 = vpop.f32.mrb[0].mxu0
        %v3173 = vpop.f32.mrb[0].mxu0
        %v3174 = vadd.f32 0.0, %v3173
        %v3175 = vpop.f32.mrb[0].mxu0
        %3176 = vdwg.mxu0
        %3177 = vmatprep.subr.bf16.mxu0 0
        %3178 = vmatpush1.bf16.msra.mxu0 %v2984
        %3179 = vmatprep.subr.bf16.mxu0 0
        %3180 = vmatpush1.bf16.msra.mxu0 %v2985
        %3181 = vmatprep.subr.bf16.mxu0 0
        %3182 = vmatpush1.bf16.msra.mxu0 %v2986
        %3183 = vmatprep.subr.bf16.mxu0 0
        %3184 = vmatpush1.bf16.msra.mxu0 %v2987
        %3185 = vmatprep.subr.bf16.mxu0 0
        %3186 = vmatpush1.bf16.msra.mxu0 %v2988
        %3187 = vmatprep.subr.bf16.mxu0 0
        %3188 = vmatpush1.bf16.msra.mxu0 %v2989
        %3189 = vmatprep.subr.bf16.mxu0 0
        %3190 = vmatpush1.bf16.msra.mxu0 %v2990
        %3191 = vmatprep.subr.bf16.mxu0 0
        %3192 = vmatpush1.bf16.msra.mxu0 %v2991
        %3193 = vmatprep.subr.bf16.mxu0 0
        %3194 = vmatpush1.bf16.msra.mxu0 0
        %3195 = vmatprep.subr.bf16.mxu0 0
        %3196 = vmatpush1.bf16.msra.mxu0 0
        %3197 = vmatprep.subr.bf16.mxu0 0
        %3198 = vmatpush1.bf16.msra.mxu0 0
        %3199 = vmatprep.subr.bf16.mxu0 0
        %3200 = vmatpush1.bf16.msra.mxu0 0
        %3201 = vmatprep.subr.bf16.mxu0 0
        %3202 = vmatpush1.bf16.msra.mxu0 0
        %3203 = vmatprep.subr.bf16.mxu0 0
        %3204 = vmatpush1.bf16.msra.mxu0 0
        %3205 = vmatprep.subr.bf16.mxu0 0
        %3206 = vmatpush1.bf16.msra.mxu0 0
        %3207 = vmatprep.subr.bf16.mxu0 0
        %3208 = vmatpush1.bf16.msra.mxu0 0
        %3209 = vmatprep.mubr.bf16.mxu0 0
        %3210 = vmatmul.mubr.bf16.gmra.mrb[0].mxu0 %v1760
        %v3211 = vpop.f32.mrb[0].mxu0
        %v3212 = vadd.f32 %v3051, %v3211
        %v3213 = vpop.f32.mrb[0].mxu0
        %v3214 = vpop.f32.mrb[0].mxu0
        %v3215 = vadd.f32 %v3054, %v3214
        %v3216 = vpop.f32.mrb[0].mxu0
        %3217 = vmatprep.mubr.bf16.mxu0 0
        %3218 = vmatmul.mubr.bf16.gmra.mrb[0].mxu0 %v1761
        %v3219 = vpop.f32.mrb[0].mxu0
        %v3220 = vadd.f32 %v3059, %v3219
        %v3221 = vpop.f32.mrb[0].mxu0
        %v3222 = vpop.f32.mrb[0].mxu0
        %v3223 = vadd.f32 %v3062, %v3222
        %v3224 = vpop.f32.mrb[0].mxu0
        %3225 = vmatprep.mubr.bf16.mxu0 0
        %3226 = vmatmul.mubr.bf16.gmra.mrb[0].mxu0 %v1762
        %v3227 = vpop.f32.mrb[0].mxu0
        %v3228 = vadd.f32 %v3067, %v3227
        %v3229 = vpop.f32.mrb[0].mxu0
        %v3230 = vpop.f32.mrb[0].mxu0
        %v3231 = vadd.f32 %v3070, %v3230
        %v3232 = vpop.f32.mrb[0].mxu0
        %3233 = vmatprep.mubr.bf16.mxu0 0
        %3234 = vmatmul.mubr.bf16.gmra.mrb[0].mxu0 %v1763
        %v3235 = vpop.f32.mrb[0].mxu0
        %v3236 = vadd.f32 %v3075, %v3235
        %v3237 = vpop.f32.mrb[0].mxu0
        %v3238 = vpop.f32.mrb[0].mxu0
        %v3239 = vadd.f32 %v3078, %v3238
        %v3240 = vpop.f32.mrb[0].mxu0
        %3241 = vmatprep.mubr.bf16.mxu0 0
        %3242 = vmatmul.mubr.bf16.gmra.mrb[0].mxu0 %v1764
        %v3243 = vpop.f32.mrb[0].mxu0
        %v3244 = vadd.f32 %v3083, %v3243
        %v3245 = vpop.f32.mrb[0].mxu0
        %v3246 = vpop.f32.mrb[0].mxu0
        %v3247 = vadd.f32 %v3086, %v3246
        %v3248 = vpop.f32.mrb[0].mxu0
        %3249 = vmatprep.mubr.bf16.mxu0 0
        %3250 = vmatmul.mubr.bf16.gmra.mrb[0].mxu0 %v1765
        %v3251 = vpop.f32.mrb[0].mxu0
        %v3252 = vadd.f32 %v3091, %v3251
        %v3253 = vpop.f32.mrb[0].mxu0
        %v3254 = vpop.f32.mrb[0].mxu0
        %v3255 = vadd.f32 %v3094, %v3254
        %v3256 = vpop.f32.mrb[0].mxu0
        %3257 = vmatprep.mubr.bf16.mxu0 0
        %3258 = vmatmul.mubr.bf16.gmra.mrb[0].mxu0 %v1766
        %v3259 = vpop.f32.mrb[0].mxu0
        %v3260 = vadd.f32 %v3099, %v3259
        %v3261 = vpop.f32.mrb[0].mxu0
        %v3262 = vpop.f32.mrb[0].mxu0
        %v3263 = vadd.f32 %v3102, %v3262
        %v3264 = vpop.f32.mrb[0].mxu0
        %3265 = vmatprep.mubr.bf16.mxu0 0
        %3266 = vmatmul.mubr.bf16.gmra.mrb[0].mxu0 %v1767
        %v3267 = vpop.f32.mrb[0].mxu0
        %v3268 = vadd.f32 %v3107, %v3267
        %v3269 = vpop.f32.mrb[0].mxu0
        %v3270 = vpop.f32.mrb[0].mxu0
        %v3271 = vadd.f32 %v3110, %v3270
        %v3272 = vpop.f32.mrb[0].mxu0
        %3273 = vmatprep.mubr.bf16.mxu0 0
        %3274 = vmatmul.mubr.bf16.gmra.mrb[0].mxu0 %v1768
        %v3275 = vpop.f32.mrb[0].mxu0
        %v3276 = vadd.f32 %v3115, %v3275
        %v3277 = vpop.f32.mrb[0].mxu0
        %v3278 = vpop.f32.mrb[0].mxu0
        %v3279 = vadd.f32 %v3118, %v3278
        %v3280 = vpop.f32.mrb[0].mxu0
        %3281 = vmatprep.mubr.bf16.mxu0 0
        %3282 = vmatmul.mubr.bf16.gmra.mrb[0].mxu0 %v1769
        %v3283 = vpop.f32.mrb[0].mxu0
        %v3284 = vadd.f32 %v3123, %v3283
        %v3285 = vpop.f32.mrb[0].mxu0
        %v3286 = vpop.f32.mrb[0].mxu0
        %v3287 = vadd.f32 %v3126, %v3286
        %v3288 = vpop.f32.mrb[0].mxu0
        %3289 = vmatprep.mubr.bf16.mxu0 0
        %3290 = vmatmul.mubr.bf16.gmra.mrb[0].mxu0 %v1770
        %v3291 = vpop.f32.mrb[0].mxu0
        %v3292 = vadd.f32 %v3131, %v3291
        %v3293 = vpop.f32.mrb[0].mxu0
        %v3294 = vpop.f32.mrb[0].mxu0
        %v3295 = vadd.f32 %v3134, %v3294
        %v3296 = vpop.f32.mrb[0].mxu0
        %3297 = vmatprep.mubr.bf16.mxu0 0
        %3298 = vmatmul.mubr.bf16.gmra.mrb[0].mxu0 %v1771
        %v3299 = vpop.f32.mrb[0].mxu0
        %v3300 = vadd.f32 %v3139, %v3299
        %v3301 = vpop.f32.mrb[0].mxu0
        %v3302 = vpop.f32.mrb[0].mxu0
        %v3303 = vadd.f32 %v3142, %v3302
        %v3304 = vpop.f32.mrb[0].mxu0
        %3305 = vmatprep.mubr.bf16.mxu0 0
        %3306 = vmatmul.mubr.bf16.gmra.mrb[0].mxu0 %v1772
        %v3307 = vpop.f32.mrb[0].mxu0
        %v3308 = vadd.f32 %v3147, %v3307
        %v3309 = vpop.f32.mrb[0].mxu0
        %v3310 = vpop.f32.mrb[0].mxu0
        %v3311 = vadd.f32 %v3150, %v3310
        %v3312 = vpop.f32.mrb[0].mxu0
        %3313 = vmatprep.mubr.bf16.mxu0 0
        %3314 = vmatmul.mubr.bf16.gmra.mrb[0].mxu0 %v1773
        %v3315 = vpop.f32.mrb[0].mxu0
        %v3316 = vadd.f32 %v3155, %v3315
        %v3317 = vpop.f32.mrb[0].mxu0
        %v3318 = vpop.f32.mrb[0].mxu0
        %v3319 = vadd.f32 %v3158, %v3318
        %v3320 = vpop.f32.mrb[0].mxu0
        %3321 = vmatprep.mubr.bf16.mxu0 0
        %3322 = vmatmul.mubr.bf16.gmra.mrb[0].mxu0 %v1774
        %v3323 = vpop.f32.mrb[0].mxu0
        %v3324 = vadd.f32 %v3163, %v3323
        %v3325 = vpop.f32.mrb[0].mxu0
        %v3326 = vpop.f32.mrb[0].mxu0
        %v3327 = vadd.f32 %v3166, %v3326
        %v3328 = vpop.f32.mrb[0].mxu0
        %3329 = vmatprep.mubr.bf16.mxu0 0
        %3330 = vmatmul.mubr.bf16.gmra.mrb[0].mxu0 %v1775
        %v3331 = vpop.f32.mrb[0].mxu0
        %v3332 = vadd.f32 %v3171, %v3331
        %v3333 = vpop.f32.mrb[0].mxu0
        %v3334 = vpop.f32.mrb[0].mxu0
        %v3335 = vadd.f32 %v3174, %v3334
        %v3336 = vpop.f32.mrb[0].mxu0
        %3337 = vdwg.mxu0
        %v3338 = vadd.f32 %v2697, %v3212
        %v3339 = vadd.f32 %v2700, %v3215
        %v3340 = vadd.f32 %v2705, %v3220
        %v3341 = vadd.f32 %v2708, %v3223
        %v3342 = vadd.f32 %v2713, %v3228
        %v3343 = vadd.f32 %v2716, %v3231
        %v3344 = vadd.f32 %v2721, %v3236
        %v3345 = vadd.f32 %v2724, %v3239
        %v3346 = vadd.f32 %v2729, %v3244
        %v3347 = vadd.f32 %v2732, %v3247
        %v3348 = vadd.f32 %v2737, %v3252
        %v3349 = vadd.f32 %v2740, %v3255
        %v3350 = vadd.f32 %v2745, %v3260
        %v3351 = vadd.f32 %v2748, %v3263
        %v3352 = vadd.f32 %v2753, %v3268
        %v3353 = vadd.f32 %v2756, %v3271
        %v3354 = vadd.f32 %v2761, %v3276
        %v3355 = vadd.f32 %v2764, %v3279
        %v3356 = vadd.f32 %v2769, %v3284
        %v3357 = vadd.f32 %v2772, %v3287
        %v3358 = vadd.f32 %v2777, %v3292
        %v3359 = vadd.f32 %v2780, %v3295
        %v3360 = vadd.f32 %v2785, %v3300
        %v3361 = vadd.f32 %v2788, %v3303
        %v3362 = vadd.f32 %v2793, %v3308
        %v3363 = vadd.f32 %v2796, %v3311
        %v3364 = vadd.f32 %v2801, %v3316
        %v3365 = vadd.f32 %v2804, %v3319
        %v3366 = vadd.f32 %v2809, %v3324
        %v3367 = vadd.f32 %v2812, %v3327
        %v3368 = vadd.f32 %v2817, %v3332
        %v3369 = vadd.f32 %v2820, %v3335
        %v3370 = vpack.c.bf16 %v3339, %v3338
        %v3371 = vpack.c.bf16 %v3341, %v3340
        %v3372 = vpack.c.bf16 %v3343, %v3342
        %v3373 = vpack.c.bf16 %v3345, %v3344
        %v3374 = vpack.c.bf16 %v3347, %v3346
        %v3375 = vpack.c.bf16 %v3349, %v3348
        %v3376 = vpack.c.bf16 %v3351, %v3350
        %v3377 = vpack.c.bf16 %v3353, %v3352
        %v3378 = vpack.c.bf16 %v3355, %v3354
        %v3379 = vpack.c.bf16 %v3357, %v3356
        %v3380 = vpack.c.bf16 %v3359, %v3358
        %v3381 = vpack.c.bf16 %v3361, %v3360
        %v3382 = vpack.c.bf16 %v3363, %v3362
        %v3383 = vpack.c.bf16 %v3365, %v3364
        %v3384 = vpack.c.bf16 %v3367, %v3366
        %v3385 = vpack.c.bf16 %v3369, %v3368
        %v3402 = vunpack.c.l.b16 %v3370
        %v3403 = vunpack.c.h.b16 %v3370
        %v3404 = vunpack.c.l.b16 %v3371
        %v3405 = vunpack.c.h.b16 %v3371
        %v3406 = vunpack.c.l.b16 %v3372
        %v3407 = vunpack.c.h.b16 %v3372
        %v3408 = vunpack.c.l.b16 %v3373
        %v3409 = vunpack.c.h.b16 %v3373
        %v3410 = vunpack.c.l.b16 %v3374
        %v3411 = vunpack.c.h.b16 %v3374
        %v3412 = vunpack.c.l.b16 %v3375
        %v3413 = vunpack.c.h.b16 %v3375
        %v3414 = vunpack.c.l.b16 %v3376
        %v3415 = vunpack.c.h.b16 %v3376
        %v3416 = vunpack.c.l.b16 %v3377
        %v3417 = vunpack.c.h.b16 %v3377
        %v3418 = vunpack.c.l.b16 %v3378
        %v3419 = vunpack.c.h.b16 %v3378
        %v3420 = vunpack.c.l.b16 %v3379
        %v3421 = vunpack.c.h.b16 %v3379
        %v3422 = vunpack.c.l.b16 %v3380
        %v3423 = vunpack.c.h.b16 %v3380
        %v3424 = vunpack.c.l.b16 %v3381
        %v3425 = vunpack.c.h.b16 %v3381
        %v3426 = vunpack.c.l.b16 %v3382
        %v3427 = vunpack.c.h.b16 %v3382
        %v3428 = vunpack.c.l.b16 %v3383
        %v3429 = vunpack.c.h.b16 %v3383
        %v3430 = vunpack.c.l.b16 %v3384
        %v3431 = vunpack.c.h.b16 %v3384
        %v3432 = vunpack.c.l.b16 %v3385
        %v3433 = vunpack.c.h.b16 %v3385
        %v3434 = vpack.c.b16 %v3402, %v3402
        %v3435 = vpack.c.b16 %v3403, %v3403
        %v3436 = vpack.c.b16 %v3404, %v3404
        %v3437 = vpack.c.b16 %v3405, %v3405
        %v3438 = vpack.c.b16 %v3406, %v3406
        %v3439 = vpack.c.b16 %v3407, %v3407
        %v3440 = vpack.c.b16 %v3408, %v3408
        %v3441 = vpack.c.b16 %v3409, %v3409
        %v3442 = vpack.c.b16 %v3410, %v3410
        %v3443 = vpack.c.b16 %v3411, %v3411
        %v3444 = vpack.c.b16 %v3412, %v3412
        %v3445 = vpack.c.b16 %v3413, %v3413
        %v3446 = vpack.c.b16 %v3414, %v3414
        %v3447 = vpack.c.b16 %v3415, %v3415
        %v3448 = vpack.c.b16 %v3416, %v3416
        %v3449 = vpack.c.b16 %v3417, %v3417
        %v3450 = vpack.c.b16 %v3418, %v3418
        %v3451 = vpack.c.b16 %v3419, %v3419
        %v3452 = vpack.c.b16 %v3420, %v3420
        %v3453 = vpack.c.b16 %v3421, %v3421
        %v3454 = vpack.c.b16 %v3422, %v3422
        %v3455 = vpack.c.b16 %v3423, %v3423
        %v3456 = vpack.c.b16 %v3424, %v3424
        %v3457 = vpack.c.b16 %v3425, %v3425
        %v3458 = vpack.c.b16 %v3426, %v3426
        %v3459 = vpack.c.b16 %v3427, %v3427
        %v3460 = vpack.c.b16 %v3428, %v3428
        %v3461 = vpack.c.b16 %v3429, %v3429
        %v3462 = vpack.c.b16 %v3430, %v3430
        %v3463 = vpack.c.b16 %v3431, %v3431
        %v3464 = vpack.c.b16 %v3432, %v3432
        %v3465 = vpack.c.b16 %v3433, %v3433
        %3498 = vst [vmem:[%s324] sm:$0xf] %v3434
        %3499 = vst [vmem:[%s324 + $0x4] sm:$0xf] %v3435
        %3500 = vst [vmem:[%s324 + $0x8] sm:$0xf] %v3436
        %3501 = vst [vmem:[%s324 + $0xc] sm:$0xf] %v3437
        %3502 = vst [vmem:[%s324 + $0x10] sm:$0xf] %v3438
        %3503 = vst [vmem:[%s324 + $0x14] sm:$0xf] %v3439
        %3504 = vst [vmem:[%s324 + $0x18] sm:$0xf] %v3440
        %3505 = vst [vmem:[%s324 + $0x1c] sm:$0xf] %v3441
        %3506 = vst [vmem:[%s324 + $0x20] sm:$0xf] %v3442
        %3507 = vst [vmem:[%s324 + $0x24] sm:$0xf] %v3443
        %3508 = vst [vmem:[%s324 + $0x28] sm:$0xf] %v3444
        %3509 = vst [vmem:[%s324 + $0x2c] sm:$0xf] %v3445
        %3510 = vst [vmem:[%s324 + $0x30] sm:$0xf] %v3446
        %3511 = vst [vmem:[%s324 + $0x34] sm:$0xf] %v3447
        %3512 = vst [vmem:[%s324 + $0x38] sm:$0xf] %v3448
        %3513 = vst [vmem:[%s324 + $0x3c] sm:$0xf] %v3449
        %3514 = vst [vmem:[%s324 + $0x40] sm:$0xf] %v3450
        %3515 = vst [vmem:[%s324 + $0x44] sm:$0xf] %v3451
        %3516 = vst [vmem:[%s324 + $0x48] sm:$0xf] %v3452
        %3517 = vst [vmem:[%s324 + $0x4c] sm:$0xf] %v3453
        %3518 = vst [vmem:[%s324 + $0x50] sm:$0xf] %v3454
        %3519 = vst [vmem:[%s324 + $0x54] sm:$0xf] %v3455
        %3520 = vst [vmem:[%s324 + $0x58] sm:$0xf] %v3456
        %3521 = vst [vmem:[%s324 + $0x5c] sm:$0xf] %v3457
        %3522 = vst [vmem:[%s324 + $0x60] sm:$0xf] %v3458
        %3523 = vst [vmem:[%s324 + $0x64] sm:$0xf] %v3459
        %3524 = vst [vmem:[%s324 + $0x68] sm:$0xf] %v3460
        %3525 = vst [vmem:[%s324 + $0x6c] sm:$0xf] %v3461
        %3526 = vst [vmem:[%s324 + $0x70] sm:$0xf] %v3462
        %3527 = vst [vmem:[%s324 + $0x74] sm:$0xf] %v3463
        %3528 = vst [vmem:[%s324 + $0x78] sm:$0xf] %v3464
        %3529 = vst [vmem:[%s324 + $0x7c] sm:$0xf] %v3465
        %v3530 = vld [vmem:[%s330] sm:$0x1]
        %v3531 = vadd.f32 %v3338, %v3339
        %v3532 = vadd.f32 %v3531, %v3340
        %v3533 = vadd.f32 %v3532, %v3341
        %v3534 = vadd.f32 %v3533, %v3342
        %v3535 = vadd.f32 %v3534, %v3343
        %v3536 = vadd.f32 %v3535, %v3344
        %v3537 = vadd.f32 %v3536, %v3345
        %v3538 = vadd.f32 %v3537, %v3346
        %v3539 = vadd.f32 %v3538, %v3347
        %v3540 = vadd.f32 %v3539, %v3348
        %v3541 = vadd.f32 %v3540, %v3349
        %v3542 = vadd.f32 %v3541, %v3350
        %v3543 = vadd.f32 %v3542, %v3351
        %v3544 = vadd.f32 %v3543, %v3352
        %v3545 = vadd.f32 %v3544, %v3353
        %v3546 = vadd.f32 %v3545, %v3354
        %v3547 = vadd.f32 %v3546, %v3355
        %v3548 = vadd.f32 %v3547, %v3356
        %v3549 = vadd.f32 %v3548, %v3357
        %v3550 = vadd.f32 %v3549, %v3358
        %v3551 = vadd.f32 %v3550, %v3359
        %v3552 = vadd.f32 %v3551, %v3360
        %v3553 = vadd.f32 %v3552, %v3361
        %v3554 = vadd.f32 %v3553, %v3362
        %v3555 = vadd.f32 %v3554, %v3363
        %v3556 = vadd.f32 %v3555, %v3364
        %v3557 = vadd.f32 %v3556, %v3365
        %v3558 = vadd.f32 %v3557, %v3366
        %v3559 = vadd.f32 %v3558, %v3367
        %v3560 = vadd.f32 %v3559, %v3368
        %v3561 = vadd.f32 %v3560, %v3369
        %v3562 = vrot.slane %v3561, 4
        %v3563 = vadd.f32 %v3561, %v3562
        %v3564 = vrot.slane %v3563, 2
        %v3565 = vadd.f32 %v3563, %v3564
        %v3566 = vrot.slane %v3565, 1
        %v3567 = vadd.f32 %v3565, %v3566
        %v3568 = vadd.f32 %v3530, %v3567
        %3569 = vst [vmem:[%s330] sm:$0x1] %v3568
        %v3570 = vld [vmem:[%s336] sm:$0x1]
        %v3571 = vmul.f32 %v3338, %v3338
        %v3572 = vmul.f32 %v3339, %v3339
        %v3573 = vmul.f32 %v3340, %v3340
        %v3574 = vmul.f32 %v3341, %v3341
        %v3575 = vmul.f32 %v3342, %v3342
        %v3576 = vmul.f32 %v3343, %v3343
        %v3577 = vmul.f32 %v3344, %v3344
        %v3578 = vmul.f32 %v3345, %v3345
        %v3579 = vmul.f32 %v3346, %v3346
        %v3580 = vmul.f32 %v3347, %v3347
        %v3581 = vmul.f32 %v3348, %v3348
        %v3582 = vmul.f32 %v3349, %v3349
        %v3583 = vmul.f32 %v3350, %v3350
        %v3584 = vmul.f32 %v3351, %v3351
        %v3585 = vmul.f32 %v3352, %v3352
        %v3586 = vmul.f32 %v3353, %v3353
        %v3587 = vmul.f32 %v3354, %v3354
        %v3588 = vmul.f32 %v3355, %v3355
        %v3589 = vmul.f32 %v3356, %v3356
        %v3590 = vmul.f32 %v3357, %v3357
        %v3591 = vmul.f32 %v3358, %v3358
        %v3592 = vmul.f32 %v3359, %v3359
        %v3593 = vmul.f32 %v3360, %v3360
        %v3594 = vmul.f32 %v3361, %v3361
        %v3595 = vmul.f32 %v3362, %v3362
        %v3596 = vmul.f32 %v3363, %v3363
        %v3597 = vmul.f32 %v3364, %v3364
        %v3598 = vmul.f32 %v3365, %v3365
        %v3599 = vmul.f32 %v3366, %v3366
        %v3600 = vmul.f32 %v3367, %v3367
        %v3601 = vmul.f32 %v3368, %v3368
        %v3602 = vmul.f32 %v3369, %v3369
        %v3603 = vadd.f32 %v3571, %v3572
        %v3604 = vadd.f32 %v3603, %v3573
        %v3605 = vadd.f32 %v3604, %v3574
        %v3606 = vadd.f32 %v3605, %v3575
        %v3607 = vadd.f32 %v3606, %v3576
        %v3608 = vadd.f32 %v3607, %v3577
        %v3609 = vadd.f32 %v3608, %v3578
        %v3610 = vadd.f32 %v3609, %v3579
        %v3611 = vadd.f32 %v3610, %v3580
        %v3612 = vadd.f32 %v3611, %v3581
        %v3613 = vadd.f32 %v3612, %v3582
        %v3614 = vadd.f32 %v3613, %v3583
        %v3615 = vadd.f32 %v3614, %v3584
        %v3616 = vadd.f32 %v3615, %v3585
        %v3617 = vadd.f32 %v3616, %v3586
        %v3618 = vadd.f32 %v3617, %v3587
        %v3619 = vadd.f32 %v3618, %v3588
        %v3620 = vadd.f32 %v3619, %v3589
        %v3621 = vadd.f32 %v3620, %v3590
        %v3622 = vadd.f32 %v3621, %v3591
        %v3623 = vadd.f32 %v3622, %v3592
        %v3624 = vadd.f32 %v3623, %v3593
        %v3625 = vadd.f32 %v3624, %v3594
        %v3626 = vadd.f32 %v3625, %v3595
        %v3627 = vadd.f32 %v3626, %v3596
        %v3628 = vadd.f32 %v3627, %v3597
        %v3629 = vadd.f32 %v3628, %v3598
        %v3630 = vadd.f32 %v3629, %v3599
        %v3631 = vadd.f32 %v3630, %v3600
        %v3632 = vadd.f32 %v3631, %v3601
        %v3633 = vadd.f32 %v3632, %v3602
        %v3634 = vrot.slane %v3633, 4
        %v3635 = vadd.f32 %v3633, %v3634
        %v3636 = vrot.slane %v3635, 2
        %v3637 = vadd.f32 %v3635, %v3636
        %v3638 = vrot.slane %v3637, 1
        %v3639 = vadd.f32 %v3637, %v3638
        %v3640 = vadd.f32 %v3570, %v3639
        %3641 = vst [vmem:[%s336] sm:$0x1] %v3640
        %s3642 = sand.u32 %s137, 1
        %s3643 = scalar_lea.sflag [#allocation4], %s3642
        %s3644 = sand.u32 %s137, 1
        %s3645 = smul.addr %s3644, 128
        %s3646 = scalar_lea.vmem [#allocation9], %s3645
        %s3647 = sand.u32 %s26, 1
        %s3648 = scalar_lea.sflag [#allocation11], %s3647
        %s3649 = sand.u32 %s163, 1
        %s3650 = scalar_lea.vmem [#allocation10], %s3649
        %s3651 = sand.u32 %s26, 1
        %s3652 = scalar_lea.sflag [#allocation11], %s3651
        %s3653 = sand.u32 %s189, 1
        %s3654 = scalar_lea.vmem [#allocation12], %s3653
        // Predicated region
        $region57: #{double_conv.2} parent=35 // pred_check
          %p3655 = pneg %p147
        $region58: #{double_conv.2} parent=35 // pred_check_branch
          %3657 = sbr.rel (%p3655) target = $region60
        $region59: #{double_conv.2} parent=35 // pred_region
          %s3658 = smul.u32 16, %s31
          %s3660 = ssub.s32 2048, 2048
          %3661 = vsyncadd %s3643, %s3660
          %s3662 = smul.addr %s3658, 2
          %s3663 = smul.addr %s30, 32
          %s3664 = sadd.s32 %s3662, %s3663
          %s3665 = smul.addr %s3664, 64
          %s3666 = scalar_lea.hbm %s4, %s3665
          %s3667 = sshll.u32 %s3646, 4
          %s3668 = int_to_ptr.vmem [resolvable:$true] %s3667
          %3673 = dma.vmem_to_hbm [thread:$0]  %s3668, 2048, %s3666, %s3643, 64, 64, 4
        $region60: #{double_conv.2} parent=35 // pred_fallthru
          _
        // Predicated region
        $region61: #{double_conv.2} parent=35 // pred_check
          %p3674 = pneg %p173
        $region62: #{double_conv.2} parent=35 // pred_check_branch
          %3676 = sbr.rel (%p3674) target = $region64
        $region63: #{double_conv.2} parent=35 // pred_region
          %s3678 = ssub.s32 16, 16
          %3679 = vsyncadd %s3648, %s3678
          %s3680 = smul.addr %s30, 16
          %s3681 = scalar_lea.hbm %s5, %s3680
          %s3683 = sshll.u32 %s3650, 4
          %s3684 = int_to_ptr.vmem [resolvable:$true] %s3683
          %3686 = dma.vmem_to_hbm [thread:$0]  %s3684, 16, %s3681, %s3648
        $region64: #{double_conv.2} parent=35 // pred_fallthru
          _
        // Predicated region
        $region65: #{double_conv.2} parent=35 // pred_check
          %p3687 = pneg %p199
        $region66: #{double_conv.2} parent=35 // pred_check_branch
          %3689 = sbr.rel (%p3687) target = $region68
        $region67: #{double_conv.2} parent=35 // pred_region
          %s3691 = ssub.s32 16, 16
          %3692 = vsyncadd %s3652, %s3691
          %s3693 = smul.addr %s30, 16
          %s3694 = scalar_lea.hbm %s6, %s3693
          %s3696 = sshll.u32 %s3654, 4
          %s3697 = int_to_ptr.vmem [resolvable:$true] %s3696
          %3699 = dma.vmem_to_hbm [thread:$0]  %s3697, 16, %s3694, %s3652
        $region68: #{double_conv.2} parent=35 // pred_fallthru
          _
      $region36: #{double_conv.2} parent=5 // pred_fallthru
        _
      %p3700 = scmp.le.s32.totalorder 2, %s21
      // Predicated region
      $region69: #{double_conv.2} parent=5 // pred_check
        %p3701 = pneg %p3700
      $region70: #{double_conv.2} parent=5 // pred_check_branch
        %3703 = sbr.rel (%p3701) target = $region72
      $region71: #{double_conv.2} parent=5 // pred_region
        %s3704 = ssub.s32 %s21, 2
        // Predicated region
        $region73: #{double_conv.2} parent=71 // pred_check
          %p3705 = pneg %p153
        $region74: #{double_conv.2} parent=71 // pred_check_branch
          %3707 = sbr.rel (%p3705) target = $region76
        $region75: #{double_conv.2} parent=71 // pred_region
          %s3708 = sand.u32 %s138, 1
          %s3709 = scalar_lea.sflag [#allocation4], %s3708
          %s3710 = sand.u32 %s138, 1
          %s3711 = smul.addr %s3710, 128
          %s3712 = scalar_lea.vmem [#allocation9], %s3711
          %3713 = dma.done %s3709, 2048
        $region76: #{double_conv.2} parent=71 // pred_fallthru
          _
        // Predicated region
        $region77: #{double_conv.2} parent=71 // pred_check
          %p3714 = pneg %p179
        $region78: #{double_conv.2} parent=71 // pred_check_branch
          %3716 = sbr.rel (%p3714) target = $region80
        $region79: #{double_conv.2} parent=71 // pred_region
          %s3717 = sand.u32 %s27, 1
          %s3718 = scalar_lea.sflag [#allocation11], %s3717
          %s3719 = sand.u32 %s164, 1
          %s3720 = scalar_lea.vmem [#allocation10], %s3719
          %3721 = dma.done %s3718, 16
        $region80: #{double_conv.2} parent=71 // pred_fallthru
          _
        // Predicated region
        $region81: #{double_conv.2} parent=71 // pred_check
          %p3722 = pneg %p205
        $region82: #{double_conv.2} parent=71 // pred_check_branch
          %3724 = sbr.rel (%p3722) target = $region84
        $region83: #{double_conv.2} parent=71 // pred_region
          %s3725 = sand.u32 %s27, 1
          %s3726 = scalar_lea.sflag [#allocation11], %s3725
          %s3727 = sand.u32 %s190, 1
          %s3728 = scalar_lea.vmem [#allocation12], %s3727
          %3729 = dma.done %s3726, 16
        $region84: #{double_conv.2} parent=71 // pred_fallthru
          _
      $region72: #{double_conv.2} parent=5 // pred_fallthru
        _
    $region6: #{double_conv.2} parent=1 // loop_footer
      %s25 = sadd.s32 1, %s21
    $region7: #{double_conv.2} parent=1 // loop_footer_branch
      %20 = sbr.rel target = $region3
    $region8: #{double_conv.2} parent=1 // loop_exit
      _
    %3730 = vsyncpa [#allocation3], 1
    %s3731 = scalar_lea.sflag [#allocation3], 1
    %3732 = vsyncpa %s3731, 1
    %3733 = vsyncpa [#allocation6], 1
    %3734 = vsyncpa [#allocation4], 1
    %s3735 = scalar_lea.sflag [#allocation4], 1
    %3736 = vsyncpa %s3735, 1
    %3737 = vsyncpa [#allocation11], 1
    %s3738 = scalar_lea.sflag [#allocation11], 1
    %3739 = vsyncpa %s3738, 1

// kernel: double_conv.3
$region0: #{double_conv.3}
  #allocation0 [shape = 'u32[]', space=smem, size = 0x4, offset = 0x4, fixed_abs, tag = 'smem constant byte address 0x4 - core index']
  #allocation1 [shape = 'u32[144,128]{1,0:T(1,128)}', space=vmem, size = 0x12000, scoped, tag = 'internal scratch']
  %s0 = inlined_call_operand.hbm [shape: f32[1,128], index: 0, kind: input, shape index: {}]
  %s1 = inlined_call_operand.hbm [shape: f32[1,128], index: 1, kind: input, shape index: {}]
  %s2 = inlined_call_operand.hbm [shape: bf16[2,16,16,128], index: 2, kind: input, shape index: {}]
  %s3 = inlined_call_operand.hbm [shape: bf16[3,384,128], index: 3, kind: input, shape index: {}]
  %s4 = inlined_call_operand.hbm [shape: bf16[2,16,16,128], index: 4, kind: output, shape index: {0}]
  %s5 = inlined_call_operand.hbm [shape: f32[2,1,128], index: 5, kind: output, shape index: {1}]
  %s6 = inlined_call_operand.hbm [shape: f32[2,1,128], index: 6, kind: output, shape index: {2}]
  %7 = xla_tuple %s4, %s5, %s6
  %s8 = sld [smem:[#allocation0]]
  $region85: #{double_conv.3} parent=0
    _
  %s10 = ssub.s32 1, %s8
  %s11 = scalar_select 0, %s10, %s8
  $region1: #{double_conv.3} parent=0
    #allocation2 [shape = 'u8[512]{0}', space=vmem, size = 0x400, scoped, tag = 'input window, operand 0, single buffered']
    #allocation3 [shape = 's32[2]{0}', space=sflag, size = 0x8, scoped, tag = 'scoped memory for double_conv.3']
    #allocation4 [shape = 's32[2]{0}', space=sflag, size = 0x8, scoped, tag = 'scoped memory for double_conv.3']
    #allocation5 [shape = 'u8[512]{0}', space=vmem, size = 0x400, scoped, tag = 'input window, operand 1, single buffered']
    #allocation6 [shape = 's32[1]{0}', space=sflag, size = 0x4, scoped, tag = 'scoped memory for double_conv.3']
    #allocation7 [shape = 'u8[131072]{0}', space=vmem, size = 0x20000, scoped, tag = 'input window, operand 2']
    #allocation8 [shape = 'u8[294912]{0}', space=vmem, size = 0x48000, scoped, tag = 'input window, operand 3, single buffered']
    #allocation9 [shape = 'u8[131072]{0}', space=vmem, size = 0x20000, scoped, tag = 'output window, operand 0']
    #allocation10 [shape = 'u8[1024]{0}', space=vmem, size = 0x400, scoped, tag = 'output window, operand 1']
    #allocation11 [shape = 's32[2]{0}', space=sflag, size = 0x8, scoped, tag = 'scoped memory for double_conv.3']
    #allocation12 [shape = 'u8[1024]{0}', space=vmem, size = 0x400, scoped, tag = 'output window, operand 2']
    %12 = vsyncpa [#allocation3], 0
    %13 = vsyncpa [#allocation6], 0
    %14 = vsyncpa [#allocation4], 0
    %s15 = scalar_lea.sflag [#allocation4], 1
    %16 = vsyncpa %s15, 0
    %17 = vsyncpa [#allocation11], 0
    %s18 = scalar_lea.sflag [#allocation11], 1
    %19 = vsyncpa %s18, 0
    loop: start=0, step=1, limit=4
    $region2: #{double_conv.3} parent=1 // loop_pre_header
      _
    $region3: #{double_conv.3} parent=1 // loop_header
      %s21 = sphi 0, %s25
      %p22 = scmp.ge.s32.totalorder %s21, 4
      %s28 = sphi 0, %s40
      %s29 = sphi 0, %s36
      %s30 = sphi 0, %s28
      %s31 = sphi 0, %s29
      %s32 = sphi 0, %s30
      %s33 = sphi 0, %s31
      %s41 = sphi 0, %s41
      %s43 = sphi 0, %s41
      %s44 = sphi 0, %s43
      %s58 = sphi 0, %s44
      %s62 = sphi 0, %s62
      %s64 = sphi 0, %s62
      %s65 = sphi 0, %s64
      %s79 = sphi 0, %s65
      %s85 = sphi 0, %s87
      %s88 = sphi 0, %s85
      %s89 = sphi 0, %s88
      %s105 = sphi 0, %s89
      %s109 = sphi 0, %s109
      %s111 = sphi 0, %s109
      %s112 = sphi 0, %s111
      %s126 = sphi 0, %s112
      %s134 = sphi 0, %s136
      %s137 = sphi 0, %s134
      %s138 = sphi 0, %s137
      %s154 = sphi 0, %s138
      %s160 = sphi 0, %s162
      %s163 = sphi 0, %s160
      %s164 = sphi 0, %s163
      %s180 = sphi 0, %s164
      %s186 = sphi 0, %s188
      %s189 = sphi 0, %s186
      %s190 = sphi 0, %s189
      %s206 = sphi 0, %s190
    $region4: #{double_conv.3} parent=1 // loop_header_branch
      %24 = sbr.rel (%p22) target = $region8
    $region5: #{double_conv.3} parent=1 // loop_body
      %s26 = ssub.s32 %s21, 1
      %s27 = ssub.s32 %s21, 2
      %s34 = sadd.s32 1, %s29
      %p35 = scmp.ge.s32.totalorder %s34, 1
      %s36 = scalar_select %p35, 0, %s34
      %s37 = sadd.s32 1, %s28
      %s38 = scalar_select %p35, %s37, %s28
      %p39 = scmp.ge.s32.totalorder %s38, 2
      %s40 = scalar_select %p39, 0, %s38
      %s42 = sadd.s32 %s41, 1
      %p45 = scmp.eq.s32.totalorder %s21, 1
      %p46 = scmp.ne.s32.totalorder %s41, %s43
      %p47 = scmp.eq.s32.totalorder %s21, 0
      %p48 = por %p46, %p47
      %p49 = scmp.ne.s32.totalorder %s41, %s43
      %p50 = scmp.eq.s32.totalorder %s26, 1
      %p51 = por %p49, %p50
      %p52 = scmp.ne.s32.totalorder %s43, %s44
      %p53 = scmp.eq.s32.totalorder %s26, 0
      %p54 = por %p52, %p53
      %p55 = scmp.ne.s32.totalorder %s43, %s44
      %p56 = scmp.eq.s32.totalorder %s27, 1
      %p57 = por %p55, %p56
      %p59 = scmp.ne.s32.totalorder %s44, %s58
      %p60 = scmp.eq.s32.totalorder %s27, 0
      %p61 = por %p59, %p60
      %s63 = sadd.s32 %s62, 1
      %p66 = scmp.eq.s32.totalorder %s21, 1
      %p67 = scmp.ne.s32.totalorder %s62, %s64
      %p68 = scmp.eq.s32.totalorder %s21, 0
      %p69 = por %p67, %p68
      %p70 = scmp.ne.s32.totalorder %s62, %s64
      %p71 = scmp.eq.s32.totalorder %s26, 1
      %p72 = por %p70, %p71
      %p73 = scmp.ne.s32.totalorder %s64, %s65
      %p74 = scmp.eq.s32.totalorder %s26, 0
      %p75 = por %p73, %p74
      %p76 = scmp.ne.s32.totalorder %s64, %s65
      %p77 = scmp.eq.s32.totalorder %s27, 1
      %p78 = por %p76, %p77
      %p80 = scmp.ne.s32.totalorder %s65, %s79
      %p81 = scmp.eq.s32.totalorder %s27, 0
      %p82 = por %p80, %p81
      %s83 = ssub.s32 %s28, %s40
      %p84 = scmp.eq.s32.totalorder %s83, 0
      %s86 = sadd.s32 %s85, 1
      %s87 = scalar_select %p84, %s85, %s86
      %p90 = pneg %p84
      %p91 = scmp.eq.s32.totalorder %s21, 1
      %p92 = por %p90, %p91
      %p93 = scmp.ne.s32.totalorder %s85, %s88
      %p94 = scmp.eq.s32.totalorder %s21, 0
      %p95 = por %p93, %p94
      %p96 = scmp.ne.s32.totalorder %s85, %s88
      %p97 = scmp.eq.s32.totalorder %s26, 1
      %p98 = por %p96, %p97
      %p99 = scmp.ne.s32.totalorder %s88, %s89
      %p100 = scmp.eq.s32.totalorder %s26, 0
      %p101 = por %p99, %p100
      %p102 = scmp.ne.s32.totalorder %s88, %s89
      %p103 = scmp.eq.s32.totalorder %s27, 1
      %p104 = por %p102, %p103
      %p106 = scmp.ne.s32.totalorder %s89, %s105
      %p107 = scmp.eq.s32.totalorder %s27, 0
      %p108 = por %p106, %p107
      %s110 = sadd.s32 %s109, 1
      %p113 = scmp.eq.s32.totalorder %s21, 1
      %p114 = scmp.ne.s32.totalorder %s109, %s111
      %p115 = scmp.eq.s32.totalorder %s21, 0
      %p116 = por %p114, %p115
      %p117 = scmp.ne.s32.totalorder %s109, %s111
      %p118 = scmp.eq.s32.totalorder %s26, 1
      %p119 = por %p117, %p118
      %p120 = scmp.ne.s32.totalorder %s111, %s112
      %p121 = scmp.eq.s32.totalorder %s26, 0
      %p122 = por %p120, %p121
      %p123 = scmp.ne.s32.totalorder %s111, %s112
      %p124 = scmp.eq.s32.totalorder %s27, 1
      %p125 = por %p123, %p124
      %p127 = scmp.ne.s32.totalorder %s112, %s126
      %p128 = scmp.eq.s32.totalorder %s27, 0
      %p129 = por %p127, %p128
      %s130 = ssub.s32 %s28, %s40
      %s131 = ssub.s32 %s29, %s36
      %s132 = sor.u32 %s130, %s131
      %p133 = scmp.eq.s32.totalorder %s132, 0
      %s135 = sadd.s32 %s134, 1
      %s136 = scalar_select %p133, %s134, %s135
      %p139 = pneg %p133
      %p140 = scmp.eq.s32.totalorder %s21, 1
      %p141 = por %p139, %p140
      %p142 = scmp.ne.s32.totalorder %s134, %s137
      %p143 = scmp.eq.s32.totalorder %s21, 0
      %p144 = por %p142, %p143
      %p145 = scmp.ne.s32.totalorder %s134, %s137
      %p146 = scmp.eq.s32.totalorder %s26, 1
      %p147 = por %p145, %p146
      %p148 = scmp.ne.s32.totalorder %s137, %s138
      %p149 = scmp.eq.s32.totalorder %s26, 0
      %p150 = por %p148, %p149
      %p151 = scmp.ne.s32.totalorder %s137, %s138
      %p152 = scmp.eq.s32.totalorder %s27, 1
      %p153 = por %p151, %p152
      %p155 = scmp.ne.s32.totalorder %s138, %s154
      %p156 = scmp.eq.s32.totalorder %s27, 0
      %p157 = por %p155, %p156
      %s158 = ssub.s32 %s28, %s40
      %p159 = scmp.eq.s32.totalorder %s158, 0
      %s161 = sadd.s32 %s160, 1
      %s162 = scalar_select %p159, %s160, %s161
      %p165 = pneg %p159
      %p166 = scmp.eq.s32.totalorder %s21, 1
      %p167 = por %p165, %p166
      %p168 = scmp.ne.s32.totalorder %s160, %s163
      %p169 = scmp.eq.s32.totalorder %s21, 0
      %p170 = por %p168, %p169
      %p171 = scmp.ne.s32.totalorder %s160, %s163
      %p172 = scmp.eq.s32.totalorder %s26, 1
      %p173 = por %p171, %p172
      %p174 = scmp.ne.s32.totalorder %s163, %s164
      %p175 = scmp.eq.s32.totalorder %s26, 0
      %p176 = por %p174, %p175
      %p177 = scmp.ne.s32.totalorder %s163, %s164
      %p178 = scmp.eq.s32.totalorder %s27, 1
      %p179 = por %p177, %p178
      %p181 = scmp.ne.s32.totalorder %s164, %s180
      %p182 = scmp.eq.s32.totalorder %s27, 0
      %p183 = por %p181, %p182
      %s184 = ssub.s32 %s28, %s40
      %p185 = scmp.eq.s32.totalorder %s184, 0
      %s187 = sadd.s32 %s186, 1
      %s188 = scalar_select %p185, %s186, %s187
      %p191 = pneg %p185
      %p192 = scmp.eq.s32.totalorder %s21, 1
      %p193 = por %p191, %p192
      %p194 = scmp.ne.s32.totalorder %s186, %s189
      %p195 = scmp.eq.s32.totalorder %s21, 0
      %p196 = por %p194, %p195
      %p197 = scmp.ne.s32.totalorder %s186, %s189
      %p198 = scmp.eq.s32.totalorder %s26, 1
      %p199 = por %p197, %p198
      %p200 = scmp.ne.s32.totalorder %s189, %s190
      %p201 = scmp.eq.s32.totalorder %s26, 0
      %p202 = por %p200, %p201
      %p203 = scmp.ne.s32.totalorder %s189, %s190
      %p204 = scmp.eq.s32.totalorder %s27, 1
      %p205 = por %p203, %p204
      %p207 = scmp.ne.s32.totalorder %s190, %s206
      %p208 = scmp.eq.s32.totalorder %s27, 0
      %p209 = por %p207, %p208
      %p210 = scmp.le.s32.totalorder 1, %s21
      %p211 = scmp.lt.s32.totalorder %s21, 3
      %p212 = pnand %p210, %p211
      %p213 = pneg %p212
      // Predicated region
      $region9: #{double_conv.3} parent=5 // pred_check
        _
      $region10: #{double_conv.3} parent=5 // pred_check_branch
        %215 = sbr.rel (%p212) target = $region12
      $region11: #{double_conv.3} parent=5 // pred_region
        %s216 = ssub.s32 %s21, 1
        // Predicated region
        $region13: #{double_conv.3} parent=11 // pred_check
          %p217 = pneg %p54
        $region14: #{double_conv.3} parent=11 // pred_check_branch
          %219 = sbr.rel (%p217) target = $region16
        $region15: #{double_conv.3} parent=11 // pred_region
          %s221 = ssub.s32 16, 16
          %222 = vsyncadd [#allocation3], %s221
          %s224 = sshll.u32 [#allocation2], 4
          %s225 = int_to_ptr.vmem [resolvable:$true] %s224
          %227 = dma.hbm_to_vmem [thread:$0]  %s0, 16, %s225, [#allocation3]
        $region16: #{double_conv.3} parent=11 // pred_fallthru
          _
        // Predicated region
        $region17: #{double_conv.3} parent=11 // pred_check
          %p228 = pneg %p75
        $region18: #{double_conv.3} parent=11 // pred_check_branch
          %230 = sbr.rel (%p228) target = $region20
        $region19: #{double_conv.3} parent=11 // pred_region
          %s232 = ssub.s32 16, 16
          %233 = vsyncadd [#allocation6], %s232
          %s235 = sshll.u32 [#allocation5], 4
          %s236 = int_to_ptr.vmem [resolvable:$true] %s235
          %238 = dma.hbm_to_vmem [thread:$0]  %s1, 16, %s236, [#allocation6]
        $region20: #{double_conv.3} parent=11 // pred_fallthru
          _
        // Predicated region
        $region21: #{double_conv.3} parent=11 // pred_check
          %p239 = pneg %p122
        $region22: #{double_conv.3} parent=11 // pred_check_branch
          %241 = sbr.rel (%p239) target = $region24
        $region23: #{double_conv.3} parent=11 // pred_region
          %s243 = ssub.s32 9216, 9216
          %244 = vsyncadd [#allocation6], %s243
          %s245 = sshll.u32 [#allocation8], 4
          %s246 = int_to_ptr.vmem [resolvable:$true] %s245
          %251 = dma.hbm_to_vmem [thread:$0]  %s3, 9216, %s246, [#allocation6], 64, 64, 4
        $region24: #{double_conv.3} parent=11 // pred_fallthru
          _
      $region12: #{double_conv.3} parent=5 // pred_fallthru
        _
      %p252 = scmp.lt.s32.totalorder %s21, 2
      // Predicated region
      $region25: #{double_conv.3} parent=5 // pred_check
        %p253 = pneg %p252
      $region26: #{double_conv.3} parent=5 // pred_check_branch
        %255 = sbr.rel (%p253) target = $region28
      $region27: #{double_conv.3} parent=5 // pred_region
        // Predicated region
        $region29: #{double_conv.3} parent=27 // pred_check
          %p256 = pneg %p95
        $region30: #{double_conv.3} parent=27 // pred_check_branch
          %258 = sbr.rel (%p256) target = $region32
        $region31: #{double_conv.3} parent=27 // pred_region
          %s259 = sand.u32 %s21, 1
          %s260 = scalar_lea.sflag [#allocation3], %s259
          %s261 = sand.u32 %s85, 1
          %s262 = smul.addr %s261, 128
          %s263 = scalar_lea.vmem [#allocation7], %s262
          %s265 = ssub.s32 2048, 2048
          %266 = vsyncadd %s260, %s265
          %s267 = smul.addr %s28, 32
          %s268 = smul.addr %s267, 64
          %s269 = scalar_lea.hbm %s2, %s268
          %s270 = sshll.u32 %s263, 4
          %s271 = int_to_ptr.vmem [resolvable:$true] %s270
          %276 = dma.hbm_to_vmem [thread:$0]  %s269, 2048, %s271, %s260, 64, 64, 4
        $region32: #{double_conv.3} parent=27 // pred_fallthru
          _
      $region28: #{double_conv.3} parent=5 // pred_fallthru
        _
      %p277 = scmp.le.s32.totalorder 1, %s21
      %p278 = scmp.lt.s32.totalorder %s21, 3
      %p279 = pnand %p277, %p278
      %p280 = pneg %p279
      // Predicated region
      $region33: #{double_conv.3} parent=5 // pred_check
        _
      $region34: #{double_conv.3} parent=5 // pred_check_branch
        %282 = sbr.rel (%p279) target = $region36
      $region35: #{double_conv.3} parent=5 // pred_region
        %s283 = ssub.s32 %s21, 1
        // Predicated region
        $region37: #{double_conv.3} parent=35 // pred_check
          %p284 = pneg %p54
        $region38: #{double_conv.3} parent=35 // pred_check_branch
          %286 = sbr.rel (%p284) target = $region40
        $region39: #{double_conv.3} parent=35 // pred_region
          %287 = dma.done [#allocation3], 16
        $region40: #{double_conv.3} parent=35 // pred_fallthru
          _
        // Predicated region
        $region41: #{double_conv.3} parent=35 // pred_check
          %p288 = pneg %p75
        $region42: #{double_conv.3} parent=35 // pred_check_branch
          %290 = sbr.rel (%p288) target = $region44
        $region43: #{double_conv.3} parent=35 // pred_region
          %291 = dma.done [#allocation6], 16
        $region44: #{double_conv.3} parent=35 // pred_fallthru
          _
        %s292 = sand.u32 %s26, 1
        %s293 = scalar_lea.sflag [#allocation3], %s292
        %s294 = sand.u32 %s88, 1
        %s295 = smul.addr %s294, 128
        %s296 = scalar_lea.vmem [#allocation7], %s295
        // Predicated region
        $region45: #{double_conv.3} parent=35 // pred_check
          %p297 = pneg %p101
        $region46: #{double_conv.3} parent=35 // pred_check_branch
          %299 = sbr.rel (%p297) target = $region48
        $region47: #{double_conv.3} parent=35 // pred_region
          %300 = dma.done %s293, 2048
        $region48: #{double_conv.3} parent=35 // pred_fallthru
          _
        // Predicated region
        $region49: #{double_conv.3} parent=35 // pred_check
          %p301 = pneg %p122
        $region50: #{double_conv.3} parent=35 // pred_check_branch
          %303 = sbr.rel (%p301) target = $region52
        $region51: #{double_conv.3} parent=35 // pred_region
          %304 = dma.done [#allocation6], 9216
        $region52: #{double_conv.3} parent=35 // pred_fallthru
          _
        %p305 = pneg %p54
        %p306 = pneg %p51
        %p307 = pneg %p75
        %p308 = pneg %p72
        %s309 = sand.u32 %s26, 1
        %s310 = scalar_lea.sflag [#allocation3], %s309
        %s311 = sand.u32 %s88, 1
        %s312 = smul.addr %s311, 128
        %s313 = scalar_lea.vmem [#allocation7], %s312
        %p314 = pneg %p101
        %p315 = pneg %p98
        %p316 = pneg %p122
        %p317 = pneg %p119
        %p318 = pneg %p150
        %p319 = pneg %p147
        %s320 = sand.u32 %s137, 1
        %s321 = scalar_lea.sflag [#allocation4], %s320
        %s322 = sand.u32 %s137, 1
        %s323 = smul.addr %s322, 128
        %s324 = scalar_lea.vmem [#allocation9], %s323
        %p325 = pneg %p176
        %p326 = pneg %p173
        %s327 = sand.u32 %s26, 1
        %s328 = scalar_lea.sflag [#allocation11], %s327
        %s329 = sand.u32 %s163, 1
        %s330 = scalar_lea.vmem [#allocation10], %s329
        %p331 = pneg %p202
        %p332 = pneg %p199
        %s333 = sand.u32 %s26, 1
        %s334 = scalar_lea.sflag [#allocation11], %s333
        %s335 = sand.u32 %s189, 1
        %s336 = scalar_lea.vmem [#allocation12], %s335
        %s337 = smul.u32 16, %s31
        %p341 = scmp.eq.s32.totalorder %s31, 0
        // Predicated region
        $region53: #{double_conv.3} parent=35 // pred_check
          %p342 = pneg %p341
        $region54: #{double_conv.3} parent=35 // pred_check_branch
          %344 = sbr.rel (%p342) target = $region56
        $region55: #{double_conv.3} parent=35 // pred_region
          %345 = vst [vmem:[%s330] sm:$0x1] 0.0
          %346 = vst [vmem:[%s336] sm:$0x1] 0.0
        $region56: #{double_conv.3} parent=35 // pred_fallthru
          _
        %s347 = smul.u32 %s31, 16
        %s348 = smul.u32 %s347, 2
        %s349 = smul.addr %s348, 4
        %s350 = scalar_lea.vmem %s296, %s349 [#allocation7]
        %v351 = vld [vmem:[%s350] sm:$0xf]
        %v352 = vld [vmem:[%s350 + $0x4] sm:$0xf]
        %v353 = vld [vmem:[%s350 + $0x8] sm:$0xf]
        %v354 = vld [vmem:[%s350 + $0xc] sm:$0xf]
        %v355 = vld [vmem:[%s350 + $0x10] sm:$0xf]
        %v356 = vld [vmem:[%s350 + $0x14] sm:$0xf]
        %v357 = vld [vmem:[%s350 + $0x18] sm:$0xf]
        %v358 = vld [vmem:[%s350 + $0x1c] sm:$0xf]
        %v359 = vld [vmem:[%s350 + $0x20] sm:$0xf]
        %v360 = vld [vmem:[%s350 + $0x24] sm:$0xf]
        %v361 = vld [vmem:[%s350 + $0x28] sm:$0xf]
        %v362 = vld [vmem:[%s350 + $0x2c] sm:$0xf]
        %v363 = vld [vmem:[%s350 + $0x30] sm:$0xf]
        %v364 = vld [vmem:[%s350 + $0x34] sm:$0xf]
        %v365 = vld [vmem:[%s350 + $0x38] sm:$0xf]
        %v366 = vld [vmem:[%s350 + $0x3c] sm:$0xf]
        %v367 = vld [vmem:[%s350 + $0x40] sm:$0xf]
        %v368 = vld [vmem:[%s350 + $0x44] sm:$0xf]
        %v369 = vld [vmem:[%s350 + $0x48] sm:$0xf]
        %v370 = vld [vmem:[%s350 + $0x4c] sm:$0xf]
        %v371 = vld [vmem:[%s350 + $0x50] sm:$0xf]
        %v372 = vld [vmem:[%s350 + $0x54] sm:$0xf]
        %v373 = vld [vmem:[%s350 + $0x58] sm:$0xf]
        %v374 = vld [vmem:[%s350 + $0x5c] sm:$0xf]
        %v375 = vld [vmem:[%s350 + $0x60] sm:$0xf]
        %v376 = vld [vmem:[%s350 + $0x64] sm:$0xf]
        %v377 = vld [vmem:[%s350 + $0x68] sm:$0xf]
        %v378 = vld [vmem:[%s350 + $0x6c] sm:$0xf]
        %v379 = vld [vmem:[%s350 + $0x70] sm:$0xf]
        %v380 = vld [vmem:[%s350 + $0x74] sm:$0xf]
        %v381 = vld [vmem:[%s350 + $0x78] sm:$0xf]
        %v382 = vld [vmem:[%s350 + $0x7c] sm:$0xf]
        %s383 = ssub.s32 %s347, 1
        %p384 = scmp.gt.s32.totalorder %s383, 0
        %s385 = scalar_select %p384, %s383, 0
        %s386 = smul.u32 %s385, 2
        %s387 = smul.addr %s386, 4
        %s388 = scalar_lea.vmem %s296, %s387 [#allocation7]
        %v389 = vld [vmem:[%s388] sm:$0xf]
        %v390 = vld [vmem:[%s388 + $0x4] sm:$0xf]
        %s391 = sadd.s32 %s347, 16
        %p392 = scmp.lt.s32.totalorder %s391, 15
        %s393 = scalar_select %p392, %s391, 15
        %s394 = smul.u32 %s393, 2
        %s395 = smul.addr %s394, 4
        %s396 = scalar_lea.vmem %s296, %s395 [#allocation7]
        %v397 = vld [vmem:[%s396] sm:$0xf]
        %v398 = vld [vmem:[%s396 + $0x4] sm:$0xf]
        %v399 = vld [vmem:[#allocation2] sm:$0x1]
        %v400 = vld [vmem:[#allocation5] sm:$0x1]
        %v401 = vunpack.c.l.bf16 %v351
        %v402 = vunpack.c.l.bf16 %v352
        %v403 = vunpack.c.l.bf16 %v353
        %v404 = vunpack.c.l.bf16 %v354
        %v405 = vunpack.c.l.bf16 %v355
        %v406 = vunpack.c.l.bf16 %v356
        %v407 = vunpack.c.l.bf16 %v357
        %v408 = vunpack.c.l.bf16 %v358
        %v409 = vunpack.c.l.bf16 %v359
        %v410 = vunpack.c.l.bf16 %v360
        %v411 = vunpack.c.l.bf16 %v361
        %v412 = vunpack.c.l.bf16 %v362
        %v413 = vunpack.c.l.bf16 %v363
        %v414 = vunpack.c.l.bf16 %v364
        %v415 = vunpack.c.l.bf16 %v365
        %v416 = vunpack.c.l.bf16 %v366
        %v417 = vunpack.c.l.bf16 %v367
        %v418 = vunpack.c.l.bf16 %v368
        %v419 = vunpack.c.l.bf16 %v369
        %v420 = vunpack.c.l.bf16 %v370
        %v421 = vunpack.c.l.bf16 %v371
        %v422 = vunpack.c.l.bf16 %v372
        %v423 = vunpack.c.l.bf16 %v373
        %v424 = vunpack.c.l.bf16 %v374
        %v425 = vunpack.c.l.bf16 %v375
        %v426 = vunpack.c.l.bf16 %v376
        %v427 = vunpack.c.l.bf16 %v377
        %v428 = vunpack.c.l.bf16 %v378
        %v429 = vunpack.c.l.bf16 %v379
        %v430 = vunpack.c.l.bf16 %v380
        %v431 = vunpack.c.l.bf16 %v381
        %v432 = vunpack.c.l.bf16 %v382
        %v434 = vlaneseq
        %v435 = vshrl.u32 %v434, 7
        %v436 = vsub.s32 0, %v435
        %v437 = vrot.slane %v399, %v436
        %v439 = vmul.f32 %v401, %v437
        %v440 = vmul.f32 %v402, %v437
        %v441 = vmul.f32 %v403, %v437
        %v442 = vmul.f32 %v404, %v437
        %v443 = vmul.f32 %v405, %v437
        %v444 = vmul.f32 %v406, %v437
        %v445 = vmul.f32 %v407, %v437
        %v446 = vmul.f32 %v408, %v437
        %v447 = vmul.f32 %v409, %v437
        %v448 = vmul.f32 %v410, %v437
        %v449 = vmul.f32 %v411, %v437
        %v450 = vmul.f32 %v412, %v437
        %v451 = vmul.f32 %v413, %v437
        %v452 = vmul.f32 %v414, %v437
        %v453 = vmul.f32 %v415, %v437
        %v454 = vmul.f32 %v416, %v437
        %v455 = vmul.f32 %v417, %v437
        %v456 = vmul.f32 %v418, %v437
        %v457 = vmul.f32 %v419, %v437
        %v458 = vmul.f32 %v420, %v437
        %v459 = vmul.f32 %v421, %v437
        %v460 = vmul.f32 %v422, %v437
        %v461 = vmul.f32 %v423, %v437
        %v462 = vmul.f32 %v424, %v437
        %v463 = vmul.f32 %v425, %v437
        %v464 = vmul.f32 %v426, %v437
        %v465 = vmul.f32 %v427, %v437
        %v466 = vmul.f32 %v428, %v437
        %v467 = vmul.f32 %v429, %v437
        %v468 = vmul.f32 %v430, %v437
        %v469 = vmul.f32 %v431, %v437
        %v470 = vmul.f32 %v432, %v437
        %v472 = vlaneseq
        %v473 = vshrl.u32 %v472, 7
        %v474 = vsub.s32 0, %v473
        %v475 = vrot.slane %v400, %v474
        %v477 = vadd.f32 %v439, %v475
        %v478 = vadd.f32 %v440, %v475
        %v479 = vadd.f32 %v441, %v475
        %v480 = vadd.f32 %v442, %v475
        %v481 = vadd.f32 %v443, %v475
        %v482 = vadd.f32 %v444, %v475
        %v483 = vadd.f32 %v445, %v475
        %v484 = vadd.f32 %v446, %v475
        %v485 = vadd.f32 %v447, %v475
        %v486 = vadd.f32 %v448, %v475
        %v487 = vadd.f32 %v449, %v475
        %v488 = vadd.f32 %v450, %v475
        %v489 = vadd.f32 %v451, %v475
        %v490 = vadd.f32 %v452, %v475
        %v491 = vadd.f32 %v453, %v475
        %v492 = vadd.f32 %v454, %v475
        %v493 = vadd.f32 %v455, %v475
        %v494 = vadd.f32 %v456, %v475
        %v495 = vadd.f32 %v457, %v475
        %v496 = vadd.f32 %v458, %v475
        %v497 = vadd.f32 %v459, %v475
        %v498 = vadd.f32 %v460, %v475
        %v499 = vadd.f32 %v461, %v475
        %v500 = vadd.f32 %v462, %v475
        %v501 = vadd.f32 %v463, %v475
        %v502 = vadd.f32 %v464, %v475
        %v503 = vadd.f32 %v465, %v475
        %v504 = vadd.f32 %v466, %v475
        %v505 = vadd.f32 %v467, %v475
        %v506 = vadd.f32 %v468, %v475
        %v507 = vadd.f32 %v469, %v475
        %v508 = vadd.f32 %v470, %v475
        %v509 = vmax.f32 %v477, 0.0
        %v510 = vmax.f32 %v478, 0.0
        %v511 = vmax.f32 %v479, 0.0
        %v512 = vmax.f32 %v480, 0.0
        %v513 = vmax.f32 %v481, 0.0
        %v514 = vmax.f32 %v482, 0.0
        %v515 = vmax.f32 %v483, 0.0
        %v516 = vmax.f32 %v484, 0.0
        %v517 = vmax.f32 %v485, 0.0
        %v518 = vmax.f32 %v486, 0.0
        %v519 = vmax.f32 %v487, 0.0
        %v520 = vmax.f32 %v488, 0.0
        %v521 = vmax.f32 %v489, 0.0
        %v522 = vmax.f32 %v490, 0.0
        %v523 = vmax.f32 %v491, 0.0
        %v524 = vmax.f32 %v492, 0.0
        %v525 = vmax.f32 %v493, 0.0
        %v526 = vmax.f32 %v494, 0.0
        %v527 = vmax.f32 %v495, 0.0
        %v528 = vmax.f32 %v496, 0.0
        %v529 = vmax.f32 %v497, 0.0
        %v530 = vmax.f32 %v498, 0.0
        %v531 = vmax.f32 %v499, 0.0
        %v532 = vmax.f32 %v500, 0.0
        %v533 = vmax.f32 %v501, 0.0
        %v534 = vmax.f32 %v502, 0.0
        %v535 = vmax.f32 %v503, 0.0
        %v536 = vmax.f32 %v504, 0.0
        %v537 = vmax.f32 %v505, 0.0
        %v538 = vmax.f32 %v506, 0.0
        %v539 = vmax.f32 %v507, 0.0
        %v540 = vmax.f32 %v508, 0.0
        %v541 = vunpack.c.l.bf16 %v389
        %v542 = vunpack.c.l.bf16 %v390
        %v543 = vmul.f32 %v541, %v437
        %v544 = vmul.f32 %v542, %v437
        %v545 = vadd.f32 %v543, %v475
        %v546 = vadd.f32 %v544, %v475
        %v547 = vmax.f32 %v545, 0.0
        %v548 = vmax.f32 %v546, 0.0
        %v549 = vunpack.c.l.bf16 %v397
        %v550 = vunpack.c.l.bf16 %v398
        %v551 = vmul.f32 %v549, %v437
        %v552 = vmul.f32 %v550, %v437
        %v553 = vadd.f32 %v551, %v475
        %v554 = vadd.f32 %v552, %v475
        %v555 = vmax.f32 %v553, 0.0
        %v556 = vmax.f32 %v554, 0.0
        %p557 = scmp.gt.s32.totalorder %s31, 0
        %s558 = scalar_select %p557, 1, 0
        %s559 = scvt.s32.f32 %s558
        %v560 = vstv %s559
        %v561 = vmul.f32 %v547, %v560
        %v562 = vmul.f32 %v548, %v560
        %p563 = scmp.lt.s32.totalorder %s31, 0
        %s564 = scalar_select %p563, 1, 0
        %s565 = scvt.s32.f32 %s564
        %v566 = vstv %s565
        %v567 = vmul.f32 %v555, %v566
        %v568 = vmul.f32 %v556, %v566
        %v569 = vpack.c.bf16 %v562, %v561
        %v570 = vpack.c.bf16 %v510, %v509
        %v571 = vpack.c.bf16 %v512, %v511
        %v572 = vpack.c.bf16 %v514, %v513
        %v573 = vpack.c.bf16 %v516, %v515
        %v574 = vpack.c.bf16 %v518, %v517
        %v575 = vpack.c.bf16 %v520, %v519
        %v576 = vpack.c.bf16 %v522, %v521
        %v577 = vpack.c.bf16 %v524, %v523
        %v578 = vpack.c.bf16 %v526, %v525
        %v579 = vpack.c.bf16 %v528, %v527
        %v580 = vpack.c.bf16 %v530, %v529
        %v581 = vpack.c.bf16 %v532, %v531
        %v582 = vpack.c.bf16 %v534, %v533
        %v583 = vpack.c.bf16 %v536, %v535
        %v584 = vpack.c.bf16 %v538, %v537
        %v585 = vpack.c.bf16 %v540, %v539
        %v586 = vpack.c.bf16 %v568, %v567
        %v587 = vlaneseq
        %v588 = vshrl.u32 %v587, 7
        %v589 = vadd.s32 %v588, 8
        %v590 = vadd.s32 %v588, 16
        %v591 = vadd.s32 %v588, 24
        %v592 = vadd.s32 %v588, 32
        %v593 = vadd.s32 %v588, 40
        %v594 = vadd.s32 %v588, 48
        %v595 = vadd.s32 %v588, 56
        %v596 = vadd.s32 %v588, 64
        %v597 = vadd.s32 %v588, 72
        %v598 = vadd.s32 %v588, 80
        %v599 = vadd.s32 %v588, 88
        %v600 = vadd.s32 %v588, 96
        %v601 = vadd.s32 %v588, 104
        %v602 = vadd.s32 %v588, 112
        %v603 = vadd.s32 %v588, 120
        %v604 = vadd.s32 %v588, 128
        %v605 = vadd.s32 %v588, 136
        %v606 = vadd.s32 %v588, 144
        %v607 = vadd.s32 %v588, 152
        %v608 = vadd.s32 %v588, 160
        %v609 = vadd.s32 %v588, 168
        %v610 = vadd.s32 %v588, 176
        %v611 = vadd.s32 %v588, 184
        %v612 = vadd.s32 %v588, 192
        %v613 = vadd.s32 %v588, 200
        %v614 = vadd.s32 %v588, 208
        %v615 = vadd.s32 %v588, 216
        %v616 = vadd.s32 %v588, 224
        %v617 = vadd.s32 %v588, 232
        %v618 = vadd.s32 %v588, 240
        %v619 = vadd.s32 %v588, 248
        %v620 = vadd.s32 %v588, 256
        %v621 = vadd.s32 %v588, 264
        %v622 = vadd.s32 %v588, 272
        %v623 = vadd.s32 %v588, 280
        %vm624 = vcmp.lt.s32.totalorder %v588, 0
        %v625 = vsub.s32 0, %v588
        %v626 = vsel %vm624, %v625, %v588
        %v627 = vshrl.u32 %v626, 4
        %v628 = vand.u32 %v626, 15
        %v629 = vsub.s32 0, %v628
        %v630 = vsel %vm624, %v629, %v628
        %vm631 = vcmp.lt.s32.totalorder %v589, 0
        %v632 = vsub.s32 0, %v589
        %v633 = vsel %vm631, %v632, %v589
        %v634 = vshrl.u32 %v633, 4
        %v635 = vand.u32 %v633, 15
        %v636 = vsub.s32 0, %v635
        %v637 = vsel %vm631, %v636, %v635
        %vm638 = vcmp.lt.s32.totalorder %v590, 0
        %v639 = vsub.s32 0, %v590
        %v640 = vsel %vm638, %v639, %v590
        %v641 = vshrl.u32 %v640, 4
        %v642 = vand.u32 %v640, 15
        %v643 = vsub.s32 0, %v642
        %v644 = vsel %vm638, %v643, %v642
        %vm645 = vcmp.lt.s32.totalorder %v591, 0
        %v646 = vsub.s32 0, %v591
        %v647 = vsel %vm645, %v646, %v591
        %v648 = vshrl.u32 %v647, 4
        %v649 = vand.u32 %v647, 15
        %v650 = vsub.s32 0, %v649
        %v651 = vsel %vm645, %v650, %v649
        %vm652 = vcmp.lt.s32.totalorder %v592, 0
        %v653 = vsub.s32 0, %v592
        %v654 = vsel %vm652, %v653, %v592
        %v655 = vshrl.u32 %v654, 4
        %v656 = vand.u32 %v654, 15
        %v657 = vsub.s32 0, %v656
        %v658 = vsel %vm652, %v657, %v656
        %vm659 = vcmp.lt.s32.totalorder %v593, 0
        %v660 = vsub.s32 0, %v593
        %v661 = vsel %vm659, %v660, %v593
        %v662 = vshrl.u32 %v661, 4
        %v663 = vand.u32 %v661, 15
        %v664 = vsub.s32 0, %v663
        %v665 = vsel %vm659, %v664, %v663
        %vm666 = vcmp.lt.s32.totalorder %v594, 0
        %v667 = vsub.s32 0, %v594
        %v668 = vsel %vm666, %v667, %v594
        %v669 = vshrl.u32 %v668, 4
        %v670 = vand.u32 %v668, 15
        %v671 = vsub.s32 0, %v670
        %v672 = vsel %vm666, %v671, %v670
        %vm673 = vcmp.lt.s32.totalorder %v595, 0
        %v674 = vsub.s32 0, %v595
        %v675 = vsel %vm673, %v674, %v595
        %v676 = vshrl.u32 %v675, 4
        %v677 = vand.u32 %v675, 15
        %v678 = vsub.s32 0, %v677
        %v679 = vsel %vm673, %v678, %v677
        %vm680 = vcmp.lt.s32.totalorder %v596, 0
        %v681 = vsub.s32 0, %v596
        %v682 = vsel %vm680, %v681, %v596
        %v683 = vshrl.u32 %v682, 4
        %v684 = vand.u32 %v682, 15
        %v685 = vsub.s32 0, %v684
        %v686 = vsel %vm680, %v685, %v684
        %vm687 = vcmp.lt.s32.totalorder %v597, 0
        %v688 = vsub.s32 0, %v597
        %v689 = vsel %vm687, %v688, %v597
        %v690 = vshrl.u32 %v689, 4
        %v691 = vand.u32 %v689, 15
        %v692 = vsub.s32 0, %v691
        %v693 = vsel %vm687, %v692, %v691
        %vm694 = vcmp.lt.s32.totalorder %v598, 0
        %v695 = vsub.s32 0, %v598
        %v696 = vsel %vm694, %v695, %v598
        %v697 = vshrl.u32 %v696, 4
        %v698 = vand.u32 %v696, 15
        %v699 = vsub.s32 0, %v698
        %v700 = vsel %vm694, %v699, %v698
        %vm701 = vcmp.lt.s32.totalorder %v599, 0
        %v702 = vsub.s32 0, %v599
        %v703 = vsel %vm701, %v702, %v599
        %v704 = vshrl.u32 %v703, 4
        %v705 = vand.u32 %v703, 15
        %v706 = vsub.s32 0, %v705
        %v707 = vsel %vm701, %v706, %v705
        %vm708 = vcmp.lt.s32.totalorder %v600, 0
        %v709 = vsub.s32 0, %v600
        %v710 = vsel %vm708, %v709, %v600
        %v711 = vshrl.u32 %v710, 4
        %v712 = vand.u32 %v710, 15
        %v713 = vsub.s32 0, %v712
        %v714 = vsel %vm708, %v713, %v712
        %vm715 = vcmp.lt.s32.totalorder %v601, 0
        %v716 = vsub.s32 0, %v601
        %v717 = vsel %vm715, %v716, %v601
        %v718 = vshrl.u32 %v717, 4
        %v719 = vand.u32 %v717, 15
        %v720 = vsub.s32 0, %v719
        %v721 = vsel %vm715, %v720, %v719
        %vm722 = vcmp.lt.s32.totalorder %v602, 0
        %v723 = vsub.s32 0, %v602
        %v724 = vsel %vm722, %v723, %v602
        %v725 = vshrl.u32 %v724, 4
        %v726 = vand.u32 %v724, 15
        %v727 = vsub.s32 0, %v726
        %v728 = vsel %vm722, %v727, %v726
        %vm729 = vcmp.lt.s32.totalorder %v603, 0
        %v730 = vsub.s32 0, %v603
        %v731 = vsel %vm729, %v730, %v603
        %v732 = vshrl.u32 %v731, 4
        %v733 = vand.u32 %v731, 15
        %v734 = vsub.s32 0, %v733
        %v735 = vsel %vm729, %v734, %v733
        %vm736 = vcmp.lt.s32.totalorder %v604, 0
        %v737 = vsub.s32 0, %v604
        %v738 = vsel %vm736, %v737, %v604
        %v739 = vshrl.u32 %v738, 4
        %v740 = vand.u32 %v738, 15
        %v741 = vsub.s32 0, %v740
        %v742 = vsel %vm736, %v741, %v740
        %vm743 = vcmp.lt.s32.totalorder %v605, 0
        %v744 = vsub.s32 0, %v605
        %v745 = vsel %vm743, %v744, %v605
        %v746 = vshrl.u32 %v745, 4
        %v747 = vand.u32 %v745, 15
        %v748 = vsub.s32 0, %v747
        %v749 = vsel %vm743, %v748, %v747
        %vm750 = vcmp.lt.s32.totalorder %v606, 0
        %v751 = vsub.s32 0, %v606
        %v752 = vsel %vm750, %v751, %v606
        %v753 = vshrl.u32 %v752, 4
        %v754 = vand.u32 %v752, 15
        %v755 = vsub.s32 0, %v754
        %v756 = vsel %vm750, %v755, %v754
        %vm757 = vcmp.lt.s32.totalorder %v607, 0
        %v758 = vsub.s32 0, %v607
        %v759 = vsel %vm757, %v758, %v607
        %v760 = vshrl.u32 %v759, 4
        %v761 = vand.u32 %v759, 15
        %v762 = vsub.s32 0, %v761
        %v763 = vsel %vm757, %v762, %v761
        %vm764 = vcmp.lt.s32.totalorder %v608, 0
        %v765 = vsub.s32 0, %v608
        %v766 = vsel %vm764, %v765, %v608
        %v767 = vshrl.u32 %v766, 4
        %v768 = vand.u32 %v766, 15
        %v769 = vsub.s32 0, %v768
        %v770 = vsel %vm764, %v769, %v768
        %vm771 = vcmp.lt.s32.totalorder %v609, 0
        %v772 = vsub.s32 0, %v609
        %v773 = vsel %vm771, %v772, %v609
        %v774 = vshrl.u32 %v773, 4
        %v775 = vand.u32 %v773, 15
        %v776 = vsub.s32 0, %v775
        %v777 = vsel %vm771, %v776, %v775
        %vm778 = vcmp.lt.s32.totalorder %v610, 0
        %v779 = vsub.s32 0, %v610
        %v780 = vsel %vm778, %v779, %v610
        %v781 = vshrl.u32 %v780, 4
        %v782 = vand.u32 %v780, 15
        %v783 = vsub.s32 0, %v782
        %v784 = vsel %vm778, %v783, %v782
        %vm785 = vcmp.lt.s32.totalorder %v611, 0
        %v786 = vsub.s32 0, %v611
        %v787 = vsel %vm785, %v786, %v611
        %v788 = vshrl.u32 %v787, 4
        %v789 = vand.u32 %v787, 15
        %v790 = vsub.s32 0, %v789
        %v791 = vsel %vm785, %v790, %v789
        %vm792 = vcmp.lt.s32.totalorder %v612, 0
        %v793 = vsub.s32 0, %v612
        %v794 = vsel %vm792, %v793, %v612
        %v795 = vshrl.u32 %v794, 4
        %v796 = vand.u32 %v794, 15
        %v797 = vsub.s32 0, %v796
        %v798 = vsel %vm792, %v797, %v796
        %vm799 = vcmp.lt.s32.totalorder %v613, 0
        %v800 = vsub.s32 0, %v613
        %v801 = vsel %vm799, %v800, %v613
        %v802 = vshrl.u32 %v801, 4
        %v803 = vand.u32 %v801, 15
        %v804 = vsub.s32 0, %v803
        %v805 = vsel %vm799, %v804, %v803
        %vm806 = vcmp.lt.s32.totalorder %v614, 0
        %v807 = vsub.s32 0, %v614
        %v808 = vsel %vm806, %v807, %v614
        %v809 = vshrl.u32 %v808, 4
        %v810 = vand.u32 %v808, 15
        %v811 = vsub.s32 0, %v810
        %v812 = vsel %vm806, %v811, %v810
        %vm813 = vcmp.lt.s32.totalorder %v615, 0
        %v814 = vsub.s32 0, %v615
        %v815 = vsel %vm813, %v814, %v615
        %v816 = vshrl.u32 %v815, 4
        %v817 = vand.u32 %v815, 15
        %v818 = vsub.s32 0, %v817
        %v819 = vsel %vm813, %v818, %v817
        %vm820 = vcmp.lt.s32.totalorder %v616, 0
        %v821 = vsub.s32 0, %v616
        %v822 = vsel %vm820, %v821, %v616
        %v823 = vshrl.u32 %v822, 4
        %v824 = vand.u32 %v822, 15
        %v825 = vsub.s32 0, %v824
        %v826 = vsel %vm820, %v825, %v824
        %vm827 = vcmp.lt.s32.totalorder %v617, 0
        %v828 = vsub.s32 0, %v617
        %v829 = vsel %vm827, %v828, %v617
        %v830 = vshrl.u32 %v829, 4
        %v831 = vand.u32 %v829, 15
        %v832 = vsub.s32 0, %v831
        %v833 = vsel %vm827, %v832, %v831
        %vm834 = vcmp.lt.s32.totalorder %v618, 0
        %v835 = vsub.s32 0, %v618
        %v836 = vsel %vm834, %v835, %v618
        %v837 = vshrl.u32 %v836, 4
        %v838 = vand.u32 %v836, 15
        %v839 = vsub.s32 0, %v838
        %v840 = vsel %vm834, %v839, %v838
        %vm841 = vcmp.lt.s32.totalorder %v619, 0
        %v842 = vsub.s32 0, %v619
        %v843 = vsel %vm841, %v842, %v619
        %v844 = vshrl.u32 %v843, 4
        %v845 = vand.u32 %v843, 15
        %v846 = vsub.s32 0, %v845
        %v847 = vsel %vm841, %v846, %v845
        %vm848 = vcmp.lt.s32.totalorder %v620, 0
        %v849 = vsub.s32 0, %v620
        %v850 = vsel %vm848, %v849, %v620
        %v851 = vshrl.u32 %v850, 4
        %v852 = vand.u32 %v850, 15
        %v853 = vsub.s32 0, %v852
        %v854 = vsel %vm848, %v853, %v852
        %vm855 = vcmp.lt.s32.totalorder %v621, 0
        %v856 = vsub.s32 0, %v621
        %v857 = vsel %vm855, %v856, %v621
        %v858 = vshrl.u32 %v857, 4
        %v859 = vand.u32 %v857, 15
        %v860 = vsub.s32 0, %v859
        %v861 = vsel %vm855, %v860, %v859
        %vm862 = vcmp.lt.s32.totalorder %v622, 0
        %v863 = vsub.s32 0, %v622
        %v864 = vsel %vm862, %v863, %v622
        %v865 = vshrl.u32 %v864, 4
        %v866 = vand.u32 %v864, 15
        %v867 = vsub.s32 0, %v866
        %v868 = vsel %vm862, %v867, %v866
        %vm869 = vcmp.lt.s32.totalorder %v623, 0
        %v870 = vsub.s32 0, %v623
        %v871 = vsel %vm869, %v870, %v623
        %v872 = vshrl.u32 %v871, 4
        %v873 = vand.u32 %v871, 15
        %v874 = vsub.s32 0, %v873
        %v875 = vsel %vm869, %v874, %v873
        %vm876 = vcmp.ne.s32.totalorder %v630, 0
        %vm877 = vcmp.ne.s32.totalorder %v637, 0
        %vm878 = vcmp.ne.s32.totalorder %v644, 0
        %vm879 = vcmp.ne.s32.totalorder %v651, 0
        %vm880 = vcmp.ne.s32.totalorder %v658, 0
        %vm881 = vcmp.ne.s32.totalorder %v665, 0
        %vm882 = vcmp.ne.s32.totalorder %v672, 0
        %vm883 = vcmp.ne.s32.totalorder %v679, 0
        %vm884 = vcmp.ne.s32.totalorder %v686, 0
        %vm885 = vcmp.ne.s32.totalorder %v693, 0
        %vm886 = vcmp.ne.s32.totalorder %v700, 0
        %vm887 = vcmp.ne.s32.totalorder %v707, 0
        %vm888 = vcmp.ne.s32.totalorder %v714, 0
        %vm889 = vcmp.ne.s32.totalorder %v721, 0
        %vm890 = vcmp.ne.s32.totalorder %v728, 0
        %vm891 = vcmp.ne.s32.totalorder %v735, 0
        %vm892 = vcmp.ne.s32.totalorder %v742, 0
        %vm893 = vcmp.ne.s32.totalorder %v749, 0
        %vm894 = vcmp.ne.s32.totalorder %v756, 0
        %vm895 = vcmp.ne.s32.totalorder %v763, 0
        %vm896 = vcmp.ne.s32.totalorder %v770, 0
        %vm897 = vcmp.ne.s32.totalorder %v777, 0
        %vm898 = vcmp.ne.s32.totalorder %v784, 0
        %vm899 = vcmp.ne.s32.totalorder %v791, 0
        %vm900 = vcmp.ne.s32.totalorder %v798, 0
        %vm901 = vcmp.ne.s32.totalorder %v805, 0
        %vm902 = vcmp.ne.s32.totalorder %v812, 0
        %vm903 = vcmp.ne.s32.totalorder %v819, 0
        %vm904 = vcmp.ne.s32.totalorder %v826, 0
        %vm905 = vcmp.ne.s32.totalorder %v833, 0
        %vm906 = vcmp.ne.s32.totalorder %v840, 0
        %vm907 = vcmp.ne.s32.totalorder %v847, 0
        %vm908 = vcmp.ne.s32.totalorder %v854, 0
        %vm909 = vcmp.ne.s32.totalorder %v861, 0
        %vm910 = vcmp.ne.s32.totalorder %v868, 0
        %vm911 = vcmp.ne.s32.totalorder %v875, 0
        %vm912 = vcmp.lt.s32.totalorder %v630, 0
        %vm913 = vcmp.lt.s32.totalorder %v637, 0
        %vm914 = vcmp.lt.s32.totalorder %v644, 0
        %vm915 = vcmp.lt.s32.totalorder %v651, 0
        %vm916 = vcmp.lt.s32.totalorder %v658, 0
        %vm917 = vcmp.lt.s32.totalorder %v665, 0
        %vm918 = vcmp.lt.s32.totalorder %v672, 0
        %vm919 = vcmp.lt.s32.totalorder %v679, 0
        %vm920 = vcmp.lt.s32.totalorder %v686, 0
        %vm921 = vcmp.lt.s32.totalorder %v693, 0
        %vm922 = vcmp.lt.s32.totalorder %v700, 0
        %vm923 = vcmp.lt.s32.totalorder %v707, 0
        %vm924 = vcmp.lt.s32.totalorder %v714, 0
        %vm925 = vcmp.lt.s32.totalorder %v721, 0
        %vm926 = vcmp.lt.s32.totalorder %v728, 0
        %vm927 = vcmp.lt.s32.totalorder %v735, 0
        %vm928 = vcmp.lt.s32.totalorder %v742, 0
        %vm929 = vcmp.lt.s32.totalorder %v749, 0
        %vm930 = vcmp.lt.s32.totalorder %v756, 0
        %vm931 = vcmp.lt.s32.totalorder %v763, 0
        %vm932 = vcmp.lt.s32.totalorder %v770, 0
        %vm933 = vcmp.lt.s32.totalorder %v777, 0
        %vm934 = vcmp.lt.s32.totalorder %v784, 0
        %vm935 = vcmp.lt.s32.totalorder %v791, 0
        %vm936 = vcmp.lt.s32.totalorder %v798, 0
        %vm937 = vcmp.lt.s32.totalorder %v805, 0
        %vm938 = vcmp.lt.s32.totalorder %v812, 0
        %vm939 = vcmp.lt.s32.totalorder %v819, 0
        %vm940 = vcmp.lt.s32.totalorder %v826, 0
        %vm941 = vcmp.lt.s32.totalorder %v833, 0
        %vm942 = vcmp.lt.s32.totalorder %v840, 0
        %vm943 = vcmp.lt.s32.totalorder %v847, 0
        %vm944 = vcmp.lt.s32.totalorder %v854, 0
        %vm945 = vcmp.lt.s32.totalorder %v861, 0
        %vm946 = vcmp.lt.s32.totalorder %v868, 0
        %vm947 = vcmp.lt.s32.totalorder %v875, 0
        %vm948 = vmand %vm912, %vm876
        %vm949 = vmand %vm913, %vm877
        %vm950 = vmand %vm914, %vm878
        %vm951 = vmand %vm915, %vm879
        %vm952 = vmand %vm916, %vm880
        %vm953 = vmand %vm917, %vm881
        %vm954 = vmand %vm918, %vm882
        %vm955 = vmand %vm919, %vm883
        %vm956 = vmand %vm920, %vm884
        %vm957 = vmand %vm921, %vm885
        %vm958 = vmand %vm922, %vm886
        %vm959 = vmand %vm923, %vm887
        %vm960 = vmand %vm924, %vm888
        %vm961 = vmand %vm925, %vm889
        %vm962 = vmand %vm926, %vm890
        %vm963 = vmand %vm927, %vm891
        %vm964 = vmand %vm928, %vm892
        %vm965 = vmand %vm929, %vm893
        %vm966 = vmand %vm930, %vm894
        %vm967 = vmand %vm931, %vm895
        %vm968 = vmand %vm932, %vm896
        %vm969 = vmand %vm933, %vm897
        %vm970 = vmand %vm934, %vm898
        %vm971 = vmand %vm935, %vm899
        %vm972 = vmand %vm936, %vm900
        %vm973 = vmand %vm937, %vm901
        %vm974 = vmand %vm938, %vm902
        %vm975 = vmand %vm939, %vm903
        %vm976 = vmand %vm940, %vm904
        %vm977 = vmand %vm941, %vm905
        %vm978 = vmand %vm942, %vm906
        %vm979 = vmand %vm943, %vm907
        %vm980 = vmand %vm944, %vm908
        %vm981 = vmand %vm945, %vm909
        %vm982 = vmand %vm946, %vm910
        %vm983 = vmand %vm947, %vm911
        %v984 = vadd.s32 %v630, 16
        %v985 = vadd.s32 %v637, 16
        %v986 = vadd.s32 %v644, 16
        %v987 = vadd.s32 %v651, 16
        %v988 = vadd.s32 %v658, 16
        %v989 = vadd.s32 %v665, 16
        %v990 = vadd.s32 %v672, 16
        %v991 = vadd.s32 %v679, 16
        %v992 = vadd.s32 %v686, 16
        %v993 = vadd.s32 %v693, 16
        %v994 = vadd.s32 %v700, 16
        %v995 = vadd.s32 %v707, 16
        %v996 = vadd.s32 %v714, 16
        %v997 = vadd.s32 %v721, 16
        %v998 = vadd.s32 %v728, 16
        %v999 = vadd.s32 %v735, 16
        %v1000 = vadd.s32 %v742, 16
        %v1001 = vadd.s32 %v749, 16
        %v1002 = vadd.s32 %v756, 16
        %v1003 = vadd.s32 %v763, 16
        %v1004 = vadd.s32 %v770, 16
        %v1005 = vadd.s32 %v777, 16
        %v1006 = vadd.s32 %v784, 16
        %v1007 = vadd.s32 %v791, 16
        %v1008 = vadd.s32 %v798, 16
        %v1009 = vadd.s32 %v805, 16
        %v1010 = vadd.s32 %v812, 16
        %v1011 = vadd.s32 %v819, 16
        %v1012 = vadd.s32 %v826, 16
        %v1013 = vadd.s32 %v833, 16
        %v1014 = vadd.s32 %v840, 16
        %v1015 = vadd.s32 %v847, 16
        %v1016 = vadd.s32 %v854, 16
        %v1017 = vadd.s32 %v861, 16
        %v1018 = vadd.s32 %v868, 16
        %v1019 = vadd.s32 %v875, 16
        %v1020 = vsel %vm948, %v984, %v630
        %v1021 = vsel %vm949, %v985, %v637
        %v1022 = vsel %vm950, %v986, %v644
        %v1023 = vsel %vm951, %v987, %v651
        %v1024 = vsel %vm952, %v988, %v658
        %v1025 = vsel %vm953, %v989, %v665
        %v1026 = vsel %vm954, %v990, %v672
        %v1027 = vsel %vm955, %v991, %v679
        %v1028 = vsel %vm956, %v992, %v686
        %v1029 = vsel %vm957, %v993, %v693
        %v1030 = vsel %vm958, %v994, %v700
        %v1031 = vsel %vm959, %v995, %v707
        %v1032 = vsel %vm960, %v996, %v714
        %v1033 = vsel %vm961, %v997, %v721
        %v1034 = vsel %vm962, %v998, %v728
        %v1035 = vsel %vm963, %v999, %v735
        %v1036 = vsel %vm964, %v1000, %v742
        %v1037 = vsel %vm965, %v1001, %v749
        %v1038 = vsel %vm966, %v1002, %v756
        %v1039 = vsel %vm967, %v1003, %v763
        %v1040 = vsel %vm968, %v1004, %v770
        %v1041 = vsel %vm969, %v1005, %v777
        %v1042 = vsel %vm970, %v1006, %v784
        %v1043 = vsel %vm971, %v1007, %v791
        %v1044 = vsel %vm972, %v1008, %v798
        %v1045 = vsel %vm973, %v1009, %v805
        %v1046 = vsel %vm974, %v1010, %v812
        %v1047 = vsel %vm975, %v1011, %v819
        %v1048 = vsel %vm976, %v1012, %v826
        %v1049 = vsel %vm977, %v1013, %v833
        %v1050 = vsel %vm978, %v1014, %v840
        %v1051 = vsel %vm979, %v1015, %v847
        %v1052 = vsel %vm980, %v1016, %v854
        %v1053 = vsel %vm981, %v1017, %v861
        %v1054 = vsel %vm982, %v1018, %v868
        %v1055 = vsel %vm983, %v1019, %v875
        %vm1056 = vsmask.f32 256
        %v1058 = vshrl.u32 %v569, 16
        %v1060 = vrot.slane %v1058, 7
        %v1061 = vshll.u32 %v569, 16
        %v1063 = vor.u32 %v1060, %v1061
        %v1065 = vshrl.u32 %v570, 16
        %v1067 = vrot.slane %v1065, 7
        %v1068 = vshll.u32 %v570, 16
        %v1070 = vor.u32 %v1067, %v1068
        %v1071 = vsel %vm1056, %v1060, %v1070
        %v1073 = vshrl.u32 %v571, 16
        %v1075 = vrot.slane %v1073, 7
        %v1076 = vshll.u32 %v571, 16
        %v1078 = vor.u32 %v1075, %v1076
        %v1079 = vsel %vm1056, %v1067, %v1078
        %v1081 = vshrl.u32 %v572, 16
        %v1083 = vrot.slane %v1081, 7
        %v1084 = vshll.u32 %v572, 16
        %v1086 = vor.u32 %v1083, %v1084
        %v1087 = vsel %vm1056, %v1075, %v1086
        %v1089 = vshrl.u32 %v573, 16
        %v1091 = vrot.slane %v1089, 7
        %v1092 = vshll.u32 %v573, 16
        %v1094 = vor.u32 %v1091, %v1092
        %v1095 = vsel %vm1056, %v1083, %v1094
        %v1097 = vshrl.u32 %v574, 16
        %v1099 = vrot.slane %v1097, 7
        %v1100 = vshll.u32 %v574, 16
        %v1102 = vor.u32 %v1099, %v1100
        %v1103 = vsel %vm1056, %v1091, %v1102
        %v1105 = vshrl.u32 %v575, 16
        %v1107 = vrot.slane %v1105, 7
        %v1108 = vshll.u32 %v575, 16
        %v1110 = vor.u32 %v1107, %v1108
        %v1111 = vsel %vm1056, %v1099, %v1110
        %v1113 = vshrl.u32 %v576, 16
        %v1115 = vrot.slane %v1113, 7
        %v1116 = vshll.u32 %v576, 16
        %v1118 = vor.u32 %v1115, %v1116
        %v1119 = vsel %vm1056, %v1107, %v1118
        %v1121 = vshrl.u32 %v577, 16
        %v1123 = vrot.slane %v1121, 7
        %v1124 = vshll.u32 %v577, 16
        %v1126 = vor.u32 %v1123, %v1124
        %v1127 = vsel %vm1056, %v1115, %v1126
        %v1129 = vshrl.u32 %v578, 16
        %v1131 = vrot.slane %v1129, 7
        %v1132 = vshll.u32 %v578, 16
        %v1134 = vor.u32 %v1131, %v1132
        %v1135 = vsel %vm1056, %v1123, %v1134
        %v1137 = vshrl.u32 %v579, 16
        %v1139 = vrot.slane %v1137, 7
        %v1140 = vshll.u32 %v579, 16
        %v1142 = vor.u32 %v1139, %v1140
        %v1143 = vsel %vm1056, %v1131, %v1142
        %v1145 = vshrl.u32 %v580, 16
        %v1147 = vrot.slane %v1145, 7
        %v1148 = vshll.u32 %v580, 16
        %v1150 = vor.u32 %v1147, %v1148
        %v1151 = vsel %vm1056, %v1139, %v1150
        %v1153 = vshrl.u32 %v581, 16
        %v1155 = vrot.slane %v1153, 7
        %v1156 = vshll.u32 %v581, 16
        %v1158 = vor.u32 %v1155, %v1156
        %v1159 = vsel %vm1056, %v1147, %v1158
        %v1161 = vshrl.u32 %v582, 16
        %v1163 = vrot.slane %v1161, 7
        %v1164 = vshll.u32 %v582, 16
        %v1166 = vor.u32 %v1163, %v1164
        %v1167 = vsel %vm1056, %v1155, %v1166
        %v1169 = vshrl.u32 %v583, 16
        %v1171 = vrot.slane %v1169, 7
        %v1172 = vshll.u32 %v583, 16
        %v1174 = vor.u32 %v1171, %v1172
        %v1175 = vsel %vm1056, %v1163, %v1174
        %v1177 = vshrl.u32 %v584, 16
        %v1179 = vrot.slane %v1177, 7
        %v1180 = vshll.u32 %v584, 16
        %v1182 = vor.u32 %v1179, %v1180
        %v1183 = vsel %vm1056, %v1171, %v1182
        %v1185 = vshrl.u32 %v585, 16
        %v1187 = vrot.slane %v1185, 7
        %v1188 = vshll.u32 %v585, 16
        %v1190 = vor.u32 %v1187, %v1188
        %v1191 = vsel %vm1056, %v1179, %v1190
        %v1193 = vshrl.u32 %v586, 16
        %v1195 = vrot.slane %v1193, 7
        %v1196 = vshll.u32 %v586, 16
        %v1198 = vor.u32 %v1195, %v1196
        %v1199 = vsel %vm1056, %v1187, %v1198
        %vm1218 = vcmask 1040384
        %vm1219 = vmand %vm1218, %vm1056
        %v1220 = vsel %vm1219, 0, %v1063
        %vm1221 = vcmp.ne.s32.totalorder %v1020, 0
        %vm1222 = vcmp.ne.s32.totalorder %v1021, 0
        %vm1223 = vcmp.ne.s32.totalorder %v1022, 0
        %vm1224 = vcmp.ne.s32.totalorder %v1023, 0
        %vm1225 = vcmp.ne.s32.totalorder %v1024, 0
        %vm1226 = vcmp.ne.s32.totalorder %v1025, 0
        %vm1227 = vcmp.ne.s32.totalorder %v1026, 0
        %vm1228 = vcmp.ne.s32.totalorder %v1027, 0
        %vm1229 = vcmp.ne.s32.totalorder %v1028, 0
        %vm1230 = vcmp.ne.s32.totalorder %v1029, 0
        %vm1231 = vcmp.ne.s32.totalorder %v1030, 0
        %vm1232 = vcmp.ne.s32.totalorder %v1031, 0
        %vm1233 = vcmp.ne.s32.totalorder %v1032, 0
        %vm1234 = vcmp.ne.s32.totalorder %v1033, 0
        %vm1235 = vcmp.ne.s32.totalorder %v1034, 0
        %vm1236 = vcmp.ne.s32.totalorder %v1035, 0
        %vm1237 = vcmp.ne.s32.totalorder %v1036, 0
        %vm1238 = vcmp.ne.s32.totalorder %v1037, 0
        %vm1239 = vcmp.ne.s32.totalorder %v1038, 0
        %vm1240 = vcmp.ne.s32.totalorder %v1039, 0
        %vm1241 = vcmp.ne.s32.totalorder %v1040, 0
        %vm1242 = vcmp.ne.s32.totalorder %v1041, 0
        %vm1243 = vcmp.ne.s32.totalorder %v1042, 0
        %vm1244 = vcmp.ne.s32.totalorder %v1043, 0
        %vm1245 = vcmp.ne.s32.totalorder %v1044, 0
        %vm1246 = vcmp.ne.s32.totalorder %v1045, 0
        %vm1247 = vcmp.ne.s32.totalorder %v1046, 0
        %vm1248 = vcmp.ne.s32.totalorder %v1047, 0
        %vm1249 = vcmp.ne.s32.totalorder %v1048, 0
        %vm1250 = vcmp.ne.s32.totalorder %v1049, 0
        %vm1251 = vcmp.ne.s32.totalorder %v1050, 0
        %vm1252 = vcmp.ne.s32.totalorder %v1051, 0
        %vm1253 = vcmp.ne.s32.totalorder %v1052, 0
        %vm1254 = vcmp.ne.s32.totalorder %v1053, 0
        %vm1255 = vcmp.ne.s32.totalorder %v1054, 0
        %vm1256 = vcmp.ne.s32.totalorder %v1055, 0
        %v1257 = vsel %vm1221, 1, 0
        %v1258 = vsel %vm1222, 1, 0
        %v1259 = vsel %vm1223, 1, 0
        %v1260 = vsel %vm1224, 1, 0
        %v1261 = vsel %vm1225, 1, 0
        %v1262 = vsel %vm1226, 1, 0
        %v1263 = vsel %vm1227, 1, 0
        %v1264 = vsel %vm1228, 1, 0
        %v1265 = vsel %vm1229, 1, 0
        %v1266 = vsel %vm1230, 1, 0
        %v1267 = vsel %vm1231, 1, 0
        %v1268 = vsel %vm1232, 1, 0
        %v1269 = vsel %vm1233, 1, 0
        %v1270 = vsel %vm1234, 1, 0
        %v1271 = vsel %vm1235, 1, 0
        %v1272 = vsel %vm1236, 1, 0
        %v1273 = vsel %vm1237, 1, 0
        %v1274 = vsel %vm1238, 1, 0
        %v1275 = vsel %vm1239, 1, 0
        %v1276 = vsel %vm1240, 1, 0
        %v1277 = vsel %vm1241, 1, 0
        %v1278 = vsel %vm1242, 1, 0
        %v1279 = vsel %vm1243, 1, 0
        %v1280 = vsel %vm1244, 1, 0
        %v1281 = vsel %vm1245, 1, 0
        %v1282 = vsel %vm1246, 1, 0
        %v1283 = vsel %vm1247, 1, 0
        %v1284 = vsel %vm1248, 1, 0
        %v1285 = vsel %vm1249, 1, 0
        %v1286 = vsel %vm1250, 1, 0
        %v1287 = vsel %vm1251, 1, 0
        %v1288 = vsel %vm1252, 1, 0
        %v1289 = vsel %vm1253, 1, 0
        %v1290 = vsel %vm1254, 1, 0
        %v1291 = vsel %vm1255, 1, 0
        %v1292 = vsel %vm1256, 1, 0
        %vm1293 = vcmp.eq.s32.totalorder %v1257, 1
        %vm1294 = vcmp.eq.s32.totalorder %v1258, 1
        %vm1295 = vcmp.eq.s32.totalorder %v1259, 1
        %vm1296 = vcmp.eq.s32.totalorder %v1260, 1
        %vm1297 = vcmp.eq.s32.totalorder %v1261, 1
        %vm1298 = vcmp.eq.s32.totalorder %v1262, 1
        %vm1299 = vcmp.eq.s32.totalorder %v1263, 1
        %vm1300 = vcmp.eq.s32.totalorder %v1264, 1
        %vm1301 = vcmp.eq.s32.totalorder %v1265, 1
        %vm1302 = vcmp.eq.s32.totalorder %v1266, 1
        %vm1303 = vcmp.eq.s32.totalorder %v1267, 1
        %vm1304 = vcmp.eq.s32.totalorder %v1268, 1
        %vm1305 = vcmp.eq.s32.totalorder %v1269, 1
        %vm1306 = vcmp.eq.s32.totalorder %v1270, 1
        %vm1307 = vcmp.eq.s32.totalorder %v1271, 1
        %vm1308 = vcmp.eq.s32.totalorder %v1272, 1
        %vm1309 = vcmp.eq.s32.totalorder %v1273, 1
        %vm1310 = vcmp.eq.s32.totalorder %v1274, 1
        %vm1311 = vcmp.eq.s32.totalorder %v1275, 1
        %vm1312 = vcmp.eq.s32.totalorder %v1276, 1
        %vm1313 = vcmp.eq.s32.totalorder %v1277, 1
        %vm1314 = vcmp.eq.s32.totalorder %v1278, 1
        %vm1315 = vcmp.eq.s32.totalorder %v1279, 1
        %vm1316 = vcmp.eq.s32.totalorder %v1280, 1
        %vm1317 = vcmp.eq.s32.totalorder %v1281, 1
        %vm1318 = vcmp.eq.s32.totalorder %v1282, 1
        %vm1319 = vcmp.eq.s32.totalorder %v1283, 1
        %vm1320 = vcmp.eq.s32.totalorder %v1284, 1
        %vm1321 = vcmp.eq.s32.totalorder %v1285, 1
        %vm1322 = vcmp.eq.s32.totalorder %v1286, 1
        %vm1323 = vcmp.eq.s32.totalorder %v1287, 1
        %vm1324 = vcmp.eq.s32.totalorder %v1288, 1
        %vm1325 = vcmp.eq.s32.totalorder %v1289, 1
        %vm1326 = vcmp.eq.s32.totalorder %v1290, 1
        %vm1327 = vcmp.eq.s32.totalorder %v1291, 1
        %vm1328 = vcmp.eq.s32.totalorder %v1292, 1
        %vm1329 = vmpackc.low %vm1293, %vm1293
        %vm1330 = vmpackc.low %vm1294, %vm1294
        %vm1331 = vmpackc.low %vm1295, %vm1295
        %vm1332 = vmpackc.low %vm1296, %vm1296
        %vm1333 = vmpackc.low %vm1297, %vm1297
        %vm1334 = vmpackc.low %vm1298, %vm1298
        %vm1335 = vmpackc.low %vm1299, %vm1299
        %vm1336 = vmpackc.low %vm1300, %vm1300
        %vm1337 = vmpackc.low %vm1301, %vm1301
        %vm1338 = vmpackc.low %vm1302, %vm1302
        %vm1339 = vmpackc.low %vm1303, %vm1303
        %vm1340 = vmpackc.low %vm1304, %vm1304
        %vm1341 = vmpackc.low %vm1305, %vm1305
        %vm1342 = vmpackc.low %vm1306, %vm1306
        %vm1343 = vmpackc.low %vm1307, %vm1307
        %vm1344 = vmpackc.low %vm1308, %vm1308
        %vm1345 = vmpackc.low %vm1309, %vm1309
        %vm1346 = vmpackc.low %vm1310, %vm1310
        %vm1347 = vmpackc.low %vm1311, %vm1311
        %vm1348 = vmpackc.low %vm1312, %vm1312
        %vm1349 = vmpackc.low %vm1313, %vm1313
        %vm1350 = vmpackc.low %vm1314, %vm1314
        %vm1351 = vmpackc.low %vm1315, %vm1315
        %vm1352 = vmpackc.low %vm1316, %vm1316
        %vm1353 = vmpackc.low %vm1317, %vm1317
        %vm1354 = vmpackc.low %vm1318, %vm1318
        %vm1355 = vmpackc.low %vm1319, %vm1319
        %vm1356 = vmpackc.low %vm1320, %vm1320
        %vm1357 = vmpackc.low %vm1321, %vm1321
        %vm1358 = vmpackc.low %vm1322, %vm1322
        %vm1359 = vmpackc.low %vm1323, %vm1323
        %vm1360 = vmpackc.low %vm1324, %vm1324
        %vm1361 = vmpackc.low %vm1325, %vm1325
        %vm1362 = vmpackc.low %vm1326, %vm1326
        %vm1363 = vmpackc.low %vm1327, %vm1327
        %vm1364 = vmpackc.low %vm1328, %vm1328
        %v1365 = vsel %vm1329, 65537, 0
        %v1366 = vsel %vm1330, 65537, 0
        %v1367 = vsel %vm1331, 65537, 0
        %v1368 = vsel %vm1332, 65537, 0
        %v1369 = vsel %vm1333, 65537, 0
        %v1370 = vsel %vm1334, 65537, 0
        %v1371 = vsel %vm1335, 65537, 0
        %v1372 = vsel %vm1336, 65537, 0
        %v1373 = vsel %vm1337, 65537, 0
        %v1374 = vsel %vm1338, 65537, 0
        %v1375 = vsel %vm1339, 65537, 0
        %v1376 = vsel %vm1340, 65537, 0
        %v1377 = vsel %vm1341, 65537, 0
        %v1378 = vsel %vm1342, 65537, 0
        %v1379 = vsel %vm1343, 65537, 0
        %v1380 = vsel %vm1344, 65537, 0
        %v1381 = vsel %vm1345, 65537, 0
        %v1382 = vsel %vm1346, 65537, 0
        %v1383 = vsel %vm1347, 65537, 0
        %v1384 = vsel %vm1348, 65537, 0
        %v1385 = vsel %vm1349, 65537, 0
        %v1386 = vsel %vm1350, 65537, 0
        %v1387 = vsel %vm1351, 65537, 0
        %v1388 = vsel %vm1352, 65537, 0
        %v1389 = vsel %vm1353, 65537, 0
        %v1390 = vsel %vm1354, 65537, 0
        %v1391 = vsel %vm1355, 65537, 0
        %v1392 = vsel %vm1356, 65537, 0
        %v1393 = vsel %vm1357, 65537, 0
        %v1394 = vsel %vm1358, 65537, 0
        %v1395 = vsel %vm1359, 65537, 0
        %v1396 = vsel %vm1360, 65537, 0
        %v1397 = vsel %vm1361, 65537, 0
        %v1398 = vsel %vm1362, 65537, 0
        %v1399 = vsel %vm1363, 65537, 0
        %v1400 = vsel %vm1364, 65537, 0
        %v1401 = vunpack.c.l.b16 %v1365
        %v1402 = vunpack.c.l.b16 %v1366
        %v1403 = vunpack.c.l.b16 %v1367
        %v1404 = vunpack.c.l.b16 %v1368
        %v1405 = vunpack.c.l.b16 %v1369
        %v1406 = vunpack.c.l.b16 %v1370
        %v1407 = vunpack.c.l.b16 %v1371
        %v1408 = vunpack.c.l.b16 %v1372
        %v1409 = vunpack.c.l.b16 %v1373
        %v1410 = vunpack.c.l.b16 %v1374
        %v1411 = vunpack.c.l.b16 %v1375
        %v1412 = vunpack.c.l.b16 %v1376
        %v1413 = vunpack.c.l.b16 %v1377
        %v1414 = vunpack.c.l.b16 %v1378
        %v1415 = vunpack.c.l.b16 %v1379
        %v1416 = vunpack.c.l.b16 %v1380
        %v1417 = vunpack.c.l.b16 %v1381
        %v1418 = vunpack.c.l.b16 %v1382
        %v1419 = vunpack.c.l.b16 %v1383
        %v1420 = vunpack.c.l.b16 %v1384
        %v1421 = vunpack.c.l.b16 %v1385
        %v1422 = vunpack.c.l.b16 %v1386
        %v1423 = vunpack.c.l.b16 %v1387
        %v1424 = vunpack.c.l.b16 %v1388
        %v1425 = vunpack.c.l.b16 %v1389
        %v1426 = vunpack.c.l.b16 %v1390
        %v1427 = vunpack.c.l.b16 %v1391
        %v1428 = vunpack.c.l.b16 %v1392
        %v1429 = vunpack.c.l.b16 %v1393
        %v1430 = vunpack.c.l.b16 %v1394
        %v1431 = vunpack.c.l.b16 %v1395
        %v1432 = vunpack.c.l.b16 %v1396
        %v1433 = vunpack.c.l.b16 %v1397
        %v1434 = vunpack.c.l.b16 %v1398
        %v1435 = vunpack.c.l.b16 %v1399
        %v1436 = vunpack.c.l.b16 %v1400
        %v1437 = vpack.c.b16 %v1402, %v1401
        %v1438 = vpack.c.b16 %v1404, %v1403
        %v1439 = vpack.c.b16 %v1406, %v1405
        %v1440 = vpack.c.b16 %v1408, %v1407
        %v1441 = vpack.c.b16 %v1410, %v1409
        %v1442 = vpack.c.b16 %v1412, %v1411
        %v1443 = vpack.c.b16 %v1414, %v1413
        %v1444 = vpack.c.b16 %v1416, %v1415
        %v1445 = vpack.c.b16 %v1418, %v1417
        %v1446 = vpack.c.b16 %v1420, %v1419
        %v1447 = vpack.c.b16 %v1422, %v1421
        %v1448 = vpack.c.b16 %v1424, %v1423
        %v1449 = vpack.c.b16 %v1426, %v1425
        %v1450 = vpack.c.b16 %v1428, %v1427
        %v1451 = vpack.c.b16 %v1430, %v1429
        %v1452 = vpack.c.b16 %v1432, %v1431
        %v1453 = vpack.c.b16 %v1434, %v1433
        %v1454 = vpack.c.b16 %v1436, %v1435
        %vm1455 = vcmp.ne.s16.totalorder %v1437, 0
        %vm1456 = vcmp.ne.s16.totalorder %v1438, 0
        %vm1457 = vcmp.ne.s16.totalorder %v1439, 0
        %vm1458 = vcmp.ne.s16.totalorder %v1440, 0
        %vm1459 = vcmp.ne.s16.totalorder %v1441, 0
        %vm1460 = vcmp.ne.s16.totalorder %v1442, 0
        %vm1461 = vcmp.ne.s16.totalorder %v1443, 0
        %vm1462 = vcmp.ne.s16.totalorder %v1444, 0
        %vm1463 = vcmp.ne.s16.totalorder %v1445, 0
        %vm1464 = vcmp.ne.s16.totalorder %v1446, 0
        %vm1465 = vcmp.ne.s16.totalorder %v1447, 0
        %vm1466 = vcmp.ne.s16.totalorder %v1448, 0
        %vm1467 = vcmp.ne.s16.totalorder %v1449, 0
        %vm1468 = vcmp.ne.s16.totalorder %v1450, 0
        %vm1469 = vcmp.ne.s16.totalorder %v1451, 0
        %vm1470 = vcmp.ne.s16.totalorder %v1452, 0
        %vm1471 = vcmp.ne.s16.totalorder %v1453, 0
        %vm1472 = vcmp.ne.s16.totalorder %v1454, 0
        %v1473 = vsel %vm1455, %v1220, 0
        %v1474 = vsel %vm1456, %v1071, 0
        %v1475 = vsel %vm1457, %v1079, 0
        %v1476 = vsel %vm1458, %v1087, 0
        %v1477 = vsel %vm1459, %v1095, 0
        %v1478 = vsel %vm1460, %v1103, 0
        %v1479 = vsel %vm1461, %v1111, 0
        %v1480 = vsel %vm1462, %v1119, 0
        %v1481 = vsel %vm1463, %v1127, 0
        %v1482 = vsel %vm1464, %v1135, 0
        %v1483 = vsel %vm1465, %v1143, 0
        %v1484 = vsel %vm1466, %v1151, 0
        %v1485 = vsel %vm1467, %v1159, 0
        %v1486 = vsel %vm1468, %v1167, 0
        %v1487 = vsel %vm1469, %v1175, 0
        %v1488 = vsel %vm1470, %v1183, 0
        %v1489 = vsel %vm1471, %v1191, 0
        %v1490 = vsel %vm1472, %v1199, 0
        %vm1491 = vsmask.f32 7424
        %v1492 = vrot.slane %v1061, 1
        %v1493 = vor.u32 %v1058, %v1492
        %v1494 = vrot.slane %v1068, 1
        %v1495 = vsel %vm1491, %v1493, %v1494
        %v1496 = vor.u32 %v1065, %v1494
        %v1497 = vrot.slane %v1076, 1
        %v1498 = vsel %vm1491, %v1496, %v1497
        %v1499 = vor.u32 %v1073, %v1497
        %v1500 = vrot.slane %v1084, 1
        %v1501 = vsel %vm1491, %v1499, %v1500
        %v1502 = vor.u32 %v1081, %v1500
        %v1503 = vrot.slane %v1092, 1
        %v1504 = vsel %vm1491, %v1502, %v1503
        %v1505 = vor.u32 %v1089, %v1503
        %v1506 = vrot.slane %v1100, 1
        %v1507 = vsel %vm1491, %v1505, %v1506
        %v1508 = vor.u32 %v1097, %v1506
        %v1509 = vrot.slane %v1108, 1
        %v1510 = vsel %vm1491, %v1508, %v1509
        %v1511 = vor.u32 %v1105, %v1509
        %v1512 = vrot.slane %v1116, 1
        %v1513 = vsel %vm1491, %v1511, %v1512
        %v1514 = vor.u32 %v1113, %v1512
        %v1515 = vrot.slane %v1124, 1
        %v1516 = vsel %vm1491, %v1514, %v1515
        %v1517 = vor.u32 %v1121, %v1515
        %v1518 = vrot.slane %v1132, 1
        %v1519 = vsel %vm1491, %v1517, %v1518
        %v1520 = vor.u32 %v1129, %v1518
        %v1521 = vrot.slane %v1140, 1
        %v1522 = vsel %vm1491, %v1520, %v1521
        %v1523 = vor.u32 %v1137, %v1521
        %v1524 = vrot.slane %v1148, 1
        %v1525 = vsel %vm1491, %v1523, %v1524
        %v1526 = vor.u32 %v1145, %v1524
        %v1527 = vrot.slane %v1156, 1
        %v1528 = vsel %vm1491, %v1526, %v1527
        %v1529 = vor.u32 %v1153, %v1527
        %v1530 = vrot.slane %v1164, 1
        %v1531 = vsel %vm1491, %v1529, %v1530
        %v1532 = vor.u32 %v1161, %v1530
        %v1533 = vrot.slane %v1172, 1
        %v1534 = vsel %vm1491, %v1532, %v1533
        %v1535 = vor.u32 %v1169, %v1533
        %v1536 = vrot.slane %v1180, 1
        %v1537 = vsel %vm1491, %v1535, %v1536
        %v1538 = vor.u32 %v1177, %v1536
        %v1539 = vrot.slane %v1188, 1
        %v1540 = vsel %vm1491, %v1538, %v1539
        %v1541 = vor.u32 %v1185, %v1539
        %v1542 = vrot.slane %v1196, 1
        %v1543 = vsel %vm1491, %v1541, %v1542
        %v1544 = vor.u32 %v1193, %v1542
        %vm1563 = vcmask 1047552
        %vm1564 = vmand %vm1563, %vm1491
        %v1565 = vsel %vm1564, %v1544, 0
        %vm1566 = vcmp.ne.s32.totalorder %v1020, 15
        %vm1567 = vcmp.ne.s32.totalorder %v1021, 15
        %vm1568 = vcmp.ne.s32.totalorder %v1022, 15
        %vm1569 = vcmp.ne.s32.totalorder %v1023, 15
        %vm1570 = vcmp.ne.s32.totalorder %v1024, 15
        %vm1571 = vcmp.ne.s32.totalorder %v1025, 15
        %vm1572 = vcmp.ne.s32.totalorder %v1026, 15
        %vm1573 = vcmp.ne.s32.totalorder %v1027, 15
        %vm1574 = vcmp.ne.s32.totalorder %v1028, 15
        %vm1575 = vcmp.ne.s32.totalorder %v1029, 15
        %vm1576 = vcmp.ne.s32.totalorder %v1030, 15
        %vm1577 = vcmp.ne.s32.totalorder %v1031, 15
        %vm1578 = vcmp.ne.s32.totalorder %v1032, 15
        %vm1579 = vcmp.ne.s32.totalorder %v1033, 15
        %vm1580 = vcmp.ne.s32.totalorder %v1034, 15
        %vm1581 = vcmp.ne.s32.totalorder %v1035, 15
        %vm1582 = vcmp.ne.s32.totalorder %v1036, 15
        %vm1583 = vcmp.ne.s32.totalorder %v1037, 15
        %vm1584 = vcmp.ne.s32.totalorder %v1038, 15
        %vm1585 = vcmp.ne.s32.totalorder %v1039, 15
        %vm1586 = vcmp.ne.s32.totalorder %v1040, 15
        %vm1587 = vcmp.ne.s32.totalorder %v1041, 15
        %vm1588 = vcmp.ne.s32.totalorder %v1042, 15
        %vm1589 = vcmp.ne.s32.totalorder %v1043, 15
        %vm1590 = vcmp.ne.s32.totalorder %v1044, 15
        %vm1591 = vcmp.ne.s32.totalorder %v1045, 15
        %vm1592 = vcmp.ne.s32.totalorder %v1046, 15
        %vm1593 = vcmp.ne.s32.totalorder %v1047, 15
        %vm1594 = vcmp.ne.s32.totalorder %v1048, 15
        %vm1595 = vcmp.ne.s32.totalorder %v1049, 15
        %vm1596 = vcmp.ne.s32.totalorder %v1050, 15
        %vm1597 = vcmp.ne.s32.totalorder %v1051, 15
        %vm1598 = vcmp.ne.s32.totalorder %v1052, 15
        %vm1599 = vcmp.ne.s32.totalorder %v1053, 15
        %vm1600 = vcmp.ne.s32.totalorder %v1054, 15
        %vm1601 = vcmp.ne.s32.totalorder %v1055, 15
        %v1602 = vsel %vm1566, 1, 0
        %v1603 = vsel %vm1567, 1, 0
        %v1604 = vsel %vm1568, 1, 0
        %v1605 = vsel %vm1569, 1, 0
        %v1606 = vsel %vm1570, 1, 0
        %v1607 = vsel %vm1571, 1, 0
        %v1608 = vsel %vm1572, 1, 0
        %v1609 = vsel %vm1573, 1, 0
        %v1610 = vsel %vm1574, 1, 0
        %v1611 = vsel %vm1575, 1, 0
        %v1612 = vsel %vm1576, 1, 0
        %v1613 = vsel %vm1577, 1, 0
        %v1614 = vsel %vm1578, 1, 0
        %v1615 = vsel %vm1579, 1, 0
        %v1616 = vsel %vm1580, 1, 0
        %v1617 = vsel %vm1581, 1, 0
        %v1618 = vsel %vm1582, 1, 0
        %v1619 = vsel %vm1583, 1, 0
        %v1620 = vsel %vm1584, 1, 0
        %v1621 = vsel %vm1585, 1, 0
        %v1622 = vsel %vm1586, 1, 0
        %v1623 = vsel %vm1587, 1, 0
        %v1624 = vsel %vm1588, 1, 0
        %v1625 = vsel %vm1589, 1, 0
        %v1626 = vsel %vm1590, 1, 0
        %v1627 = vsel %vm1591, 1, 0
        %v1628 = vsel %vm1592, 1, 0
        %v1629 = vsel %vm1593, 1, 0
        %v1630 = vsel %vm1594, 1, 0
        %v1631 = vsel %vm1595, 1, 0
        %v1632 = vsel %vm1596, 1, 0
        %v1633 = vsel %vm1597, 1, 0
        %v1634 = vsel %vm1598, 1, 0
        %v1635 = vsel %vm1599, 1, 0
        %v1636 = vsel %vm1600, 1, 0
        %v1637 = vsel %vm1601, 1, 0
        %vm1638 = vcmp.eq.s32.totalorder %v1602, 1
        %vm1639 = vcmp.eq.s32.totalorder %v1603, 1
        %vm1640 = vcmp.eq.s32.totalorder %v1604, 1
        %vm1641 = vcmp.eq.s32.totalorder %v1605, 1
        %vm1642 = vcmp.eq.s32.totalorder %v1606, 1
        %vm1643 = vcmp.eq.s32.totalorder %v1607, 1
        %vm1644 = vcmp.eq.s32.totalorder %v1608, 1
        %vm1645 = vcmp.eq.s32.totalorder %v1609, 1
        %vm1646 = vcmp.eq.s32.totalorder %v1610, 1
        %vm1647 = vcmp.eq.s32.totalorder %v1611, 1
        %vm1648 = vcmp.eq.s32.totalorder %v1612, 1
        %vm1649 = vcmp.eq.s32.totalorder %v1613, 1
        %vm1650 = vcmp.eq.s32.totalorder %v1614, 1
        %vm1651 = vcmp.eq.s32.totalorder %v1615, 1
        %vm1652 = vcmp.eq.s32.totalorder %v1616, 1
        %vm1653 = vcmp.eq.s32.totalorder %v1617, 1
        %vm1654 = vcmp.eq.s32.totalorder %v1618, 1
        %vm1655 = vcmp.eq.s32.totalorder %v1619, 1
        %vm1656 = vcmp.eq.s32.totalorder %v1620, 1
        %vm1657 = vcmp.eq.s32.totalorder %v1621, 1
        %vm1658 = vcmp.eq.s32.totalorder %v1622, 1
        %vm1659 = vcmp.eq.s32.totalorder %v1623, 1
        %vm1660 = vcmp.eq.s32.totalorder %v1624, 1
        %vm1661 = vcmp.eq.s32.totalorder %v1625, 1
        %vm1662 = vcmp.eq.s32.totalorder %v1626, 1
        %vm1663 = vcmp.eq.s32.totalorder %v1627, 1
        %vm1664 = vcmp.eq.s32.totalorder %v1628, 1
        %vm1665 = vcmp.eq.s32.totalorder %v1629, 1
        %vm1666 = vcmp.eq.s32.totalorder %v1630, 1
        %vm1667 = vcmp.eq.s32.totalorder %v1631, 1
        %vm1668 = vcmp.eq.s32.totalorder %v1632, 1
        %vm1669 = vcmp.eq.s32.totalorder %v1633, 1
        %vm1670 = vcmp.eq.s32.totalorder %v1634, 1
        %vm1671 = vcmp.eq.s32.totalorder %v1635, 1
        %vm1672 = vcmp.eq.s32.totalorder %v1636, 1
        %vm1673 = vcmp.eq.s32.totalorder %v1637, 1
        %vm1674 = vmpackc.low %vm1638, %vm1638
        %vm1675 = vmpackc.low %vm1639, %vm1639
        %vm1676 = vmpackc.low %vm1640, %vm1640
        %vm1677 = vmpackc.low %vm1641, %vm1641
        %vm1678 = vmpackc.low %vm1642, %vm1642
        %vm1679 = vmpackc.low %vm1643, %vm1643
        %vm1680 = vmpackc.low %vm1644, %vm1644
        %vm1681 = vmpackc.low %vm1645, %vm1645
        %vm1682 = vmpackc.low %vm1646, %vm1646
        %vm1683 = vmpackc.low %vm1647, %vm1647
        %vm1684 = vmpackc.low %vm1648, %vm1648
        %vm1685 = vmpackc.low %vm1649, %vm1649
        %vm1686 = vmpackc.low %vm1650, %vm1650
        %vm1687 = vmpackc.low %vm1651, %vm1651
        %vm1688 = vmpackc.low %vm1652, %vm1652
        %vm1689 = vmpackc.low %vm1653, %vm1653
        %vm1690 = vmpackc.low %vm1654, %vm1654
        %vm1691 = vmpackc.low %vm1655, %vm1655
        %vm1692 = vmpackc.low %vm1656, %vm1656
        %vm1693 = vmpackc.low %vm1657, %vm1657
        %vm1694 = vmpackc.low %vm1658, %vm1658
        %vm1695 = vmpackc.low %vm1659, %vm1659
        %vm1696 = vmpackc.low %vm1660, %vm1660
        %vm1697 = vmpackc.low %vm1661, %vm1661
        %vm1698 = vmpackc.low %vm1662, %vm1662
        %vm1699 = vmpackc.low %vm1663, %vm1663
        %vm1700 = vmpackc.low %vm1664, %vm1664
        %vm1701 = vmpackc.low %vm1665, %vm1665
        %vm1702 = vmpackc.low %vm1666, %vm1666
        %vm1703 = vmpackc.low %vm1667, %vm1667
        %vm1704 = vmpackc.low %vm1668, %vm1668
        %vm1705 = vmpackc.low %vm1669, %vm1669
        %vm1706 = vmpackc.low %vm1670, %vm1670
        %vm1707 = vmpackc.low %vm1671, %vm1671
        %vm1708 = vmpackc.low %vm1672, %vm1672
        %vm1709 = vmpackc.low %vm1673, %vm1673
        %v1710 = vsel %vm1674, 65537, 0
        %v1711 = vsel %vm1675, 65537, 0
        %v1712 = vsel %vm1676, 65537, 0
        %v1713 = vsel %vm1677, 65537, 0
        %v1714 = vsel %vm1678, 65537, 0
        %v1715 = vsel %vm1679, 65537, 0
        %v1716 = vsel %vm1680, 65537, 0
        %v1717 = vsel %vm1681, 65537, 0
        %v1718 = vsel %vm1682, 65537, 0
        %v1719 = vsel %vm1683, 65537, 0
        %v1720 = vsel %vm1684, 65537, 0
        %v1721 = vsel %vm1685, 65537, 0
        %v1722 = vsel %vm1686, 65537, 0
        %v1723 = vsel %vm1687, 65537, 0
        %v1724 = vsel %vm1688, 65537, 0
        %v1725 = vsel %vm1689, 65537, 0
        %v1726 = vsel %vm1690, 65537, 0
        %v1727 = vsel %vm1691, 65537, 0
        %v1728 = vsel %vm1692, 65537, 0
        %v1729 = vsel %vm1693, 65537, 0
        %v1730 = vsel %vm1694, 65537, 0
        %v1731 = vsel %vm1695, 65537, 0
        %v1732 = vsel %vm1696, 65537, 0
        %v1733 = vsel %vm1697, 65537, 0
        %v1734 = vsel %vm1698, 65537, 0
        %v1735 = vsel %vm1699, 65537, 0
        %v1736 = vsel %vm1700, 65537, 0
        %v1737 = vsel %vm1701, 65537, 0
        %v1738 = vsel %vm1702, 65537, 0
        %v1739 = vsel %vm1703, 65537, 0
        %v1740 = vsel %vm1704, 65537, 0
        %v1741 = vsel %vm1705, 65537, 0
        %v1742 = vsel %vm1706, 65537, 0
        %v1743 = vsel %vm1707, 65537, 0
        %v1744 = vsel %vm1708, 65537, 0
        %v1745 = vsel %vm1709, 65537, 0
        %v1746 = vunpack.c.l.b16 %v1710
        %v1747 = vunpack.c.l.b16 %v1711
        %v1748 = vunpack.c.l.b16 %v1712
        %v1749 = vunpack.c.l.b16 %v1713
        %v1750 = vunpack.c.l.b16 %v1714
        %v1751 = vunpack.c.l.b16 %v1715
        %v1752 = vunpack.c.l.b16 %v1716
        %v1753 = vunpack.c.l.b16 %v1717
        %v1754 = vunpack.c.l.b16 %v1718
        %v1755 = vunpack.c.l.b16 %v1719
        %v1756 = vunpack.c.l.b16 %v1720
        %v1757 = vunpack.c.l.b16 %v1721
        %v1758 = vunpack.c.l.b16 %v1722
        %v1759 = vunpack.c.l.b16 %v1723
        %v1760 = vunpack.c.l.b16 %v1724
        %v1761 = vunpack.c.l.b16 %v1725
        %v1762 = vunpack.c.l.b16 %v1726
        %v1763 = vunpack.c.l.b16 %v1727
        %v1764 = vunpack.c.l.b16 %v1728
        %v1765 = vunpack.c.l.b16 %v1729
        %v1766 = vunpack.c.l.b16 %v1730
        %v1767 = vunpack.c.l.b16 %v1731
        %v1768 = vunpack.c.l.b16 %v1732
        %v1769 = vunpack.c.l.b16 %v1733
        %v1770 = vunpack.c.l.b16 %v1734
        %v1771 = vunpack.c.l.b16 %v1735
        %v1772 = vunpack.c.l.b16 %v1736
        %v1773 = vunpack.c.l.b16 %v1737
        %v1774 = vunpack.c.l.b16 %v1738
        %v1775 = vunpack.c.l.b16 %v1739
        %v1776 = vunpack.c.l.b16 %v1740
        %v1777 = vunpack.c.l.b16 %v1741
        %v1778 = vunpack.c.l.b16 %v1742
        %v1779 = vunpack.c.l.b16 %v1743
        %v1780 = vunpack.c.l.b16 %v1744
        %v1781 = vunpack.c.l.b16 %v1745
        %v1782 = vpack.c.b16 %v1747, %v1746
        %v1783 = vpack.c.b16 %v1749, %v1748
        %v1784 = vpack.c.b16 %v1751, %v1750
        %v1785 = vpack.c.b16 %v1753, %v1752
        %v1786 = vpack.c.b16 %v1755, %v1754
        %v1787 = vpack.c.b16 %v1757, %v1756
        %v1788 = vpack.c.b16 %v1759, %v1758
        %v1789 = vpack.c.b16 %v1761, %v1760
        %v1790 = vpack.c.b16 %v1763, %v1762
        %v1791 = vpack.c.b16 %v1765, %v1764
        %v1792 = vpack.c.b16 %v1767, %v1766
        %v1793 = vpack.c.b16 %v1769, %v1768
        %v1794 = vpack.c.b16 %v1771, %v1770
        %v1795 = vpack.c.b16 %v1773, %v1772
        %v1796 = vpack.c.b16 %v1775, %v1774
        %v1797 = vpack.c.b16 %v1777, %v1776
        %v1798 = vpack.c.b16 %v1779, %v1778
        %v1799 = vpack.c.b16 %v1781, %v1780
        %vm1800 = vcmp.ne.s16.totalorder %v1782, 0
        %vm1801 = vcmp.ne.s16.totalorder %v1783, 0
        %vm1802 = vcmp.ne.s16.totalorder %v1784, 0
        %vm1803 = vcmp.ne.s16.totalorder %v1785, 0
        %vm1804 = vcmp.ne.s16.totalorder %v1786, 0
        %vm1805 = vcmp.ne.s16.totalorder %v1787, 0
        %vm1806 = vcmp.ne.s16.totalorder %v1788, 0
        %vm1807 = vcmp.ne.s16.totalorder %v1789, 0
        %vm1808 = vcmp.ne.s16.totalorder %v1790, 0
        %vm1809 = vcmp.ne.s16.totalorder %v1791, 0
        %vm1810 = vcmp.ne.s16.totalorder %v1792, 0
        %vm1811 = vcmp.ne.s16.totalorder %v1793, 0
        %vm1812 = vcmp.ne.s16.totalorder %v1794, 0
        %vm1813 = vcmp.ne.s16.totalorder %v1795, 0
        %vm1814 = vcmp.ne.s16.totalorder %v1796, 0
        %vm1815 = vcmp.ne.s16.totalorder %v1797, 0
        %vm1816 = vcmp.ne.s16.totalorder %v1798, 0
        %vm1817 = vcmp.ne.s16.totalorder %v1799, 0
        %v1818 = vsel %vm1800, %v1495, 0
        %v1819 = vsel %vm1801, %v1498, 0
        %v1820 = vsel %vm1802, %v1501, 0
        %v1821 = vsel %vm1803, %v1504, 0
        %v1822 = vsel %vm1804, %v1507, 0
        %v1823 = vsel %vm1805, %v1510, 0
        %v1824 = vsel %vm1806, %v1513, 0
        %v1825 = vsel %vm1807, %v1516, 0
        %v1826 = vsel %vm1808, %v1519, 0
        %v1827 = vsel %vm1809, %v1522, 0
        %v1828 = vsel %vm1810, %v1525, 0
        %v1829 = vsel %vm1811, %v1528, 0
        %v1830 = vsel %vm1812, %v1531, 0
        %v1831 = vsel %vm1813, %v1534, 0
        %v1832 = vsel %vm1814, %v1537, 0
        %v1833 = vsel %vm1815, %v1540, 0
        %v1834 = vsel %vm1816, %v1543, 0
        %v1835 = vsel %vm1817, %v1565, 0
        %v1836 = vld [vmem:[#allocation8] sm:$0xf]
        %v1837 = vld [vmem:[#allocation8 + $0x4] sm:$0xf]
        %v1838 = vld [vmem:[#allocation8 + $0x8] sm:$0xf]
        %v1839 = vld [vmem:[#allocation8 + $0xc] sm:$0xf]
        %v1840 = vld [vmem:[#allocation8 + $0x10] sm:$0xf]
        %v1841 = vld [vmem:[#allocation8 + $0x14] sm:$0xf]
        %v1842 = vld [vmem:[#allocation8 + $0x18] sm:$0xf]
        %v1843 = vld [vmem:[#allocation8 + $0x1c] sm:$0xf]
        %v1844 = vld [vmem:[#allocation8 + $0x20] sm:$0xf]
        %v1845 = vld [vmem:[#allocation8 + $0x24] sm:$0xf]
        %v1846 = vld [vmem:[#allocation8 + $0x28] sm:$0xf]
        %v1847 = vld [vmem:[#allocation8 + $0x2c] sm:$0xf]
        %v1848 = vld [vmem:[#allocation8 + $0x30] sm:$0xf]
        %v1849 = vld [vmem:[#allocation8 + $0x34] sm:$0xf]
        %v1850 = vld [vmem:[#allocation8 + $0x38] sm:$0xf]
        %v1851 = vld [vmem:[#allocation8 + $0x3c] sm:$0xf]
        %v1852 = vld [vmem:[#allocation8 + $0x40] sm:$0xf]
        %v1853 = vld [vmem:[#allocation8 + $0x44] sm:$0xf]
        %v1854 = vld [vmem:[#allocation8 + $0x48] sm:$0xf]
        %v1855 = vld [vmem:[#allocation8 + $0x4c] sm:$0xf]
        %v1856 = vld [vmem:[#allocation8 + $0x50] sm:$0xf]
        %v1857 = vld [vmem:[#allocation8 + $0x54] sm:$0xf]
        %v1858 = vld [vmem:[#allocation8 + $0x58] sm:$0xf]
        %v1859 = vld [vmem:[#allocation8 + $0x5c] sm:$0xf]
        %v1860 = vld [vmem:[#allocation8 + $0x60] sm:$0xf]
        %v1861 = vld [vmem:[#allocation8 + $0x64] sm:$0xf]
        %v1862 = vld [vmem:[#allocation8 + $0x68] sm:$0xf]
        %v1863 = vld [vmem:[#allocation8 + $0x6c] sm:$0xf]
        %v1864 = vld [vmem:[#allocation8 + $0x70] sm:$0xf]
        %v1865 = vld [vmem:[#allocation8 + $0x74] sm:$0xf]
        %v1866 = vld [vmem:[#allocation8 + $0x78] sm:$0xf]
        %v1867 = vld [vmem:[#allocation8 + $0x7c] sm:$0xf]
        %v1868 = vld [vmem:[#allocation8 + $0x80] sm:$0xf]
        %v1869 = vld [vmem:[#allocation8 + $0x84] sm:$0xf]
        %v1870 = vld [vmem:[#allocation8 + $0x88] sm:$0xf]
        %v1871 = vld [vmem:[#allocation8 + $0x8c] sm:$0xf]
        %v1872 = vld [vmem:[#allocation8 + $0x90] sm:$0xf]
        %v1873 = vld [vmem:[#allocation8 + $0x94] sm:$0xf]
        %v1874 = vld [vmem:[#allocation8 + $0x98] sm:$0xf]
        %v1875 = vld [vmem:[#allocation8 + $0x9c] sm:$0xf]
        %v1876 = vld [vmem:[#allocation8 + $0xa0] sm:$0xf]
        %v1877 = vld [vmem:[#allocation8 + $0xa4] sm:$0xf]
        %v1878 = vld [vmem:[#allocation8 + $0xa8] sm:$0xf]
        %v1879 = vld [vmem:[#allocation8 + $0xac] sm:$0xf]
        %v1880 = vld [vmem:[#allocation8 + $0xb0] sm:$0xf]
        %v1881 = vld [vmem:[#allocation8 + $0xb4] sm:$0xf]
        %v1882 = vld [vmem:[#allocation8 + $0xb8] sm:$0xf]
        %v1883 = vld [vmem:[#allocation8 + $0xbc] sm:$0xf]
        %s1884 = scalar_lea.vmem [#allocation8], 192
        %v1885 = vld [vmem:[%s1884] sm:$0xf]
        %v1886 = vld [vmem:[%s1884 + $0x4] sm:$0xf]
        %v1887 = vld [vmem:[%s1884 + $0x8] sm:$0xf]
        %v1888 = vld [vmem:[%s1884 + $0xc] sm:$0xf]
        %v1889 = vld [vmem:[%s1884 + $0x10] sm:$0xf]
        %v1890 = vld [vmem:[%s1884 + $0x14] sm:$0xf]
        %v1891 = vld [vmem:[%s1884 + $0x18] sm:$0xf]
        %v1892 = vld [vmem:[%s1884 + $0x1c] sm:$0xf]
        %v1893 = vld [vmem:[%s1884 + $0x20] sm:$0xf]
        %v1894 = vld [vmem:[%s1884 + $0x24] sm:$0xf]
        %v1895 = vld [vmem:[%s1884 + $0x28] sm:$0xf]
        %v1896 = vld [vmem:[%s1884 + $0x2c] sm:$0xf]
        %v1897 = vld [vmem:[%s1884 + $0x30] sm:$0xf]
        %v1898 = vld [vmem:[%s1884 + $0x34] sm:$0xf]
        %v1899 = vld [vmem:[%s1884 + $0x38] sm:$0xf]
        %v1900 = vld [vmem:[%s1884 + $0x3c] sm:$0xf]
        %v1901 = vld [vmem:[%s1884 + $0x40] sm:$0xf]
        %v1902 = vld [vmem:[%s1884 + $0x44] sm:$0xf]
        %v1903 = vld [vmem:[%s1884 + $0x48] sm:$0xf]
        %v1904 = vld [vmem:[%s1884 + $0x4c] sm:$0xf]
        %v1905 = vld [vmem:[%s1884 + $0x50] sm:$0xf]
        %v1906 = vld [vmem:[%s1884 + $0x54] sm:$0xf]
        %v1907 = vld [vmem:[%s1884 + $0x58] sm:$0xf]
        %v1908 = vld [vmem:[%s1884 + $0x5c] sm:$0xf]
        %v1909 = vld [vmem:[%s1884 + $0x60] sm:$0xf]
        %v1910 = vld [vmem:[%s1884 + $0x64] sm:$0xf]
        %v1911 = vld [vmem:[%s1884 + $0x68] sm:$0xf]
        %v1912 = vld [vmem:[%s1884 + $0x6c] sm:$0xf]
        %v1913 = vld [vmem:[%s1884 + $0x70] sm:$0xf]
        %v1914 = vld [vmem:[%s1884 + $0x74] sm:$0xf]
        %v1915 = vld [vmem:[%s1884 + $0x78] sm:$0xf]
        %v1916 = vld [vmem:[%s1884 + $0x7c] sm:$0xf]
        %v1917 = vld [vmem:[%s1884 + $0x80] sm:$0xf]
        %v1918 = vld [vmem:[%s1884 + $0x84] sm:$0xf]
        %v1919 = vld [vmem:[%s1884 + $0x88] sm:$0xf]
        %v1920 = vld [vmem:[%s1884 + $0x8c] sm:$0xf]
        %v1921 = vld [vmem:[%s1884 + $0x90] sm:$0xf]
        %v1922 = vld [vmem:[%s1884 + $0x94] sm:$0xf]
        %v1923 = vld [vmem:[%s1884 + $0x98] sm:$0xf]
        %v1924 = vld [vmem:[%s1884 + $0x9c] sm:$0xf]
        %v1925 = vld [vmem:[%s1884 + $0xa0] sm:$0xf]
        %v1926 = vld [vmem:[%s1884 + $0xa4] sm:$0xf]
        %v1927 = vld [vmem:[%s1884 + $0xa8] sm:$0xf]
        %v1928 = vld [vmem:[%s1884 + $0xac] sm:$0xf]
        %v1929 = vld [vmem:[%s1884 + $0xb0] sm:$0xf]
        %v1930 = vld [vmem:[%s1884 + $0xb4] sm:$0xf]
        %v1931 = vld [vmem:[%s1884 + $0xb8] sm:$0xf]
        %v1932 = vld [vmem:[%s1884 + $0xbc] sm:$0xf]
        %v1981 = vunpack.c.l.b16 %v1885
        %v1982 = vunpack.c.l.b16 %v1886
        %v1983 = vunpack.c.l.b16 %v1887
        %v1984 = vunpack.c.l.b16 %v1888
        %v1985 = vunpack.c.l.b16 %v1889
        %v1986 = vunpack.c.l.b16 %v1890
        %v1987 = vunpack.c.l.b16 %v1891
        %v1988 = vunpack.c.l.b16 %v1892
        %v1989 = vunpack.c.l.b16 %v1893
        %v1990 = vunpack.c.l.b16 %v1894
        %v1991 = vunpack.c.l.b16 %v1895
        %v1992 = vunpack.c.l.b16 %v1896
        %v1993 = vunpack.c.l.b16 %v1897
        %v1994 = vunpack.c.l.b16 %v1898
        %v1995 = vunpack.c.l.b16 %v1899
        %v1996 = vunpack.c.l.b16 %v1900
        %v1997 = vunpack.c.l.b16 %v1901
        %v1998 = vunpack.c.l.b16 %v1902
        %v1999 = vunpack.c.l.b16 %v1903
        %v2000 = vunpack.c.l.b16 %v1904
        %v2001 = vunpack.c.l.b16 %v1905
        %v2002 = vunpack.c.l.b16 %v1906
        %v2003 = vunpack.c.l.b16 %v1907
        %v2004 = vunpack.c.l.b16 %v1908
        %v2005 = vunpack.c.l.b16 %v1909
        %v2006 = vunpack.c.l.b16 %v1910
        %v2007 = vunpack.c.l.b16 %v1911
        %v2008 = vunpack.c.l.b16 %v1912
        %v2009 = vunpack.c.l.b16 %v1913
        %v2010 = vunpack.c.l.b16 %v1914
        %v2011 = vunpack.c.l.b16 %v1915
        %v2012 = vunpack.c.l.b16 %v1916
        %v2013 = vunpack.c.l.b16 %v1917
        %v2014 = vunpack.c.l.b16 %v1918
        %v2015 = vunpack.c.l.b16 %v1919
        %v2016 = vunpack.c.l.b16 %v1920
        %v2017 = vunpack.c.l.b16 %v1921
        %v2018 = vunpack.c.l.b16 %v1922
        %v2019 = vunpack.c.l.b16 %v1923
        %v2020 = vunpack.c.l.b16 %v1924
        %v2021 = vunpack.c.l.b16 %v1925
        %v2022 = vunpack.c.l.b16 %v1926
        %v2023 = vunpack.c.l.b16 %v1927
        %v2024 = vunpack.c.l.b16 %v1928
        %v2025 = vunpack.c.l.b16 %v1929
        %v2026 = vunpack.c.l.b16 %v1930
        %v2027 = vunpack.c.l.b16 %v1931
        %v2028 = vunpack.c.l.b16 %v1932
        %v2029 = vpack.c.b16 %v1982, %v1981
        %v2030 = vpack.c.b16 %v1984, %v1983
        %v2031 = vpack.c.b16 %v1986, %v1985
        %v2032 = vpack.c.b16 %v1988, %v1987
        %v2033 = vpack.c.b16 %v1990, %v1989
        %v2034 = vpack.c.b16 %v1992, %v1991
        %v2035 = vpack.c.b16 %v1994, %v1993
        %v2036 = vpack.c.b16 %v1996, %v1995
        %v2037 = vpack.c.b16 %v1998, %v1997
        %v2038 = vpack.c.b16 %v2000, %v1999
        %v2039 = vpack.c.b16 %v2002, %v2001
        %v2040 = vpack.c.b16 %v2004, %v2003
        %v2041 = vpack.c.b16 %v2006, %v2005
        %v2042 = vpack.c.b16 %v2008, %v2007
        %v2043 = vpack.c.b16 %v2010, %v2009
        %v2044 = vpack.c.b16 %v2012, %v2011
        %v2045 = vpack.c.b16 %v2014, %v2013
        %v2046 = vpack.c.b16 %v2016, %v2015
        %v2047 = vpack.c.b16 %v2018, %v2017
        %v2048 = vpack.c.b16 %v2020, %v2019
        %v2049 = vpack.c.b16 %v2022, %v2021
        %v2050 = vpack.c.b16 %v2024, %v2023
        %v2051 = vpack.c.b16 %v2026, %v2025
        %v2052 = vpack.c.b16 %v2028, %v2027
        %2077 = vmatprep.subr.bf16.mxu0 0
        %2078 = vmatpush1.bf16.msra.mxu0 %v2029
        %2079 = vmatprep.subr.bf16.mxu0 0
        %2080 = vmatpush1.bf16.msra.mxu0 %v2030
        %2081 = vmatprep.subr.bf16.mxu0 0
        %2082 = vmatpush1.bf16.msra.mxu0 %v2031
        %2083 = vmatprep.subr.bf16.mxu0 0
        %2084 = vmatpush1.bf16.msra.mxu0 %v2032
        %2085 = vmatprep.subr.bf16.mxu0 0
        %2086 = vmatpush1.bf16.msra.mxu0 %v2033
        %2087 = vmatprep.subr.bf16.mxu0 0
        %2088 = vmatpush1.bf16.msra.mxu0 %v2034
        %2089 = vmatprep.subr.bf16.mxu0 0
        %2090 = vmatpush1.bf16.msra.mxu0 %v2035
        %2091 = vmatprep.subr.bf16.mxu0 0
        %2092 = vmatpush1.bf16.msra.mxu0 %v2036
        %2093 = vmatprep.subr.bf16.mxu0 0
        %2094 = vmatpush1.bf16.msra.mxu0 %v2037
        %2095 = vmatprep.subr.bf16.mxu0 0
        %2096 = vmatpush1.bf16.msra.mxu0 %v2038
        %2097 = vmatprep.subr.bf16.mxu0 0
        %2098 = vmatpush1.bf16.msra.mxu0 %v2039
        %2099 = vmatprep.subr.bf16.mxu0 0
        %2100 = vmatpush1.bf16.msra.mxu0 %v2040
        %2101 = vmatprep.subr.bf16.mxu0 0
        %2102 = vmatpush1.bf16.msra.mxu0 %v2041
        %2103 = vmatprep.subr.bf16.mxu0 0
        %2104 = vmatpush1.bf16.msra.mxu0 %v2042
        %2105 = vmatprep.subr.bf16.mxu0 0
        %2106 = vmatpush1.bf16.msra.mxu0 %v2043
        %2107 = vmatprep.subr.bf16.mxu0 0
        %2108 = vmatpush1.bf16.msra.mxu0 %v2044
        %2109 = vmatprep.mubr.bf16.mxu0 %v570
        %2110 = vmatmul.mubr.bf16.gmra.mrb[0].mxu0 %v1474
        %v2111 = vpop.f32.mrb[0].mxu0
        %v2112 = vadd.f32 0.0, %v2111
        %v2113 = vpop.f32.mrb[0].mxu0
        %v2114 = vpop.f32.mrb[0].mxu0
        %v2115 = vadd.f32 0.0, %v2114
        %v2116 = vpop.f32.mrb[0].mxu0
        %2117 = vmatprep.mubr.bf16.mxu0 %v571
        %2118 = vmatmul.mubr.bf16.gmra.mrb[0].mxu0 %v1475
        %v2119 = vpop.f32.mrb[0].mxu0
        %v2120 = vadd.f32 0.0, %v2119
        %v2121 = vpop.f32.mrb[0].mxu0
        %v2122 = vpop.f32.mrb[0].mxu0
        %v2123 = vadd.f32 0.0, %v2122
        %v2124 = vpop.f32.mrb[0].mxu0
        %2125 = vmatprep.mubr.bf16.mxu0 %v572
        %2126 = vmatmul.mubr.bf16.gmra.mrb[0].mxu0 %v1476
        %v2127 = vpop.f32.mrb[0].mxu0
        %v2128 = vadd.f32 0.0, %v2127
        %v2129 = vpop.f32.mrb[0].mxu0
        %v2130 = vpop.f32.mrb[0].mxu0
        %v2131 = vadd.f32 0.0, %v2130
        %v2132 = vpop.f32.mrb[0].mxu0
        %2133 = vmatprep.mubr.bf16.mxu0 %v573
        %2134 = vmatmul.mubr.bf16.gmra.mrb[0].mxu0 %v1477
        %v2135 = vpop.f32.mrb[0].mxu0
        %v2136 = vadd.f32 0.0, %v2135
        %v2137 = vpop.f32.mrb[0].mxu0
        %v2138 = vpop.f32.mrb[0].mxu0
        %v2139 = vadd.f32 0.0, %v2138
        %v2140 = vpop.f32.mrb[0].mxu0
        %2141 = vmatprep.mubr.bf16.mxu0 %v574
        %2142 = vmatmul.mubr.bf16.gmra.mrb[0].mxu0 %v1478
        %v2143 = vpop.f32.mrb[0].mxu0
        %v2144 = vadd.f32 0.0, %v2143
        %v2145 = vpop.f32.mrb[0].mxu0
        %v2146 = vpop.f32.mrb[0].mxu0
        %v2147 = vadd.f32 0.0, %v2146
        %v2148 = vpop.f32.mrb[0].mxu0
        %2149 = vmatprep.mubr.bf16.mxu0 %v575
        %2150 = vmatmul.mubr.bf16.gmra.mrb[0].mxu0 %v1479
        %v2151 = vpop.f32.mrb[0].mxu0
        %v2152 = vadd.f32 0.0, %v2151
        %v2153 = vpop.f32.mrb[0].mxu0
        %v2154 = vpop.f32.mrb[0].mxu0
        %v2155 = vadd.f32 0.0, %v2154
        %v2156 = vpop.f32.mrb[0].mxu0
        %2157 = vmatprep.mubr.bf16.mxu0 %v576
        %2158 = vmatmul.mubr.bf16.gmra.mrb[0].mxu0 %v1480
        %v2159 = vpop.f32.mrb[0].mxu0
        %v2160 = vadd.f32 0.0, %v2159
        %v2161 = vpop.f32.mrb[0].mxu0
        %v2162 = vpop.f32.mrb[0].mxu0
        %v2163 = vadd.f32 0.0, %v2162
        %v2164 = vpop.f32.mrb[0].mxu0
        %2165 = vmatprep.mubr.bf16.mxu0 %v577
        %2166 = vmatmul.mubr.bf16.gmra.mrb[0].mxu0 %v1481
        %v2167 = vpop.f32.mrb[0].mxu0
        %v2168 = vadd.f32 0.0, %v2167
        %v2169 = vpop.f32.mrb[0].mxu0
        %v2170 = vpop.f32.mrb[0].mxu0
        %v2171 = vadd.f32 0.0, %v2170
        %v2172 = vpop.f32.mrb[0].mxu0
        %2173 = vmatprep.mubr.bf16.mxu0 %v578
        %2174 = vmatmul.mubr.bf16.gmra.mrb[0].mxu0 %v1482
        %v2175 = vpop.f32.mrb[0].mxu0
        %v2176 = vadd.f32 0.0, %v2175
        %v2177 = vpop.f32.mrb[0].mxu0
        %v2178 = vpop.f32.mrb[0].mxu0
        %v2179 = vadd.f32 0.0, %v2178
        %v2180 = vpop.f32.mrb[0].mxu0
        %2181 = vmatprep.mubr.bf16.mxu0 %v579
        %2182 = vmatmul.mubr.bf16.gmra.mrb[0].mxu0 %v1483
        %v2183 = vpop.f32.mrb[0].mxu0
        %v2184 = vadd.f32 0.0, %v2183
        %v2185 = vpop.f32.mrb[0].mxu0
        %v2186 = vpop.f32.mrb[0].mxu0
        %v2187 = vadd.f32 0.0, %v2186
        %v2188 = vpop.f32.mrb[0].mxu0
        %2189 = vmatprep.mubr.bf16.mxu0 %v580
        %2190 = vmatmul.mubr.bf16.gmra.mrb[0].mxu0 %v1484
        %v2191 = vpop.f32.mrb[0].mxu0
        %v2192 = vadd.f32 0.0, %v2191
        %v2193 = vpop.f32.mrb[0].mxu0
        %v2194 = vpop.f32.mrb[0].mxu0
        %v2195 = vadd.f32 0.0, %v2194
        %v2196 = vpop.f32.mrb[0].mxu0
        %2197 = vmatprep.mubr.bf16.mxu0 %v581
        %2198 = vmatmul.mubr.bf16.gmra.mrb[0].mxu0 %v1485
        %v2199 = vpop.f32.mrb[0].mxu0
        %v2200 = vadd.f32 0.0, %v2199
        %v2201 = vpop.f32.mrb[0].mxu0
        %v2202 = vpop.f32.mrb[0].mxu0
        %v2203 = vadd.f32 0.0, %v2202
        %v2204 = vpop.f32.mrb[0].mxu0
        %2205 = vmatprep.mubr.bf16.mxu0 %v582
        %2206 = vmatmul.mubr.bf16.gmra.mrb[0].mxu0 %v1486
        %v2207 = vpop.f32.mrb[0].mxu0
        %v2208 = vadd.f32 0.0, %v2207
        %v2209 = vpop.f32.mrb[0].mxu0
        %v2210 = vpop.f32.mrb[0].mxu0
        %v2211 = vadd.f32 0.0, %v2210
        %v2212 = vpop.f32.mrb[0].mxu0
        %2213 = vmatprep.mubr.bf16.mxu0 %v583
        %2214 = vmatmul.mubr.bf16.gmra.mrb[0].mxu0 %v1487
        %v2215 = vpop.f32.mrb[0].mxu0
        %v2216 = vadd.f32 0.0, %v2215
        %v2217 = vpop.f32.mrb[0].mxu0
        %v2218 = vpop.f32.mrb[0].mxu0
        %v2219 = vadd.f32 0.0, %v2218
        %v2220 = vpop.f32.mrb[0].mxu0
        %2221 = vmatprep.mubr.bf16.mxu0 %v584
        %2222 = vmatmul.mubr.bf16.gmra.mrb[0].mxu0 %v1488
        %v2223 = vpop.f32.mrb[0].mxu0
        %v2224 = vadd.f32 0.0, %v2223
        %v2225 = vpop.f32.mrb[0].mxu0
        %v2226 = vpop.f32.mrb[0].mxu0
        %v2227 = vadd.f32 0.0, %v2226
        %v2228 = vpop.f32.mrb[0].mxu0
        %2229 = vmatprep.mubr.bf16.mxu0 %v585
        %2230 = vmatmul.mubr.bf16.gmra.mrb[0].mxu0 %v1489
        %v2231 = vpop.f32.mrb[0].mxu0
        %v2232 = vadd.f32 0.0, %v2231
        %v2233 = vpop.f32.mrb[0].mxu0
        %v2234 = vpop.f32.mrb[0].mxu0
        %v2235 = vadd.f32 0.0, %v2234
        %v2236 = vpop.f32.mrb[0].mxu0
        %2237 = vdwg.mxu0
        %2238 = vmatprep.subr.bf16.mxu0 0
        %2239 = vmatpush1.bf16.msra.mxu0 %v2045
        %2240 = vmatprep.subr.bf16.mxu0 0
        %2241 = vmatpush1.bf16.msra.mxu0 %v2046
        %2242 = vmatprep.subr.bf16.mxu0 0
        %2243 = vmatpush1.bf16.msra.mxu0 %v2047
        %2244 = vmatprep.subr.bf16.mxu0 0
        %2245 = vmatpush1.bf16.msra.mxu0 %v2048
        %2246 = vmatprep.subr.bf16.mxu0 0
        %2247 = vmatpush1.bf16.msra.mxu0 %v2049
        %2248 = vmatprep.subr.bf16.mxu0 0
        %2249 = vmatpush1.bf16.msra.mxu0 %v2050
        %2250 = vmatprep.subr.bf16.mxu0 0
        %2251 = vmatpush1.bf16.msra.mxu0 %v2051
        %2252 = vmatprep.subr.bf16.mxu0 0
        %2253 = vmatpush1.bf16.msra.mxu0 %v2052
        %2254 = vmatprep.subr.bf16.mxu0 0
        %2255 = vmatpush1.bf16.msra.mxu0 0
        %2256 = vmatprep.subr.bf16.mxu0 0
        %2257 = vmatpush1.bf16.msra.mxu0 0
        %2258 = vmatprep.subr.bf16.mxu0 0
        %2259 = vmatpush1.bf16.msra.mxu0 0
        %2260 = vmatprep.subr.bf16.mxu0 0
        %2261 = vmatpush1.bf16.msra.mxu0 0
        %2262 = vmatprep.subr.bf16.mxu0 0
        %2263 = vmatpush1.bf16.msra.mxu0 0
        %2264 = vmatprep.subr.bf16.mxu0 0
        %2265 = vmatpush1.bf16.msra.mxu0 0
        %2266 = vmatprep.subr.bf16.mxu0 0
        %2267 = vmatpush1.bf16.msra.mxu0 0
        %2268 = vmatprep.subr.bf16.mxu0 0
        %2269 = vmatpush1.bf16.msra.mxu0 0
        %2270 = vmatprep.mubr.bf16.mxu0 0
        %2271 = vmatmul.mubr.bf16.gmra.mrb[0].mxu0 %v1819
        %v2272 = vpop.f32.mrb[0].mxu0
        %v2273 = vadd.f32 %v2112, %v2272
        %v2274 = vpop.f32.mrb[0].mxu0
        %v2275 = vpop.f32.mrb[0].mxu0
        %v2276 = vadd.f32 %v2115, %v2275
        %v2277 = vpop.f32.mrb[0].mxu0
        %2278 = vmatprep.mubr.bf16.mxu0 0
        %2279 = vmatmul.mubr.bf16.gmra.mrb[0].mxu0 %v1820
        %v2280 = vpop.f32.mrb[0].mxu0
        %v2281 = vadd.f32 %v2120, %v2280
        %v2282 = vpop.f32.mrb[0].mxu0
        %v2283 = vpop.f32.mrb[0].mxu0
        %v2284 = vadd.f32 %v2123, %v2283
        %v2285 = vpop.f32.mrb[0].mxu0
        %2286 = vmatprep.mubr.bf16.mxu0 0
        %2287 = vmatmul.mubr.bf16.gmra.mrb[0].mxu0 %v1821
        %v2288 = vpop.f32.mrb[0].mxu0
        %v2289 = vadd.f32 %v2128, %v2288
        %v2290 = vpop.f32.mrb[0].mxu0
        %v2291 = vpop.f32.mrb[0].mxu0
        %v2292 = vadd.f32 %v2131, %v2291
        %v2293 = vpop.f32.mrb[0].mxu0
        %2294 = vmatprep.mubr.bf16.mxu0 0
        %2295 = vmatmul.mubr.bf16.gmra.mrb[0].mxu0 %v1822
        %v2296 = vpop.f32.mrb[0].mxu0
        %v2297 = vadd.f32 %v2136, %v2296
        %v2298 = vpop.f32.mrb[0].mxu0
        %v2299 = vpop.f32.mrb[0].mxu0
        %v2300 = vadd.f32 %v2139, %v2299
        %v2301 = vpop.f32.mrb[0].mxu0
        %2302 = vmatprep.mubr.bf16.mxu0 0
        %2303 = vmatmul.mubr.bf16.gmra.mrb[0].mxu0 %v1823
        %v2304 = vpop.f32.mrb[0].mxu0
        %v2305 = vadd.f32 %v2144, %v2304
        %v2306 = vpop.f32.mrb[0].mxu0
        %v2307 = vpop.f32.mrb[0].mxu0
        %v2308 = vadd.f32 %v2147, %v2307
        %v2309 = vpop.f32.mrb[0].mxu0
        %2310 = vmatprep.mubr.bf16.mxu0 0
        %2311 = vmatmul.mubr.bf16.gmra.mrb[0].mxu0 %v1824
        %v2312 = vpop.f32.mrb[0].mxu0
        %v2313 = vadd.f32 %v2152, %v2312
        %v2314 = vpop.f32.mrb[0].mxu0
        %v2315 = vpop.f32.mrb[0].mxu0
        %v2316 = vadd.f32 %v2155, %v2315
        %v2317 = vpop.f32.mrb[0].mxu0
        %2318 = vmatprep.mubr.bf16.mxu0 0
        %2319 = vmatmul.mubr.bf16.gmra.mrb[0].mxu0 %v1825
        %v2320 = vpop.f32.mrb[0].mxu0
        %v2321 = vadd.f32 %v2160, %v2320
        %v2322 = vpop.f32.mrb[0].mxu0
        %v2323 = vpop.f32.mrb[0].mxu0
        %v2324 = vadd.f32 %v2163, %v2323
        %v2325 = vpop.f32.mrb[0].mxu0
        %2326 = vmatprep.mubr.bf16.mxu0 0
        %2327 = vmatmul.mubr.bf16.gmra.mrb[0].mxu0 %v1826
        %v2328 = vpop.f32.mrb[0].mxu0
        %v2329 = vadd.f32 %v2168, %v2328
        %v2330 = vpop.f32.mrb[0].mxu0
        %v2331 = vpop.f32.mrb[0].mxu0
        %v2332 = vadd.f32 %v2171, %v2331
        %v2333 = vpop.f32.mrb[0].mxu0
        %2334 = vmatprep.mubr.bf16.mxu0 0
        %2335 = vmatmul.mubr.bf16.gmra.mrb[0].mxu0 %v1827
        %v2336 = vpop.f32.mrb[0].mxu0
        %v2337 = vadd.f32 %v2176, %v2336
        %v2338 = vpop.f32.mrb[0].mxu0
        %v2339 = vpop.f32.mrb[0].mxu0
        %v2340 = vadd.f32 %v2179, %v2339
        %v2341 = vpop.f32.mrb[0].mxu0
        %2342 = vmatprep.mubr.bf16.mxu0 0
        %2343 = vmatmul.mubr.bf16.gmra.mrb[0].mxu0 %v1828
        %v2344 = vpop.f32.mrb[0].mxu0
        %v2345 = vadd.f32 %v2184, %v2344
        %v2346 = vpop.f32.mrb[0].mxu0
        %v2347 = vpop.f32.mrb[0].mxu0
        %v2348 = vadd.f32 %v2187, %v2347
        %v2349 = vpop.f32.mrb[0].mxu0
        %2350 = vmatprep.mubr.bf16.mxu0 0
        %2351 = vmatmul.mubr.bf16.gmra.mrb[0].mxu0 %v1829
        %v2352 = vpop.f32.mrb[0].mxu0
        %v2353 = vadd.f32 %v2192, %v2352
        %v2354 = vpop.f32.mrb[0].mxu0
        %v2355 = vpop.f32.mrb[0].mxu0
        %v2356 = vadd.f32 %v2195, %v2355
        %v2357 = vpop.f32.mrb[0].mxu0
        %2358 = vmatprep.mubr.bf16.mxu0 0
        %2359 = vmatmul.mubr.bf16.gmra.mrb[0].mxu0 %v1830
        %v2360 = vpop.f32.mrb[0].mxu0
        %v2361 = vadd.f32 %v2200, %v2360
        %v2362 = vpop.f32.mrb[0].mxu0
        %v2363 = vpop.f32.mrb[0].mxu0
        %v2364 = vadd.f32 %v2203, %v2363
        %v2365 = vpop.f32.mrb[0].mxu0
        %2366 = vmatprep.mubr.bf16.mxu0 0
        %2367 = vmatmul.mubr.bf16.gmra.mrb[0].mxu0 %v1831
        %v2368 = vpop.f32.mrb[0].mxu0
        %v2369 = vadd.f32 %v2208, %v2368
        %v2370 = vpop.f32.mrb[0].mxu0
        %v2371 = vpop.f32.mrb[0].mxu0
        %v2372 = vadd.f32 %v2211, %v2371
        %v2373 = vpop.f32.mrb[0].mxu0
        %2374 = vmatprep.mubr.bf16.mxu0 0
        %2375 = vmatmul.mubr.bf16.gmra.mrb[0].mxu0 %v1832
        %v2376 = vpop.f32.mrb[0].mxu0
        %v2377 = vadd.f32 %v2216, %v2376
        %v2378 = vpop.f32.mrb[0].mxu0
        %v2379 = vpop.f32.mrb[0].mxu0
        %v2380 = vadd.f32 %v2219, %v2379
        %v2381 = vpop.f32.mrb[0].mxu0
        %2382 = vmatprep.mubr.bf16.mxu0 0
        %2383 = vmatmul.mubr.bf16.gmra.mrb[0].mxu0 %v1833
        %v2384 = vpop.f32.mrb[0].mxu0
        %v2385 = vadd.f32 %v2224, %v2384
        %v2386 = vpop.f32.mrb[0].mxu0
        %v2387 = vpop.f32.mrb[0].mxu0
        %v2388 = vadd.f32 %v2227, %v2387
        %v2389 = vpop.f32.mrb[0].mxu0
        %2390 = vmatprep.mubr.bf16.mxu0 0
        %2391 = vmatmul.mubr.bf16.gmra.mrb[0].mxu0 %v1834
        %v2392 = vpop.f32.mrb[0].mxu0
        %v2393 = vadd.f32 %v2232, %v2392
        %v2394 = vpop.f32.mrb[0].mxu0
        %v2395 = vpop.f32.mrb[0].mxu0
        %v2396 = vadd.f32 %v2235, %v2395
        %v2397 = vpop.f32.mrb[0].mxu0
        %2398 = vdwg.mxu0
        %v2447 = vunpack.c.l.b16 %v1836
        %v2448 = vunpack.c.l.b16 %v1837
        %v2449 = vunpack.c.l.b16 %v1838
        %v2450 = vunpack.c.l.b16 %v1839
        %v2451 = vunpack.c.l.b16 %v1840
        %v2452 = vunpack.c.l.b16 %v1841
        %v2453 = vunpack.c.l.b16 %v1842
        %v2454 = vunpack.c.l.b16 %v1843
        %v2455 = vunpack.c.l.b16 %v1844
        %v2456 = vunpack.c.l.b16 %v1845
        %v2457 = vunpack.c.l.b16 %v1846
        %v2458 = vunpack.c.l.b16 %v1847
        %v2459 = vunpack.c.l.b16 %v1848
        %v2460 = vunpack.c.l.b16 %v1849
        %v2461 = vunpack.c.l.b16 %v1850
        %v2462 = vunpack.c.l.b16 %v1851
        %v2463 = vunpack.c.l.b16 %v1852
        %v2464 = vunpack.c.l.b16 %v1853
        %v2465 = vunpack.c.l.b16 %v1854
        %v2466 = vunpack.c.l.b16 %v1855
        %v2467 = vunpack.c.l.b16 %v1856
        %v2468 = vunpack.c.l.b16 %v1857
        %v2469 = vunpack.c.l.b16 %v1858
        %v2470 = vunpack.c.l.b16 %v1859
        %v2471 = vunpack.c.l.b16 %v1860
        %v2472 = vunpack.c.l.b16 %v1861
        %v2473 = vunpack.c.l.b16 %v1862
        %v2474 = vunpack.c.l.b16 %v1863
        %v2475 = vunpack.c.l.b16 %v1864
        %v2476 = vunpack.c.l.b16 %v1865
        %v2477 = vunpack.c.l.b16 %v1866
        %v2478 = vunpack.c.l.b16 %v1867
        %v2479 = vunpack.c.l.b16 %v1868
        %v2480 = vunpack.c.l.b16 %v1869
        %v2481 = vunpack.c.l.b16 %v1870
        %v2482 = vunpack.c.l.b16 %v1871
        %v2483 = vunpack.c.l.b16 %v1872
        %v2484 = vunpack.c.l.b16 %v1873
        %v2485 = vunpack.c.l.b16 %v1874
        %v2486 = vunpack.c.l.b16 %v1875
        %v2487 = vunpack.c.l.b16 %v1876
        %v2488 = vunpack.c.l.b16 %v1877
        %v2489 = vunpack.c.l.b16 %v1878
        %v2490 = vunpack.c.l.b16 %v1879
        %v2491 = vunpack.c.l.b16 %v1880
        %v2492 = vunpack.c.l.b16 %v1881
        %v2493 = vunpack.c.l.b16 %v1882
        %v2494 = vunpack.c.l.b16 %v1883
        %v2495 = vpack.c.b16 %v2448, %v2447
        %v2496 = vpack.c.b16 %v2450, %v2449
        %v2497 = vpack.c.b16 %v2452, %v2451
        %v2498 = vpack.c.b16 %v2454, %v2453
        %v2499 = vpack.c.b16 %v2456, %v2455
        %v2500 = vpack.c.b16 %v2458, %v2457
        %v2501 = vpack.c.b16 %v2460, %v2459
        %v2502 = vpack.c.b16 %v2462, %v2461
        %v2503 = vpack.c.b16 %v2464, %v2463
        %v2504 = vpack.c.b16 %v2466, %v2465
        %v2505 = vpack.c.b16 %v2468, %v2467
        %v2506 = vpack.c.b16 %v2470, %v2469
        %v2507 = vpack.c.b16 %v2472, %v2471
        %v2508 = vpack.c.b16 %v2474, %v2473
        %v2509 = vpack.c.b16 %v2476, %v2475
        %v2510 = vpack.c.b16 %v2478, %v2477
        %v2511 = vpack.c.b16 %v2480, %v2479
        %v2512 = vpack.c.b16 %v2482, %v2481
        %v2513 = vpack.c.b16 %v2484, %v2483
        %v2514 = vpack.c.b16 %v2486, %v2485
        %v2515 = vpack.c.b16 %v2488, %v2487
        %v2516 = vpack.c.b16 %v2490, %v2489
        %v2517 = vpack.c.b16 %v2492, %v2491
        %v2518 = vpack.c.b16 %v2494, %v2493
        %2543 = vmatprep.subr.bf16.mxu0 0
        %2544 = vmatpush1.bf16.msra.mxu0 %v2495
        %2545 = vmatprep.subr.bf16.mxu0 0
        %2546 = vmatpush1.bf16.msra.mxu0 %v2496
        %2547 = vmatprep.subr.bf16.mxu0 0
        %2548 = vmatpush1.bf16.msra.mxu0 %v2497
        %2549 = vmatprep.subr.bf16.mxu0 0
        %2550 = vmatpush1.bf16.msra.mxu0 %v2498
        %2551 = vmatprep.subr.bf16.mxu0 0
        %2552 = vmatpush1.bf16.msra.mxu0 %v2499
        %2553 = vmatprep.subr.bf16.mxu0 0
        %2554 = vmatpush1.bf16.msra.mxu0 %v2500
        %2555 = vmatprep.subr.bf16.mxu0 0
        %2556 = vmatpush1.bf16.msra.mxu0 %v2501
        %2557 = vmatprep.subr.bf16.mxu0 0
        %2558 = vmatpush1.bf16.msra.mxu0 %v2502
        %2559 = vmatprep.subr.bf16.mxu0 0
        %2560 = vmatpush1.bf16.msra.mxu0 %v2503
        %2561 = vmatprep.subr.bf16.mxu0 0
        %2562 = vmatpush1.bf16.msra.mxu0 %v2504
        %2563 = vmatprep.subr.bf16.mxu0 0
        %2564 = vmatpush1.bf16.msra.mxu0 %v2505
        %2565 = vmatprep.subr.bf16.mxu0 0
        %2566 = vmatpush1.bf16.msra.mxu0 %v2506
        %2567 = vmatprep.subr.bf16.mxu0 0
        %2568 = vmatpush1.bf16.msra.mxu0 %v2507
        %2569 = vmatprep.subr.bf16.mxu0 0
        %2570 = vmatpush1.bf16.msra.mxu0 %v2508
        %2571 = vmatprep.subr.bf16.mxu0 0
        %2572 = vmatpush1.bf16.msra.mxu0 %v2509
        %2573 = vmatprep.subr.bf16.mxu0 0
        %2574 = vmatpush1.bf16.msra.mxu0 %v2510
        %2575 = vmatprep.mubr.bf16.mxu0 %v569
        %2576 = vmatmul.mubr.bf16.gmra.mrb[0].mxu0 %v1473
        %v2577 = vpop.f32.mrb[0].mxu0
        %v2578 = vadd.f32 %v2273, %v2577
        %v2579 = vpop.f32.mrb[0].mxu0
        %v2580 = vpop.f32.mrb[0].mxu0
        %v2581 = vadd.f32 %v2276, %v2580
        %v2582 = vpop.f32.mrb[0].mxu0
        %2583 = vmatprep.mubr.bf16.mxu0 %v570
        %2584 = vmatmul.mubr.bf16.gmra.mrb[0].mxu0 %v1474
        %v2585 = vpop.f32.mrb[0].mxu0
        %v2586 = vadd.f32 %v2281, %v2585
        %v2587 = vpop.f32.mrb[0].mxu0
        %v2588 = vpop.f32.mrb[0].mxu0
        %v2589 = vadd.f32 %v2284, %v2588
        %v2590 = vpop.f32.mrb[0].mxu0
        %2591 = vmatprep.mubr.bf16.mxu0 %v571
        %2592 = vmatmul.mubr.bf16.gmra.mrb[0].mxu0 %v1475
        %v2593 = vpop.f32.mrb[0].mxu0
        %v2594 = vadd.f32 %v2289, %v2593
        %v2595 = vpop.f32.mrb[0].mxu0
        %v2596 = vpop.f32.mrb[0].mxu0
        %v2597 = vadd.f32 %v2292, %v2596
        %v2598 = vpop.f32.mrb[0].mxu0
        %2599 = vmatprep.mubr.bf16.mxu0 %v572
        %2600 = vmatmul.mubr.bf16.gmra.mrb[0].mxu0 %v1476
        %v2601 = vpop.f32.mrb[0].mxu0
        %v2602 = vadd.f32 %v2297, %v2601
        %v2603 = vpop.f32.mrb[0].mxu0
        %v2604 = vpop.f32.mrb[0].mxu0
        %v2605 = vadd.f32 %v2300, %v2604
        %v2606 = vpop.f32.mrb[0].mxu0
        %2607 = vmatprep.mubr.bf16.mxu0 %v573
        %2608 = vmatmul.mubr.bf16.gmra.mrb[0].mxu0 %v1477
        %v2609 = vpop.f32.mrb[0].mxu0
        %v2610 = vadd.f32 %v2305, %v2609
        %v2611 = vpop.f32.mrb[0].mxu0
        %v2612 = vpop.f32.mrb[0].mxu0
        %v2613 = vadd.f32 %v2308, %v2612
        %v2614 = vpop.f32.mrb[0].mxu0
        %2615 = vmatprep.mubr.bf16.mxu0 %v574
        %2616 = vmatmul.mubr.bf16.gmra.mrb[0].mxu0 %v1478
        %v2617 = vpop.f32.mrb[0].mxu0
        %v2618 = vadd.f32 %v2313, %v2617
        %v2619 = vpop.f32.mrb[0].mxu0
        %v2620 = vpop.f32.mrb[0].mxu0
        %v2621 = vadd.f32 %v2316, %v2620
        %v2622 = vpop.f32.mrb[0].mxu0
        %2623 = vmatprep.mubr.bf16.mxu0 %v575
        %2624 = vmatmul.mubr.bf16.gmra.mrb[0].mxu0 %v1479
        %v2625 = vpop.f32.mrb[0].mxu0
        %v2626 = vadd.f32 %v2321, %v2625
        %v2627 = vpop.f32.mrb[0].mxu0
        %v2628 = vpop.f32.mrb[0].mxu0
        %v2629 = vadd.f32 %v2324, %v2628
        %v2630 = vpop.f32.mrb[0].mxu0
        %2631 = vmatprep.mubr.bf16.mxu0 %v576
        %2632 = vmatmul.mubr.bf16.gmra.mrb[0].mxu0 %v1480
        %v2633 = vpop.f32.mrb[0].mxu0
        %v2634 = vadd.f32 %v2329, %v2633
        %v2635 = vpop.f32.mrb[0].mxu0
        %v2636 = vpop.f32.mrb[0].mxu0
        %v2637 = vadd.f32 %v2332, %v2636
        %v2638 = vpop.f32.mrb[0].mxu0
        %2639 = vmatprep.mubr.bf16.mxu0 %v577
        %2640 = vmatmul.mubr.bf16.gmra.mrb[0].mxu0 %v1481
        %v2641 = vpop.f32.mrb[0].mxu0
        %v2642 = vadd.f32 %v2337, %v2641
        %v2643 = vpop.f32.mrb[0].mxu0
        %v2644 = vpop.f32.mrb[0].mxu0
        %v2645 = vadd.f32 %v2340, %v2644
        %v2646 = vpop.f32.mrb[0].mxu0
        %2647 = vmatprep.mubr.bf16.mxu0 %v578
        %2648 = vmatmul.mubr.bf16.gmra.mrb[0].mxu0 %v1482
        %v2649 = vpop.f32.mrb[0].mxu0
        %v2650 = vadd.f32 %v2345, %v2649
        %v2651 = vpop.f32.mrb[0].mxu0
        %v2652 = vpop.f32.mrb[0].mxu0
        %v2653 = vadd.f32 %v2348, %v2652
        %v2654 = vpop.f32.mrb[0].mxu0
        %2655 = vmatprep.mubr.bf16.mxu0 %v579
        %2656 = vmatmul.mubr.bf16.gmra.mrb[0].mxu0 %v1483
        %v2657 = vpop.f32.mrb[0].mxu0
        %v2658 = vadd.f32 %v2353, %v2657
        %v2659 = vpop.f32.mrb[0].mxu0
        %v2660 = vpop.f32.mrb[0].mxu0
        %v2661 = vadd.f32 %v2356, %v2660
        %v2662 = vpop.f32.mrb[0].mxu0
        %2663 = vmatprep.mubr.bf16.mxu0 %v580
        %2664 = vmatmul.mubr.bf16.gmra.mrb[0].mxu0 %v1484
        %v2665 = vpop.f32.mrb[0].mxu0
        %v2666 = vadd.f32 %v2361, %v2665
        %v2667 = vpop.f32.mrb[0].mxu0
        %v2668 = vpop.f32.mrb[0].mxu0
        %v2669 = vadd.f32 %v2364, %v2668
        %v2670 = vpop.f32.mrb[0].mxu0
        %2671 = vmatprep.mubr.bf16.mxu0 %v581
        %2672 = vmatmul.mubr.bf16.gmra.mrb[0].mxu0 %v1485
        %v2673 = vpop.f32.mrb[0].mxu0
        %v2674 = vadd.f32 %v2369, %v2673
        %v2675 = vpop.f32.mrb[0].mxu0
        %v2676 = vpop.f32.mrb[0].mxu0
        %v2677 = vadd.f32 %v2372, %v2676
        %v2678 = vpop.f32.mrb[0].mxu0
        %2679 = vmatprep.mubr.bf16.mxu0 %v582
        %2680 = vmatmul.mubr.bf16.gmra.mrb[0].mxu0 %v1486
        %v2681 = vpop.f32.mrb[0].mxu0
        %v2682 = vadd.f32 %v2377, %v2681
        %v2683 = vpop.f32.mrb[0].mxu0
        %v2684 = vpop.f32.mrb[0].mxu0
        %v2685 = vadd.f32 %v2380, %v2684
        %v2686 = vpop.f32.mrb[0].mxu0
        %2687 = vmatprep.mubr.bf16.mxu0 %v583
        %2688 = vmatmul.mubr.bf16.gmra.mrb[0].mxu0 %v1487
        %v2689 = vpop.f32.mrb[0].mxu0
        %v2690 = vadd.f32 %v2385, %v2689
        %v2691 = vpop.f32.mrb[0].mxu0
        %v2692 = vpop.f32.mrb[0].mxu0
        %v2693 = vadd.f32 %v2388, %v2692
        %v2694 = vpop.f32.mrb[0].mxu0
        %2695 = vmatprep.mubr.bf16.mxu0 %v584
        %2696 = vmatmul.mubr.bf16.gmra.mrb[0].mxu0 %v1488
        %v2697 = vpop.f32.mrb[0].mxu0
        %v2698 = vadd.f32 %v2393, %v2697
        %v2699 = vpop.f32.mrb[0].mxu0
        %v2700 = vpop.f32.mrb[0].mxu0
        %v2701 = vadd.f32 %v2396, %v2700
        %v2702 = vpop.f32.mrb[0].mxu0
        %2703 = vdwg.mxu0
        %2704 = vmatprep.subr.bf16.mxu0 0
        %2705 = vmatpush1.bf16.msra.mxu0 %v2511
        %2706 = vmatprep.subr.bf16.mxu0 0
        %2707 = vmatpush1.bf16.msra.mxu0 %v2512
        %2708 = vmatprep.subr.bf16.mxu0 0
        %2709 = vmatpush1.bf16.msra.mxu0 %v2513
        %2710 = vmatprep.subr.bf16.mxu0 0
        %2711 = vmatpush1.bf16.msra.mxu0 %v2514
        %2712 = vmatprep.subr.bf16.mxu0 0
        %2713 = vmatpush1.bf16.msra.mxu0 %v2515
        %2714 = vmatprep.subr.bf16.mxu0 0
        %2715 = vmatpush1.bf16.msra.mxu0 %v2516
        %2716 = vmatprep.subr.bf16.mxu0 0
        %2717 = vmatpush1.bf16.msra.mxu0 %v2517
        %2718 = vmatprep.subr.bf16.mxu0 0
        %2719 = vmatpush1.bf16.msra.mxu0 %v2518
        %2720 = vmatprep.subr.bf16.mxu0 0
        %2721 = vmatpush1.bf16.msra.mxu0 0
        %2722 = vmatprep.subr.bf16.mxu0 0
        %2723 = vmatpush1.bf16.msra.mxu0 0
        %2724 = vmatprep.subr.bf16.mxu0 0
        %2725 = vmatpush1.bf16.msra.mxu0 0
        %2726 = vmatprep.subr.bf16.mxu0 0
        %2727 = vmatpush1.bf16.msra.mxu0 0
        %2728 = vmatprep.subr.bf16.mxu0 0
        %2729 = vmatpush1.bf16.msra.mxu0 0
        %2730 = vmatprep.subr.bf16.mxu0 0
        %2731 = vmatpush1.bf16.msra.mxu0 0
        %2732 = vmatprep.subr.bf16.mxu0 0
        %2733 = vmatpush1.bf16.msra.mxu0 0
        %2734 = vmatprep.subr.bf16.mxu0 0
        %2735 = vmatpush1.bf16.msra.mxu0 0
        %2736 = vmatprep.mubr.bf16.mxu0 0
        %2737 = vmatmul.mubr.bf16.gmra.mrb[0].mxu0 %v1818
        %v2738 = vpop.f32.mrb[0].mxu0
        %v2739 = vadd.f32 %v2578, %v2738
        %v2740 = vpop.f32.mrb[0].mxu0
        %v2741 = vpop.f32.mrb[0].mxu0
        %v2742 = vadd.f32 %v2581, %v2741
        %v2743 = vpop.f32.mrb[0].mxu0
        %2744 = vmatprep.mubr.bf16.mxu0 0
        %2745 = vmatmul.mubr.bf16.gmra.mrb[0].mxu0 %v1819
        %v2746 = vpop.f32.mrb[0].mxu0
        %v2747 = vadd.f32 %v2586, %v2746
        %v2748 = vpop.f32.mrb[0].mxu0
        %v2749 = vpop.f32.mrb[0].mxu0
        %v2750 = vadd.f32 %v2589, %v2749
        %v2751 = vpop.f32.mrb[0].mxu0
        %2752 = vmatprep.mubr.bf16.mxu0 0
        %2753 = vmatmul.mubr.bf16.gmra.mrb[0].mxu0 %v1820
        %v2754 = vpop.f32.mrb[0].mxu0
        %v2755 = vadd.f32 %v2594, %v2754
        %v2756 = vpop.f32.mrb[0].mxu0
        %v2757 = vpop.f32.mrb[0].mxu0
        %v2758 = vadd.f32 %v2597, %v2757
        %v2759 = vpop.f32.mrb[0].mxu0
        %2760 = vmatprep.mubr.bf16.mxu0 0
        %2761 = vmatmul.mubr.bf16.gmra.mrb[0].mxu0 %v1821
        %v2762 = vpop.f32.mrb[0].mxu0
        %v2763 = vadd.f32 %v2602, %v2762
        %v2764 = vpop.f32.mrb[0].mxu0
        %v2765 = vpop.f32.mrb[0].mxu0
        %v2766 = vadd.f32 %v2605, %v2765
        %v2767 = vpop.f32.mrb[0].mxu0
        %2768 = vmatprep.mubr.bf16.mxu0 0
        %2769 = vmatmul.mubr.bf16.gmra.mrb[0].mxu0 %v1822
        %v2770 = vpop.f32.mrb[0].mxu0
        %v2771 = vadd.f32 %v2610, %v2770
        %v2772 = vpop.f32.mrb[0].mxu0
        %v2773 = vpop.f32.mrb[0].mxu0
        %v2774 = vadd.f32 %v2613, %v2773
        %v2775 = vpop.f32.mrb[0].mxu0
        %2776 = vmatprep.mubr.bf16.mxu0 0
        %2777 = vmatmul.mubr.bf16.gmra.mrb[0].mxu0 %v1823
        %v2778 = vpop.f32.mrb[0].mxu0
        %v2779 = vadd.f32 %v2618, %v2778
        %v2780 = vpop.f32.mrb[0].mxu0
        %v2781 = vpop.f32.mrb[0].mxu0
        %v2782 = vadd.f32 %v2621, %v2781
        %v2783 = vpop.f32.mrb[0].mxu0
        %2784 = vmatprep.mubr.bf16.mxu0 0
        %2785 = vmatmul.mubr.bf16.gmra.mrb[0].mxu0 %v1824
        %v2786 = vpop.f32.mrb[0].mxu0
        %v2787 = vadd.f32 %v2626, %v2786
        %v2788 = vpop.f32.mrb[0].mxu0
        %v2789 = vpop.f32.mrb[0].mxu0
        %v2790 = vadd.f32 %v2629, %v2789
        %v2791 = vpop.f32.mrb[0].mxu0
        %2792 = vmatprep.mubr.bf16.mxu0 0
        %2793 = vmatmul.mubr.bf16.gmra.mrb[0].mxu0 %v1825
        %v2794 = vpop.f32.mrb[0].mxu0
        %v2795 = vadd.f32 %v2634, %v2794
        %v2796 = vpop.f32.mrb[0].mxu0
        %v2797 = vpop.f32.mrb[0].mxu0
        %v2798 = vadd.f32 %v2637, %v2797
        %v2799 = vpop.f32.mrb[0].mxu0
        %2800 = vmatprep.mubr.bf16.mxu0 0
        %2801 = vmatmul.mubr.bf16.gmra.mrb[0].mxu0 %v1826
        %v2802 = vpop.f32.mrb[0].mxu0
        %v2803 = vadd.f32 %v2642, %v2802
        %v2804 = vpop.f32.mrb[0].mxu0
        %v2805 = vpop.f32.mrb[0].mxu0
        %v2806 = vadd.f32 %v2645, %v2805
        %v2807 = vpop.f32.mrb[0].mxu0
        %2808 = vmatprep.mubr.bf16.mxu0 0
        %2809 = vmatmul.mubr.bf16.gmra.mrb[0].mxu0 %v1827
        %v2810 = vpop.f32.mrb[0].mxu0
        %v2811 = vadd.f32 %v2650, %v2810
        %v2812 = vpop.f32.mrb[0].mxu0
        %v2813 = vpop.f32.mrb[0].mxu0
        %v2814 = vadd.f32 %v2653, %v2813
        %v2815 = vpop.f32.mrb[0].mxu0
        %2816 = vmatprep.mubr.bf16.mxu0 0
        %2817 = vmatmul.mubr.bf16.gmra.mrb[0].mxu0 %v1828
        %v2818 = vpop.f32.mrb[0].mxu0
        %v2819 = vadd.f32 %v2658, %v2818
        %v2820 = vpop.f32.mrb[0].mxu0
        %v2821 = vpop.f32.mrb[0].mxu0
        %v2822 = vadd.f32 %v2661, %v2821
        %v2823 = vpop.f32.mrb[0].mxu0
        %2824 = vmatprep.mubr.bf16.mxu0 0
        %2825 = vmatmul.mubr.bf16.gmra.mrb[0].mxu0 %v1829
        %v2826 = vpop.f32.mrb[0].mxu0
        %v2827 = vadd.f32 %v2666, %v2826
        %v2828 = vpop.f32.mrb[0].mxu0
        %v2829 = vpop.f32.mrb[0].mxu0
        %v2830 = vadd.f32 %v2669, %v2829
        %v2831 = vpop.f32.mrb[0].mxu0
        %2832 = vmatprep.mubr.bf16.mxu0 0
        %2833 = vmatmul.mubr.bf16.gmra.mrb[0].mxu0 %v1830
        %v2834 = vpop.f32.mrb[0].mxu0
        %v2835 = vadd.f32 %v2674, %v2834
        %v2836 = vpop.f32.mrb[0].mxu0
        %v2837 = vpop.f32.mrb[0].mxu0
        %v2838 = vadd.f32 %v2677, %v2837
        %v2839 = vpop.f32.mrb[0].mxu0
        %2840 = vmatprep.mubr.bf16.mxu0 0
        %2841 = vmatmul.mubr.bf16.gmra.mrb[0].mxu0 %v1831
        %v2842 = vpop.f32.mrb[0].mxu0
        %v2843 = vadd.f32 %v2682, %v2842
        %v2844 = vpop.f32.mrb[0].mxu0
        %v2845 = vpop.f32.mrb[0].mxu0
        %v2846 = vadd.f32 %v2685, %v2845
        %v2847 = vpop.f32.mrb[0].mxu0
        %2848 = vmatprep.mubr.bf16.mxu0 0
        %2849 = vmatmul.mubr.bf16.gmra.mrb[0].mxu0 %v1832
        %v2850 = vpop.f32.mrb[0].mxu0
        %v2851 = vadd.f32 %v2690, %v2850
        %v2852 = vpop.f32.mrb[0].mxu0
        %v2853 = vpop.f32.mrb[0].mxu0
        %v2854 = vadd.f32 %v2693, %v2853
        %v2855 = vpop.f32.mrb[0].mxu0
        %2856 = vmatprep.mubr.bf16.mxu0 0
        %2857 = vmatmul.mubr.bf16.gmra.mrb[0].mxu0 %v1833
        %v2858 = vpop.f32.mrb[0].mxu0
        %v2859 = vadd.f32 %v2698, %v2858
        %v2860 = vpop.f32.mrb[0].mxu0
        %v2861 = vpop.f32.mrb[0].mxu0
        %v2862 = vadd.f32 %v2701, %v2861
        %v2863 = vpop.f32.mrb[0].mxu0
        %2864 = vdwg.mxu0
        %s2865 = scalar_lea.vmem [#allocation8], 384
        %v2866 = vld [vmem:[%s2865] sm:$0xf]
        %v2867 = vld [vmem:[%s2865 + $0x4] sm:$0xf]
        %v2868 = vld [vmem:[%s2865 + $0x8] sm:$0xf]
        %v2869 = vld [vmem:[%s2865 + $0xc] sm:$0xf]
        %v2870 = vld [vmem:[%s2865 + $0x10] sm:$0xf]
        %v2871 = vld [vmem:[%s2865 + $0x14] sm:$0xf]
        %v2872 = vld [vmem:[%s2865 + $0x18] sm:$0xf]
        %v2873 = vld [vmem:[%s2865 + $0x1c] sm:$0xf]
        %v2874 = vld [vmem:[%s2865 + $0x20] sm:$0xf]
        %v2875 = vld [vmem:[%s2865 + $0x24] sm:$0xf]
        %v2876 = vld [vmem:[%s2865 + $0x28] sm:$0xf]
        %v2877 = vld [vmem:[%s2865 + $0x2c] sm:$0xf]
        %v2878 = vld [vmem:[%s2865 + $0x30] sm:$0xf]
        %v2879 = vld [vmem:[%s2865 + $0x34] sm:$0xf]
        %v2880 = vld [vmem:[%s2865 + $0x38] sm:$0xf]
        %v2881 = vld [vmem:[%s2865 + $0x3c] sm:$0xf]
        %v2882 = vld [vmem:[%s2865 + $0x40] sm:$0xf]
        %v2883 = vld [vmem:[%s2865 + $0x44] sm:$0xf]
        %v2884 = vld [vmem:[%s2865 + $0x48] sm:$0xf]
        %v2885 = vld [vmem:[%s2865 + $0x4c] sm:$0xf]
        %v2886 = vld [vmem:[%s2865 + $0x50] sm:$0xf]
        %v2887 = vld [vmem:[%s2865 + $0x54] sm:$0xf]
        %v2888 = vld [vmem:[%s2865 + $0x58] sm:$0xf]
        %v2889 = vld [vmem:[%s2865 + $0x5c] sm:$0xf]
        %v2890 = vld [vmem:[%s2865 + $0x60] sm:$0xf]
        %v2891 = vld [vmem:[%s2865 + $0x64] sm:$0xf]
        %v2892 = vld [vmem:[%s2865 + $0x68] sm:$0xf]
        %v2893 = vld [vmem:[%s2865 + $0x6c] sm:$0xf]
        %v2894 = vld [vmem:[%s2865 + $0x70] sm:$0xf]
        %v2895 = vld [vmem:[%s2865 + $0x74] sm:$0xf]
        %v2896 = vld [vmem:[%s2865 + $0x78] sm:$0xf]
        %v2897 = vld [vmem:[%s2865 + $0x7c] sm:$0xf]
        %v2898 = vld [vmem:[%s2865 + $0x80] sm:$0xf]
        %v2899 = vld [vmem:[%s2865 + $0x84] sm:$0xf]
        %v2900 = vld [vmem:[%s2865 + $0x88] sm:$0xf]
        %v2901 = vld [vmem:[%s2865 + $0x8c] sm:$0xf]
        %v2902 = vld [vmem:[%s2865 + $0x90] sm:$0xf]
        %v2903 = vld [vmem:[%s2865 + $0x94] sm:$0xf]
        %v2904 = vld [vmem:[%s2865 + $0x98] sm:$0xf]
        %v2905 = vld [vmem:[%s2865 + $0x9c] sm:$0xf]
        %v2906 = vld [vmem:[%s2865 + $0xa0] sm:$0xf]
        %v2907 = vld [vmem:[%s2865 + $0xa4] sm:$0xf]
        %v2908 = vld [vmem:[%s2865 + $0xa8] sm:$0xf]
        %v2909 = vld [vmem:[%s2865 + $0xac] sm:$0xf]
        %v2910 = vld [vmem:[%s2865 + $0xb0] sm:$0xf]
        %v2911 = vld [vmem:[%s2865 + $0xb4] sm:$0xf]
        %v2912 = vld [vmem:[%s2865 + $0xb8] sm:$0xf]
        %v2913 = vld [vmem:[%s2865 + $0xbc] sm:$0xf]
        %v2962 = vunpack.c.l.b16 %v2866
        %v2963 = vunpack.c.l.b16 %v2867
        %v2964 = vunpack.c.l.b16 %v2868
        %v2965 = vunpack.c.l.b16 %v2869
        %v2966 = vunpack.c.l.b16 %v2870
        %v2967 = vunpack.c.l.b16 %v2871
        %v2968 = vunpack.c.l.b16 %v2872
        %v2969 = vunpack.c.l.b16 %v2873
        %v2970 = vunpack.c.l.b16 %v2874
        %v2971 = vunpack.c.l.b16 %v2875
        %v2972 = vunpack.c.l.b16 %v2876
        %v2973 = vunpack.c.l.b16 %v2877
        %v2974 = vunpack.c.l.b16 %v2878
        %v2975 = vunpack.c.l.b16 %v2879
        %v2976 = vunpack.c.l.b16 %v2880
        %v2977 = vunpack.c.l.b16 %v2881
        %v2978 = vunpack.c.l.b16 %v2882
        %v2979 = vunpack.c.l.b16 %v2883
        %v2980 = vunpack.c.l.b16 %v2884
        %v2981 = vunpack.c.l.b16 %v2885
        %v2982 = vunpack.c.l.b16 %v2886
        %v2983 = vunpack.c.l.b16 %v2887
        %v2984 = vunpack.c.l.b16 %v2888
        %v2985 = vunpack.c.l.b16 %v2889
        %v2986 = vunpack.c.l.b16 %v2890
        %v2987 = vunpack.c.l.b16 %v2891
        %v2988 = vunpack.c.l.b16 %v2892
        %v2989 = vunpack.c.l.b16 %v2893
        %v2990 = vunpack.c.l.b16 %v2894
        %v2991 = vunpack.c.l.b16 %v2895
        %v2992 = vunpack.c.l.b16 %v2896
        %v2993 = vunpack.c.l.b16 %v2897
        %v2994 = vunpack.c.l.b16 %v2898
        %v2995 = vunpack.c.l.b16 %v2899
        %v2996 = vunpack.c.l.b16 %v2900
        %v2997 = vunpack.c.l.b16 %v2901
        %v2998 = vunpack.c.l.b16 %v2902
        %v2999 = vunpack.c.l.b16 %v2903
        %v3000 = vunpack.c.l.b16 %v2904
        %v3001 = vunpack.c.l.b16 %v2905
        %v3002 = vunpack.c.l.b16 %v2906
        %v3003 = vunpack.c.l.b16 %v2907
        %v3004 = vunpack.c.l.b16 %v2908
        %v3005 = vunpack.c.l.b16 %v2909
        %v3006 = vunpack.c.l.b16 %v2910
        %v3007 = vunpack.c.l.b16 %v2911
        %v3008 = vunpack.c.l.b16 %v2912
        %v3009 = vunpack.c.l.b16 %v2913
        %v3010 = vpack.c.b16 %v2963, %v2962
        %v3011 = vpack.c.b16 %v2965, %v2964
        %v3012 = vpack.c.b16 %v2967, %v2966
        %v3013 = vpack.c.b16 %v2969, %v2968
        %v3014 = vpack.c.b16 %v2971, %v2970
        %v3015 = vpack.c.b16 %v2973, %v2972
        %v3016 = vpack.c.b16 %v2975, %v2974
        %v3017 = vpack.c.b16 %v2977, %v2976
        %v3018 = vpack.c.b16 %v2979, %v2978
        %v3019 = vpack.c.b16 %v2981, %v2980
        %v3020 = vpack.c.b16 %v2983, %v2982
        %v3021 = vpack.c.b16 %v2985, %v2984
        %v3022 = vpack.c.b16 %v2987, %v2986
        %v3023 = vpack.c.b16 %v2989, %v2988
        %v3024 = vpack.c.b16 %v2991, %v2990
        %v3025 = vpack.c.b16 %v2993, %v2992
        %v3026 = vpack.c.b16 %v2995, %v2994
        %v3027 = vpack.c.b16 %v2997, %v2996
        %v3028 = vpack.c.b16 %v2999, %v2998
        %v3029 = vpack.c.b16 %v3001, %v3000
        %v3030 = vpack.c.b16 %v3003, %v3002
        %v3031 = vpack.c.b16 %v3005, %v3004
        %v3032 = vpack.c.b16 %v3007, %v3006
        %v3033 = vpack.c.b16 %v3009, %v3008
        %3058 = vmatprep.subr.bf16.mxu0 0
        %3059 = vmatpush1.bf16.msra.mxu0 %v3010
        %3060 = vmatprep.subr.bf16.mxu0 0
        %3061 = vmatpush1.bf16.msra.mxu0 %v3011
        %3062 = vmatprep.subr.bf16.mxu0 0
        %3063 = vmatpush1.bf16.msra.mxu0 %v3012
        %3064 = vmatprep.subr.bf16.mxu0 0
        %3065 = vmatpush1.bf16.msra.mxu0 %v3013
        %3066 = vmatprep.subr.bf16.mxu0 0
        %3067 = vmatpush1.bf16.msra.mxu0 %v3014
        %3068 = vmatprep.subr.bf16.mxu0 0
        %3069 = vmatpush1.bf16.msra.mxu0 %v3015
        %3070 = vmatprep.subr.bf16.mxu0 0
        %3071 = vmatpush1.bf16.msra.mxu0 %v3016
        %3072 = vmatprep.subr.bf16.mxu0 0
        %3073 = vmatpush1.bf16.msra.mxu0 %v3017
        %3074 = vmatprep.subr.bf16.mxu0 0
        %3075 = vmatpush1.bf16.msra.mxu0 %v3018
        %3076 = vmatprep.subr.bf16.mxu0 0
        %3077 = vmatpush1.bf16.msra.mxu0 %v3019
        %3078 = vmatprep.subr.bf16.mxu0 0
        %3079 = vmatpush1.bf16.msra.mxu0 %v3020
        %3080 = vmatprep.subr.bf16.mxu0 0
        %3081 = vmatpush1.bf16.msra.mxu0 %v3021
        %3082 = vmatprep.subr.bf16.mxu0 0
        %3083 = vmatpush1.bf16.msra.mxu0 %v3022
        %3084 = vmatprep.subr.bf16.mxu0 0
        %3085 = vmatpush1.bf16.msra.mxu0 %v3023
        %3086 = vmatprep.subr.bf16.mxu0 0
        %3087 = vmatpush1.bf16.msra.mxu0 %v3024
        %3088 = vmatprep.subr.bf16.mxu0 0
        %3089 = vmatpush1.bf16.msra.mxu0 %v3025
        %3090 = vmatprep.mubr.bf16.mxu0 %v571
        %3091 = vmatmul.mubr.bf16.gmra.mrb[0].mxu0 %v1475
        %v3092 = vpop.f32.mrb[0].mxu0
        %v3093 = vadd.f32 0.0, %v3092
        %v3094 = vpop.f32.mrb[0].mxu0
        %v3095 = vpop.f32.mrb[0].mxu0
        %v3096 = vadd.f32 0.0, %v3095
        %v3097 = vpop.f32.mrb[0].mxu0
        %3098 = vmatprep.mubr.bf16.mxu0 %v572
        %3099 = vmatmul.mubr.bf16.gmra.mrb[0].mxu0 %v1476
        %v3100 = vpop.f32.mrb[0].mxu0
        %v3101 = vadd.f32 0.0, %v3100
        %v3102 = vpop.f32.mrb[0].mxu0
        %v3103 = vpop.f32.mrb[0].mxu0
        %v3104 = vadd.f32 0.0, %v3103
        %v3105 = vpop.f32.mrb[0].mxu0
        %3106 = vmatprep.mubr.bf16.mxu0 %v573
        %3107 = vmatmul.mubr.bf16.gmra.mrb[0].mxu0 %v1477
        %v3108 = vpop.f32.mrb[0].mxu0
        %v3109 = vadd.f32 0.0, %v3108
        %v3110 = vpop.f32.mrb[0].mxu0
        %v3111 = vpop.f32.mrb[0].mxu0
        %v3112 = vadd.f32 0.0, %v3111
        %v3113 = vpop.f32.mrb[0].mxu0
        %3114 = vmatprep.mubr.bf16.mxu0 %v574
        %3115 = vmatmul.mubr.bf16.gmra.mrb[0].mxu0 %v1478
        %v3116 = vpop.f32.mrb[0].mxu0
        %v3117 = vadd.f32 0.0, %v3116
        %v3118 = vpop.f32.mrb[0].mxu0
        %v3119 = vpop.f32.mrb[0].mxu0
        %v3120 = vadd.f32 0.0, %v3119
        %v3121 = vpop.f32.mrb[0].mxu0
        %3122 = vmatprep.mubr.bf16.mxu0 %v575
        %3123 = vmatmul.mubr.bf16.gmra.mrb[0].mxu0 %v1479
        %v3124 = vpop.f32.mrb[0].mxu0
        %v3125 = vadd.f32 0.0, %v3124
        %v3126 = vpop.f32.mrb[0].mxu0
        %v3127 = vpop.f32.mrb[0].mxu0
        %v3128 = vadd.f32 0.0, %v3127
        %v3129 = vpop.f32.mrb[0].mxu0
        %3130 = vmatprep.mubr.bf16.mxu0 %v576
        %3131 = vmatmul.mubr.bf16.gmra.mrb[0].mxu0 %v1480
        %v3132 = vpop.f32.mrb[0].mxu0
        %v3133 = vadd.f32 0.0, %v3132
        %v3134 = vpop.f32.mrb[0].mxu0
        %v3135 = vpop.f32.mrb[0].mxu0
        %v3136 = vadd.f32 0.0, %v3135
        %v3137 = vpop.f32.mrb[0].mxu0
        %3138 = vmatprep.mubr.bf16.mxu0 %v577
        %3139 = vmatmul.mubr.bf16.gmra.mrb[0].mxu0 %v1481
        %v3140 = vpop.f32.mrb[0].mxu0
        %v3141 = vadd.f32 0.0, %v3140
        %v3142 = vpop.f32.mrb[0].mxu0
        %v3143 = vpop.f32.mrb[0].mxu0
        %v3144 = vadd.f32 0.0, %v3143
        %v3145 = vpop.f32.mrb[0].mxu0
        %3146 = vmatprep.mubr.bf16.mxu0 %v578
        %3147 = vmatmul.mubr.bf16.gmra.mrb[0].mxu0 %v1482
        %v3148 = vpop.f32.mrb[0].mxu0
        %v3149 = vadd.f32 0.0, %v3148
        %v3150 = vpop.f32.mrb[0].mxu0
        %v3151 = vpop.f32.mrb[0].mxu0
        %v3152 = vadd.f32 0.0, %v3151
        %v3153 = vpop.f32.mrb[0].mxu0
        %3154 = vmatprep.mubr.bf16.mxu0 %v579
        %3155 = vmatmul.mubr.bf16.gmra.mrb[0].mxu0 %v1483
        %v3156 = vpop.f32.mrb[0].mxu0
        %v3157 = vadd.f32 0.0, %v3156
        %v3158 = vpop.f32.mrb[0].mxu0
        %v3159 = vpop.f32.mrb[0].mxu0
        %v3160 = vadd.f32 0.0, %v3159
        %v3161 = vpop.f32.mrb[0].mxu0
        %3162 = vmatprep.mubr.bf16.mxu0 %v580
        %3163 = vmatmul.mubr.bf16.gmra.mrb[0].mxu0 %v1484
        %v3164 = vpop.f32.mrb[0].mxu0
        %v3165 = vadd.f32 0.0, %v3164
        %v3166 = vpop.f32.mrb[0].mxu0
        %v3167 = vpop.f32.mrb[0].mxu0
        %v3168 = vadd.f32 0.0, %v3167
        %v3169 = vpop.f32.mrb[0].mxu0
        %3170 = vmatprep.mubr.bf16.mxu0 %v581
        %3171 = vmatmul.mubr.bf16.gmra.mrb[0].mxu0 %v1485
        %v3172 = vpop.f32.mrb[0].mxu0
        %v3173 = vadd.f32 0.0, %v3172
        %v3174 = vpop.f32.mrb[0].mxu0
        %v3175 = vpop.f32.mrb[0].mxu0
        %v3176 = vadd.f32 0.0, %v3175
        %v3177 = vpop.f32.mrb[0].mxu0
        %3178 = vmatprep.mubr.bf16.mxu0 %v582
        %3179 = vmatmul.mubr.bf16.gmra.mrb[0].mxu0 %v1486
        %v3180 = vpop.f32.mrb[0].mxu0
        %v3181 = vadd.f32 0.0, %v3180
        %v3182 = vpop.f32.mrb[0].mxu0
        %v3183 = vpop.f32.mrb[0].mxu0
        %v3184 = vadd.f32 0.0, %v3183
        %v3185 = vpop.f32.mrb[0].mxu0
        %3186 = vmatprep.mubr.bf16.mxu0 %v583
        %3187 = vmatmul.mubr.bf16.gmra.mrb[0].mxu0 %v1487
        %v3188 = vpop.f32.mrb[0].mxu0
        %v3189 = vadd.f32 0.0, %v3188
        %v3190 = vpop.f32.mrb[0].mxu0
        %v3191 = vpop.f32.mrb[0].mxu0
        %v3192 = vadd.f32 0.0, %v3191
        %v3193 = vpop.f32.mrb[0].mxu0
        %3194 = vmatprep.mubr.bf16.mxu0 %v584
        %3195 = vmatmul.mubr.bf16.gmra.mrb[0].mxu0 %v1488
        %v3196 = vpop.f32.mrb[0].mxu0
        %v3197 = vadd.f32 0.0, %v3196
        %v3198 = vpop.f32.mrb[0].mxu0
        %v3199 = vpop.f32.mrb[0].mxu0
        %v3200 = vadd.f32 0.0, %v3199
        %v3201 = vpop.f32.mrb[0].mxu0
        %3202 = vmatprep.mubr.bf16.mxu0 %v585
        %3203 = vmatmul.mubr.bf16.gmra.mrb[0].mxu0 %v1489
        %v3204 = vpop.f32.mrb[0].mxu0
        %v3205 = vadd.f32 0.0, %v3204
        %v3206 = vpop.f32.mrb[0].mxu0
        %v3207 = vpop.f32.mrb[0].mxu0
        %v3208 = vadd.f32 0.0, %v3207
        %v3209 = vpop.f32.mrb[0].mxu0
        %3210 = vmatprep.mubr.bf16.mxu0 %v586
        %3211 = vmatmul.mubr.bf16.gmra.mrb[0].mxu0 %v1490
        %v3212 = vpop.f32.mrb[0].mxu0
        %v3213 = vadd.f32 0.0, %v3212
        %v3214 = vpop.f32.mrb[0].mxu0
        %v3215 = vpop.f32.mrb[0].mxu0
        %v3216 = vadd.f32 0.0, %v3215
        %v3217 = vpop.f32.mrb[0].mxu0
        %3218 = vdwg.mxu0
        %3219 = vmatprep.subr.bf16.mxu0 0
        %3220 = vmatpush1.bf16.msra.mxu0 %v3026
        %3221 = vmatprep.subr.bf16.mxu0 0
        %3222 = vmatpush1.bf16.msra.mxu0 %v3027
        %3223 = vmatprep.subr.bf16.mxu0 0
        %3224 = vmatpush1.bf16.msra.mxu0 %v3028
        %3225 = vmatprep.subr.bf16.mxu0 0
        %3226 = vmatpush1.bf16.msra.mxu0 %v3029
        %3227 = vmatprep.subr.bf16.mxu0 0
        %3228 = vmatpush1.bf16.msra.mxu0 %v3030
        %3229 = vmatprep.subr.bf16.mxu0 0
        %3230 = vmatpush1.bf16.msra.mxu0 %v3031
        %3231 = vmatprep.subr.bf16.mxu0 0
        %3232 = vmatpush1.bf16.msra.mxu0 %v3032
        %3233 = vmatprep.subr.bf16.mxu0 0
        %3234 = vmatpush1.bf16.msra.mxu0 %v3033
        %3235 = vmatprep.subr.bf16.mxu0 0
        %3236 = vmatpush1.bf16.msra.mxu0 0
        %3237 = vmatprep.subr.bf16.mxu0 0
        %3238 = vmatpush1.bf16.msra.mxu0 0
        %3239 = vmatprep.subr.bf16.mxu0 0
        %3240 = vmatpush1.bf16.msra.mxu0 0
        %3241 = vmatprep.subr.bf16.mxu0 0
        %3242 = vmatpush1.bf16.msra.mxu0 0
        %3243 = vmatprep.subr.bf16.mxu0 0
        %3244 = vmatpush1.bf16.msra.mxu0 0
        %3245 = vmatprep.subr.bf16.mxu0 0
        %3246 = vmatpush1.bf16.msra.mxu0 0
        %3247 = vmatprep.subr.bf16.mxu0 0
        %3248 = vmatpush1.bf16.msra.mxu0 0
        %3249 = vmatprep.subr.bf16.mxu0 0
        %3250 = vmatpush1.bf16.msra.mxu0 0
        %3251 = vmatprep.mubr.bf16.mxu0 0
        %3252 = vmatmul.mubr.bf16.gmra.mrb[0].mxu0 %v1820
        %v3253 = vpop.f32.mrb[0].mxu0
        %v3254 = vadd.f32 %v3093, %v3253
        %v3255 = vpop.f32.mrb[0].mxu0
        %v3256 = vpop.f32.mrb[0].mxu0
        %v3257 = vadd.f32 %v3096, %v3256
        %v3258 = vpop.f32.mrb[0].mxu0
        %3259 = vmatprep.mubr.bf16.mxu0 0
        %3260 = vmatmul.mubr.bf16.gmra.mrb[0].mxu0 %v1821
        %v3261 = vpop.f32.mrb[0].mxu0
        %v3262 = vadd.f32 %v3101, %v3261
        %v3263 = vpop.f32.mrb[0].mxu0
        %v3264 = vpop.f32.mrb[0].mxu0
        %v3265 = vadd.f32 %v3104, %v3264
        %v3266 = vpop.f32.mrb[0].mxu0
        %3267 = vmatprep.mubr.bf16.mxu0 0
        %3268 = vmatmul.mubr.bf16.gmra.mrb[0].mxu0 %v1822
        %v3269 = vpop.f32.mrb[0].mxu0
        %v3270 = vadd.f32 %v3109, %v3269
        %v3271 = vpop.f32.mrb[0].mxu0
        %v3272 = vpop.f32.mrb[0].mxu0
        %v3273 = vadd.f32 %v3112, %v3272
        %v3274 = vpop.f32.mrb[0].mxu0
        %3275 = vmatprep.mubr.bf16.mxu0 0
        %3276 = vmatmul.mubr.bf16.gmra.mrb[0].mxu0 %v1823
        %v3277 = vpop.f32.mrb[0].mxu0
        %v3278 = vadd.f32 %v3117, %v3277
        %v3279 = vpop.f32.mrb[0].mxu0
        %v3280 = vpop.f32.mrb[0].mxu0
        %v3281 = vadd.f32 %v3120, %v3280
        %v3282 = vpop.f32.mrb[0].mxu0
        %3283 = vmatprep.mubr.bf16.mxu0 0
        %3284 = vmatmul.mubr.bf16.gmra.mrb[0].mxu0 %v1824
        %v3285 = vpop.f32.mrb[0].mxu0
        %v3286 = vadd.f32 %v3125, %v3285
        %v3287 = vpop.f32.mrb[0].mxu0
        %v3288 = vpop.f32.mrb[0].mxu0
        %v3289 = vadd.f32 %v3128, %v3288
        %v3290 = vpop.f32.mrb[0].mxu0
        %3291 = vmatprep.mubr.bf16.mxu0 0
        %3292 = vmatmul.mubr.bf16.gmra.mrb[0].mxu0 %v1825
        %v3293 = vpop.f32.mrb[0].mxu0
        %v3294 = vadd.f32 %v3133, %v3293
        %v3295 = vpop.f32.mrb[0].mxu0
        %v3296 = vpop.f32.mrb[0].mxu0
        %v3297 = vadd.f32 %v3136, %v3296
        %v3298 = vpop.f32.mrb[0].mxu0
        %3299 = vmatprep.mubr.bf16.mxu0 0
        %3300 = vmatmul.mubr.bf16.gmra.mrb[0].mxu0 %v1826
        %v3301 = vpop.f32.mrb[0].mxu0
        %v3302 = vadd.f32 %v3141, %v3301
        %v3303 = vpop.f32.mrb[0].mxu0
        %v3304 = vpop.f32.mrb[0].mxu0
        %v3305 = vadd.f32 %v3144, %v3304
        %v3306 = vpop.f32.mrb[0].mxu0
        %3307 = vmatprep.mubr.bf16.mxu0 0
        %3308 = vmatmul.mubr.bf16.gmra.mrb[0].mxu0 %v1827
        %v3309 = vpop.f32.mrb[0].mxu0
        %v3310 = vadd.f32 %v3149, %v3309
        %v3311 = vpop.f32.mrb[0].mxu0
        %v3312 = vpop.f32.mrb[0].mxu0
        %v3313 = vadd.f32 %v3152, %v3312
        %v3314 = vpop.f32.mrb[0].mxu0
        %3315 = vmatprep.mubr.bf16.mxu0 0
        %3316 = vmatmul.mubr.bf16.gmra.mrb[0].mxu0 %v1828
        %v3317 = vpop.f32.mrb[0].mxu0
        %v3318 = vadd.f32 %v3157, %v3317
        %v3319 = vpop.f32.mrb[0].mxu0
        %v3320 = vpop.f32.mrb[0].mxu0
        %v3321 = vadd.f32 %v3160, %v3320
        %v3322 = vpop.f32.mrb[0].mxu0
        %3323 = vmatprep.mubr.bf16.mxu0 0
        %3324 = vmatmul.mubr.bf16.gmra.mrb[0].mxu0 %v1829
        %v3325 = vpop.f32.mrb[0].mxu0
        %v3326 = vadd.f32 %v3165, %v3325
        %v3327 = vpop.f32.mrb[0].mxu0
        %v3328 = vpop.f32.mrb[0].mxu0
        %v3329 = vadd.f32 %v3168, %v3328
        %v3330 = vpop.f32.mrb[0].mxu0
        %3331 = vmatprep.mubr.bf16.mxu0 0
        %3332 = vmatmul.mubr.bf16.gmra.mrb[0].mxu0 %v1830
        %v3333 = vpop.f32.mrb[0].mxu0
        %v3334 = vadd.f32 %v3173, %v3333
        %v3335 = vpop.f32.mrb[0].mxu0
        %v3336 = vpop.f32.mrb[0].mxu0
        %v3337 = vadd.f32 %v3176, %v3336
        %v3338 = vpop.f32.mrb[0].mxu0
        %3339 = vmatprep.mubr.bf16.mxu0 0
        %3340 = vmatmul.mubr.bf16.gmra.mrb[0].mxu0 %v1831
        %v3341 = vpop.f32.mrb[0].mxu0
        %v3342 = vadd.f32 %v3181, %v3341
        %v3343 = vpop.f32.mrb[0].mxu0
        %v3344 = vpop.f32.mrb[0].mxu0
        %v3345 = vadd.f32 %v3184, %v3344
        %v3346 = vpop.f32.mrb[0].mxu0
        %3347 = vmatprep.mubr.bf16.mxu0 0
        %3348 = vmatmul.mubr.bf16.gmra.mrb[0].mxu0 %v1832
        %v3349 = vpop.f32.mrb[0].mxu0
        %v3350 = vadd.f32 %v3189, %v3349
        %v3351 = vpop.f32.mrb[0].mxu0
        %v3352 = vpop.f32.mrb[0].mxu0
        %v3353 = vadd.f32 %v3192, %v3352
        %v3354 = vpop.f32.mrb[0].mxu0
        %3355 = vmatprep.mubr.bf16.mxu0 0
        %3356 = vmatmul.mubr.bf16.gmra.mrb[0].mxu0 %v1833
        %v3357 = vpop.f32.mrb[0].mxu0
        %v3358 = vadd.f32 %v3197, %v3357
        %v3359 = vpop.f32.mrb[0].mxu0
        %v3360 = vpop.f32.mrb[0].mxu0
        %v3361 = vadd.f32 %v3200, %v3360
        %v3362 = vpop.f32.mrb[0].mxu0
        %3363 = vmatprep.mubr.bf16.mxu0 0
        %3364 = vmatmul.mubr.bf16.gmra.mrb[0].mxu0 %v1834
        %v3365 = vpop.f32.mrb[0].mxu0
        %v3366 = vadd.f32 %v3205, %v3365
        %v3367 = vpop.f32.mrb[0].mxu0
        %v3368 = vpop.f32.mrb[0].mxu0
        %v3369 = vadd.f32 %v3208, %v3368
        %v3370 = vpop.f32.mrb[0].mxu0
        %3371 = vmatprep.mubr.bf16.mxu0 0
        %3372 = vmatmul.mubr.bf16.gmra.mrb[0].mxu0 %v1835
        %v3373 = vpop.f32.mrb[0].mxu0
        %v3374 = vadd.f32 %v3213, %v3373
        %v3375 = vpop.f32.mrb[0].mxu0
        %v3376 = vpop.f32.mrb[0].mxu0
        %v3377 = vadd.f32 %v3216, %v3376
        %v3378 = vpop.f32.mrb[0].mxu0
        %3379 = vdwg.mxu0
        %v3380 = vadd.f32 %v2739, %v3254
        %v3381 = vadd.f32 %v2742, %v3257
        %v3382 = vadd.f32 %v2747, %v3262
        %v3383 = vadd.f32 %v2750, %v3265
        %v3384 = vadd.f32 %v2755, %v3270
        %v3385 = vadd.f32 %v2758, %v3273
        %v3386 = vadd.f32 %v2763, %v3278
        %v3387 = vadd.f32 %v2766, %v3281
        %v3388 = vadd.f32 %v2771, %v3286
        %v3389 = vadd.f32 %v2774, %v3289
        %v3390 = vadd.f32 %v2779, %v3294
        %v3391 = vadd.f32 %v2782, %v3297
        %v3392 = vadd.f32 %v2787, %v3302
        %v3393 = vadd.f32 %v2790, %v3305
        %v3394 = vadd.f32 %v2795, %v3310
        %v3395 = vadd.f32 %v2798, %v3313
        %v3396 = vadd.f32 %v2803, %v3318
        %v3397 = vadd.f32 %v2806, %v3321
        %v3398 = vadd.f32 %v2811, %v3326
        %v3399 = vadd.f32 %v2814, %v3329
        %v3400 = vadd.f32 %v2819, %v3334
        %v3401 = vadd.f32 %v2822, %v3337
        %v3402 = vadd.f32 %v2827, %v3342
        %v3403 = vadd.f32 %v2830, %v3345
        %v3404 = vadd.f32 %v2835, %v3350
        %v3405 = vadd.f32 %v2838, %v3353
        %v3406 = vadd.f32 %v2843, %v3358
        %v3407 = vadd.f32 %v2846, %v3361
        %v3408 = vadd.f32 %v2851, %v3366
        %v3409 = vadd.f32 %v2854, %v3369
        %v3410 = vadd.f32 %v2859, %v3374
        %v3411 = vadd.f32 %v2862, %v3377
        %v3412 = vpack.c.bf16 %v3381, %v3380
        %v3413 = vpack.c.bf16 %v3383, %v3382
        %v3414 = vpack.c.bf16 %v3385, %v3384
        %v3415 = vpack.c.bf16 %v3387, %v3386
        %v3416 = vpack.c.bf16 %v3389, %v3388
        %v3417 = vpack.c.bf16 %v3391, %v3390
        %v3418 = vpack.c.bf16 %v3393, %v3392
        %v3419 = vpack.c.bf16 %v3395, %v3394
        %v3420 = vpack.c.bf16 %v3397, %v3396
        %v3421 = vpack.c.bf16 %v3399, %v3398
        %v3422 = vpack.c.bf16 %v3401, %v3400
        %v3423 = vpack.c.bf16 %v3403, %v3402
        %v3424 = vpack.c.bf16 %v3405, %v3404
        %v3425 = vpack.c.bf16 %v3407, %v3406
        %v3426 = vpack.c.bf16 %v3409, %v3408
        %v3427 = vpack.c.bf16 %v3411, %v3410
        %v3444 = vunpack.c.l.b16 %v3412
        %v3445 = vunpack.c.h.b16 %v3412
        %v3446 = vunpack.c.l.b16 %v3413
        %v3447 = vunpack.c.h.b16 %v3413
        %v3448 = vunpack.c.l.b16 %v3414
        %v3449 = vunpack.c.h.b16 %v3414
        %v3450 = vunpack.c.l.b16 %v3415
        %v3451 = vunpack.c.h.b16 %v3415
        %v3452 = vunpack.c.l.b16 %v3416
        %v3453 = vunpack.c.h.b16 %v3416
        %v3454 = vunpack.c.l.b16 %v3417
        %v3455 = vunpack.c.h.b16 %v3417
        %v3456 = vunpack.c.l.b16 %v3418
        %v3457 = vunpack.c.h.b16 %v3418
        %v3458 = vunpack.c.l.b16 %v3419
        %v3459 = vunpack.c.h.b16 %v3419
        %v3460 = vunpack.c.l.b16 %v3420
        %v3461 = vunpack.c.h.b16 %v3420
        %v3462 = vunpack.c.l.b16 %v3421
        %v3463 = vunpack.c.h.b16 %v3421
        %v3464 = vunpack.c.l.b16 %v3422
        %v3465 = vunpack.c.h.b16 %v3422
        %v3466 = vunpack.c.l.b16 %v3423
        %v3467 = vunpack.c.h.b16 %v3423
        %v3468 = vunpack.c.l.b16 %v3424
        %v3469 = vunpack.c.h.b16 %v3424
        %v3470 = vunpack.c.l.b16 %v3425
        %v3471 = vunpack.c.h.b16 %v3425
        %v3472 = vunpack.c.l.b16 %v3426
        %v3473 = vunpack.c.h.b16 %v3426
        %v3474 = vunpack.c.l.b16 %v3427
        %v3475 = vunpack.c.h.b16 %v3427
        %v3476 = vpack.c.b16 %v3444, %v3444
        %v3477 = vpack.c.b16 %v3445, %v3445
        %v3478 = vpack.c.b16 %v3446, %v3446
        %v3479 = vpack.c.b16 %v3447, %v3447
        %v3480 = vpack.c.b16 %v3448, %v3448
        %v3481 = vpack.c.b16 %v3449, %v3449
        %v3482 = vpack.c.b16 %v3450, %v3450
        %v3483 = vpack.c.b16 %v3451, %v3451
        %v3484 = vpack.c.b16 %v3452, %v3452
        %v3485 = vpack.c.b16 %v3453, %v3453
        %v3486 = vpack.c.b16 %v3454, %v3454
        %v3487 = vpack.c.b16 %v3455, %v3455
        %v3488 = vpack.c.b16 %v3456, %v3456
        %v3489 = vpack.c.b16 %v3457, %v3457
        %v3490 = vpack.c.b16 %v3458, %v3458
        %v3491 = vpack.c.b16 %v3459, %v3459
        %v3492 = vpack.c.b16 %v3460, %v3460
        %v3493 = vpack.c.b16 %v3461, %v3461
        %v3494 = vpack.c.b16 %v3462, %v3462
        %v3495 = vpack.c.b16 %v3463, %v3463
        %v3496 = vpack.c.b16 %v3464, %v3464
        %v3497 = vpack.c.b16 %v3465, %v3465
        %v3498 = vpack.c.b16 %v3466, %v3466
        %v3499 = vpack.c.b16 %v3467, %v3467
        %v3500 = vpack.c.b16 %v3468, %v3468
        %v3501 = vpack.c.b16 %v3469, %v3469
        %v3502 = vpack.c.b16 %v3470, %v3470
        %v3503 = vpack.c.b16 %v3471, %v3471
        %v3504 = vpack.c.b16 %v3472, %v3472
        %v3505 = vpack.c.b16 %v3473, %v3473
        %v3506 = vpack.c.b16 %v3474, %v3474
        %v3507 = vpack.c.b16 %v3475, %v3475
        %3540 = vst [vmem:[%s324] sm:$0xf] %v3476
        %3541 = vst [vmem:[%s324 + $0x4] sm:$0xf] %v3477
        %3542 = vst [vmem:[%s324 + $0x8] sm:$0xf] %v3478
        %3543 = vst [vmem:[%s324 + $0xc] sm:$0xf] %v3479
        %3544 = vst [vmem:[%s324 + $0x10] sm:$0xf] %v3480
        %3545 = vst [vmem:[%s324 + $0x14] sm:$0xf] %v3481
        %3546 = vst [vmem:[%s324 + $0x18] sm:$0xf] %v3482
        %3547 = vst [vmem:[%s324 + $0x1c] sm:$0xf] %v3483
        %3548 = vst [vmem:[%s324 + $0x20] sm:$0xf] %v3484
        %3549 = vst [vmem:[%s324 + $0x24] sm:$0xf] %v3485
        %3550 = vst [vmem:[%s324 + $0x28] sm:$0xf] %v3486
        %3551 = vst [vmem:[%s324 + $0x2c] sm:$0xf] %v3487
        %3552 = vst [vmem:[%s324 + $0x30] sm:$0xf] %v3488
        %3553 = vst [vmem:[%s324 + $0x34] sm:$0xf] %v3489
        %3554 = vst [vmem:[%s324 + $0x38] sm:$0xf] %v3490
        %3555 = vst [vmem:[%s324 + $0x3c] sm:$0xf] %v3491
        %3556 = vst [vmem:[%s324 + $0x40] sm:$0xf] %v3492
        %3557 = vst [vmem:[%s324 + $0x44] sm:$0xf] %v3493
        %3558 = vst [vmem:[%s324 + $0x48] sm:$0xf] %v3494
        %3559 = vst [vmem:[%s324 + $0x4c] sm:$0xf] %v3495
        %3560 = vst [vmem:[%s324 + $0x50] sm:$0xf] %v3496
        %3561 = vst [vmem:[%s324 + $0x54] sm:$0xf] %v3497
        %3562 = vst [vmem:[%s324 + $0x58] sm:$0xf] %v3498
        %3563 = vst [vmem:[%s324 + $0x5c] sm:$0xf] %v3499
        %3564 = vst [vmem:[%s324 + $0x60] sm:$0xf] %v3500
        %3565 = vst [vmem:[%s324 + $0x64] sm:$0xf] %v3501
        %3566 = vst [vmem:[%s324 + $0x68] sm:$0xf] %v3502
        %3567 = vst [vmem:[%s324 + $0x6c] sm:$0xf] %v3503
        %3568 = vst [vmem:[%s324 + $0x70] sm:$0xf] %v3504
        %3569 = vst [vmem:[%s324 + $0x74] sm:$0xf] %v3505
        %3570 = vst [vmem:[%s324 + $0x78] sm:$0xf] %v3506
        %3571 = vst [vmem:[%s324 + $0x7c] sm:$0xf] %v3507
        %v3572 = vld [vmem:[%s330] sm:$0x1]
        %v3573 = vadd.f32 %v3380, %v3381
        %v3574 = vadd.f32 %v3573, %v3382
        %v3575 = vadd.f32 %v3574, %v3383
        %v3576 = vadd.f32 %v3575, %v3384
        %v3577 = vadd.f32 %v3576, %v3385
        %v3578 = vadd.f32 %v3577, %v3386
        %v3579 = vadd.f32 %v3578, %v3387
        %v3580 = vadd.f32 %v3579, %v3388
        %v3581 = vadd.f32 %v3580, %v3389
        %v3582 = vadd.f32 %v3581, %v3390
        %v3583 = vadd.f32 %v3582, %v3391
        %v3584 = vadd.f32 %v3583, %v3392
        %v3585 = vadd.f32 %v3584, %v3393
        %v3586 = vadd.f32 %v3585, %v3394
        %v3587 = vadd.f32 %v3586, %v3395
        %v3588 = vadd.f32 %v3587, %v3396
        %v3589 = vadd.f32 %v3588, %v3397
        %v3590 = vadd.f32 %v3589, %v3398
        %v3591 = vadd.f32 %v3590, %v3399
        %v3592 = vadd.f32 %v3591, %v3400
        %v3593 = vadd.f32 %v3592, %v3401
        %v3594 = vadd.f32 %v3593, %v3402
        %v3595 = vadd.f32 %v3594, %v3403
        %v3596 = vadd.f32 %v3595, %v3404
        %v3597 = vadd.f32 %v3596, %v3405
        %v3598 = vadd.f32 %v3597, %v3406
        %v3599 = vadd.f32 %v3598, %v3407
        %v3600 = vadd.f32 %v3599, %v3408
        %v3601 = vadd.f32 %v3600, %v3409
        %v3602 = vadd.f32 %v3601, %v3410
        %v3603 = vadd.f32 %v3602, %v3411
        %v3604 = vrot.slane %v3603, 4
        %v3605 = vadd.f32 %v3603, %v3604
        %v3606 = vrot.slane %v3605, 2
        %v3607 = vadd.f32 %v3605, %v3606
        %v3608 = vrot.slane %v3607, 1
        %v3609 = vadd.f32 %v3607, %v3608
        %v3610 = vadd.f32 %v3572, %v3609
        %3611 = vst [vmem:[%s330] sm:$0x1] %v3610
        %v3612 = vld [vmem:[%s336] sm:$0x1]
        %v3613 = vmul.f32 %v3380, %v3380
        %v3614 = vmul.f32 %v3381, %v3381
        %v3615 = vmul.f32 %v3382, %v3382
        %v3616 = vmul.f32 %v3383, %v3383
        %v3617 = vmul.f32 %v3384, %v3384
        %v3618 = vmul.f32 %v3385, %v3385
        %v3619 = vmul.f32 %v3386, %v3386
        %v3620 = vmul.f32 %v3387, %v3387
        %v3621 = vmul.f32 %v3388, %v3388
        %v3622 = vmul.f32 %v3389, %v3389
        %v3623 = vmul.f32 %v3390, %v3390
        %v3624 = vmul.f32 %v3391, %v3391
        %v3625 = vmul.f32 %v3392, %v3392
        %v3626 = vmul.f32 %v3393, %v3393
        %v3627 = vmul.f32 %v3394, %v3394
        %v3628 = vmul.f32 %v3395, %v3395
        %v3629 = vmul.f32 %v3396, %v3396
        %v3630 = vmul.f32 %v3397, %v3397
        %v3631 = vmul.f32 %v3398, %v3398
        %v3632 = vmul.f32 %v3399, %v3399
        %v3633 = vmul.f32 %v3400, %v3400
        %v3634 = vmul.f32 %v3401, %v3401
        %v3635 = vmul.f32 %v3402, %v3402
        %v3636 = vmul.f32 %v3403, %v3403
        %v3637 = vmul.f32 %v3404, %v3404
        %v3638 = vmul.f32 %v3405, %v3405
        %v3639 = vmul.f32 %v3406, %v3406
        %v3640 = vmul.f32 %v3407, %v3407
        %v3641 = vmul.f32 %v3408, %v3408
        %v3642 = vmul.f32 %v3409, %v3409
        %v3643 = vmul.f32 %v3410, %v3410
        %v3644 = vmul.f32 %v3411, %v3411
        %v3645 = vadd.f32 %v3613, %v3614
        %v3646 = vadd.f32 %v3645, %v3615
        %v3647 = vadd.f32 %v3646, %v3616
        %v3648 = vadd.f32 %v3647, %v3617
        %v3649 = vadd.f32 %v3648, %v3618
        %v3650 = vadd.f32 %v3649, %v3619
        %v3651 = vadd.f32 %v3650, %v3620
        %v3652 = vadd.f32 %v3651, %v3621
        %v3653 = vadd.f32 %v3652, %v3622
        %v3654 = vadd.f32 %v3653, %v3623
        %v3655 = vadd.f32 %v3654, %v3624
        %v3656 = vadd.f32 %v3655, %v3625
        %v3657 = vadd.f32 %v3656, %v3626
        %v3658 = vadd.f32 %v3657, %v3627
        %v3659 = vadd.f32 %v3658, %v3628
        %v3660 = vadd.f32 %v3659, %v3629
        %v3661 = vadd.f32 %v3660, %v3630
        %v3662 = vadd.f32 %v3661, %v3631
        %v3663 = vadd.f32 %v3662, %v3632
        %v3664 = vadd.f32 %v3663, %v3633
        %v3665 = vadd.f32 %v3664, %v3634
        %v3666 = vadd.f32 %v3665, %v3635
        %v3667 = vadd.f32 %v3666, %v3636
        %v3668 = vadd.f32 %v3667, %v3637
        %v3669 = vadd.f32 %v3668, %v3638
        %v3670 = vadd.f32 %v3669, %v3639
        %v3671 = vadd.f32 %v3670, %v3640
        %v3672 = vadd.f32 %v3671, %v3641
        %v3673 = vadd.f32 %v3672, %v3642
        %v3674 = vadd.f32 %v3673, %v3643
        %v3675 = vadd.f32 %v3674, %v3644
        %v3676 = vrot.slane %v3675, 4
        %v3677 = vadd.f32 %v3675, %v3676
        %v3678 = vrot.slane %v3677, 2
        %v3679 = vadd.f32 %v3677, %v3678
        %v3680 = vrot.slane %v3679, 1
        %v3681 = vadd.f32 %v3679, %v3680
        %v3682 = vadd.f32 %v3612, %v3681
        %3683 = vst [vmem:[%s336] sm:$0x1] %v3682
        %s3684 = sand.u32 %s137, 1
        %s3685 = scalar_lea.sflag [#allocation4], %s3684
        %s3686 = sand.u32 %s137, 1
        %s3687 = smul.addr %s3686, 128
        %s3688 = scalar_lea.vmem [#allocation9], %s3687
        %s3689 = sand.u32 %s26, 1
        %s3690 = scalar_lea.sflag [#allocation11], %s3689
        %s3691 = sand.u32 %s163, 1
        %s3692 = scalar_lea.vmem [#allocation10], %s3691
        %s3693 = sand.u32 %s26, 1
        %s3694 = scalar_lea.sflag [#allocation11], %s3693
        %s3695 = sand.u32 %s189, 1
        %s3696 = scalar_lea.vmem [#allocation12], %s3695
        // Predicated region
        $region57: #{double_conv.3} parent=35 // pred_check
          %p3697 = pneg %p147
        $region58: #{double_conv.3} parent=35 // pred_check_branch
          %3699 = sbr.rel (%p3697) target = $region60
        $region59: #{double_conv.3} parent=35 // pred_region
          %s3700 = smul.u32 16, %s31
          %s3702 = ssub.s32 2048, 2048
          %3703 = vsyncadd %s3685, %s3702
          %s3704 = smul.addr %s3700, 2
          %s3705 = smul.addr %s30, 32
          %s3706 = sadd.s32 %s3704, %s3705
          %s3707 = smul.addr %s3706, 64
          %s3708 = scalar_lea.hbm %s4, %s3707
          %s3709 = sshll.u32 %s3688, 4
          %s3710 = int_to_ptr.vmem [resolvable:$true] %s3709
          %3715 = dma.vmem_to_hbm [thread:$0]  %s3710, 2048, %s3708, %s3685, 64, 64, 4
        $region60: #{double_conv.3} parent=35 // pred_fallthru
          _
        // Predicated region
        $region61: #{double_conv.3} parent=35 // pred_check
          %p3716 = pneg %p173
        $region62: #{double_conv.3} parent=35 // pred_check_branch
          %3718 = sbr.rel (%p3716) target = $region64
        $region63: #{double_conv.3} parent=35 // pred_region
          %s3720 = ssub.s32 16, 16
          %3721 = vsyncadd %s3690, %s3720
          %s3722 = smul.addr %s30, 16
          %s3723 = scalar_lea.hbm %s5, %s3722
          %s3725 = sshll.u32 %s3692, 4
          %s3726 = int_to_ptr.vmem [resolvable:$true] %s3725
          %3728 = dma.vmem_to_hbm [thread:$0]  %s3726, 16, %s3723, %s3690
        $region64: #{double_conv.3} parent=35 // pred_fallthru
          _
        // Predicated region
        $region65: #{double_conv.3} parent=35 // pred_check
          %p3729 = pneg %p199
        $region66: #{double_conv.3} parent=35 // pred_check_branch
          %3731 = sbr.rel (%p3729) target = $region68
        $region67: #{double_conv.3} parent=35 // pred_region
          %s3733 = ssub.s32 16, 16
          %3734 = vsyncadd %s3694, %s3733
          %s3735 = smul.addr %s30, 16
          %s3736 = scalar_lea.hbm %s6, %s3735
          %s3738 = sshll.u32 %s3696, 4
          %s3739 = int_to_ptr.vmem [resolvable:$true] %s3738
          %3741 = dma.vmem_to_hbm [thread:$0]  %s3739, 16, %s3736, %s3694
        $region68: #{double_conv.3} parent=35 // pred_fallthru
          _
      $region36: #{double_conv.3} parent=5 // pred_fallthru
        _
      %p3742 = scmp.le.s32.totalorder 2, %s21
      // Predicated region
      $region69: #{double_conv.3} parent=5 // pred_check
        %p3743 = pneg %p3742
      $region70: #{double_conv.3} parent=5 // pred_check_branch
        %3745 = sbr.rel (%p3743) target = $region72
      $region71: #{double_conv.3} parent=5 // pred_region
        %s3746 = ssub.s32 %s21, 2
        // Predicated region
        $region73: #{double_conv.3} parent=71 // pred_check
          %p3747 = pneg %p153
        $region74: #{double_conv.3} parent=71 // pred_check_branch
          %3749 = sbr.rel (%p3747) target = $region76
        $region75: #{double_conv.3} parent=71 // pred_region
          %s3750 = sand.u32 %s138, 1
          %s3751 = scalar_lea.sflag [#allocation4], %s3750
          %s3752 = sand.u32 %s138, 1
          %s3753 = smul.addr %s3752, 128
          %s3754 = scalar_lea.vmem [#allocation9], %s3753
          %3755 = dma.done %s3751, 2048
        $region76: #{double_conv.3} parent=71 // pred_fallthru
          _
        // Predicated region
        $region77: #{double_conv.3} parent=71 // pred_check
          %p3756 = pneg %p179
        $region78: #{double_conv.3} parent=71 // pred_check_branch
          %3758 = sbr.rel (%p3756) target = $region80
        $region79: #{double_conv.3} parent=71 // pred_region
          %s3759 = sand.u32 %s27, 1
          %s3760 = scalar_lea.sflag [#allocation11], %s3759
          %s3761 = sand.u32 %s164, 1
          %s3762 = scalar_lea.vmem [#allocation10], %s3761
          %3763 = dma.done %s3760, 16
        $region80: #{double_conv.3} parent=71 // pred_fallthru
          _
        // Predicated region
        $region81: #{double_conv.3} parent=71 // pred_check
          %p3764 = pneg %p205
        $region82: #{double_conv.3} parent=71 // pred_check_branch
          %3766 = sbr.rel (%p3764) target = $region84
        $region83: #{double_conv.3} parent=71 // pred_region
          %s3767 = sand.u32 %s27, 1
          %s3768 = scalar_lea.sflag [#allocation11], %s3767
          %s3769 = sand.u32 %s190, 1
          %s3770 = scalar_lea.vmem [#allocation12], %s3769
          %3771 = dma.done %s3768, 16
        $region84: #{double_conv.3} parent=71 // pred_fallthru
          _
      $region72: #{double_conv.3} parent=5 // pred_fallthru
        _
    $region6: #{double_conv.3} parent=1 // loop_footer
      %s25 = sadd.s32 1, %s21
    $region7: #{double_conv.3} parent=1 // loop_footer_branch
      %20 = sbr.rel target = $region3
    $region8: #{double_conv.3} parent=1 // loop_exit
      _
    %3772 = vsyncpa [#allocation3], 1
    %s3773 = scalar_lea.sflag [#allocation3], 1
    %3774 = vsyncpa %s3773, 1
    %3775 = vsyncpa [#allocation6], 1
    %3776 = vsyncpa [#allocation4], 1
    %s3777 = scalar_lea.sflag [#allocation4], 1
    %3778 = vsyncpa %s3777, 1
    %3779 = vsyncpa [#allocation11], 1
    %s3780 = scalar_lea.sflag [#allocation11], 1
    %3781 = vsyncpa %s3780, 1

</llo_original>
